<compile_context>
chip_gen: v7x
topology: tpu7x:2x2x1
jax: 0.10.0
libtpu: 0.0.40
codegen_flags: <defaults>
</compile_context>

<pallas_src>
import math
import functools

import jax
import jax.numpy as jnp
from jax.experimental import pallas as pl
from jax.experimental.pallas import tpu as pltpu

LANE = 128      # vreg lane width
SUBLANE = 8     # f32 sublane count


def _round_up(x, m):
    return ((x + m - 1) // m) * m


# ---------------------------------------------------------------------------
# Bidirectional GRU (the RNNEncoder building block), interleaved fwd+bwd chains.
# ---------------------------------------------------------------------------
def _bigru_kernel(gi_f_ref, gi_b_ref, whh_f_ref, whh_b_ref, bhh_f_ref,
                  bhh_b_ref, len_ref,
                  out_f_ref, out_b_ref, lastf_ref, lastb_ref,
                  hf_ref, hb_ref):
    """One grid step == one (batch-block, time-chunk).

    gi_*_ref : (T_BLK, NB, 3*Hp) bf16   precomputed x@W_ih^T + b_ih (time-major);
                                        the bwd spec already selects the mirrored chunk
    whh_*    : (Hp, 3*Hp) bf16          recurrent weights (resident)
    bhh_*    : (1, 3*Hp)  f32           recurrent bias
    len_ref  : (NB, 1)    int32         per-sequence valid lengths
    out_*    : (T_BLK, NB, Hp) f32      time-major outputs for this chunk
    last*    : (NB, Hp)  f32            final hidden state per direction
    h*_ref   : (NB, Hp)  f32 scratch    hidden carried across time chunks
    """
    tb = pl.program_id(1)
    nb = pl.num_programs(1)
    t_blk = out_f_ref.shape[0]
    hp = hf_ref.shape[1]

    @pl.when(tb == 0)
    def _():
        hf_ref[...] = jnp.zeros_like(hf_ref)
        hb_ref[...] = jnp.zeros_like(hb_ref)

    lens = len_ref[...]                      # (NB, 1) int32
    whh_f = whh_f_ref[...]                   # (Hp, 3Hp) bf16
    whh_b = whh_b_ref[...]
    bhh_f = bhh_f_ref[...]                   # (1, 3Hp) f32
    bhh_b = bhh_b_ref[...]

    base_f = tb * t_blk                      # global time origin of the fwd chunk
    base_b = (nb - 1 - tb) * t_blk           # global time origin of the bwd chunk

    h_f = hf_ref[...]
    h_b = hb_ref[...]

    def cell(gi_t, h_prev, whh, bhh):
        gh = jnp.dot(h_prev.astype(jnp.bfloat16), whh,
                     preferred_element_type=jnp.float32) + bhh
        r = jax.nn.sigmoid(gi_t[:, 0:hp] + gh[:, 0:hp])
        z = jax.nn.sigmoid(gi_t[:, hp:2 * hp] + gh[:, hp:2 * hp])
        n = jnp.tanh(gi_t[:, 2 * hp:3 * hp] + r * gh[:, 2 * hp:3 * hp])
        return (1.0 - z) * n + z * h_prev

    # Static Python loop: all indices are compile-time constants, every gi load and
    # out store is a full aligned (NB, Hp)/(NB, 3Hp) tile.  The two direction chains
    # are independent, so their matmul/EUP latency overlaps on a single TensorCore.
    for j in range(t_blk):
        p = t_blk - 1 - j                                       # mirrored index (static)
        cand_f = cell(gi_f_ref[j].astype(jnp.float32), h_f, whh_f, bhh_f)
        cand_b = cell(gi_b_ref[p].astype(jnp.float32), h_b, whh_b, bhh_b)
        valid_f = (base_f + j) < lens                           # (NB,1) broadcast
        valid_b = (base_b + p) < lens
        h_f = jnp.where(valid_f, cand_f, h_f)                   # freeze past true length
        h_b = jnp.where(valid_b, cand_b, h_b)
        out_f_ref[j] = jnp.where(valid_f, h_f, 0.0)             # dense leading-axis store
        out_b_ref[p] = jnp.where(valid_b, h_b, 0.0)

    hf_ref[...] = h_f
    hb_ref[...] = h_b

    @pl.when(tb == nb - 1)
    def _():
        lastf_ref[...] = h_f
        lastb_ref[...] = h_b


def bidirectional_gru(x, lengths, params, *, t_blk_max=16, n_blk_max=128):
    """RNNEncoder.forward equivalent: bidirectional 1-layer GRU, batch_first.

    x       : (N, T, I) float32
    lengths : (N,) int valid lengths (pack_padded_sequence semantics via masking)
    params  : PyTorch nn.GRU layout: w_ih_f (3H, I), w_hh_f (3H, H), b_ih_f (3H,),
              b_hh_f (3H,) and the *_b equivalents for the backward direction.
    returns : outputs (N, T, 2H) float32, last_hidden (1, N, 2H) float32
    """
    N, T, I = x.shape
    H = params["w_hh_f"].shape[1]
    Hp = _round_up(H, LANE)                       # lane-dense gate blocks [r|z|n]
    Np = _round_up(N, SUBLANE)
    NB = min(n_blk_max, Np)                       # batch tile (multiple of 8/16)
    Np = _round_up(Np, NB)
    t_blk = min(t_blk_max, T)
    nb = pl.cdiv(T, t_blk)
    Tp = nb * t_blk

    # --- pack PyTorch-layout weights into padded, transposed gate blocks [r|z|n] ---
    def pack_ih(w):                               # (3H, I) -> (I, 3Hp)
        w3 = jnp.pad(w.reshape(3, H, I), ((0, 0), (0, Hp - H), (0, 0)))
        return jnp.transpose(w3, (2, 0, 1)).reshape(I, 3 * Hp)

    def pack_hh(w):                               # (3H, H) -> (Hp, 3Hp)
        w3 = jnp.pad(w.reshape(3, H, H), ((0, 0), (0, Hp - H), (0, Hp - H)))
        return jnp.transpose(w3, (2, 0, 1)).reshape(Hp, 3 * Hp)

    def pack_b(b):                                # (3H,) -> (1, 3Hp)
        return jnp.pad(b.reshape(3, H), ((0, 0), (0, Hp - H))).reshape(1, 3 * Hp)

    x_p = jnp.pad(x, ((0, Np - N), (0, Tp - T), (0, 0)))                 # (Np, Tp, I)
    lens = jnp.pad(lengths.astype(jnp.int32), (0, Np - N)).reshape(Np, 1)

    # Hoisted input projection, one big matmul per direction, stored time-major bf16.
    def gi_for(wi_key, bi_key):
        wi = pack_ih(params[wi_key])
        bi = pack_b(params[bi_key])
        return (jnp.einsum("nti,ig->tng", x_p, wi) + bi).astype(jnp.bfloat16)

    gi_f = gi_for("w_ih_f", "b_ih_f")             # (Tp, Np, 3Hp) bf16
    gi_b = gi_for("w_ih_b", "b_ih_b")
    whh_f = pack_hh(params["w_hh_f"]).astype(jnp.bfloat16)
    whh_b = pack_hh(params["w_hh_b"]).astype(jnp.bfloat16)
    bhh_f = pack_b(params["b_hh_f"])
    bhh_b = pack_b(params["b_hh_b"])

    grid_spec = pltpu.PrefetchScalarGridSpec(
        num_scalar_prefetch=0,
        grid=(Np // NB, nb),                      # (batch-block, time-chunk)
        in_specs=[
            pl.BlockSpec((t_blk, NB, 3 * Hp), lambda b, t: (t, b, 0)),          # gi fwd
            pl.BlockSpec((t_blk, NB, 3 * Hp), lambda b, t: (nb - 1 - t, b, 0)), # gi bwd (mirrored)
            pl.BlockSpec((Hp, 3 * Hp), lambda b, t: (0, 0)),                    # W_hh fwd
            pl.BlockSpec((Hp, 3 * Hp), lambda b, t: (0, 0)),                    # W_hh bwd
            pl.BlockSpec((1, 3 * Hp), lambda b, t: (0, 0)),                     # b_hh fwd
            pl.BlockSpec((1, 3 * Hp), lambda b, t: (0, 0)),                     # b_hh bwd
            pl.BlockSpec((NB, 1), lambda b, t: (b, 0)),                         # lengths
        ],
        out_specs=[
            pl.BlockSpec((t_blk, NB, Hp), lambda b, t: (t, b, 0)),              # out fwd
            pl.BlockSpec((t_blk, NB, Hp), lambda b, t: (nb - 1 - t, b, 0)),     # out bwd
            pl.BlockSpec((NB, Hp), lambda b, t: (b, 0)),                        # last h fwd
            pl.BlockSpec((NB, Hp), lambda b, t: (b, 0)),                        # last h bwd
        ],
        scratch_shapes=[pltpu.VMEM((NB, Hp), jnp.float32),
                        pltpu.VMEM((NB, Hp), jnp.float32)],
    )

    out_f, out_b, last_f, last_b = pl.pallas_call(
        _bigru_kernel,
        out_shape=(
            jax.ShapeDtypeStruct((Tp, Np, Hp), jnp.float32),
            jax.ShapeDtypeStruct((Tp, Np, Hp), jnp.float32),
            jax.ShapeDtypeStruct((Np, Hp), jnp.float32),
            jax.ShapeDtypeStruct((Np, Hp), jnp.float32),
        ),
        grid_spec=grid_spec,
        compiler_params=pltpu.CompilerParams(
            dimension_semantics=("parallel", "arbitrary")),
    )(gi_f, gi_b, whh_f, whh_b, bhh_f, bhh_b, lens)

    # One wrapper-level transpose/concat (no-op slicing when H, N are already aligned).
    outputs = jnp.concatenate([out_f[:T, :N, :H], out_b[:T, :N, :H]], axis=-1)   # (T, N, 2H)
    outputs = jnp.transpose(outputs, (1, 0, 2))                                  # (N, T, 2H)
    last_hidden = jnp.concatenate([last_f[:N, :H], last_b[:N, :H]], axis=-1)[None]
    return outputs, last_hidden


# ---------------------------------------------------------------------------
# SelfAttention.  NOTE: the reference module only applies the mask when it is
# None (and would then crash); with a real mask the masked_fill is skipped, so
# the effective semantics are an unmasked softmax over all T -- reproduced here.
# (The iota mask below only excludes our own artificial T padding.)
# ---------------------------------------------------------------------------
def _self_attention_kernel(t_valid, x_ref, wpt_ref, bp_ref, v_ref, o_ref):
    nb, tp, d = x_ref.shape
    x = x_ref[...]                                                   # (NB, Tp, D)
    x2 = x.reshape(nb * tp, d)                                       # Tp % 8 == 0 -> layout no-op
    proj = jnp.tanh(jnp.dot(x2, wpt_ref[...],
                            preferred_element_type=jnp.float32) + bp_ref[...])
    s = jnp.sum(proj.reshape(nb, tp, -1) * v_ref[...], axis=-1)      # (NB, Tp)
    col = jax.lax.broadcasted_iota(jnp.int32, (nb, tp), 1)
    s = jnp.where(col < t_valid, s, -jnp.inf)                        # hide padded tail only
    s = s - jnp.max(s, axis=-1, keepdims=True)
    e = jnp.exp(s)
    w = e / jnp.sum(e, axis=-1, keepdims=True)
    o_ref[...] = jnp.sum(w[:, :, None] * x, axis=1)                  # (NB, D)


def self_attention(x, params, *, vmem_target_bytes=4 << 20):
    """weights = softmax(v(tanh(proj(x)))); returns sum_t weights[t] * x[t]."""
    N, T, D = x.shape
    Dh = params["w_proj"].shape[0]
    Tp = _round_up(T, SUBLANE)
    Np = _round_up(N, SUBLANE)
    row_bytes = Tp * D * 4
    nb_blk = max(SUBLANE,
                 min(128, (vmem_target_bytes // max(row_bytes, 1)) // SUBLANE * SUBLANE))
    NB = min(nb_blk, Np)
    Np = _round_up(Np, NB)

    x_p = jnp.pad(x, ((0, Np - N), (0, Tp - T), (0, 0)))
    wpt = params["w_proj"].T                      # (D, Dh)
    bp = params["b_proj"].reshape(1, Dh)
    v = params["v_w"].reshape(1, Dh)

    out = pl.pallas_call(
        functools.partial(_self_attention_kernel, T),
        out_shape=jax.ShapeDtypeStruct((Np, D), jnp.float32),
        grid_spec=pltpu.PrefetchScalarGridSpec(
            num_scalar_prefetch=0,
            grid=(Np // NB,),
            in_specs=[
                pl.BlockSpec((NB, Tp, D), lambda i: (i, 0, 0)),
                pl.BlockSpec((D, Dh), lambda i: (0, 0)),
                pl.BlockSpec((1, Dh), lambda i: (0, 0)),
                pl.BlockSpec((1, Dh), lambda i: (0, 0)),
            ],
            out_specs=pl.BlockSpec((NB, D), lambda i: (i, 0)),
        ),
        compiler_params=pltpu.CompilerParams(dimension_semantics=("parallel",)),
    )(x_p, wpt, bp, v)
    return out[:N]


# ---------------------------------------------------------------------------
# HRNNEncoder.forward  (is_word_attn=True, features=None, hidden=None)
# ---------------------------------------------------------------------------
def hrnn_encoder_forward(indices, lengths, mask, params):
    """
    indices : (B, max_hiera_len, max_sub_len, hidden_size) float32
    lengths : (B, max_hiera_len) int32
    mask    : (B, max_hiera_len, max_sub_len) bool -- accepted for signature parity;
              the reference SelfAttention never applies a non-None mask (dead branch).
    """
    del mask
    B, max_hiera_len, max_sub_len, _ = indices.shape

    hiera_lengths = jnp.sum((lengths > 0).astype(jnp.int32), axis=1)      # (B,)

    flat = indices.reshape(B * max_hiera_len, max_sub_len, -1)
    sub_lengths = lengths.reshape(-1)
    sub_outputs, _gru_sub_hidden = bidirectional_gru(flat, sub_lengths, params["sub"])

    # Word-level attention replaces the GRU bridge hidden (is_word_attn=True).
    sub_hidden = self_attention(sub_outputs, params["attn"])              # (B*Hl, 2Hs)
    sub_hidden = sub_hidden.reshape(B, max_hiera_len, -1)

    hiera_outputs, hiera_hidden = bidirectional_gru(
        sub_hidden, hiera_lengths, params["hiera"])

    sub_outputs = sub_outputs.reshape(B, max_hiera_len, max_sub_len, -1)
    sel = hiera_lengths - 1
    last_sub_outputs = jnp.take_along_axis(
        sub_outputs, sel[:, None, None, None], axis=1)[:, 0]              # (B, max_sub_len, 2Hs)
    last_sub_lengths = jnp.take_along_axis(lengths, sel[:, None], axis=1)[:, 0]
    # TODO(synk): torch truncates last_sub_outputs[:, :last_sub_lengths.max()] -- that is a
    # data-dependent output shape, so the full max_sub_len axis is returned instead.
    return (hiera_outputs, hiera_hidden, sub_outputs, sub_hidden,
            last_sub_outputs, last_sub_lengths)


# ---------------------------------------------------------------------------
# Deterministic parameter initialisation (PyTorch layouts).
# ---------------------------------------------------------------------------
def init_gru_params(key, input_size, rnn_hidden):
    k = 1.0 / math.sqrt(rnn_hidden)
    names_shapes = [
        ("w_ih_f", (3 * rnn_hidden, input_size)),
        ("w_hh_f", (3 * rnn_hidden, rnn_hidden)),
        ("b_ih_f", (3 * rnn_hidden,)),
        ("b_hh_f", (3 * rnn_hidden,)),
        ("w_ih_b", (3 * rnn_hidden, input_size)),
        ("w_hh_b", (3 * rnn_hidden, rnn_hidden)),
        ("b_ih_b", (3 * rnn_hidden,)),
        ("b_hh_b", (3 * rnn_hidden,)),
    ]
    keys = jax.random.split(key, len(names_shapes))
    return {name: jax.random.uniform(kk, shape, jnp.float32, -k, k)
            for (name, shape), kk in zip(names_shapes, keys)}


def init_attn_params(key, input_size, hidden_size):
    kp = 1.0 / math.sqrt(input_size)
    kv = 1.0 / math.sqrt(hidden_size)
    k1, k2, k3 = jax.random.split(key, 3)
    return {
        "w_proj": jax.random.uniform(k1, (hidden_size, input_size), jnp.float32, -kp, kp),
        "b_proj": jax.random.uniform(k2, (hidden_size,), jnp.float32, -kp, kp),
        "v_w": jax.random.uniform(k3, (1, hidden_size), jnp.float32, -kv, kv),
    }


if __name__ == "__main__":
    B, MAX_HIERA_LEN, MAX_SUB_LEN, EMB = 2, 3, 8, 16
    SUB_HIDDEN = 32        # sub encoder output width  -> rnn_hidden 16 per direction
    HIERA_HIDDEN = 32      # hiera encoder output width

    root = jax.random.PRNGKey(0)
    k_x, k_sub, k_attn, k_hiera = jax.random.split(root, 4)

    indices = jax.random.normal(k_x, (B, MAX_HIERA_LEN, MAX_SUB_LEN, EMB), jnp.float32)
    lengths = jnp.array([[8, 5, 3], [6, 4, 0]], jnp.int32)
    mask = jnp.arange(MAX_SUB_LEN)[None, None, :] >= lengths[:, :, None]   # pad positions

    params = {
        "sub": init_gru_params(k_sub, EMB, SUB_HIDDEN // 2),
        "attn": init_attn_params(k_attn, SUB_HIDDEN, SUB_HIDDEN // 2),
        "hiera": init_gru_params(k_hiera, SUB_HIDDEN, HIERA_HIDDEN // 2),
    }

    outs = jax.jit(hrnn_encoder_forward)(indices, lengths, mask, params)
    jax.block_until_ready(outs)
    (hiera_outputs, hiera_hidden, sub_outputs, sub_hidden,
     last_sub_outputs, last_sub_lengths) = outs

    assert hiera_outputs.shape == (B, MAX_HIERA_LEN, HIERA_HIDDEN), hiera_outputs.shape
    assert hiera_hidden.shape == (1, B, HIERA_HIDDEN), hiera_hidden.shape
    assert sub_outputs.shape == (B, MAX_HIERA_LEN, MAX_SUB_LEN, SUB_HIDDEN), sub_outputs.shape
    assert sub_hidden.shape == (B, MAX_HIERA_LEN, SUB_HIDDEN), sub_hidden.shape
    assert last_sub_outputs.shape == (B, MAX_SUB_LEN, SUB_HIDDEN), last_sub_outputs.shape
    assert last_sub_lengths.shape == (B,), last_sub_lengths.shape
    print("KERNEL_OK")
</pallas_src>

<mosaic_0001>
module attributes {stable_mosaic.version = 11 : i64} {
  func.func @_self_attention_kernel(%arg0: i32, %arg1: memref<8x8x32xf32, #tpu.memory_space<vmem>>, %arg2: memref<32x16xf32, #tpu.memory_space<vmem>>, %arg3: memref<1x16xf32, #tpu.memory_space<vmem>>, %arg4: memref<1x16xf32, #tpu.memory_space<vmem>>, %arg5: memref<8x32xf32, #tpu.memory_space<vmem>>) attributes {dimension_semantics = [#tpu.dimension_semantics<parallel>], iteration_bounds = array<i64: 1>, scalar_prefetch = 0 : i64, scratch_operands = 0 : i64, tpu.core_type = #tpu.core_type<tc>, window_params = [{transform_indices = @transform_0, window_bounds = array<i64: 8, 8, 32>}, {pipeline_mode = #tpu.pipeline_mode<synchronous>, transform_indices = @transform_1, window_bounds = array<i64: 32, 16>}, {pipeline_mode = #tpu.pipeline_mode<synchronous>, transform_indices = @transform_2, window_bounds = array<i64: 1, 16>}, {pipeline_mode = #tpu.pipeline_mode<synchronous>, transform_indices = @transform_3, window_bounds = array<i64: 1, 16>}, {transform_indices = @transform_4, window_bounds = array<i64: 8, 32>}]} {
    %c0 = arith.constant 0 : index
    %c0_0 = arith.constant 0 : index
    %c0_1 = arith.constant 0 : index
    %0 = vector.load %arg1[%c0, %c0_0, %c0_1] : memref<8x8x32xf32, #tpu.memory_space<vmem>>, vector<8x8x32xf32>
    %1 = vector.shape_cast %0 : vector<8x8x32xf32> to vector<64x32xf32>
    %c0_2 = arith.constant 0 : index
    %c0_3 = arith.constant 0 : index
    %2 = vector.load %arg2[%c0_2, %c0_3] : memref<32x16xf32, #tpu.memory_space<vmem>>, vector<32x16xf32>
    %cst = arith.constant dense<0.000000e+00> : vector<64x16xf32>
    %3 = tpu.matmul %1, %2, %cst {dimension_numbers = #tpu.dot_dimension_numbers<[1], [0], [0], [1], [0, 0, 1, 1], [], []>} : vector<64x32xf32>, vector<32x16xf32>, vector<64x16xf32> -> vector<64x16xf32>
    %c0_4 = arith.constant 0 : index
    %c0_5 = arith.constant 0 : index
    %4 = vector.load %arg3[%c0_4, %c0_5] : memref<1x16xf32, #tpu.memory_space<vmem>>, vector<1x16xf32>
    %5 = vector.broadcast %4 : vector<1x16xf32> to vector<64x16xf32>
    %6 = arith.addf %3, %5 : vector<64x16xf32>
    %7 = math.tanh %6 : vector<64x16xf32>
    %8 = vector.shape_cast %7 : vector<64x16xf32> to vector<8x8x16xf32>
    %c0_6 = arith.constant 0 : index
    %c0_7 = arith.constant 0 : index
    %9 = vector.load %arg4[%c0_6, %c0_7] : memref<1x16xf32, #tpu.memory_space<vmem>>, vector<1x16xf32>
    %10 = vector.shape_cast %9 : vector<1x16xf32> to vector<1x1x16xf32>
    %11 = vector.broadcast %10 : vector<1x1x16xf32> to vector<8x8x16xf32>
    %12 = arith.mulf %8, %11 : vector<8x8x16xf32>
    %cst_8 = arith.constant dense<0.000000e+00> : vector<8x8xf32>
    %13 = vector.multi_reduction <add>, %12, %cst_8 [2] : vector<8x8x16xf32> to vector<8x8xf32>
    %14 = tpu.iota {dimensions = array<i32: 1>} : vector<8x8xi32>
    %c8_i32 = arith.constant 8 : i32
    %15 = vector.broadcast %c8_i32 : i32 to vector<8x8xi32>
    %16 = arith.cmpi slt, %14, %15 : vector<8x8xi32>
    %cst_9 = arith.constant 0xFF800000 : f32
    %17 = vector.broadcast %cst_9 : f32 to vector<8x8xf32>
    %18 = arith.select %16, %13, %17 : vector<8x8xi1>, vector<8x8xf32>
    %cst_10 = arith.constant dense<0xFF800000> : vector<8xf32>
    %19 = vector.multi_reduction <maximumf>, %18, %cst_10 [1] : vector<8x8xf32> to vector<8xf32>
    %20 = vector.shape_cast %19 : vector<8xf32> to vector<8x1xf32>
    %21 = vector.broadcast %20 : vector<8x1xf32> to vector<8x8xf32>
    %22 = arith.subf %18, %21 : vector<8x8xf32>
    %23 = math.exp %22 : vector<8x8xf32>
    %cst_11 = arith.constant dense<0.000000e+00> : vector<8xf32>
    %24 = vector.multi_reduction <add>, %23, %cst_11 [1] : vector<8x8xf32> to vector<8xf32>
    %25 = vector.shape_cast %24 : vector<8xf32> to vector<8x1xf32>
    %26 = vector.broadcast %25 : vector<8x1xf32> to vector<8x8xf32>
    %27 = arith.divf %23, %26 : vector<8x8xf32>
    %28 = vector.shape_cast %27 : vector<8x8xf32> to vector<8x8x1xf32>
    %29 = vector.broadcast %28 : vector<8x8x1xf32> to vector<8x8x32xf32>
    %30 = arith.mulf %29, %0 : vector<8x8x32xf32>
    %cst_12 = arith.constant dense<0.000000e+00> : vector<8x32xf32>
    %31 = vector.multi_reduction <add>, %30, %cst_12 [1] : vector<8x8x32xf32> to vector<8x32xf32>
    %c0_13 = arith.constant 0 : index
    %c0_14 = arith.constant 0 : index
    %32 = vector.load %arg5[%c0_13, %c0_14] : memref<8x32xf32, #tpu.memory_space<vmem>>, vector<8x32xf32>
    tpu.vector_store %arg5[%c0_13, %c0_14], %31 {strides = array<i32>} : memref<8x32xf32, #tpu.memory_space<vmem>>, vector<8x32xf32>,
    return
  }
  func.func @transform_0(%arg0: i32) -> (i32, i32, i32) {
    %c0_i32 = arith.constant 0 : i32
    %c0_i32_0 = arith.constant 0 : i32
    %c0_i32_1 = arith.constant 0 : i32
    return %arg0, %c0_i32, %c0_i32_0 : i32, i32, i32
  }
  func.func @transform_1(%arg0: i32) -> (i32, i32) {
    %c0_i32 = arith.constant 0 : i32
    %c0_i32_0 = arith.constant 0 : i32
    %c0_i32_1 = arith.constant 0 : i32
    return %c0_i32, %c0_i32_0 : i32, i32
  }
  func.func @transform_2(%arg0: i32) -> (i32, i32) {
    %c0_i32 = arith.constant 0 : i32
    %c0_i32_0 = arith.constant 0 : i32
    %c0_i32_1 = arith.constant 0 : i32
    return %c0_i32, %c0_i32_0 : i32, i32
  }
  func.func @transform_3(%arg0: i32) -> (i32, i32) {
    %c0_i32 = arith.constant 0 : i32
    %c0_i32_0 = arith.constant 0 : i32
    %c0_i32_1 = arith.constant 0 : i32
    return %c0_i32, %c0_i32_0 : i32, i32
  }
  func.func @transform_4(%arg0: i32) -> (i32, i32) {
    %c0_i32 = arith.constant 0 : i32
    %c0_i32_0 = arith.constant 0 : i32
    return %arg0, %c0_i32 : i32, i32
  }
}

module attributes {stable_mosaic.version = 11 : i64} {
  func.func @_bigru_kernel(%arg0: i32, %arg1: i32, %arg2: memref<8x8x384xbf16, #tpu.memory_space<vmem>>, %arg3: memref<8x8x384xbf16, #tpu.memory_space<vmem>>, %arg4: memref<128x384xbf16, #tpu.memory_space<vmem>>, %arg5: memref<128x384xbf16, #tpu.memory_space<vmem>>, %arg6: memref<1x384xf32, #tpu.memory_space<vmem>>, %arg7: memref<1x384xf32, #tpu.memory_space<vmem>>, %arg8: memref<8x1xi32, #tpu.memory_space<vmem>>, %arg9: memref<8x8x128xf32, #tpu.memory_space<vmem>>, %arg10: memref<8x8x128xf32, #tpu.memory_space<vmem>>, %arg11: memref<8x128xf32, #tpu.memory_space<vmem>>, %arg12: memref<8x128xf32, #tpu.memory_space<vmem>>, %arg13: memref<8x128xf32, #tpu.memory_space<vmem>>, %arg14: memref<8x128xf32, #tpu.memory_space<vmem>>) attributes {dimension_semantics = [#tpu.dimension_semantics<parallel>, #tpu.dimension_semantics<arbitrary>], iteration_bounds = array<i64: 1, 1>, scalar_prefetch = 0 : i64, scratch_operands = 2 : i64, tpu.core_type = #tpu.core_type<tc>, window_params = [{transform_indices = @transform_0, window_bounds = array<i64: 8, 8, 384>}, {transform_indices = @transform_1, window_bounds = array<i64: 8, 8, 384>}, {pipeline_mode = #tpu.pipeline_mode<synchronous>, transform_indices = @transform_2, window_bounds = array<i64: 128, 384>}, {pipeline_mode = #tpu.pipeline_mode<synchronous>, transform_indices = @transform_3, window_bounds = array<i64: 128, 384>}, {pipeline_mode = #tpu.pipeline_mode<synchronous>, transform_indices = @transform_4, window_bounds = array<i64: 1, 384>}, {pipeline_mode = #tpu.pipeline_mode<synchronous>, transform_indices = @transform_5, window_bounds = array<i64: 1, 384>}, {transform_indices = @transform_6, window_bounds = array<i64: 8, 1>}, {transform_indices = @transform_7, window_bounds = array<i64: 8, 8, 128>}, {transform_indices = @transform_8, window_bounds = array<i64: 8, 8, 128>}, {transform_indices = @transform_9, window_bounds = array<i64: 8, 128>}, {transform_indices = @transform_10, window_bounds = array<i64: 8, 128>}]} {
    %c0_i32 = arith.constant 0 : i32
    %0 = arith.cmpi eq, %arg1, %c0_i32 : i32
    %1 = arith.extui %0 : i1 to i32
    %c0_i32_0 = arith.constant 0 : i32
    %2 = arith.cmpi ne, %1, %c0_i32_0 : i32
    scf.if %2 {
      %cst_199 = arith.constant 0.000000e+00 : f32
      %754 = vector.broadcast %cst_199 : f32 to vector<8x128xf32>
      %c0_200 = arith.constant 0 : index
      %c0_201 = arith.constant 0 : index
      %755 = vector.load %arg13[%c0_200, %c0_201] : memref<8x128xf32, #tpu.memory_space<vmem>>, vector<8x128xf32>
      tpu.vector_store %arg13[%c0_200, %c0_201], %754 {strides = array<i32>} : memref<8x128xf32, #tpu.memory_space<vmem>>, vector<8x128xf32>,
      %cst_202 = arith.constant 0.000000e+00 : f32
      %756 = vector.broadcast %cst_202 : f32 to vector<8x128xf32>
      %c0_203 = arith.constant 0 : index
      %c0_204 = arith.constant 0 : index
      %757 = vector.load %arg14[%c0_203, %c0_204] : memref<8x128xf32, #tpu.memory_space<vmem>>, vector<8x128xf32>
      tpu.vector_store %arg14[%c0_203, %c0_204], %756 {strides = array<i32>} : memref<8x128xf32, #tpu.memory_space<vmem>>, vector<8x128xf32>,
    } else {
    }
    %c0 = arith.constant 0 : index
    %c0_1 = arith.constant 0 : index
    %3 = vector.load %arg8[%c0, %c0_1] : memref<8x1xi32, #tpu.memory_space<vmem>>, vector<8x1xi32>
    %c0_2 = arith.constant 0 : index
    %c0_3 = arith.constant 0 : index
    %4 = vector.load %arg4[%c0_2, %c0_3] : memref<128x384xbf16, #tpu.memory_space<vmem>>, vector<128x384xbf16>
    %c0_4 = arith.constant 0 : index
    %c0_5 = arith.constant 0 : index
    %5 = vector.load %arg5[%c0_4, %c0_5] : memref<128x384xbf16, #tpu.memory_space<vmem>>, vector<128x384xbf16>
    %c0_6 = arith.constant 0 : index
    %c0_7 = arith.constant 0 : index
    %6 = vector.load %arg6[%c0_6, %c0_7] : memref<1x384xf32, #tpu.memory_space<vmem>>, vector<1x384xf32>
    %c0_8 = arith.constant 0 : index
    %c0_9 = arith.constant 0 : index
    %7 = vector.load %arg7[%c0_8, %c0_9] : memref<1x384xf32, #tpu.memory_space<vmem>>, vector<1x384xf32>
    %c8_i32 = arith.constant 8 : i32
    %8 = arith.muli %arg1, %c8_i32 : i32
    %c0_i32_10 = arith.constant 0 : i32
    %9 = arith.subi %c0_i32_10, %arg1 : i32
    %c8_i32_11 = arith.constant 8 : i32
    %10 = arith.muli %9, %c8_i32_11 : i32
    %c0_12 = arith.constant 0 : index
    %c0_13 = arith.constant 0 : index
    %11 = vector.load %arg13[%c0_12, %c0_13] : memref<8x128xf32, #tpu.memory_space<vmem>>, vector<8x128xf32>
    %c0_14 = arith.constant 0 : index
    %c0_15 = arith.constant 0 : index
    %12 = vector.load %arg14[%c0_14, %c0_15] : memref<8x128xf32, #tpu.memory_space<vmem>>, vector<8x128xf32>
    %c0_16 = arith.constant 0 : index
    %c0_17 = arith.constant 0 : index
    %c0_18 = arith.constant 0 : index
    %13 = vector.load %arg2[%c0_16, %c0_17, %c0_18] : memref<8x8x384xbf16, #tpu.memory_space<vmem>>, vector<1x8x384xbf16>
    %14 = vector.shape_cast %13 : vector<1x8x384xbf16> to vector<8x384xbf16>
    %15 = arith.extf %14 : vector<8x384xbf16> to vector<8x384xf32>
    %16 = arith.truncf %11 : vector<8x128xf32> to vector<8x128xbf16>
    %cst = arith.constant dense<0.000000e+00> : vector<8x384xf32>
    %17 = tpu.matmul %16, %4, %cst {dimension_numbers = #tpu.dot_dimension_numbers<[1], [0], [0], [1], [0, 0, 1, 1], [], []>} : vector<8x128xbf16>, vector<128x384xbf16>, vector<8x384xf32> -> vector<8x384xf32>
    %18 = vector.broadcast %6 : vector<1x384xf32> to vector<8x384xf32>
    %19 = arith.addf %17, %18 : vector<8x384xf32>
    %20 = vector.extract_strided_slice %15 {offsets = [0, 0], sizes = [8, 128], strides = [1, 1]} : vector<8x384xf32> to vector<8x128xf32>
    %21 = vector.extract_strided_slice %19 {offsets = [0, 0], sizes = [8, 128], strides = [1, 1]} : vector<8x384xf32> to vector<8x128xf32>
    %22 = arith.addf %20, %21 : vector<8x128xf32>
    %23 = arith.negf %22 : vector<8x128xf32>
    %24 = math.exp %23 : vector<8x128xf32>
    %cst_19 = arith.constant 1.000000e+00 : f32
    %25 = vector.broadcast %cst_19 : f32 to vector<8x128xf32>
    %26 = arith.addf %25, %24 : vector<8x128xf32>
    %27 = arith.divf %25, %26 : vector<8x128xf32>
    %28 = vector.extract_strided_slice %15 {offsets = [0, 128], sizes = [8, 128], strides = [1, 1]} : vector<8x384xf32> to vector<8x128xf32>
    %29 = vector.extract_strided_slice %19 {offsets = [0, 128], sizes = [8, 128], strides = [1, 1]} : vector<8x384xf32> to vector<8x128xf32>
    %30 = arith.addf %28, %29 : vector<8x128xf32>
    %31 = arith.negf %30 : vector<8x128xf32>
    %32 = math.exp %31 : vector<8x128xf32>
    %cst_20 = arith.constant 1.000000e+00 : f32
    %33 = vector.broadcast %cst_20 : f32 to vector<8x128xf32>
    %34 = arith.addf %33, %32 : vector<8x128xf32>
    %35 = arith.divf %33, %34 : vector<8x128xf32>
    %36 = vector.extract_strided_slice %15 {offsets = [0, 256], sizes = [8, 128], strides = [1, 1]} : vector<8x384xf32> to vector<8x128xf32>
    %37 = vector.extract_strided_slice %19 {offsets = [0, 256], sizes = [8, 128], strides = [1, 1]} : vector<8x384xf32> to vector<8x128xf32>
    %38 = arith.mulf %27, %37 : vector<8x128xf32>
    %39 = arith.addf %36, %38 : vector<8x128xf32>
    %40 = math.tanh %39 : vector<8x128xf32>
    %cst_21 = arith.constant 1.000000e+00 : f32
    %41 = vector.broadcast %cst_21 : f32 to vector<8x128xf32>
    %42 = arith.subf %41, %35 : vector<8x128xf32>
    %43 = arith.mulf %42, %40 : vector<8x128xf32>
    %44 = arith.mulf %35, %11 : vector<8x128xf32>
    %45 = arith.addf %43, %44 : vector<8x128xf32>
    %c7 = arith.constant 7 : index
    %c0_22 = arith.constant 0 : index
    %c0_23 = arith.constant 0 : index
    %46 = vector.load %arg3[%c7, %c0_22, %c0_23] : memref<8x8x384xbf16, #tpu.memory_space<vmem>>, vector<1x8x384xbf16>
    %47 = vector.shape_cast %46 : vector<1x8x384xbf16> to vector<8x384xbf16>
    %48 = arith.extf %47 : vector<8x384xbf16> to vector<8x384xf32>
    %49 = arith.truncf %12 : vector<8x128xf32> to vector<8x128xbf16>
    %cst_24 = arith.constant dense<0.000000e+00> : vector<8x384xf32>
    %50 = tpu.matmul %49, %5, %cst_24 {dimension_numbers = #tpu.dot_dimension_numbers<[1], [0], [0], [1], [0, 0, 1, 1], [], []>} : vector<8x128xbf16>, vector<128x384xbf16>, vector<8x384xf32> -> vector<8x384xf32>
    %51 = vector.broadcast %7 : vector<1x384xf32> to vector<8x384xf32>
    %52 = arith.addf %50, %51 : vector<8x384xf32>
    %53 = vector.extract_strided_slice %48 {offsets = [0, 0], sizes = [8, 128], strides = [1, 1]} : vector<8x384xf32> to vector<8x128xf32>
    %54 = vector.extract_strided_slice %52 {offsets = [0, 0], sizes = [8, 128], strides = [1, 1]} : vector<8x384xf32> to vector<8x128xf32>
    %55 = arith.addf %53, %54 : vector<8x128xf32>
    %56 = arith.negf %55 : vector<8x128xf32>
    %57 = math.exp %56 : vector<8x128xf32>
    %cst_25 = arith.constant 1.000000e+00 : f32
    %58 = vector.broadcast %cst_25 : f32 to vector<8x128xf32>
    %59 = arith.addf %58, %57 : vector<8x128xf32>
    %60 = arith.divf %58, %59 : vector<8x128xf32>
    %61 = vector.extract_strided_slice %48 {offsets = [0, 128], sizes = [8, 128], strides = [1, 1]} : vector<8x384xf32> to vector<8x128xf32>
    %62 = vector.extract_strided_slice %52 {offsets = [0, 128], sizes = [8, 128], strides = [1, 1]} : vector<8x384xf32> to vector<8x128xf32>
    %63 = arith.addf %61, %62 : vector<8x128xf32>
    %64 = arith.negf %63 : vector<8x128xf32>
    %65 = math.exp %64 : vector<8x128xf32>
    %cst_26 = arith.constant 1.000000e+00 : f32
    %66 = vector.broadcast %cst_26 : f32 to vector<8x128xf32>
    %67 = arith.addf %66, %65 : vector<8x128xf32>
    %68 = arith.divf %66, %67 : vector<8x128xf32>
    %69 = vector.extract_strided_slice %48 {offsets = [0, 256], sizes = [8, 128], strides = [1, 1]} : vector<8x384xf32> to vector<8x128xf32>
    %70 = vector.extract_strided_slice %52 {offsets = [0, 256], sizes = [8, 128], strides = [1, 1]} : vector<8x384xf32> to vector<8x128xf32>
    %71 = arith.mulf %60, %70 : vector<8x128xf32>
    %72 = arith.addf %69, %71 : vector<8x128xf32>
    %73 = math.tanh %72 : vector<8x128xf32>
    %cst_27 = arith.constant 1.000000e+00 : f32
    %74 = vector.broadcast %cst_27 : f32 to vector<8x128xf32>
    %75 = arith.subf %74, %68 : vector<8x128xf32>
    %76 = arith.mulf %75, %73 : vector<8x128xf32>
    %77 = arith.mulf %68, %12 : vector<8x128xf32>
    %78 = arith.addf %76, %77 : vector<8x128xf32>
    %c0_i32_28 = arith.constant 0 : i32
    %79 = arith.addi %8, %c0_i32_28 : i32
    %80 = vector.broadcast %79 : i32 to vector<8x1xi32>
    %81 = arith.cmpi slt, %80, %3 : vector<8x1xi32>
    %c7_i32 = arith.constant 7 : i32
    %82 = arith.addi %10, %c7_i32 : i32
    %83 = vector.broadcast %82 : i32 to vector<8x1xi32>
    %84 = arith.cmpi slt, %83, %3 : vector<8x1xi32>
    %85 = vector.shape_cast %81 : vector<8x1xi1> to vector<8x1xi1>
    %86 = vector.broadcast %85 : vector<8x1xi1> to vector<8x128xi1>
    %87 = arith.select %86, %45, %11 : vector<8x128xi1>, vector<8x128xf32>
    %88 = vector.shape_cast %84 : vector<8x1xi1> to vector<8x1xi1>
    %89 = vector.broadcast %88 : vector<8x1xi1> to vector<8x128xi1>
    %90 = arith.select %89, %78, %12 : vector<8x128xi1>, vector<8x128xf32>
    %cst_29 = arith.constant 0.000000e+00 : f32
    %91 = vector.shape_cast %81 : vector<8x1xi1> to vector<8x1xi1>
    %92 = vector.broadcast %91 : vector<8x1xi1> to vector<8x128xi1>
    %93 = vector.broadcast %cst_29 : f32 to vector<8x128xf32>
    %94 = arith.select %92, %87, %93 : vector<8x128xi1>, vector<8x128xf32>
    %c0_30 = arith.constant 0 : index
    %c0_31 = arith.constant 0 : index
    %c0_32 = arith.constant 0 : index
    %95 = vector.load %arg9[%c0_30, %c0_31, %c0_32] : memref<8x8x128xf32, #tpu.memory_space<vmem>>, vector<1x8x128xf32>
    %96 = vector.shape_cast %95 : vector<1x8x128xf32> to vector<8x128xf32>
    %97 = vector.shape_cast %94 : vector<8x128xf32> to vector<1x8x128xf32>
    tpu.vector_store %arg9[%c0_30, %c0_31, %c0_32], %97 {strides = array<i32>} : memref<8x8x128xf32, #tpu.memory_space<vmem>>, vector<1x8x128xf32>,
    %cst_33 = arith.constant 0.000000e+00 : f32
    %98 = vector.shape_cast %84 : vector<8x1xi1> to vector<8x1xi1>
    %99 = vector.broadcast %98 : vector<8x1xi1> to vector<8x128xi1>
    %100 = vector.broadcast %cst_33 : f32 to vector<8x128xf32>
    %101 = arith.select %99, %90, %100 : vector<8x128xi1>, vector<8x128xf32>
    %c7_34 = arith.constant 7 : index
    %c0_35 = arith.constant 0 : index
    %c0_36 = arith.constant 0 : index
    %102 = vector.load %arg10[%c7_34, %c0_35, %c0_36] : memref<8x8x128xf32, #tpu.memory_space<vmem>>, vector<1x8x128xf32>
    %103 = vector.shape_cast %102 : vector<1x8x128xf32> to vector<8x128xf32>
    %104 = vector.shape_cast %101 : vector<8x128xf32> to vector<1x8x128xf32>
    tpu.vector_store %arg10[%c7_34, %c0_35, %c0_36], %104 {strides = array<i32>} : memref<8x8x128xf32, #tpu.memory_space<vmem>>, vector<1x8x128xf32>,
    %c1 = arith.constant 1 : index
    %c0_37 = arith.constant 0 : index
    %c0_38 = arith.constant 0 : index
    %105 = vector.load %arg2[%c1, %c0_37, %c0_38] : memref<8x8x384xbf16, #tpu.memory_space<vmem>>, vector<1x8x384xbf16>
    %106 = vector.shape_cast %105 : vector<1x8x384xbf16> to vector<8x384xbf16>
    %107 = arith.extf %106 : vector<8x384xbf16> to vector<8x384xf32>
    %108 = arith.truncf %87 : vector<8x128xf32> to vector<8x128xbf16>
    %cst_39 = arith.constant dense<0.000000e+00> : vector<8x384xf32>
    %109 = tpu.matmul %108, %4, %cst_39 {dimension_numbers = #tpu.dot_dimension_numbers<[1], [0], [0], [1], [0, 0, 1, 1], [], []>} : vector<8x128xbf16>, vector<128x384xbf16>, vector<8x384xf32> -> vector<8x384xf32>
    %110 = vector.broadcast %6 : vector<1x384xf32> to vector<8x384xf32>
    %111 = arith.addf %109, %110 : vector<8x384xf32>
    %112 = vector.extract_strided_slice %107 {offsets = [0, 0], sizes = [8, 128], strides = [1, 1]} : vector<8x384xf32> to vector<8x128xf32>
    %113 = vector.extract_strided_slice %111 {offsets = [0, 0], sizes = [8, 128], strides = [1, 1]} : vector<8x384xf32> to vector<8x128xf32>
    %114 = arith.addf %112, %113 : vector<8x128xf32>
    %115 = arith.negf %114 : vector<8x128xf32>
    %116 = math.exp %115 : vector<8x128xf32>
    %cst_40 = arith.constant 1.000000e+00 : f32
    %117 = vector.broadcast %cst_40 : f32 to vector<8x128xf32>
    %118 = arith.addf %117, %116 : vector<8x128xf32>
    %119 = arith.divf %117, %118 : vector<8x128xf32>
    %120 = vector.extract_strided_slice %107 {offsets = [0, 128], sizes = [8, 128], strides = [1, 1]} : vector<8x384xf32> to vector<8x128xf32>
    %121 = vector.extract_strided_slice %111 {offsets = [0, 128], sizes = [8, 128], strides = [1, 1]} : vector<8x384xf32> to vector<8x128xf32>
    %122 = arith.addf %120, %121 : vector<8x128xf32>
    %123 = arith.negf %122 : vector<8x128xf32>
    %124 = math.exp %123 : vector<8x128xf32>
    %cst_41 = arith.constant 1.000000e+00 : f32
    %125 = vector.broadcast %cst_41 : f32 to vector<8x128xf32>
    %126 = arith.addf %125, %124 : vector<8x128xf32>
    %127 = arith.divf %125, %126 : vector<8x128xf32>
    %128 = vector.extract_strided_slice %107 {offsets = [0, 256], sizes = [8, 128], strides = [1, 1]} : vector<8x384xf32> to vector<8x128xf32>
    %129 = vector.extract_strided_slice %111 {offsets = [0, 256], sizes = [8, 128], strides = [1, 1]} : vector<8x384xf32> to vector<8x128xf32>
    %130 = arith.mulf %119, %129 : vector<8x128xf32>
    %131 = arith.addf %128, %130 : vector<8x128xf32>
    %132 = math.tanh %131 : vector<8x128xf32>
    %cst_42 = arith.constant 1.000000e+00 : f32
    %133 = vector.broadcast %cst_42 : f32 to vector<8x128xf32>
    %134 = arith.subf %133, %127 : vector<8x128xf32>
    %135 = arith.mulf %134, %132 : vector<8x128xf32>
    %136 = arith.mulf %127, %87 : vector<8x128xf32>
    %137 = arith.addf %135, %136 : vector<8x128xf32>
    %c6 = arith.constant 6 : index
    %c0_43 = arith.constant 0 : index
    %c0_44 = arith.constant 0 : index
    %138 = vector.load %arg3[%c6, %c0_43, %c0_44] : memref<8x8x384xbf16, #tpu.memory_space<vmem>>, vector<1x8x384xbf16>
    %139 = vector.shape_cast %138 : vector<1x8x384xbf16> to vector<8x384xbf16>
    %140 = arith.extf %139 : vector<8x384xbf16> to vector<8x384xf32>
    %141 = arith.truncf %90 : vector<8x128xf32> to vector<8x128xbf16>
    %cst_45 = arith.constant dense<0.000000e+00> : vector<8x384xf32>
    %142 = tpu.matmul %141, %5, %cst_45 {dimension_numbers = #tpu.dot_dimension_numbers<[1], [0], [0], [1], [0, 0, 1, 1], [], []>} : vector<8x128xbf16>, vector<128x384xbf16>, vector<8x384xf32> -> vector<8x384xf32>
    %143 = vector.broadcast %7 : vector<1x384xf32> to vector<8x384xf32>
    %144 = arith.addf %142, %143 : vector<8x384xf32>
    %145 = vector.extract_strided_slice %140 {offsets = [0, 0], sizes = [8, 128], strides = [1, 1]} : vector<8x384xf32> to vector<8x128xf32>
    %146 = vector.extract_strided_slice %144 {offsets = [0, 0], sizes = [8, 128], strides = [1, 1]} : vector<8x384xf32> to vector<8x128xf32>
    %147 = arith.addf %145, %146 : vector<8x128xf32>
    %148 = arith.negf %147 : vector<8x128xf32>
    %149 = math.exp %148 : vector<8x128xf32>
    %cst_46 = arith.constant 1.000000e+00 : f32
    %150 = vector.broadcast %cst_46 : f32 to vector<8x128xf32>
    %151 = arith.addf %150, %149 : vector<8x128xf32>
    %152 = arith.divf %150, %151 : vector<8x128xf32>
    %153 = vector.extract_strided_slice %140 {offsets = [0, 128], sizes = [8, 128], strides = [1, 1]} : vector<8x384xf32> to vector<8x128xf32>
    %154 = vector.extract_strided_slice %144 {offsets = [0, 128], sizes = [8, 128], strides = [1, 1]} : vector<8x384xf32> to vector<8x128xf32>
    %155 = arith.addf %153, %154 : vector<8x128xf32>
    %156 = arith.negf %155 : vector<8x128xf32>
    %157 = math.exp %156 : vector<8x128xf32>
    %cst_47 = arith.constant 1.000000e+00 : f32
    %158 = vector.broadcast %cst_47 : f32 to vector<8x128xf32>
    %159 = arith.addf %158, %157 : vector<8x128xf32>
    %160 = arith.divf %158, %159 : vector<8x128xf32>
    %161 = vector.extract_strided_slice %140 {offsets = [0, 256], sizes = [8, 128], strides = [1, 1]} : vector<8x384xf32> to vector<8x128xf32>
    %162 = vector.extract_strided_slice %144 {offsets = [0, 256], sizes = [8, 128], strides = [1, 1]} : vector<8x384xf32> to vector<8x128xf32>
    %163 = arith.mulf %152, %162 : vector<8x128xf32>
    %164 = arith.addf %161, %163 : vector<8x128xf32>
    %165 = math.tanh %164 : vector<8x128xf32>
    %cst_48 = arith.constant 1.000000e+00 : f32
    %166 = vector.broadcast %cst_48 : f32 to vector<8x128xf32>
    %167 = arith.subf %166, %160 : vector<8x128xf32>
    %168 = arith.mulf %167, %165 : vector<8x128xf32>
    %169 = arith.mulf %160, %90 : vector<8x128xf32>
    %170 = arith.addf %168, %169 : vector<8x128xf32>
    %c1_i32 = arith.constant 1 : i32
    %171 = arith.addi %8, %c1_i32 : i32
    %172 = vector.broadcast %171 : i32 to vector<8x1xi32>
    %173 = arith.cmpi slt, %172, %3 : vector<8x1xi32>
    %c6_i32 = arith.constant 6 : i32
    %174 = arith.addi %10, %c6_i32 : i32
    %175 = vector.broadcast %174 : i32 to vector<8x1xi32>
    %176 = arith.cmpi slt, %175, %3 : vector<8x1xi32>
    %177 = vector.shape_cast %173 : vector<8x1xi1> to vector<8x1xi1>
    %178 = vector.broadcast %177 : vector<8x1xi1> to vector<8x128xi1>
    %179 = arith.select %178, %137, %87 : vector<8x128xi1>, vector<8x128xf32>
    %180 = vector.shape_cast %176 : vector<8x1xi1> to vector<8x1xi1>
    %181 = vector.broadcast %180 : vector<8x1xi1> to vector<8x128xi1>
    %182 = arith.select %181, %170, %90 : vector<8x128xi1>, vector<8x128xf32>
    %cst_49 = arith.constant 0.000000e+00 : f32
    %183 = vector.shape_cast %173 : vector<8x1xi1> to vector<8x1xi1>
    %184 = vector.broadcast %183 : vector<8x1xi1> to vector<8x128xi1>
    %185 = vector.broadcast %cst_49 : f32 to vector<8x128xf32>
    %186 = arith.select %184, %179, %185 : vector<8x128xi1>, vector<8x128xf32>
    %c1_50 = arith.constant 1 : index
    %c0_51 = arith.constant 0 : index
    %c0_52 = arith.constant 0 : index
    %187 = vector.load %arg9[%c1_50, %c0_51, %c0_52] : memref<8x8x128xf32, #tpu.memory_space<vmem>>, vector<1x8x128xf32>
    %188 = vector.shape_cast %187 : vector<1x8x128xf32> to vector<8x128xf32>
    %189 = vector.shape_cast %186 : vector<8x128xf32> to vector<1x8x128xf32>
    tpu.vector_store %arg9[%c1_50, %c0_51, %c0_52], %189 {strides = array<i32>} : memref<8x8x128xf32, #tpu.memory_space<vmem>>, vector<1x8x128xf32>,
    %cst_53 = arith.constant 0.000000e+00 : f32
    %190 = vector.shape_cast %176 : vector<8x1xi1> to vector<8x1xi1>
    %191 = vector.broadcast %190 : vector<8x1xi1> to vector<8x128xi1>
    %192 = vector.broadcast %cst_53 : f32 to vector<8x128xf32>
    %193 = arith.select %191, %182, %192 : vector<8x128xi1>, vector<8x128xf32>
    %c6_54 = arith.constant 6 : index
    %c0_55 = arith.constant 0 : index
    %c0_56 = arith.constant 0 : index
    %194 = vector.load %arg10[%c6_54, %c0_55, %c0_56] : memref<8x8x128xf32, #tpu.memory_space<vmem>>, vector<1x8x128xf32>
    %195 = vector.shape_cast %194 : vector<1x8x128xf32> to vector<8x128xf32>
    %196 = vector.shape_cast %193 : vector<8x128xf32> to vector<1x8x128xf32>
    tpu.vector_store %arg10[%c6_54, %c0_55, %c0_56], %196 {strides = array<i32>} : memref<8x8x128xf32, #tpu.memory_space<vmem>>, vector<1x8x128xf32>,
    %c2 = arith.constant 2 : index
    %c0_57 = arith.constant 0 : index
    %c0_58 = arith.constant 0 : index
    %197 = vector.load %arg2[%c2, %c0_57, %c0_58] : memref<8x8x384xbf16, #tpu.memory_space<vmem>>, vector<1x8x384xbf16>
    %198 = vector.shape_cast %197 : vector<1x8x384xbf16> to vector<8x384xbf16>
    %199 = arith.extf %198 : vector<8x384xbf16> to vector<8x384xf32>
    %200 = arith.truncf %179 : vector<8x128xf32> to vector<8x128xbf16>
    %cst_59 = arith.constant dense<0.000000e+00> : vector<8x384xf32>
    %201 = tpu.matmul %200, %4, %cst_59 {dimension_numbers = #tpu.dot_dimension_numbers<[1], [0], [0], [1], [0, 0, 1, 1], [], []>} : vector<8x128xbf16>, vector<128x384xbf16>, vector<8x384xf32> -> vector<8x384xf32>
    %202 = vector.broadcast %6 : vector<1x384xf32> to vector<8x384xf32>
    %203 = arith.addf %201, %202 : vector<8x384xf32>
    %204 = vector.extract_strided_slice %199 {offsets = [0, 0], sizes = [8, 128], strides = [1, 1]} : vector<8x384xf32> to vector<8x128xf32>
    %205 = vector.extract_strided_slice %203 {offsets = [0, 0], sizes = [8, 128], strides = [1, 1]} : vector<8x384xf32> to vector<8x128xf32>
    %206 = arith.addf %204, %205 : vector<8x128xf32>
    %207 = arith.negf %206 : vector<8x128xf32>
    %208 = math.exp %207 : vector<8x128xf32>
    %cst_60 = arith.constant 1.000000e+00 : f32
    %209 = vector.broadcast %cst_60 : f32 to vector<8x128xf32>
    %210 = arith.addf %209, %208 : vector<8x128xf32>
    %211 = arith.divf %209, %210 : vector<8x128xf32>
    %212 = vector.extract_strided_slice %199 {offsets = [0, 128], sizes = [8, 128], strides = [1, 1]} : vector<8x384xf32> to vector<8x128xf32>
    %213 = vector.extract_strided_slice %203 {offsets = [0, 128], sizes = [8, 128], strides = [1, 1]} : vector<8x384xf32> to vector<8x128xf32>
    %214 = arith.addf %212, %213 : vector<8x128xf32>
    %215 = arith.negf %214 : vector<8x128xf32>
    %216 = math.exp %215 : vector<8x128xf32>
    %cst_61 = arith.constant 1.000000e+00 : f32
    %217 = vector.broadcast %cst_61 : f32 to vector<8x128xf32>
    %218 = arith.addf %217, %216 : vector<8x128xf32>
    %219 = arith.divf %217, %218 : vector<8x128xf32>
    %220 = vector.extract_strided_slice %199 {offsets = [0, 256], sizes = [8, 128], strides = [1, 1]} : vector<8x384xf32> to vector<8x128xf32>
    %221 = vector.extract_strided_slice %203 {offsets = [0, 256], sizes = [8, 128], strides = [1, 1]} : vector<8x384xf32> to vector<8x128xf32>
    %222 = arith.mulf %211, %221 : vector<8x128xf32>
    %223 = arith.addf %220, %222 : vector<8x128xf32>
    %224 = math.tanh %223 : vector<8x128xf32>
    %cst_62 = arith.constant 1.000000e+00 : f32
    %225 = vector.broadcast %cst_62 : f32 to vector<8x128xf32>
    %226 = arith.subf %225, %219 : vector<8x128xf32>
    %227 = arith.mulf %226, %224 : vector<8x128xf32>
    %228 = arith.mulf %219, %179 : vector<8x128xf32>
    %229 = arith.addf %227, %228 : vector<8x128xf32>
    %c5 = arith.constant 5 : index
    %c0_63 = arith.constant 0 : index
    %c0_64 = arith.constant 0 : index
    %230 = vector.load %arg3[%c5, %c0_63, %c0_64] : memref<8x8x384xbf16, #tpu.memory_space<vmem>>, vector<1x8x384xbf16>
    %231 = vector.shape_cast %230 : vector<1x8x384xbf16> to vector<8x384xbf16>
    %232 = arith.extf %231 : vector<8x384xbf16> to vector<8x384xf32>
    %233 = arith.truncf %182 : vector<8x128xf32> to vector<8x128xbf16>
    %cst_65 = arith.constant dense<0.000000e+00> : vector<8x384xf32>
    %234 = tpu.matmul %233, %5, %cst_65 {dimension_numbers = #tpu.dot_dimension_numbers<[1], [0], [0], [1], [0, 0, 1, 1], [], []>} : vector<8x128xbf16>, vector<128x384xbf16>, vector<8x384xf32> -> vector<8x384xf32>
    %235 = vector.broadcast %7 : vector<1x384xf32> to vector<8x384xf32>
    %236 = arith.addf %234, %235 : vector<8x384xf32>
    %237 = vector.extract_strided_slice %232 {offsets = [0, 0], sizes = [8, 128], strides = [1, 1]} : vector<8x384xf32> to vector<8x128xf32>
    %238 = vector.extract_strided_slice %236 {offsets = [0, 0], sizes = [8, 128], strides = [1, 1]} : vector<8x384xf32> to vector<8x128xf32>
    %239 = arith.addf %237, %238 : vector<8x128xf32>
    %240 = arith.negf %239 : vector<8x128xf32>
    %241 = math.exp %240 : vector<8x128xf32>
    %cst_66 = arith.constant 1.000000e+00 : f32
    %242 = vector.broadcast %cst_66 : f32 to vector<8x128xf32>
    %243 = arith.addf %242, %241 : vector<8x128xf32>
    %244 = arith.divf %242, %243 : vector<8x128xf32>
    %245 = vector.extract_strided_slice %232 {offsets = [0, 128], sizes = [8, 128], strides = [1, 1]} : vector<8x384xf32> to vector<8x128xf32>
    %246 = vector.extract_strided_slice %236 {offsets = [0, 128], sizes = [8, 128], strides = [1, 1]} : vector<8x384xf32> to vector<8x128xf32>
    %247 = arith.addf %245, %246 : vector<8x128xf32>
    %248 = arith.negf %247 : vector<8x128xf32>
    %249 = math.exp %248 : vector<8x128xf32>
    %cst_67 = arith.constant 1.000000e+00 : f32
    %250 = vector.broadcast %cst_67 : f32 to vector<8x128xf32>
    %251 = arith.addf %250, %249 : vector<8x128xf32>
    %252 = arith.divf %250, %251 : vector<8x128xf32>
    %253 = vector.extract_strided_slice %232 {offsets = [0, 256], sizes = [8, 128], strides = [1, 1]} : vector<8x384xf32> to vector<8x128xf32>
    %254 = vector.extract_strided_slice %236 {offsets = [0, 256], sizes = [8, 128], strides = [1, 1]} : vector<8x384xf32> to vector<8x128xf32>
    %255 = arith.mulf %244, %254 : vector<8x128xf32>
    %256 = arith.addf %253, %255 : vector<8x128xf32>
    %257 = math.tanh %256 : vector<8x128xf32>
    %cst_68 = arith.constant 1.000000e+00 : f32
    %258 = vector.broadcast %cst_68 : f32 to vector<8x128xf32>
    %259 = arith.subf %258, %252 : vector<8x128xf32>
    %260 = arith.mulf %259, %257 : vector<8x128xf32>
    %261 = arith.mulf %252, %182 : vector<8x128xf32>
    %262 = arith.addf %260, %261 : vector<8x128xf32>
    %c2_i32 = arith.constant 2 : i32
    %263 = arith.addi %8, %c2_i32 : i32
    %264 = vector.broadcast %263 : i32 to vector<8x1xi32>
    %265 = arith.cmpi slt, %264, %3 : vector<8x1xi32>
    %c5_i32 = arith.constant 5 : i32
    %266 = arith.addi %10, %c5_i32 : i32
    %267 = vector.broadcast %266 : i32 to vector<8x1xi32>
    %268 = arith.cmpi slt, %267, %3 : vector<8x1xi32>
    %269 = vector.shape_cast %265 : vector<8x1xi1> to vector<8x1xi1>
    %270 = vector.broadcast %269 : vector<8x1xi1> to vector<8x128xi1>
    %271 = arith.select %270, %229, %179 : vector<8x128xi1>, vector<8x128xf32>
    %272 = vector.shape_cast %268 : vector<8x1xi1> to vector<8x1xi1>
    %273 = vector.broadcast %272 : vector<8x1xi1> to vector<8x128xi1>
    %274 = arith.select %273, %262, %182 : vector<8x128xi1>, vector<8x128xf32>
    %cst_69 = arith.constant 0.000000e+00 : f32
    %275 = vector.shape_cast %265 : vector<8x1xi1> to vector<8x1xi1>
    %276 = vector.broadcast %275 : vector<8x1xi1> to vector<8x128xi1>
    %277 = vector.broadcast %cst_69 : f32 to vector<8x128xf32>
    %278 = arith.select %276, %271, %277 : vector<8x128xi1>, vector<8x128xf32>
    %c2_70 = arith.constant 2 : index
    %c0_71 = arith.constant 0 : index
    %c0_72 = arith.constant 0 : index
    %279 = vector.load %arg9[%c2_70, %c0_71, %c0_72] : memref<8x8x128xf32, #tpu.memory_space<vmem>>, vector<1x8x128xf32>
    %280 = vector.shape_cast %279 : vector<1x8x128xf32> to vector<8x128xf32>
    %281 = vector.shape_cast %278 : vector<8x128xf32> to vector<1x8x128xf32>
    tpu.vector_store %arg9[%c2_70, %c0_71, %c0_72], %281 {strides = array<i32>} : memref<8x8x128xf32, #tpu.memory_space<vmem>>, vector<1x8x128xf32>,
    %cst_73 = arith.constant 0.000000e+00 : f32
    %282 = vector.shape_cast %268 : vector<8x1xi1> to vector<8x1xi1>
    %283 = vector.broadcast %282 : vector<8x1xi1> to vector<8x128xi1>
    %284 = vector.broadcast %cst_73 : f32 to vector<8x128xf32>
    %285 = arith.select %283, %274, %284 : vector<8x128xi1>, vector<8x128xf32>
    %c5_74 = arith.constant 5 : index
    %c0_75 = arith.constant 0 : index
    %c0_76 = arith.constant 0 : index
    %286 = vector.load %arg10[%c5_74, %c0_75, %c0_76] : memref<8x8x128xf32, #tpu.memory_space<vmem>>, vector<1x8x128xf32>
    %287 = vector.shape_cast %286 : vector<1x8x128xf32> to vector<8x128xf32>
    %288 = vector.shape_cast %285 : vector<8x128xf32> to vector<1x8x128xf32>
    tpu.vector_store %arg10[%c5_74, %c0_75, %c0_76], %288 {strides = array<i32>} : memref<8x8x128xf32, #tpu.memory_space<vmem>>, vector<1x8x128xf32>,
    %c3 = arith.constant 3 : index
    %c0_77 = arith.constant 0 : index
    %c0_78 = arith.constant 0 : index
    %289 = vector.load %arg2[%c3, %c0_77, %c0_78] : memref<8x8x384xbf16, #tpu.memory_space<vmem>>, vector<1x8x384xbf16>
    %290 = vector.shape_cast %289 : vector<1x8x384xbf16> to vector<8x384xbf16>
    %291 = arith.extf %290 : vector<8x384xbf16> to vector<8x384xf32>
    %292 = arith.truncf %271 : vector<8x128xf32> to vector<8x128xbf16>
    %cst_79 = arith.constant dense<0.000000e+00> : vector<8x384xf32>
    %293 = tpu.matmul %292, %4, %cst_79 {dimension_numbers = #tpu.dot_dimension_numbers<[1], [0], [0], [1], [0, 0, 1, 1], [], []>} : vector<8x128xbf16>, vector<128x384xbf16>, vector<8x384xf32> -> vector<8x384xf32>
    %294 = vector.broadcast %6 : vector<1x384xf32> to vector<8x384xf32>
    %295 = arith.addf %293, %294 : vector<8x384xf32>
    %296 = vector.extract_strided_slice %291 {offsets = [0, 0], sizes = [8, 128], strides = [1, 1]} : vector<8x384xf32> to vector<8x128xf32>
    %297 = vector.extract_strided_slice %295 {offsets = [0, 0], sizes = [8, 128], strides = [1, 1]} : vector<8x384xf32> to vector<8x128xf32>
    %298 = arith.addf %296, %297 : vector<8x128xf32>
    %299 = arith.negf %298 : vector<8x128xf32>
    %300 = math.exp %299 : vector<8x128xf32>
    %cst_80 = arith.constant 1.000000e+00 : f32
    %301 = vector.broadcast %cst_80 : f32 to vector<8x128xf32>
    %302 = arith.addf %301, %300 : vector<8x128xf32>
    %303 = arith.divf %301, %302 : vector<8x128xf32>
    %304 = vector.extract_strided_slice %291 {offsets = [0, 128], sizes = [8, 128], strides = [1, 1]} : vector<8x384xf32> to vector<8x128xf32>
    %305 = vector.extract_strided_slice %295 {offsets = [0, 128], sizes = [8, 128], strides = [1, 1]} : vector<8x384xf32> to vector<8x128xf32>
    %306 = arith.addf %304, %305 : vector<8x128xf32>
    %307 = arith.negf %306 : vector<8x128xf32>
    %308 = math.exp %307 : vector<8x128xf32>
    %cst_81 = arith.constant 1.000000e+00 : f32
    %309 = vector.broadcast %cst_81 : f32 to vector<8x128xf32>
    %310 = arith.addf %309, %308 : vector<8x128xf32>
    %311 = arith.divf %309, %310 : vector<8x128xf32>
    %312 = vector.extract_strided_slice %291 {offsets = [0, 256], sizes = [8, 128], strides = [1, 1]} : vector<8x384xf32> to vector<8x128xf32>
    %313 = vector.extract_strided_slice %295 {offsets = [0, 256], sizes = [8, 128], strides = [1, 1]} : vector<8x384xf32> to vector<8x128xf32>
    %314 = arith.mulf %303, %313 : vector<8x128xf32>
    %315 = arith.addf %312, %314 : vector<8x128xf32>
    %316 = math.tanh %315 : vector<8x128xf32>
    %cst_82 = arith.constant 1.000000e+00 : f32
    %317 = vector.broadcast %cst_82 : f32 to vector<8x128xf32>
    %318 = arith.subf %317, %311 : vector<8x128xf32>
    %319 = arith.mulf %318, %316 : vector<8x128xf32>
    %320 = arith.mulf %311, %271 : vector<8x128xf32>
    %321 = arith.addf %319, %320 : vector<8x128xf32>
    %c4 = arith.constant 4 : index
    %c0_83 = arith.constant 0 : index
    %c0_84 = arith.constant 0 : index
    %322 = vector.load %arg3[%c4, %c0_83, %c0_84] : memref<8x8x384xbf16, #tpu.memory_space<vmem>>, vector<1x8x384xbf16>
    %323 = vector.shape_cast %322 : vector<1x8x384xbf16> to vector<8x384xbf16>
    %324 = arith.extf %323 : vector<8x384xbf16> to vector<8x384xf32>
    %325 = arith.truncf %274 : vector<8x128xf32> to vector<8x128xbf16>
    %cst_85 = arith.constant dense<0.000000e+00> : vector<8x384xf32>
    %326 = tpu.matmul %325, %5, %cst_85 {dimension_numbers = #tpu.dot_dimension_numbers<[1], [0], [0], [1], [0, 0, 1, 1], [], []>} : vector<8x128xbf16>, vector<128x384xbf16>, vector<8x384xf32> -> vector<8x384xf32>
    %327 = vector.broadcast %7 : vector<1x384xf32> to vector<8x384xf32>
    %328 = arith.addf %326, %327 : vector<8x384xf32>
    %329 = vector.extract_strided_slice %324 {offsets = [0, 0], sizes = [8, 128], strides = [1, 1]} : vector<8x384xf32> to vector<8x128xf32>
    %330 = vector.extract_strided_slice %328 {offsets = [0, 0], sizes = [8, 128], strides = [1, 1]} : vector<8x384xf32> to vector<8x128xf32>
    %331 = arith.addf %329, %330 : vector<8x128xf32>
    %332 = arith.negf %331 : vector<8x128xf32>
    %333 = math.exp %332 : vector<8x128xf32>
    %cst_86 = arith.constant 1.000000e+00 : f32
    %334 = vector.broadcast %cst_86 : f32 to vector<8x128xf32>
    %335 = arith.addf %334, %333 : vector<8x128xf32>
    %336 = arith.divf %334, %335 : vector<8x128xf32>
    %337 = vector.extract_strided_slice %324 {offsets = [0, 128], sizes = [8, 128], strides = [1, 1]} : vector<8x384xf32> to vector<8x128xf32>
    %338 = vector.extract_strided_slice %328 {offsets = [0, 128], sizes = [8, 128], strides = [1, 1]} : vector<8x384xf32> to vector<8x128xf32>
    %339 = arith.addf %337, %338 : vector<8x128xf32>
    %340 = arith.negf %339 : vector<8x128xf32>
    %341 = math.exp %340 : vector<8x128xf32>
    %cst_87 = arith.constant 1.000000e+00 : f32
    %342 = vector.broadcast %cst_87 : f32 to vector<8x128xf32>
    %343 = arith.addf %342, %341 : vector<8x128xf32>
    %344 = arith.divf %342, %343 : vector<8x128xf32>
    %345 = vector.extract_strided_slice %324 {offsets = [0, 256], sizes = [8, 128], strides = [1, 1]} : vector<8x384xf32> to vector<8x128xf32>
    %346 = vector.extract_strided_slice %328 {offsets = [0, 256], sizes = [8, 128], strides = [1, 1]} : vector<8x384xf32> to vector<8x128xf32>
    %347 = arith.mulf %336, %346 : vector<8x128xf32>
    %348 = arith.addf %345, %347 : vector<8x128xf32>
    %349 = math.tanh %348 : vector<8x128xf32>
    %cst_88 = arith.constant 1.000000e+00 : f32
    %350 = vector.broadcast %cst_88 : f32 to vector<8x128xf32>
    %351 = arith.subf %350, %344 : vector<8x128xf32>
    %352 = arith.mulf %351, %349 : vector<8x128xf32>
    %353 = arith.mulf %344, %274 : vector<8x128xf32>
    %354 = arith.addf %352, %353 : vector<8x128xf32>
    %c3_i32 = arith.constant 3 : i32
    %355 = arith.addi %8, %c3_i32 : i32
    %356 = vector.broadcast %355 : i32 to vector<8x1xi32>
    %357 = arith.cmpi slt, %356, %3 : vector<8x1xi32>
    %c4_i32 = arith.constant 4 : i32
    %358 = arith.addi %10, %c4_i32 : i32
    %359 = vector.broadcast %358 : i32 to vector<8x1xi32>
    %360 = arith.cmpi slt, %359, %3 : vector<8x1xi32>
    %361 = vector.shape_cast %357 : vector<8x1xi1> to vector<8x1xi1>
    %362 = vector.broadcast %361 : vector<8x1xi1> to vector<8x128xi1>
    %363 = arith.select %362, %321, %271 : vector<8x128xi1>, vector<8x128xf32>
    %364 = vector.shape_cast %360 : vector<8x1xi1> to vector<8x1xi1>
    %365 = vector.broadcast %364 : vector<8x1xi1> to vector<8x128xi1>
    %366 = arith.select %365, %354, %274 : vector<8x128xi1>, vector<8x128xf32>
    %cst_89 = arith.constant 0.000000e+00 : f32
    %367 = vector.shape_cast %357 : vector<8x1xi1> to vector<8x1xi1>
    %368 = vector.broadcast %367 : vector<8x1xi1> to vector<8x128xi1>
    %369 = vector.broadcast %cst_89 : f32 to vector<8x128xf32>
    %370 = arith.select %368, %363, %369 : vector<8x128xi1>, vector<8x128xf32>
    %c3_90 = arith.constant 3 : index
    %c0_91 = arith.constant 0 : index
    %c0_92 = arith.constant 0 : index
    %371 = vector.load %arg9[%c3_90, %c0_91, %c0_92] : memref<8x8x128xf32, #tpu.memory_space<vmem>>, vector<1x8x128xf32>
    %372 = vector.shape_cast %371 : vector<1x8x128xf32> to vector<8x128xf32>
    %373 = vector.shape_cast %370 : vector<8x128xf32> to vector<1x8x128xf32>
    tpu.vector_store %arg9[%c3_90, %c0_91, %c0_92], %373 {strides = array<i32>} : memref<8x8x128xf32, #tpu.memory_space<vmem>>, vector<1x8x128xf32>,
    %cst_93 = arith.constant 0.000000e+00 : f32
    %374 = vector.shape_cast %360 : vector<8x1xi1> to vector<8x1xi1>
    %375 = vector.broadcast %374 : vector<8x1xi1> to vector<8x128xi1>
    %376 = vector.broadcast %cst_93 : f32 to vector<8x128xf32>
    %377 = arith.select %375, %366, %376 : vector<8x128xi1>, vector<8x128xf32>
    %c4_94 = arith.constant 4 : index
    %c0_95 = arith.constant 0 : index
    %c0_96 = arith.constant 0 : index
    %378 = vector.load %arg10[%c4_94, %c0_95, %c0_96] : memref<8x8x128xf32, #tpu.memory_space<vmem>>, vector<1x8x128xf32>
    %379 = vector.shape_cast %378 : vector<1x8x128xf32> to vector<8x128xf32>
    %380 = vector.shape_cast %377 : vector<8x128xf32> to vector<1x8x128xf32>
    tpu.vector_store %arg10[%c4_94, %c0_95, %c0_96], %380 {strides = array<i32>} : memref<8x8x128xf32, #tpu.memory_space<vmem>>, vector<1x8x128xf32>,
    %c4_97 = arith.constant 4 : index
    %c0_98 = arith.constant 0 : index
    %c0_99 = arith.constant 0 : index
    %381 = vector.load %arg2[%c4_97, %c0_98, %c0_99] : memref<8x8x384xbf16, #tpu.memory_space<vmem>>, vector<1x8x384xbf16>
    %382 = vector.shape_cast %381 : vector<1x8x384xbf16> to vector<8x384xbf16>
    %383 = arith.extf %382 : vector<8x384xbf16> to vector<8x384xf32>
    %384 = arith.truncf %363 : vector<8x128xf32> to vector<8x128xbf16>
    %cst_100 = arith.constant dense<0.000000e+00> : vector<8x384xf32>
    %385 = tpu.matmul %384, %4, %cst_100 {dimension_numbers = #tpu.dot_dimension_numbers<[1], [0], [0], [1], [0, 0, 1, 1], [], []>} : vector<8x128xbf16>, vector<128x384xbf16>, vector<8x384xf32> -> vector<8x384xf32>
    %386 = vector.broadcast %6 : vector<1x384xf32> to vector<8x384xf32>
    %387 = arith.addf %385, %386 : vector<8x384xf32>
    %388 = vector.extract_strided_slice %383 {offsets = [0, 0], sizes = [8, 128], strides = [1, 1]} : vector<8x384xf32> to vector<8x128xf32>
    %389 = vector.extract_strided_slice %387 {offsets = [0, 0], sizes = [8, 128], strides = [1, 1]} : vector<8x384xf32> to vector<8x128xf32>
    %390 = arith.addf %388, %389 : vector<8x128xf32>
    %391 = arith.negf %390 : vector<8x128xf32>
    %392 = math.exp %391 : vector<8x128xf32>
    %cst_101 = arith.constant 1.000000e+00 : f32
    %393 = vector.broadcast %cst_101 : f32 to vector<8x128xf32>
    %394 = arith.addf %393, %392 : vector<8x128xf32>
    %395 = arith.divf %393, %394 : vector<8x128xf32>
    %396 = vector.extract_strided_slice %383 {offsets = [0, 128], sizes = [8, 128], strides = [1, 1]} : vector<8x384xf32> to vector<8x128xf32>
    %397 = vector.extract_strided_slice %387 {offsets = [0, 128], sizes = [8, 128], strides = [1, 1]} : vector<8x384xf32> to vector<8x128xf32>
    %398 = arith.addf %396, %397 : vector<8x128xf32>
    %399 = arith.negf %398 : vector<8x128xf32>
    %400 = math.exp %399 : vector<8x128xf32>
    %cst_102 = arith.constant 1.000000e+00 : f32
    %401 = vector.broadcast %cst_102 : f32 to vector<8x128xf32>
    %402 = arith.addf %401, %400 : vector<8x128xf32>
    %403 = arith.divf %401, %402 : vector<8x128xf32>
    %404 = vector.extract_strided_slice %383 {offsets = [0, 256], sizes = [8, 128], strides = [1, 1]} : vector<8x384xf32> to vector<8x128xf32>
    %405 = vector.extract_strided_slice %387 {offsets = [0, 256], sizes = [8, 128], strides = [1, 1]} : vector<8x384xf32> to vector<8x128xf32>
    %406 = arith.mulf %395, %405 : vector<8x128xf32>
    %407 = arith.addf %404, %406 : vector<8x128xf32>
    %408 = math.tanh %407 : vector<8x128xf32>
    %cst_103 = arith.constant 1.000000e+00 : f32
    %409 = vector.broadcast %cst_103 : f32 to vector<8x128xf32>
    %410 = arith.subf %409, %403 : vector<8x128xf32>
    %411 = arith.mulf %410, %408 : vector<8x128xf32>
    %412 = arith.mulf %403, %363 : vector<8x128xf32>
    %413 = arith.addf %411, %412 : vector<8x128xf32>
    %c3_104 = arith.constant 3 : index
    %c0_105 = arith.constant 0 : index
    %c0_106 = arith.constant 0 : index
    %414 = vector.load %arg3[%c3_104, %c0_105, %c0_106] : memref<8x8x384xbf16, #tpu.memory_space<vmem>>, vector<1x8x384xbf16>
    %415 = vector.shape_cast %414 : vector<1x8x384xbf16> to vector<8x384xbf16>
    %416 = arith.extf %415 : vector<8x384xbf16> to vector<8x384xf32>
    %417 = arith.truncf %366 : vector<8x128xf32> to vector<8x128xbf16>
    %cst_107 = arith.constant dense<0.000000e+00> : vector<8x384xf32>
    %418 = tpu.matmul %417, %5, %cst_107 {dimension_numbers = #tpu.dot_dimension_numbers<[1], [0], [0], [1], [0, 0, 1, 1], [], []>} : vector<8x128xbf16>, vector<128x384xbf16>, vector<8x384xf32> -> vector<8x384xf32>
    %419 = vector.broadcast %7 : vector<1x384xf32> to vector<8x384xf32>
    %420 = arith.addf %418, %419 : vector<8x384xf32>
    %421 = vector.extract_strided_slice %416 {offsets = [0, 0], sizes = [8, 128], strides = [1, 1]} : vector<8x384xf32> to vector<8x128xf32>
    %422 = vector.extract_strided_slice %420 {offsets = [0, 0], sizes = [8, 128], strides = [1, 1]} : vector<8x384xf32> to vector<8x128xf32>
    %423 = arith.addf %421, %422 : vector<8x128xf32>
    %424 = arith.negf %423 : vector<8x128xf32>
    %425 = math.exp %424 : vector<8x128xf32>
    %cst_108 = arith.constant 1.000000e+00 : f32
    %426 = vector.broadcast %cst_108 : f32 to vector<8x128xf32>
    %427 = arith.addf %426, %425 : vector<8x128xf32>
    %428 = arith.divf %426, %427 : vector<8x128xf32>
    %429 = vector.extract_strided_slice %416 {offsets = [0, 128], sizes = [8, 128], strides = [1, 1]} : vector<8x384xf32> to vector<8x128xf32>
    %430 = vector.extract_strided_slice %420 {offsets = [0, 128], sizes = [8, 128], strides = [1, 1]} : vector<8x384xf32> to vector<8x128xf32>
    %431 = arith.addf %429, %430 : vector<8x128xf32>
    %432 = arith.negf %431 : vector<8x128xf32>
    %433 = math.exp %432 : vector<8x128xf32>
    %cst_109 = arith.constant 1.000000e+00 : f32
    %434 = vector.broadcast %cst_109 : f32 to vector<8x128xf32>
    %435 = arith.addf %434, %433 : vector<8x128xf32>
    %436 = arith.divf %434, %435 : vector<8x128xf32>
    %437 = vector.extract_strided_slice %416 {offsets = [0, 256], sizes = [8, 128], strides = [1, 1]} : vector<8x384xf32> to vector<8x128xf32>
    %438 = vector.extract_strided_slice %420 {offsets = [0, 256], sizes = [8, 128], strides = [1, 1]} : vector<8x384xf32> to vector<8x128xf32>
    %439 = arith.mulf %428, %438 : vector<8x128xf32>
    %440 = arith.addf %437, %439 : vector<8x128xf32>
    %441 = math.tanh %440 : vector<8x128xf32>
    %cst_110 = arith.constant 1.000000e+00 : f32
    %442 = vector.broadcast %cst_110 : f32 to vector<8x128xf32>
    %443 = arith.subf %442, %436 : vector<8x128xf32>
    %444 = arith.mulf %443, %441 : vector<8x128xf32>
    %445 = arith.mulf %436, %366 : vector<8x128xf32>
    %446 = arith.addf %444, %445 : vector<8x128xf32>
    %c4_i32_111 = arith.constant 4 : i32
    %447 = arith.addi %8, %c4_i32_111 : i32
    %448 = vector.broadcast %447 : i32 to vector<8x1xi32>
    %449 = arith.cmpi slt, %448, %3 : vector<8x1xi32>
    %c3_i32_112 = arith.constant 3 : i32
    %450 = arith.addi %10, %c3_i32_112 : i32
    %451 = vector.broadcast %450 : i32 to vector<8x1xi32>
    %452 = arith.cmpi slt, %451, %3 : vector<8x1xi32>
    %453 = vector.shape_cast %449 : vector<8x1xi1> to vector<8x1xi1>
    %454 = vector.broadcast %453 : vector<8x1xi1> to vector<8x128xi1>
    %455 = arith.select %454, %413, %363 : vector<8x128xi1>, vector<8x128xf32>
    %456 = vector.shape_cast %452 : vector<8x1xi1> to vector<8x1xi1>
    %457 = vector.broadcast %456 : vector<8x1xi1> to vector<8x128xi1>
    %458 = arith.select %457, %446, %366 : vector<8x128xi1>, vector<8x128xf32>
    %cst_113 = arith.constant 0.000000e+00 : f32
    %459 = vector.shape_cast %449 : vector<8x1xi1> to vector<8x1xi1>
    %460 = vector.broadcast %459 : vector<8x1xi1> to vector<8x128xi1>
    %461 = vector.broadcast %cst_113 : f32 to vector<8x128xf32>
    %462 = arith.select %460, %455, %461 : vector<8x128xi1>, vector<8x128xf32>
    %c4_114 = arith.constant 4 : index
    %c0_115 = arith.constant 0 : index
    %c0_116 = arith.constant 0 : index
    %463 = vector.load %arg9[%c4_114, %c0_115, %c0_116] : memref<8x8x128xf32, #tpu.memory_space<vmem>>, vector<1x8x128xf32>
    %464 = vector.shape_cast %463 : vector<1x8x128xf32> to vector<8x128xf32>
    %465 = vector.shape_cast %462 : vector<8x128xf32> to vector<1x8x128xf32>
    tpu.vector_store %arg9[%c4_114, %c0_115, %c0_116], %465 {strides = array<i32>} : memref<8x8x128xf32, #tpu.memory_space<vmem>>, vector<1x8x128xf32>,
    %cst_117 = arith.constant 0.000000e+00 : f32
    %466 = vector.shape_cast %452 : vector<8x1xi1> to vector<8x1xi1>
    %467 = vector.broadcast %466 : vector<8x1xi1> to vector<8x128xi1>
    %468 = vector.broadcast %cst_117 : f32 to vector<8x128xf32>
    %469 = arith.select %467, %458, %468 : vector<8x128xi1>, vector<8x128xf32>
    %c3_118 = arith.constant 3 : index
    %c0_119 = arith.constant 0 : index
    %c0_120 = arith.constant 0 : index
    %470 = vector.load %arg10[%c3_118, %c0_119, %c0_120] : memref<8x8x128xf32, #tpu.memory_space<vmem>>, vector<1x8x128xf32>
    %471 = vector.shape_cast %470 : vector<1x8x128xf32> to vector<8x128xf32>
    %472 = vector.shape_cast %469 : vector<8x128xf32> to vector<1x8x128xf32>
    tpu.vector_store %arg10[%c3_118, %c0_119, %c0_120], %472 {strides = array<i32>} : memref<8x8x128xf32, #tpu.memory_space<vmem>>, vector<1x8x128xf32>,
    %c5_121 = arith.constant 5 : index
    %c0_122 = arith.constant 0 : index
    %c0_123 = arith.constant 0 : index
    %473 = vector.load %arg2[%c5_121, %c0_122, %c0_123] : memref<8x8x384xbf16, #tpu.memory_space<vmem>>, vector<1x8x384xbf16>
    %474 = vector.shape_cast %473 : vector<1x8x384xbf16> to vector<8x384xbf16>
    %475 = arith.extf %474 : vector<8x384xbf16> to vector<8x384xf32>
    %476 = arith.truncf %455 : vector<8x128xf32> to vector<8x128xbf16>
    %cst_124 = arith.constant dense<0.000000e+00> : vector<8x384xf32>
    %477 = tpu.matmul %476, %4, %cst_124 {dimension_numbers = #tpu.dot_dimension_numbers<[1], [0], [0], [1], [0, 0, 1, 1], [], []>} : vector<8x128xbf16>, vector<128x384xbf16>, vector<8x384xf32> -> vector<8x384xf32>
    %478 = vector.broadcast %6 : vector<1x384xf32> to vector<8x384xf32>
    %479 = arith.addf %477, %478 : vector<8x384xf32>
    %480 = vector.extract_strided_slice %475 {offsets = [0, 0], sizes = [8, 128], strides = [1, 1]} : vector<8x384xf32> to vector<8x128xf32>
    %481 = vector.extract_strided_slice %479 {offsets = [0, 0], sizes = [8, 128], strides = [1, 1]} : vector<8x384xf32> to vector<8x128xf32>
    %482 = arith.addf %480, %481 : vector<8x128xf32>
    %483 = arith.negf %482 : vector<8x128xf32>
    %484 = math.exp %483 : vector<8x128xf32>
    %cst_125 = arith.constant 1.000000e+00 : f32
    %485 = vector.broadcast %cst_125 : f32 to vector<8x128xf32>
    %486 = arith.addf %485, %484 : vector<8x128xf32>
    %487 = arith.divf %485, %486 : vector<8x128xf32>
    %488 = vector.extract_strided_slice %475 {offsets = [0, 128], sizes = [8, 128], strides = [1, 1]} : vector<8x384xf32> to vector<8x128xf32>
    %489 = vector.extract_strided_slice %479 {offsets = [0, 128], sizes = [8, 128], strides = [1, 1]} : vector<8x384xf32> to vector<8x128xf32>
    %490 = arith.addf %488, %489 : vector<8x128xf32>
    %491 = arith.negf %490 : vector<8x128xf32>
    %492 = math.exp %491 : vector<8x128xf32>
    %cst_126 = arith.constant 1.000000e+00 : f32
    %493 = vector.broadcast %cst_126 : f32 to vector<8x128xf32>
    %494 = arith.addf %493, %492 : vector<8x128xf32>
    %495 = arith.divf %493, %494 : vector<8x128xf32>
    %496 = vector.extract_strided_slice %475 {offsets = [0, 256], sizes = [8, 128], strides = [1, 1]} : vector<8x384xf32> to vector<8x128xf32>
    %497 = vector.extract_strided_slice %479 {offsets = [0, 256], sizes = [8, 128], strides = [1, 1]} : vector<8x384xf32> to vector<8x128xf32>
    %498 = arith.mulf %487, %497 : vector<8x128xf32>
    %499 = arith.addf %496, %498 : vector<8x128xf32>
    %500 = math.tanh %499 : vector<8x128xf32>
    %cst_127 = arith.constant 1.000000e+00 : f32
    %501 = vector.broadcast %cst_127 : f32 to vector<8x128xf32>
    %502 = arith.subf %501, %495 : vector<8x128xf32>
    %503 = arith.mulf %502, %500 : vector<8x128xf32>
    %504 = arith.mulf %495, %455 : vector<8x128xf32>
    %505 = arith.addf %503, %504 : vector<8x128xf32>
    %c2_128 = arith.constant 2 : index
    %c0_129 = arith.constant 0 : index
    %c0_130 = arith.constant 0 : index
    %506 = vector.load %arg3[%c2_128, %c0_129, %c0_130] : memref<8x8x384xbf16, #tpu.memory_space<vmem>>, vector<1x8x384xbf16>
    %507 = vector.shape_cast %506 : vector<1x8x384xbf16> to vector<8x384xbf16>
    %508 = arith.extf %507 : vector<8x384xbf16> to vector<8x384xf32>
    %509 = arith.truncf %458 : vector<8x128xf32> to vector<8x128xbf16>
    %cst_131 = arith.constant dense<0.000000e+00> : vector<8x384xf32>
    %510 = tpu.matmul %509, %5, %cst_131 {dimension_numbers = #tpu.dot_dimension_numbers<[1], [0], [0], [1], [0, 0, 1, 1], [], []>} : vector<8x128xbf16>, vector<128x384xbf16>, vector<8x384xf32> -> vector<8x384xf32>
    %511 = vector.broadcast %7 : vector<1x384xf32> to vector<8x384xf32>
    %512 = arith.addf %510, %511 : vector<8x384xf32>
    %513 = vector.extract_strided_slice %508 {offsets = [0, 0], sizes = [8, 128], strides = [1, 1]} : vector<8x384xf32> to vector<8x128xf32>
    %514 = vector.extract_strided_slice %512 {offsets = [0, 0], sizes = [8, 128], strides = [1, 1]} : vector<8x384xf32> to vector<8x128xf32>
    %515 = arith.addf %513, %514 : vector<8x128xf32>
    %516 = arith.negf %515 : vector<8x128xf32>
    %517 = math.exp %516 : vector<8x128xf32>
    %cst_132 = arith.constant 1.000000e+00 : f32
    %518 = vector.broadcast %cst_132 : f32 to vector<8x128xf32>
    %519 = arith.addf %518, %517 : vector<8x128xf32>
    %520 = arith.divf %518, %519 : vector<8x128xf32>
    %521 = vector.extract_strided_slice %508 {offsets = [0, 128], sizes = [8, 128], strides = [1, 1]} : vector<8x384xf32> to vector<8x128xf32>
    %522 = vector.extract_strided_slice %512 {offsets = [0, 128], sizes = [8, 128], strides = [1, 1]} : vector<8x384xf32> to vector<8x128xf32>
    %523 = arith.addf %521, %522 : vector<8x128xf32>
    %524 = arith.negf %523 : vector<8x128xf32>
    %525 = math.exp %524 : vector<8x128xf32>
    %cst_133 = arith.constant 1.000000e+00 : f32
    %526 = vector.broadcast %cst_133 : f32 to vector<8x128xf32>
    %527 = arith.addf %526, %525 : vector<8x128xf32>
    %528 = arith.divf %526, %527 : vector<8x128xf32>
    %529 = vector.extract_strided_slice %508 {offsets = [0, 256], sizes = [8, 128], strides = [1, 1]} : vector<8x384xf32> to vector<8x128xf32>
    %530 = vector.extract_strided_slice %512 {offsets = [0, 256], sizes = [8, 128], strides = [1, 1]} : vector<8x384xf32> to vector<8x128xf32>
    %531 = arith.mulf %520, %530 : vector<8x128xf32>
    %532 = arith.addf %529, %531 : vector<8x128xf32>
    %533 = math.tanh %532 : vector<8x128xf32>
    %cst_134 = arith.constant 1.000000e+00 : f32
    %534 = vector.broadcast %cst_134 : f32 to vector<8x128xf32>
    %535 = arith.subf %534, %528 : vector<8x128xf32>
    %536 = arith.mulf %535, %533 : vector<8x128xf32>
    %537 = arith.mulf %528, %458 : vector<8x128xf32>
    %538 = arith.addf %536, %537 : vector<8x128xf32>
    %c5_i32_135 = arith.constant 5 : i32
    %539 = arith.addi %8, %c5_i32_135 : i32
    %540 = vector.broadcast %539 : i32 to vector<8x1xi32>
    %541 = arith.cmpi slt, %540, %3 : vector<8x1xi32>
    %c2_i32_136 = arith.constant 2 : i32
    %542 = arith.addi %10, %c2_i32_136 : i32
    %543 = vector.broadcast %542 : i32 to vector<8x1xi32>
    %544 = arith.cmpi slt, %543, %3 : vector<8x1xi32>
    %545 = vector.shape_cast %541 : vector<8x1xi1> to vector<8x1xi1>
    %546 = vector.broadcast %545 : vector<8x1xi1> to vector<8x128xi1>
    %547 = arith.select %546, %505, %455 : vector<8x128xi1>, vector<8x128xf32>
    %548 = vector.shape_cast %544 : vector<8x1xi1> to vector<8x1xi1>
    %549 = vector.broadcast %548 : vector<8x1xi1> to vector<8x128xi1>
    %550 = arith.select %549, %538, %458 : vector<8x128xi1>, vector<8x128xf32>
    %cst_137 = arith.constant 0.000000e+00 : f32
    %551 = vector.shape_cast %541 : vector<8x1xi1> to vector<8x1xi1>
    %552 = vector.broadcast %551 : vector<8x1xi1> to vector<8x128xi1>
    %553 = vector.broadcast %cst_137 : f32 to vector<8x128xf32>
    %554 = arith.select %552, %547, %553 : vector<8x128xi1>, vector<8x128xf32>
    %c5_138 = arith.constant 5 : index
    %c0_139 = arith.constant 0 : index
    %c0_140 = arith.constant 0 : index
    %555 = vector.load %arg9[%c5_138, %c0_139, %c0_140] : memref<8x8x128xf32, #tpu.memory_space<vmem>>, vector<1x8x128xf32>
    %556 = vector.shape_cast %555 : vector<1x8x128xf32> to vector<8x128xf32>
    %557 = vector.shape_cast %554 : vector<8x128xf32> to vector<1x8x128xf32>
    tpu.vector_store %arg9[%c5_138, %c0_139, %c0_140], %557 {strides = array<i32>} : memref<8x8x128xf32, #tpu.memory_space<vmem>>, vector<1x8x128xf32>,
    %cst_141 = arith.constant 0.000000e+00 : f32
    %558 = vector.shape_cast %544 : vector<8x1xi1> to vector<8x1xi1>
    %559 = vector.broadcast %558 : vector<8x1xi1> to vector<8x128xi1>
    %560 = vector.broadcast %cst_141 : f32 to vector<8x128xf32>
    %561 = arith.select %559, %550, %560 : vector<8x128xi1>, vector<8x128xf32>
    %c2_142 = arith.constant 2 : index
    %c0_143 = arith.constant 0 : index
    %c0_144 = arith.constant 0 : index
    %562 = vector.load %arg10[%c2_142, %c0_143, %c0_144] : memref<8x8x128xf32, #tpu.memory_space<vmem>>, vector<1x8x128xf32>
    %563 = vector.shape_cast %562 : vector<1x8x128xf32> to vector<8x128xf32>
    %564 = vector.shape_cast %561 : vector<8x128xf32> to vector<1x8x128xf32>
    tpu.vector_store %arg10[%c2_142, %c0_143, %c0_144], %564 {strides = array<i32>} : memref<8x8x128xf32, #tpu.memory_space<vmem>>, vector<1x8x128xf32>,
    %c6_145 = arith.constant 6 : index
    %c0_146 = arith.constant 0 : index
    %c0_147 = arith.constant 0 : index
    %565 = vector.load %arg2[%c6_145, %c0_146, %c0_147] : memref<8x8x384xbf16, #tpu.memory_space<vmem>>, vector<1x8x384xbf16>
    %566 = vector.shape_cast %565 : vector<1x8x384xbf16> to vector<8x384xbf16>
    %567 = arith.extf %566 : vector<8x384xbf16> to vector<8x384xf32>
    %568 = arith.truncf %547 : vector<8x128xf32> to vector<8x128xbf16>
    %cst_148 = arith.constant dense<0.000000e+00> : vector<8x384xf32>
    %569 = tpu.matmul %568, %4, %cst_148 {dimension_numbers = #tpu.dot_dimension_numbers<[1], [0], [0], [1], [0, 0, 1, 1], [], []>} : vector<8x128xbf16>, vector<128x384xbf16>, vector<8x384xf32> -> vector<8x384xf32>
    %570 = vector.broadcast %6 : vector<1x384xf32> to vector<8x384xf32>
    %571 = arith.addf %569, %570 : vector<8x384xf32>
    %572 = vector.extract_strided_slice %567 {offsets = [0, 0], sizes = [8, 128], strides = [1, 1]} : vector<8x384xf32> to vector<8x128xf32>
    %573 = vector.extract_strided_slice %571 {offsets = [0, 0], sizes = [8, 128], strides = [1, 1]} : vector<8x384xf32> to vector<8x128xf32>
    %574 = arith.addf %572, %573 : vector<8x128xf32>
    %575 = arith.negf %574 : vector<8x128xf32>
    %576 = math.exp %575 : vector<8x128xf32>
    %cst_149 = arith.constant 1.000000e+00 : f32
    %577 = vector.broadcast %cst_149 : f32 to vector<8x128xf32>
    %578 = arith.addf %577, %576 : vector<8x128xf32>
    %579 = arith.divf %577, %578 : vector<8x128xf32>
    %580 = vector.extract_strided_slice %567 {offsets = [0, 128], sizes = [8, 128], strides = [1, 1]} : vector<8x384xf32> to vector<8x128xf32>
    %581 = vector.extract_strided_slice %571 {offsets = [0, 128], sizes = [8, 128], strides = [1, 1]} : vector<8x384xf32> to vector<8x128xf32>
    %582 = arith.addf %580, %581 : vector<8x128xf32>
    %583 = arith.negf %582 : vector<8x128xf32>
    %584 = math.exp %583 : vector<8x128xf32>
    %cst_150 = arith.constant 1.000000e+00 : f32
    %585 = vector.broadcast %cst_150 : f32 to vector<8x128xf32>
    %586 = arith.addf %585, %584 : vector<8x128xf32>
    %587 = arith.divf %585, %586 : vector<8x128xf32>
    %588 = vector.extract_strided_slice %567 {offsets = [0, 256], sizes = [8, 128], strides = [1, 1]} : vector<8x384xf32> to vector<8x128xf32>
    %589 = vector.extract_strided_slice %571 {offsets = [0, 256], sizes = [8, 128], strides = [1, 1]} : vector<8x384xf32> to vector<8x128xf32>
    %590 = arith.mulf %579, %589 : vector<8x128xf32>
    %591 = arith.addf %588, %590 : vector<8x128xf32>
    %592 = math.tanh %591 : vector<8x128xf32>
    %cst_151 = arith.constant 1.000000e+00 : f32
    %593 = vector.broadcast %cst_151 : f32 to vector<8x128xf32>
    %594 = arith.subf %593, %587 : vector<8x128xf32>
    %595 = arith.mulf %594, %592 : vector<8x128xf32>
    %596 = arith.mulf %587, %547 : vector<8x128xf32>
    %597 = arith.addf %595, %596 : vector<8x128xf32>
    %c1_152 = arith.constant 1 : index
    %c0_153 = arith.constant 0 : index
    %c0_154 = arith.constant 0 : index
    %598 = vector.load %arg3[%c1_152, %c0_153, %c0_154] : memref<8x8x384xbf16, #tpu.memory_space<vmem>>, vector<1x8x384xbf16>
    %599 = vector.shape_cast %598 : vector<1x8x384xbf16> to vector<8x384xbf16>
    %600 = arith.extf %599 : vector<8x384xbf16> to vector<8x384xf32>
    %601 = arith.truncf %550 : vector<8x128xf32> to vector<8x128xbf16>
    %cst_155 = arith.constant dense<0.000000e+00> : vector<8x384xf32>
    %602 = tpu.matmul %601, %5, %cst_155 {dimension_numbers = #tpu.dot_dimension_numbers<[1], [0], [0], [1], [0, 0, 1, 1], [], []>} : vector<8x128xbf16>, vector<128x384xbf16>, vector<8x384xf32> -> vector<8x384xf32>
    %603 = vector.broadcast %7 : vector<1x384xf32> to vector<8x384xf32>
    %604 = arith.addf %602, %603 : vector<8x384xf32>
    %605 = vector.extract_strided_slice %600 {offsets = [0, 0], sizes = [8, 128], strides = [1, 1]} : vector<8x384xf32> to vector<8x128xf32>
    %606 = vector.extract_strided_slice %604 {offsets = [0, 0], sizes = [8, 128], strides = [1, 1]} : vector<8x384xf32> to vector<8x128xf32>
    %607 = arith.addf %605, %606 : vector<8x128xf32>
    %608 = arith.negf %607 : vector<8x128xf32>
    %609 = math.exp %608 : vector<8x128xf32>
    %cst_156 = arith.constant 1.000000e+00 : f32
    %610 = vector.broadcast %cst_156 : f32 to vector<8x128xf32>
    %611 = arith.addf %610, %609 : vector<8x128xf32>
    %612 = arith.divf %610, %611 : vector<8x128xf32>
    %613 = vector.extract_strided_slice %600 {offsets = [0, 128], sizes = [8, 128], strides = [1, 1]} : vector<8x384xf32> to vector<8x128xf32>
    %614 = vector.extract_strided_slice %604 {offsets = [0, 128], sizes = [8, 128], strides = [1, 1]} : vector<8x384xf32> to vector<8x128xf32>
    %615 = arith.addf %613, %614 : vector<8x128xf32>
    %616 = arith.negf %615 : vector<8x128xf32>
    %617 = math.exp %616 : vector<8x128xf32>
    %cst_157 = arith.constant 1.000000e+00 : f32
    %618 = vector.broadcast %cst_157 : f32 to vector<8x128xf32>
    %619 = arith.addf %618, %617 : vector<8x128xf32>
    %620 = arith.divf %618, %619 : vector<8x128xf32>
    %621 = vector.extract_strided_slice %600 {offsets = [0, 256], sizes = [8, 128], strides = [1, 1]} : vector<8x384xf32> to vector<8x128xf32>
    %622 = vector.extract_strided_slice %604 {offsets = [0, 256], sizes = [8, 128], strides = [1, 1]} : vector<8x384xf32> to vector<8x128xf32>
    %623 = arith.mulf %612, %622 : vector<8x128xf32>
    %624 = arith.addf %621, %623 : vector<8x128xf32>
    %625 = math.tanh %624 : vector<8x128xf32>
    %cst_158 = arith.constant 1.000000e+00 : f32
    %626 = vector.broadcast %cst_158 : f32 to vector<8x128xf32>
    %627 = arith.subf %626, %620 : vector<8x128xf32>
    %628 = arith.mulf %627, %625 : vector<8x128xf32>
    %629 = arith.mulf %620, %550 : vector<8x128xf32>
    %630 = arith.addf %628, %629 : vector<8x128xf32>
    %c6_i32_159 = arith.constant 6 : i32
    %631 = arith.addi %8, %c6_i32_159 : i32
    %632 = vector.broadcast %631 : i32 to vector<8x1xi32>
    %633 = arith.cmpi slt, %632, %3 : vector<8x1xi32>
    %c1_i32_160 = arith.constant 1 : i32
    %634 = arith.addi %10, %c1_i32_160 : i32
    %635 = vector.broadcast %634 : i32 to vector<8x1xi32>
    %636 = arith.cmpi slt, %635, %3 : vector<8x1xi32>
    %637 = vector.shape_cast %633 : vector<8x1xi1> to vector<8x1xi1>
    %638 = vector.broadcast %637 : vector<8x1xi1> to vector<8x128xi1>
    %639 = arith.select %638, %597, %547 : vector<8x128xi1>, vector<8x128xf32>
    %640 = vector.shape_cast %636 : vector<8x1xi1> to vector<8x1xi1>
    %641 = vector.broadcast %640 : vector<8x1xi1> to vector<8x128xi1>
    %642 = arith.select %641, %630, %550 : vector<8x128xi1>, vector<8x128xf32>
    %cst_161 = arith.constant 0.000000e+00 : f32
    %643 = vector.shape_cast %633 : vector<8x1xi1> to vector<8x1xi1>
    %644 = vector.broadcast %643 : vector<8x1xi1> to vector<8x128xi1>
    %645 = vector.broadcast %cst_161 : f32 to vector<8x128xf32>
    %646 = arith.select %644, %639, %645 : vector<8x128xi1>, vector<8x128xf32>
    %c6_162 = arith.constant 6 : index
    %c0_163 = arith.constant 0 : index
    %c0_164 = arith.constant 0 : index
    %647 = vector.load %arg9[%c6_162, %c0_163, %c0_164] : memref<8x8x128xf32, #tpu.memory_space<vmem>>, vector<1x8x128xf32>
    %648 = vector.shape_cast %647 : vector<1x8x128xf32> to vector<8x128xf32>
    %649 = vector.shape_cast %646 : vector<8x128xf32> to vector<1x8x128xf32>
    tpu.vector_store %arg9[%c6_162, %c0_163, %c0_164], %649 {strides = array<i32>} : memref<8x8x128xf32, #tpu.memory_space<vmem>>, vector<1x8x128xf32>,
    %cst_165 = arith.constant 0.000000e+00 : f32
    %650 = vector.shape_cast %636 : vector<8x1xi1> to vector<8x1xi1>
    %651 = vector.broadcast %650 : vector<8x1xi1> to vector<8x128xi1>
    %652 = vector.broadcast %cst_165 : f32 to vector<8x128xf32>
    %653 = arith.select %651, %642, %652 : vector<8x128xi1>, vector<8x128xf32>
    %c1_166 = arith.constant 1 : index
    %c0_167 = arith.constant 0 : index
    %c0_168 = arith.constant 0 : index
    %654 = vector.load %arg10[%c1_166, %c0_167, %c0_168] : memref<8x8x128xf32, #tpu.memory_space<vmem>>, vector<1x8x128xf32>
    %655 = vector.shape_cast %654 : vector<1x8x128xf32> to vector<8x128xf32>
    %656 = vector.shape_cast %653 : vector<8x128xf32> to vector<1x8x128xf32>
    tpu.vector_store %arg10[%c1_166, %c0_167, %c0_168], %656 {strides = array<i32>} : memref<8x8x128xf32, #tpu.memory_space<vmem>>, vector<1x8x128xf32>,
    %c7_169 = arith.constant 7 : index
    %c0_170 = arith.constant 0 : index
    %c0_171 = arith.constant 0 : index
    %657 = vector.load %arg2[%c7_169, %c0_170, %c0_171] : memref<8x8x384xbf16, #tpu.memory_space<vmem>>, vector<1x8x384xbf16>
    %658 = vector.shape_cast %657 : vector<1x8x384xbf16> to vector<8x384xbf16>
    %659 = arith.extf %658 : vector<8x384xbf16> to vector<8x384xf32>
    %660 = arith.truncf %639 : vector<8x128xf32> to vector<8x128xbf16>
    %cst_172 = arith.constant dense<0.000000e+00> : vector<8x384xf32>
    %661 = tpu.matmul %660, %4, %cst_172 {dimension_numbers = #tpu.dot_dimension_numbers<[1], [0], [0], [1], [0, 0, 1, 1], [], []>} : vector<8x128xbf16>, vector<128x384xbf16>, vector<8x384xf32> -> vector<8x384xf32>
    %662 = vector.broadcast %6 : vector<1x384xf32> to vector<8x384xf32>
    %663 = arith.addf %661, %662 : vector<8x384xf32>
    %664 = vector.extract_strided_slice %659 {offsets = [0, 0], sizes = [8, 128], strides = [1, 1]} : vector<8x384xf32> to vector<8x128xf32>
    %665 = vector.extract_strided_slice %663 {offsets = [0, 0], sizes = [8, 128], strides = [1, 1]} : vector<8x384xf32> to vector<8x128xf32>
    %666 = arith.addf %664, %665 : vector<8x128xf32>
    %667 = arith.negf %666 : vector<8x128xf32>
    %668 = math.exp %667 : vector<8x128xf32>
    %cst_173 = arith.constant 1.000000e+00 : f32
    %669 = vector.broadcast %cst_173 : f32 to vector<8x128xf32>
    %670 = arith.addf %669, %668 : vector<8x128xf32>
    %671 = arith.divf %669, %670 : vector<8x128xf32>
    %672 = vector.extract_strided_slice %659 {offsets = [0, 128], sizes = [8, 128], strides = [1, 1]} : vector<8x384xf32> to vector<8x128xf32>
    %673 = vector.extract_strided_slice %663 {offsets = [0, 128], sizes = [8, 128], strides = [1, 1]} : vector<8x384xf32> to vector<8x128xf32>
    %674 = arith.addf %672, %673 : vector<8x128xf32>
    %675 = arith.negf %674 : vector<8x128xf32>
    %676 = math.exp %675 : vector<8x128xf32>
    %cst_174 = arith.constant 1.000000e+00 : f32
    %677 = vector.broadcast %cst_174 : f32 to vector<8x128xf32>
    %678 = arith.addf %677, %676 : vector<8x128xf32>
    %679 = arith.divf %677, %678 : vector<8x128xf32>
    %680 = vector.extract_strided_slice %659 {offsets = [0, 256], sizes = [8, 128], strides = [1, 1]} : vector<8x384xf32> to vector<8x128xf32>
    %681 = vector.extract_strided_slice %663 {offsets = [0, 256], sizes = [8, 128], strides = [1, 1]} : vector<8x384xf32> to vector<8x128xf32>
    %682 = arith.mulf %671, %681 : vector<8x128xf32>
    %683 = arith.addf %680, %682 : vector<8x128xf32>
    %684 = math.tanh %683 : vector<8x128xf32>
    %cst_175 = arith.constant 1.000000e+00 : f32
    %685 = vector.broadcast %cst_175 : f32 to vector<8x128xf32>
    %686 = arith.subf %685, %679 : vector<8x128xf32>
    %687 = arith.mulf %686, %684 : vector<8x128xf32>
    %688 = arith.mulf %679, %639 : vector<8x128xf32>
    %689 = arith.addf %687, %688 : vector<8x128xf32>
    %c0_176 = arith.constant 0 : index
    %c0_177 = arith.constant 0 : index
    %c0_178 = arith.constant 0 : index
    %690 = vector.load %arg3[%c0_176, %c0_177, %c0_178] : memref<8x8x384xbf16, #tpu.memory_space<vmem>>, vector<1x8x384xbf16>
    %691 = vector.shape_cast %690 : vector<1x8x384xbf16> to vector<8x384xbf16>
    %692 = arith.extf %691 : vector<8x384xbf16> to vector<8x384xf32>
    %693 = arith.truncf %642 : vector<8x128xf32> to vector<8x128xbf16>
    %cst_179 = arith.constant dense<0.000000e+00> : vector<8x384xf32>
    %694 = tpu.matmul %693, %5, %cst_179 {dimension_numbers = #tpu.dot_dimension_numbers<[1], [0], [0], [1], [0, 0, 1, 1], [], []>} : vector<8x128xbf16>, vector<128x384xbf16>, vector<8x384xf32> -> vector<8x384xf32>
    %695 = vector.broadcast %7 : vector<1x384xf32> to vector<8x384xf32>
    %696 = arith.addf %694, %695 : vector<8x384xf32>
    %697 = vector.extract_strided_slice %692 {offsets = [0, 0], sizes = [8, 128], strides = [1, 1]} : vector<8x384xf32> to vector<8x128xf32>
    %698 = vector.extract_strided_slice %696 {offsets = [0, 0], sizes = [8, 128], strides = [1, 1]} : vector<8x384xf32> to vector<8x128xf32>
    %699 = arith.addf %697, %698 : vector<8x128xf32>
    %700 = arith.negf %699 : vector<8x128xf32>
    %701 = math.exp %700 : vector<8x128xf32>
    %cst_180 = arith.constant 1.000000e+00 : f32
    %702 = vector.broadcast %cst_180 : f32 to vector<8x128xf32>
    %703 = arith.addf %702, %701 : vector<8x128xf32>
    %704 = arith.divf %702, %703 : vector<8x128xf32>
    %705 = vector.extract_strided_slice %692 {offsets = [0, 128], sizes = [8, 128], strides = [1, 1]} : vector<8x384xf32> to vector<8x128xf32>
    %706 = vector.extract_strided_slice %696 {offsets = [0, 128], sizes = [8, 128], strides = [1, 1]} : vector<8x384xf32> to vector<8x128xf32>
    %707 = arith.addf %705, %706 : vector<8x128xf32>
    %708 = arith.negf %707 : vector<8x128xf32>
    %709 = math.exp %708 : vector<8x128xf32>
    %cst_181 = arith.constant 1.000000e+00 : f32
    %710 = vector.broadcast %cst_181 : f32 to vector<8x128xf32>
    %711 = arith.addf %710, %709 : vector<8x128xf32>
    %712 = arith.divf %710, %711 : vector<8x128xf32>
    %713 = vector.extract_strided_slice %692 {offsets = [0, 256], sizes = [8, 128], strides = [1, 1]} : vector<8x384xf32> to vector<8x128xf32>
    %714 = vector.extract_strided_slice %696 {offsets = [0, 256], sizes = [8, 128], strides = [1, 1]} : vector<8x384xf32> to vector<8x128xf32>
    %715 = arith.mulf %704, %714 : vector<8x128xf32>
    %716 = arith.addf %713, %715 : vector<8x128xf32>
    %717 = math.tanh %716 : vector<8x128xf32>
    %cst_182 = arith.constant 1.000000e+00 : f32
    %718 = vector.broadcast %cst_182 : f32 to vector<8x128xf32>
    %719 = arith.subf %718, %712 : vector<8x128xf32>
    %720 = arith.mulf %719, %717 : vector<8x128xf32>
    %721 = arith.mulf %712, %642 : vector<8x128xf32>
    %722 = arith.addf %720, %721 : vector<8x128xf32>
    %c7_i32_183 = arith.constant 7 : i32
    %723 = arith.addi %8, %c7_i32_183 : i32
    %724 = vector.broadcast %723 : i32 to vector<8x1xi32>
    %725 = arith.cmpi slt, %724, %3 : vector<8x1xi32>
    %c0_i32_184 = arith.constant 0 : i32
    %726 = arith.addi %10, %c0_i32_184 : i32
    %727 = vector.broadcast %726 : i32 to vector<8x1xi32>
    %728 = arith.cmpi slt, %727, %3 : vector<8x1xi32>
    %729 = vector.shape_cast %725 : vector<8x1xi1> to vector<8x1xi1>
    %730 = vector.broadcast %729 : vector<8x1xi1> to vector<8x128xi1>
    %731 = arith.select %730, %689, %639 : vector<8x128xi1>, vector<8x128xf32>
    %732 = vector.shape_cast %728 : vector<8x1xi1> to vector<8x1xi1>
    %733 = vector.broadcast %732 : vector<8x1xi1> to vector<8x128xi1>
    %734 = arith.select %733, %722, %642 : vector<8x128xi1>, vector<8x128xf32>
    %cst_185 = arith.constant 0.000000e+00 : f32
    %735 = vector.shape_cast %725 : vector<8x1xi1> to vector<8x1xi1>
    %736 = vector.broadcast %735 : vector<8x1xi1> to vector<8x128xi1>
    %737 = vector.broadcast %cst_185 : f32 to vector<8x128xf32>
    %738 = arith.select %736, %731, %737 : vector<8x128xi1>, vector<8x128xf32>
    %c7_186 = arith.constant 7 : index
    %c0_187 = arith.constant 0 : index
    %c0_188 = arith.constant 0 : index
    %739 = vector.load %arg9[%c7_186, %c0_187, %c0_188] : memref<8x8x128xf32, #tpu.memory_space<vmem>>, vector<1x8x128xf32>
    %740 = vector.shape_cast %739 : vector<1x8x128xf32> to vector<8x128xf32>
    %741 = vector.shape_cast %738 : vector<8x128xf32> to vector<1x8x128xf32>
    tpu.vector_store %arg9[%c7_186, %c0_187, %c0_188], %741 {strides = array<i32>} : memref<8x8x128xf32, #tpu.memory_space<vmem>>, vector<1x8x128xf32>,
    %cst_189 = arith.constant 0.000000e+00 : f32
    %742 = vector.shape_cast %728 : vector<8x1xi1> to vector<8x1xi1>
    %743 = vector.broadcast %742 : vector<8x1xi1> to vector<8x128xi1>
    %744 = vector.broadcast %cst_189 : f32 to vector<8x128xf32>
    %745 = arith.select %743, %734, %744 : vector<8x128xi1>, vector<8x128xf32>
    %c0_190 = arith.constant 0 : index
    %c0_191 = arith.constant 0 : index
    %c0_192 = arith.constant 0 : index
    %746 = vector.load %arg10[%c0_190, %c0_191, %c0_192] : memref<8x8x128xf32, #tpu.memory_space<vmem>>, vector<1x8x128xf32>
    %747 = vector.shape_cast %746 : vector<1x8x128xf32> to vector<8x128xf32>
    %748 = vector.shape_cast %745 : vector<8x128xf32> to vector<1x8x128xf32>
    tpu.vector_store %arg10[%c0_190, %c0_191, %c0_192], %748 {strides = array<i32>} : memref<8x8x128xf32, #tpu.memory_space<vmem>>, vector<1x8x128xf32>,
    %c0_193 = arith.constant 0 : index
    %c0_194 = arith.constant 0 : index
    %749 = vector.load %arg13[%c0_193, %c0_194] : memref<8x128xf32, #tpu.memory_space<vmem>>, vector<8x128xf32>
    tpu.vector_store %arg13[%c0_193, %c0_194], %731 {strides = array<i32>} : memref<8x128xf32, #tpu.memory_space<vmem>>, vector<8x128xf32>,
    %c0_195 = arith.constant 0 : index
    %c0_196 = arith.constant 0 : index
    %750 = vector.load %arg14[%c0_195, %c0_196] : memref<8x128xf32, #tpu.memory_space<vmem>>, vector<8x128xf32>
    tpu.vector_store %arg14[%c0_195, %c0_196], %734 {strides = array<i32>} : memref<8x128xf32, #tpu.memory_space<vmem>>, vector<8x128xf32>,
    %c0_i32_197 = arith.constant 0 : i32
    %751 = arith.cmpi eq, %arg1, %c0_i32_197 : i32
    %752 = arith.extui %751 : i1 to i32
    %c0_i32_198 = arith.constant 0 : i32
    %753 = arith.cmpi ne, %752, %c0_i32_198 : i32
    scf.if %753 {
      %c0_199 = arith.constant 0 : index
      %c0_200 = arith.constant 0 : index
      %754 = vector.load %arg11[%c0_199, %c0_200] : memref<8x128xf32, #tpu.memory_space<vmem>>, vector<8x128xf32>
      tpu.vector_store %arg11[%c0_199, %c0_200], %731 {strides = array<i32>} : memref<8x128xf32, #tpu.memory_space<vmem>>, vector<8x128xf32>,
      %c0_201 = arith.constant 0 : index
      %c0_202 = arith.constant 0 : index
      %755 = vector.load %arg12[%c0_201, %c0_202] : memref<8x128xf32, #tpu.memory_space<vmem>>, vector<8x128xf32>
      tpu.vector_store %arg12[%c0_201, %c0_202], %734 {strides = array<i32>} : memref<8x128xf32, #tpu.memory_space<vmem>>, vector<8x128xf32>,
    } else {
    }
    return
  }
  func.func @transform_0(%arg0: i32, %arg1: i32) -> (i32, i32, i32) {
    %c0_i32 = arith.constant 0 : i32
    %c0_i32_0 = arith.constant 0 : i32
    return %arg1, %arg0, %c0_i32 : i32, i32, i32
  }
  func.func @transform_1(%arg0: i32, %arg1: i32) -> (i32, i32, i32) {
    %c0_i32 = arith.constant 0 : i32
    %0 = arith.subi %c0_i32, %arg1 : i32
    %c0_i32_0 = arith.constant 0 : i32
    %c0_i32_1 = arith.constant 0 : i32
    return %0, %arg0, %c0_i32_0 : i32, i32, i32
  }
  func.func @transform_2(%arg0: i32, %arg1: i32) -> (i32, i32) {
    %c0_i32 = arith.constant 0 : i32
    %c0_i32_0 = arith.constant 0 : i32
    %c0_i32_1 = arith.constant 0 : i32
    return %c0_i32, %c0_i32_0 : i32, i32
  }
  func.func @transform_3(%arg0: i32, %arg1: i32) -> (i32, i32) {
    %c0_i32 = arith.constant 0 : i32
    %c0_i32_0 = arith.constant 0 : i32
    %c0_i32_1 = arith.constant 0 : i32
    return %c0_i32, %c0_i32_0 : i32, i32
  }
  func.func @transform_4(%arg0: i32, %arg1: i32) -> (i32, i32) {
    %c0_i32 = arith.constant 0 : i32
    %c0_i32_0 = arith.constant 0 : i32
    %c0_i32_1 = arith.constant 0 : i32
    return %c0_i32, %c0_i32_0 : i32, i32
  }
  func.func @transform_5(%arg0: i32, %arg1: i32) -> (i32, i32) {
    %c0_i32 = arith.constant 0 : i32
    %c0_i32_0 = arith.constant 0 : i32
    %c0_i32_1 = arith.constant 0 : i32
    return %c0_i32, %c0_i32_0 : i32, i32
  }
  func.func @transform_6(%arg0: i32, %arg1: i32) -> (i32, i32) {
    %c0_i32 = arith.constant 0 : i32
    %c0_i32_0 = arith.constant 0 : i32
    return %arg0, %c0_i32 : i32, i32
  }
  func.func @transform_7(%arg0: i32, %arg1: i32) -> (i32, i32, i32) {
    %c0_i32 = arith.constant 0 : i32
    %c0_i32_0 = arith.constant 0 : i32
    return %arg1, %arg0, %c0_i32 : i32, i32, i32
  }
  func.func @transform_8(%arg0: i32, %arg1: i32) -> (i32, i32, i32) {
    %c0_i32 = arith.constant 0 : i32
    %0 = arith.subi %c0_i32, %arg1 : i32
    %c0_i32_0 = arith.constant 0 : i32
    %c0_i32_1 = arith.constant 0 : i32
    return %0, %arg0, %c0_i32_0 : i32, i32, i32
  }
  func.func @transform_9(%arg0: i32, %arg1: i32) -> (i32, i32) {
    %c0_i32 = arith.constant 0 : i32
    %c0_i32_0 = arith.constant 0 : i32
    return %arg0, %c0_i32 : i32, i32
  }
  func.func @transform_10(%arg0: i32, %arg1: i32) -> (i32, i32) {
    %c0_i32 = arith.constant 0 : i32
    %c0_i32_0 = arith.constant 0 : i32
    return %arg0, %c0_i32 : i32, i32
  }
}

module attributes {stable_mosaic.version = 11 : i64} {
  func.func @_bigru_kernel(%arg0: i32, %arg1: i32, %arg2: memref<3x8x384xbf16, #tpu.memory_space<vmem>>, %arg3: memref<3x8x384xbf16, #tpu.memory_space<vmem>>, %arg4: memref<128x384xbf16, #tpu.memory_space<vmem>>, %arg5: memref<128x384xbf16, #tpu.memory_space<vmem>>, %arg6: memref<1x384xf32, #tpu.memory_space<vmem>>, %arg7: memref<1x384xf32, #tpu.memory_space<vmem>>, %arg8: memref<8x1xi32, #tpu.memory_space<vmem>>, %arg9: memref<3x8x128xf32, #tpu.memory_space<vmem>>, %arg10: memref<3x8x128xf32, #tpu.memory_space<vmem>>, %arg11: memref<8x128xf32, #tpu.memory_space<vmem>>, %arg12: memref<8x128xf32, #tpu.memory_space<vmem>>, %arg13: memref<8x128xf32, #tpu.memory_space<vmem>>, %arg14: memref<8x128xf32, #tpu.memory_space<vmem>>) attributes {dimension_semantics = [#tpu.dimension_semantics<parallel>, #tpu.dimension_semantics<arbitrary>], iteration_bounds = array<i64: 1, 1>, scalar_prefetch = 0 : i64, scratch_operands = 2 : i64, tpu.core_type = #tpu.core_type<tc>, window_params = [{transform_indices = @transform_0, window_bounds = array<i64: 3, 8, 384>}, {transform_indices = @transform_1, window_bounds = array<i64: 3, 8, 384>}, {pipeline_mode = #tpu.pipeline_mode<synchronous>, transform_indices = @transform_2, window_bounds = array<i64: 128, 384>}, {pipeline_mode = #tpu.pipeline_mode<synchronous>, transform_indices = @transform_3, window_bounds = array<i64: 128, 384>}, {pipeline_mode = #tpu.pipeline_mode<synchronous>, transform_indices = @transform_4, window_bounds = array<i64: 1, 384>}, {pipeline_mode = #tpu.pipeline_mode<synchronous>, transform_indices = @transform_5, window_bounds = array<i64: 1, 384>}, {transform_indices = @transform_6, window_bounds = array<i64: 8, 1>}, {transform_indices = @transform_7, window_bounds = array<i64: 3, 8, 128>}, {transform_indices = @transform_8, window_bounds = array<i64: 3, 8, 128>}, {transform_indices = @transform_9, window_bounds = array<i64: 8, 128>}, {transform_indices = @transform_10, window_bounds = array<i64: 8, 128>}]} {
    %c0_i32 = arith.constant 0 : i32
    %0 = arith.cmpi eq, %arg1, %c0_i32 : i32
    %1 = arith.extui %0 : i1 to i32
    %c0_i32_0 = arith.constant 0 : i32
    %2 = arith.cmpi ne, %1, %c0_i32_0 : i32
    scf.if %2 {
      %cst_89 = arith.constant 0.000000e+00 : f32
      %294 = vector.broadcast %cst_89 : f32 to vector<8x128xf32>
      %c0_90 = arith.constant 0 : index
      %c0_91 = arith.constant 0 : index
      %295 = vector.load %arg13[%c0_90, %c0_91] : memref<8x128xf32, #tpu.memory_space<vmem>>, vector<8x128xf32>
      tpu.vector_store %arg13[%c0_90, %c0_91], %294 {strides = array<i32>} : memref<8x128xf32, #tpu.memory_space<vmem>>, vector<8x128xf32>,
      %cst_92 = arith.constant 0.000000e+00 : f32
      %296 = vector.broadcast %cst_92 : f32 to vector<8x128xf32>
      %c0_93 = arith.constant 0 : index
      %c0_94 = arith.constant 0 : index
      %297 = vector.load %arg14[%c0_93, %c0_94] : memref<8x128xf32, #tpu.memory_space<vmem>>, vector<8x128xf32>
      tpu.vector_store %arg14[%c0_93, %c0_94], %296 {strides = array<i32>} : memref<8x128xf32, #tpu.memory_space<vmem>>, vector<8x128xf32>,
    } else {
    }
    %c0 = arith.constant 0 : index
    %c0_1 = arith.constant 0 : index
    %3 = vector.load %arg8[%c0, %c0_1] : memref<8x1xi32, #tpu.memory_space<vmem>>, vector<8x1xi32>
    %c0_2 = arith.constant 0 : index
    %c0_3 = arith.constant 0 : index
    %4 = vector.load %arg4[%c0_2, %c0_3] : memref<128x384xbf16, #tpu.memory_space<vmem>>, vector<128x384xbf16>
    %c0_4 = arith.constant 0 : index
    %c0_5 = arith.constant 0 : index
    %5 = vector.load %arg5[%c0_4, %c0_5] : memref<128x384xbf16, #tpu.memory_space<vmem>>, vector<128x384xbf16>
    %c0_6 = arith.constant 0 : index
    %c0_7 = arith.constant 0 : index
    %6 = vector.load %arg6[%c0_6, %c0_7] : memref<1x384xf32, #tpu.memory_space<vmem>>, vector<1x384xf32>
    %c0_8 = arith.constant 0 : index
    %c0_9 = arith.constant 0 : index
    %7 = vector.load %arg7[%c0_8, %c0_9] : memref<1x384xf32, #tpu.memory_space<vmem>>, vector<1x384xf32>
    %c3_i32 = arith.constant 3 : i32
    %8 = arith.muli %arg1, %c3_i32 : i32
    %c0_i32_10 = arith.constant 0 : i32
    %9 = arith.subi %c0_i32_10, %arg1 : i32
    %c3_i32_11 = arith.constant 3 : i32
    %10 = arith.muli %9, %c3_i32_11 : i32
    %c0_12 = arith.constant 0 : index
    %c0_13 = arith.constant 0 : index
    %11 = vector.load %arg13[%c0_12, %c0_13] : memref<8x128xf32, #tpu.memory_space<vmem>>, vector<8x128xf32>
    %c0_14 = arith.constant 0 : index
    %c0_15 = arith.constant 0 : index
    %12 = vector.load %arg14[%c0_14, %c0_15] : memref<8x128xf32, #tpu.memory_space<vmem>>, vector<8x128xf32>
    %c0_16 = arith.constant 0 : index
    %c0_17 = arith.constant 0 : index
    %c0_18 = arith.constant 0 : index
    %13 = vector.load %arg2[%c0_16, %c0_17, %c0_18] : memref<3x8x384xbf16, #tpu.memory_space<vmem>>, vector<1x8x384xbf16>
    %14 = vector.shape_cast %13 : vector<1x8x384xbf16> to vector<8x384xbf16>
    %15 = arith.extf %14 : vector<8x384xbf16> to vector<8x384xf32>
    %16 = arith.truncf %11 : vector<8x128xf32> to vector<8x128xbf16>
    %cst = arith.constant dense<0.000000e+00> : vector<8x384xf32>
    %17 = tpu.matmul %16, %4, %cst {dimension_numbers = #tpu.dot_dimension_numbers<[1], [0], [0], [1], [0, 0, 1, 1], [], []>} : vector<8x128xbf16>, vector<128x384xbf16>, vector<8x384xf32> -> vector<8x384xf32>
    %18 = vector.broadcast %6 : vector<1x384xf32> to vector<8x384xf32>
    %19 = arith.addf %17, %18 : vector<8x384xf32>
    %20 = vector.extract_strided_slice %15 {offsets = [0, 0], sizes = [8, 128], strides = [1, 1]} : vector<8x384xf32> to vector<8x128xf32>
    %21 = vector.extract_strided_slice %19 {offsets = [0, 0], sizes = [8, 128], strides = [1, 1]} : vector<8x384xf32> to vector<8x128xf32>
    %22 = arith.addf %20, %21 : vector<8x128xf32>
    %23 = arith.negf %22 : vector<8x128xf32>
    %24 = math.exp %23 : vector<8x128xf32>
    %cst_19 = arith.constant 1.000000e+00 : f32
    %25 = vector.broadcast %cst_19 : f32 to vector<8x128xf32>
    %26 = arith.addf %25, %24 : vector<8x128xf32>
    %27 = arith.divf %25, %26 : vector<8x128xf32>
    %28 = vector.extract_strided_slice %15 {offsets = [0, 128], sizes = [8, 128], strides = [1, 1]} : vector<8x384xf32> to vector<8x128xf32>
    %29 = vector.extract_strided_slice %19 {offsets = [0, 128], sizes = [8, 128], strides = [1, 1]} : vector<8x384xf32> to vector<8x128xf32>
    %30 = arith.addf %28, %29 : vector<8x128xf32>
    %31 = arith.negf %30 : vector<8x128xf32>
    %32 = math.exp %31 : vector<8x128xf32>
    %cst_20 = arith.constant 1.000000e+00 : f32
    %33 = vector.broadcast %cst_20 : f32 to vector<8x128xf32>
    %34 = arith.addf %33, %32 : vector<8x128xf32>
    %35 = arith.divf %33, %34 : vector<8x128xf32>
    %36 = vector.extract_strided_slice %15 {offsets = [0, 256], sizes = [8, 128], strides = [1, 1]} : vector<8x384xf32> to vector<8x128xf32>
    %37 = vector.extract_strided_slice %19 {offsets = [0, 256], sizes = [8, 128], strides = [1, 1]} : vector<8x384xf32> to vector<8x128xf32>
    %38 = arith.mulf %27, %37 : vector<8x128xf32>
    %39 = arith.addf %36, %38 : vector<8x128xf32>
    %40 = math.tanh %39 : vector<8x128xf32>
    %cst_21 = arith.constant 1.000000e+00 : f32
    %41 = vector.broadcast %cst_21 : f32 to vector<8x128xf32>
    %42 = arith.subf %41, %35 : vector<8x128xf32>
    %43 = arith.mulf %42, %40 : vector<8x128xf32>
    %44 = arith.mulf %35, %11 : vector<8x128xf32>
    %45 = arith.addf %43, %44 : vector<8x128xf32>
    %c2 = arith.constant 2 : index
    %c0_22 = arith.constant 0 : index
    %c0_23 = arith.constant 0 : index
    %46 = vector.load %arg3[%c2, %c0_22, %c0_23] : memref<3x8x384xbf16, #tpu.memory_space<vmem>>, vector<1x8x384xbf16>
    %47 = vector.shape_cast %46 : vector<1x8x384xbf16> to vector<8x384xbf16>
    %48 = arith.extf %47 : vector<8x384xbf16> to vector<8x384xf32>
    %49 = arith.truncf %12 : vector<8x128xf32> to vector<8x128xbf16>
    %cst_24 = arith.constant dense<0.000000e+00> : vector<8x384xf32>
    %50 = tpu.matmul %49, %5, %cst_24 {dimension_numbers = #tpu.dot_dimension_numbers<[1], [0], [0], [1], [0, 0, 1, 1], [], []>} : vector<8x128xbf16>, vector<128x384xbf16>, vector<8x384xf32> -> vector<8x384xf32>
    %51 = vector.broadcast %7 : vector<1x384xf32> to vector<8x384xf32>
    %52 = arith.addf %50, %51 : vector<8x384xf32>
    %53 = vector.extract_strided_slice %48 {offsets = [0, 0], sizes = [8, 128], strides = [1, 1]} : vector<8x384xf32> to vector<8x128xf32>
    %54 = vector.extract_strided_slice %52 {offsets = [0, 0], sizes = [8, 128], strides = [1, 1]} : vector<8x384xf32> to vector<8x128xf32>
    %55 = arith.addf %53, %54 : vector<8x128xf32>
    %56 = arith.negf %55 : vector<8x128xf32>
    %57 = math.exp %56 : vector<8x128xf32>
    %cst_25 = arith.constant 1.000000e+00 : f32
    %58 = vector.broadcast %cst_25 : f32 to vector<8x128xf32>
    %59 = arith.addf %58, %57 : vector<8x128xf32>
    %60 = arith.divf %58, %59 : vector<8x128xf32>
    %61 = vector.extract_strided_slice %48 {offsets = [0, 128], sizes = [8, 128], strides = [1, 1]} : vector<8x384xf32> to vector<8x128xf32>
    %62 = vector.extract_strided_slice %52 {offsets = [0, 128], sizes = [8, 128], strides = [1, 1]} : vector<8x384xf32> to vector<8x128xf32>
    %63 = arith.addf %61, %62 : vector<8x128xf32>
    %64 = arith.negf %63 : vector<8x128xf32>
    %65 = math.exp %64 : vector<8x128xf32>
    %cst_26 = arith.constant 1.000000e+00 : f32
    %66 = vector.broadcast %cst_26 : f32 to vector<8x128xf32>
    %67 = arith.addf %66, %65 : vector<8x128xf32>
    %68 = arith.divf %66, %67 : vector<8x128xf32>
    %69 = vector.extract_strided_slice %48 {offsets = [0, 256], sizes = [8, 128], strides = [1, 1]} : vector<8x384xf32> to vector<8x128xf32>
    %70 = vector.extract_strided_slice %52 {offsets = [0, 256], sizes = [8, 128], strides = [1, 1]} : vector<8x384xf32> to vector<8x128xf32>
    %71 = arith.mulf %60, %70 : vector<8x128xf32>
    %72 = arith.addf %69, %71 : vector<8x128xf32>
    %73 = math.tanh %72 : vector<8x128xf32>
    %cst_27 = arith.constant 1.000000e+00 : f32
    %74 = vector.broadcast %cst_27 : f32 to vector<8x128xf32>
    %75 = arith.subf %74, %68 : vector<8x128xf32>
    %76 = arith.mulf %75, %73 : vector<8x128xf32>
    %77 = arith.mulf %68, %12 : vector<8x128xf32>
    %78 = arith.addf %76, %77 : vector<8x128xf32>
    %c0_i32_28 = arith.constant 0 : i32
    %79 = arith.addi %8, %c0_i32_28 : i32
    %80 = vector.broadcast %79 : i32 to vector<8x1xi32>
    %81 = arith.cmpi slt, %80, %3 : vector<8x1xi32>
    %c2_i32 = arith.constant 2 : i32
    %82 = arith.addi %10, %c2_i32 : i32
    %83 = vector.broadcast %82 : i32 to vector<8x1xi32>
    %84 = arith.cmpi slt, %83, %3 : vector<8x1xi32>
    %85 = vector.shape_cast %81 : vector<8x1xi1> to vector<8x1xi1>
    %86 = vector.broadcast %85 : vector<8x1xi1> to vector<8x128xi1>
    %87 = arith.select %86, %45, %11 : vector<8x128xi1>, vector<8x128xf32>
    %88 = vector.shape_cast %84 : vector<8x1xi1> to vector<8x1xi1>
    %89 = vector.broadcast %88 : vector<8x1xi1> to vector<8x128xi1>
    %90 = arith.select %89, %78, %12 : vector<8x128xi1>, vector<8x128xf32>
    %cst_29 = arith.constant 0.000000e+00 : f32
    %91 = vector.shape_cast %81 : vector<8x1xi1> to vector<8x1xi1>
    %92 = vector.broadcast %91 : vector<8x1xi1> to vector<8x128xi1>
    %93 = vector.broadcast %cst_29 : f32 to vector<8x128xf32>
    %94 = arith.select %92, %87, %93 : vector<8x128xi1>, vector<8x128xf32>
    %c0_30 = arith.constant 0 : index
    %c0_31 = arith.constant 0 : index
    %c0_32 = arith.constant 0 : index
    %95 = vector.load %arg9[%c0_30, %c0_31, %c0_32] : memref<3x8x128xf32, #tpu.memory_space<vmem>>, vector<1x8x128xf32>
    %96 = vector.shape_cast %95 : vector<1x8x128xf32> to vector<8x128xf32>
    %97 = vector.shape_cast %94 : vector<8x128xf32> to vector<1x8x128xf32>
    tpu.vector_store %arg9[%c0_30, %c0_31, %c0_32], %97 {strides = array<i32>} : memref<3x8x128xf32, #tpu.memory_space<vmem>>, vector<1x8x128xf32>,
    %cst_33 = arith.constant 0.000000e+00 : f32
    %98 = vector.shape_cast %84 : vector<8x1xi1> to vector<8x1xi1>
    %99 = vector.broadcast %98 : vector<8x1xi1> to vector<8x128xi1>
    %100 = vector.broadcast %cst_33 : f32 to vector<8x128xf32>
    %101 = arith.select %99, %90, %100 : vector<8x128xi1>, vector<8x128xf32>
    %c2_34 = arith.constant 2 : index
    %c0_35 = arith.constant 0 : index
    %c0_36 = arith.constant 0 : index
    %102 = vector.load %arg10[%c2_34, %c0_35, %c0_36] : memref<3x8x128xf32, #tpu.memory_space<vmem>>, vector<1x8x128xf32>
    %103 = vector.shape_cast %102 : vector<1x8x128xf32> to vector<8x128xf32>
    %104 = vector.shape_cast %101 : vector<8x128xf32> to vector<1x8x128xf32>
    tpu.vector_store %arg10[%c2_34, %c0_35, %c0_36], %104 {strides = array<i32>} : memref<3x8x128xf32, #tpu.memory_space<vmem>>, vector<1x8x128xf32>,
    %c1 = arith.constant 1 : index
    %c0_37 = arith.constant 0 : index
    %c0_38 = arith.constant 0 : index
    %105 = vector.load %arg2[%c1, %c0_37, %c0_38] : memref<3x8x384xbf16, #tpu.memory_space<vmem>>, vector<1x8x384xbf16>
    %106 = vector.shape_cast %105 : vector<1x8x384xbf16> to vector<8x384xbf16>
    %107 = arith.extf %106 : vector<8x384xbf16> to vector<8x384xf32>
    %108 = arith.truncf %87 : vector<8x128xf32> to vector<8x128xbf16>
    %cst_39 = arith.constant dense<0.000000e+00> : vector<8x384xf32>
    %109 = tpu.matmul %108, %4, %cst_39 {dimension_numbers = #tpu.dot_dimension_numbers<[1], [0], [0], [1], [0, 0, 1, 1], [], []>} : vector<8x128xbf16>, vector<128x384xbf16>, vector<8x384xf32> -> vector<8x384xf32>
    %110 = vector.broadcast %6 : vector<1x384xf32> to vector<8x384xf32>
    %111 = arith.addf %109, %110 : vector<8x384xf32>
    %112 = vector.extract_strided_slice %107 {offsets = [0, 0], sizes = [8, 128], strides = [1, 1]} : vector<8x384xf32> to vector<8x128xf32>
    %113 = vector.extract_strided_slice %111 {offsets = [0, 0], sizes = [8, 128], strides = [1, 1]} : vector<8x384xf32> to vector<8x128xf32>
    %114 = arith.addf %112, %113 : vector<8x128xf32>
    %115 = arith.negf %114 : vector<8x128xf32>
    %116 = math.exp %115 : vector<8x128xf32>
    %cst_40 = arith.constant 1.000000e+00 : f32
    %117 = vector.broadcast %cst_40 : f32 to vector<8x128xf32>
    %118 = arith.addf %117, %116 : vector<8x128xf32>
    %119 = arith.divf %117, %118 : vector<8x128xf32>
    %120 = vector.extract_strided_slice %107 {offsets = [0, 128], sizes = [8, 128], strides = [1, 1]} : vector<8x384xf32> to vector<8x128xf32>
    %121 = vector.extract_strided_slice %111 {offsets = [0, 128], sizes = [8, 128], strides = [1, 1]} : vector<8x384xf32> to vector<8x128xf32>
    %122 = arith.addf %120, %121 : vector<8x128xf32>
    %123 = arith.negf %122 : vector<8x128xf32>
    %124 = math.exp %123 : vector<8x128xf32>
    %cst_41 = arith.constant 1.000000e+00 : f32
    %125 = vector.broadcast %cst_41 : f32 to vector<8x128xf32>
    %126 = arith.addf %125, %124 : vector<8x128xf32>
    %127 = arith.divf %125, %126 : vector<8x128xf32>
    %128 = vector.extract_strided_slice %107 {offsets = [0, 256], sizes = [8, 128], strides = [1, 1]} : vector<8x384xf32> to vector<8x128xf32>
    %129 = vector.extract_strided_slice %111 {offsets = [0, 256], sizes = [8, 128], strides = [1, 1]} : vector<8x384xf32> to vector<8x128xf32>
    %130 = arith.mulf %119, %129 : vector<8x128xf32>
    %131 = arith.addf %128, %130 : vector<8x128xf32>
    %132 = math.tanh %131 : vector<8x128xf32>
    %cst_42 = arith.constant 1.000000e+00 : f32
    %133 = vector.broadcast %cst_42 : f32 to vector<8x128xf32>
    %134 = arith.subf %133, %127 : vector<8x128xf32>
    %135 = arith.mulf %134, %132 : vector<8x128xf32>
    %136 = arith.mulf %127, %87 : vector<8x128xf32>
    %137 = arith.addf %135, %136 : vector<8x128xf32>
    %c1_43 = arith.constant 1 : index
    %c0_44 = arith.constant 0 : index
    %c0_45 = arith.constant 0 : index
    %138 = vector.load %arg3[%c1_43, %c0_44, %c0_45] : memref<3x8x384xbf16, #tpu.memory_space<vmem>>, vector<1x8x384xbf16>
    %139 = vector.shape_cast %138 : vector<1x8x384xbf16> to vector<8x384xbf16>
    %140 = arith.extf %139 : vector<8x384xbf16> to vector<8x384xf32>
    %141 = arith.truncf %90 : vector<8x128xf32> to vector<8x128xbf16>
    %cst_46 = arith.constant dense<0.000000e+00> : vector<8x384xf32>
    %142 = tpu.matmul %141, %5, %cst_46 {dimension_numbers = #tpu.dot_dimension_numbers<[1], [0], [0], [1], [0, 0, 1, 1], [], []>} : vector<8x128xbf16>, vector<128x384xbf16>, vector<8x384xf32> -> vector<8x384xf32>
    %143 = vector.broadcast %7 : vector<1x384xf32> to vector<8x384xf32>
    %144 = arith.addf %142, %143 : vector<8x384xf32>
    %145 = vector.extract_strided_slice %140 {offsets = [0, 0], sizes = [8, 128], strides = [1, 1]} : vector<8x384xf32> to vector<8x128xf32>
    %146 = vector.extract_strided_slice %144 {offsets = [0, 0], sizes = [8, 128], strides = [1, 1]} : vector<8x384xf32> to vector<8x128xf32>
    %147 = arith.addf %145, %146 : vector<8x128xf32>
    %148 = arith.negf %147 : vector<8x128xf32>
    %149 = math.exp %148 : vector<8x128xf32>
    %cst_47 = arith.constant 1.000000e+00 : f32
    %150 = vector.broadcast %cst_47 : f32 to vector<8x128xf32>
    %151 = arith.addf %150, %149 : vector<8x128xf32>
    %152 = arith.divf %150, %151 : vector<8x128xf32>
    %153 = vector.extract_strided_slice %140 {offsets = [0, 128], sizes = [8, 128], strides = [1, 1]} : vector<8x384xf32> to vector<8x128xf32>
    %154 = vector.extract_strided_slice %144 {offsets = [0, 128], sizes = [8, 128], strides = [1, 1]} : vector<8x384xf32> to vector<8x128xf32>
    %155 = arith.addf %153, %154 : vector<8x128xf32>
    %156 = arith.negf %155 : vector<8x128xf32>
    %157 = math.exp %156 : vector<8x128xf32>
    %cst_48 = arith.constant 1.000000e+00 : f32
    %158 = vector.broadcast %cst_48 : f32 to vector<8x128xf32>
    %159 = arith.addf %158, %157 : vector<8x128xf32>
    %160 = arith.divf %158, %159 : vector<8x128xf32>
    %161 = vector.extract_strided_slice %140 {offsets = [0, 256], sizes = [8, 128], strides = [1, 1]} : vector<8x384xf32> to vector<8x128xf32>
    %162 = vector.extract_strided_slice %144 {offsets = [0, 256], sizes = [8, 128], strides = [1, 1]} : vector<8x384xf32> to vector<8x128xf32>
    %163 = arith.mulf %152, %162 : vector<8x128xf32>
    %164 = arith.addf %161, %163 : vector<8x128xf32>
    %165 = math.tanh %164 : vector<8x128xf32>
    %cst_49 = arith.constant 1.000000e+00 : f32
    %166 = vector.broadcast %cst_49 : f32 to vector<8x128xf32>
    %167 = arith.subf %166, %160 : vector<8x128xf32>
    %168 = arith.mulf %167, %165 : vector<8x128xf32>
    %169 = arith.mulf %160, %90 : vector<8x128xf32>
    %170 = arith.addf %168, %169 : vector<8x128xf32>
    %c1_i32 = arith.constant 1 : i32
    %171 = arith.addi %8, %c1_i32 : i32
    %172 = vector.broadcast %171 : i32 to vector<8x1xi32>
    %173 = arith.cmpi slt, %172, %3 : vector<8x1xi32>
    %c1_i32_50 = arith.constant 1 : i32
    %174 = arith.addi %10, %c1_i32_50 : i32
    %175 = vector.broadcast %174 : i32 to vector<8x1xi32>
    %176 = arith.cmpi slt, %175, %3 : vector<8x1xi32>
    %177 = vector.shape_cast %173 : vector<8x1xi1> to vector<8x1xi1>
    %178 = vector.broadcast %177 : vector<8x1xi1> to vector<8x128xi1>
    %179 = arith.select %178, %137, %87 : vector<8x128xi1>, vector<8x128xf32>
    %180 = vector.shape_cast %176 : vector<8x1xi1> to vector<8x1xi1>
    %181 = vector.broadcast %180 : vector<8x1xi1> to vector<8x128xi1>
    %182 = arith.select %181, %170, %90 : vector<8x128xi1>, vector<8x128xf32>
    %cst_51 = arith.constant 0.000000e+00 : f32
    %183 = vector.shape_cast %173 : vector<8x1xi1> to vector<8x1xi1>
    %184 = vector.broadcast %183 : vector<8x1xi1> to vector<8x128xi1>
    %185 = vector.broadcast %cst_51 : f32 to vector<8x128xf32>
    %186 = arith.select %184, %179, %185 : vector<8x128xi1>, vector<8x128xf32>
    %c1_52 = arith.constant 1 : index
    %c0_53 = arith.constant 0 : index
    %c0_54 = arith.constant 0 : index
    %187 = vector.load %arg9[%c1_52, %c0_53, %c0_54] : memref<3x8x128xf32, #tpu.memory_space<vmem>>, vector<1x8x128xf32>
    %188 = vector.shape_cast %187 : vector<1x8x128xf32> to vector<8x128xf32>
    %189 = vector.shape_cast %186 : vector<8x128xf32> to vector<1x8x128xf32>
    tpu.vector_store %arg9[%c1_52, %c0_53, %c0_54], %189 {strides = array<i32>} : memref<3x8x128xf32, #tpu.memory_space<vmem>>, vector<1x8x128xf32>,
    %cst_55 = arith.constant 0.000000e+00 : f32
    %190 = vector.shape_cast %176 : vector<8x1xi1> to vector<8x1xi1>
    %191 = vector.broadcast %190 : vector<8x1xi1> to vector<8x128xi1>
    %192 = vector.broadcast %cst_55 : f32 to vector<8x128xf32>
    %193 = arith.select %191, %182, %192 : vector<8x128xi1>, vector<8x128xf32>
    %c1_56 = arith.constant 1 : index
    %c0_57 = arith.constant 0 : index
    %c0_58 = arith.constant 0 : index
    %194 = vector.load %arg10[%c1_56, %c0_57, %c0_58] : memref<3x8x128xf32, #tpu.memory_space<vmem>>, vector<1x8x128xf32>
    %195 = vector.shape_cast %194 : vector<1x8x128xf32> to vector<8x128xf32>
    %196 = vector.shape_cast %193 : vector<8x128xf32> to vector<1x8x128xf32>
    tpu.vector_store %arg10[%c1_56, %c0_57, %c0_58], %196 {strides = array<i32>} : memref<3x8x128xf32, #tpu.memory_space<vmem>>, vector<1x8x128xf32>,
    %c2_59 = arith.constant 2 : index
    %c0_60 = arith.constant 0 : index
    %c0_61 = arith.constant 0 : index
    %197 = vector.load %arg2[%c2_59, %c0_60, %c0_61] : memref<3x8x384xbf16, #tpu.memory_space<vmem>>, vector<1x8x384xbf16>
    %198 = vector.shape_cast %197 : vector<1x8x384xbf16> to vector<8x384xbf16>
    %199 = arith.extf %198 : vector<8x384xbf16> to vector<8x384xf32>
    %200 = arith.truncf %179 : vector<8x128xf32> to vector<8x128xbf16>
    %cst_62 = arith.constant dense<0.000000e+00> : vector<8x384xf32>
    %201 = tpu.matmul %200, %4, %cst_62 {dimension_numbers = #tpu.dot_dimension_numbers<[1], [0], [0], [1], [0, 0, 1, 1], [], []>} : vector<8x128xbf16>, vector<128x384xbf16>, vector<8x384xf32> -> vector<8x384xf32>
    %202 = vector.broadcast %6 : vector<1x384xf32> to vector<8x384xf32>
    %203 = arith.addf %201, %202 : vector<8x384xf32>
    %204 = vector.extract_strided_slice %199 {offsets = [0, 0], sizes = [8, 128], strides = [1, 1]} : vector<8x384xf32> to vector<8x128xf32>
    %205 = vector.extract_strided_slice %203 {offsets = [0, 0], sizes = [8, 128], strides = [1, 1]} : vector<8x384xf32> to vector<8x128xf32>
    %206 = arith.addf %204, %205 : vector<8x128xf32>
    %207 = arith.negf %206 : vector<8x128xf32>
    %208 = math.exp %207 : vector<8x128xf32>
    %cst_63 = arith.constant 1.000000e+00 : f32
    %209 = vector.broadcast %cst_63 : f32 to vector<8x128xf32>
    %210 = arith.addf %209, %208 : vector<8x128xf32>
    %211 = arith.divf %209, %210 : vector<8x128xf32>
    %212 = vector.extract_strided_slice %199 {offsets = [0, 128], sizes = [8, 128], strides = [1, 1]} : vector<8x384xf32> to vector<8x128xf32>
    %213 = vector.extract_strided_slice %203 {offsets = [0, 128], sizes = [8, 128], strides = [1, 1]} : vector<8x384xf32> to vector<8x128xf32>
    %214 = arith.addf %212, %213 : vector<8x128xf32>
    %215 = arith.negf %214 : vector<8x128xf32>
    %216 = math.exp %215 : vector<8x128xf32>
    %cst_64 = arith.constant 1.000000e+00 : f32
    %217 = vector.broadcast %cst_64 : f32 to vector<8x128xf32>
    %218 = arith.addf %217, %216 : vector<8x128xf32>
    %219 = arith.divf %217, %218 : vector<8x128xf32>
    %220 = vector.extract_strided_slice %199 {offsets = [0, 256], sizes = [8, 128], strides = [1, 1]} : vector<8x384xf32> to vector<8x128xf32>
    %221 = vector.extract_strided_slice %203 {offsets = [0, 256], sizes = [8, 128], strides = [1, 1]} : vector<8x384xf32> to vector<8x128xf32>
    %222 = arith.mulf %211, %221 : vector<8x128xf32>
    %223 = arith.addf %220, %222 : vector<8x128xf32>
    %224 = math.tanh %223 : vector<8x128xf32>
    %cst_65 = arith.constant 1.000000e+00 : f32
    %225 = vector.broadcast %cst_65 : f32 to vector<8x128xf32>
    %226 = arith.subf %225, %219 : vector<8x128xf32>
    %227 = arith.mulf %226, %224 : vector<8x128xf32>
    %228 = arith.mulf %219, %179 : vector<8x128xf32>
    %229 = arith.addf %227, %228 : vector<8x128xf32>
    %c0_66 = arith.constant 0 : index
    %c0_67 = arith.constant 0 : index
    %c0_68 = arith.constant 0 : index
    %230 = vector.load %arg3[%c0_66, %c0_67, %c0_68] : memref<3x8x384xbf16, #tpu.memory_space<vmem>>, vector<1x8x384xbf16>
    %231 = vector.shape_cast %230 : vector<1x8x384xbf16> to vector<8x384xbf16>
    %232 = arith.extf %231 : vector<8x384xbf16> to vector<8x384xf32>
    %233 = arith.truncf %182 : vector<8x128xf32> to vector<8x128xbf16>
    %cst_69 = arith.constant dense<0.000000e+00> : vector<8x384xf32>
    %234 = tpu.matmul %233, %5, %cst_69 {dimension_numbers = #tpu.dot_dimension_numbers<[1], [0], [0], [1], [0, 0, 1, 1], [], []>} : vector<8x128xbf16>, vector<128x384xbf16>, vector<8x384xf32> -> vector<8x384xf32>
    %235 = vector.broadcast %7 : vector<1x384xf32> to vector<8x384xf32>
    %236 = arith.addf %234, %235 : vector<8x384xf32>
    %237 = vector.extract_strided_slice %232 {offsets = [0, 0], sizes = [8, 128], strides = [1, 1]} : vector<8x384xf32> to vector<8x128xf32>
    %238 = vector.extract_strided_slice %236 {offsets = [0, 0], sizes = [8, 128], strides = [1, 1]} : vector<8x384xf32> to vector<8x128xf32>
    %239 = arith.addf %237, %238 : vector<8x128xf32>
    %240 = arith.negf %239 : vector<8x128xf32>
    %241 = math.exp %240 : vector<8x128xf32>
    %cst_70 = arith.constant 1.000000e+00 : f32
    %242 = vector.broadcast %cst_70 : f32 to vector<8x128xf32>
    %243 = arith.addf %242, %241 : vector<8x128xf32>
    %244 = arith.divf %242, %243 : vector<8x128xf32>
    %245 = vector.extract_strided_slice %232 {offsets = [0, 128], sizes = [8, 128], strides = [1, 1]} : vector<8x384xf32> to vector<8x128xf32>
    %246 = vector.extract_strided_slice %236 {offsets = [0, 128], sizes = [8, 128], strides = [1, 1]} : vector<8x384xf32> to vector<8x128xf32>
    %247 = arith.addf %245, %246 : vector<8x128xf32>
    %248 = arith.negf %247 : vector<8x128xf32>
    %249 = math.exp %248 : vector<8x128xf32>
    %cst_71 = arith.constant 1.000000e+00 : f32
    %250 = vector.broadcast %cst_71 : f32 to vector<8x128xf32>
    %251 = arith.addf %250, %249 : vector<8x128xf32>
    %252 = arith.divf %250, %251 : vector<8x128xf32>
    %253 = vector.extract_strided_slice %232 {offsets = [0, 256], sizes = [8, 128], strides = [1, 1]} : vector<8x384xf32> to vector<8x128xf32>
    %254 = vector.extract_strided_slice %236 {offsets = [0, 256], sizes = [8, 128], strides = [1, 1]} : vector<8x384xf32> to vector<8x128xf32>
    %255 = arith.mulf %244, %254 : vector<8x128xf32>
    %256 = arith.addf %253, %255 : vector<8x128xf32>
    %257 = math.tanh %256 : vector<8x128xf32>
    %cst_72 = arith.constant 1.000000e+00 : f32
    %258 = vector.broadcast %cst_72 : f32 to vector<8x128xf32>
    %259 = arith.subf %258, %252 : vector<8x128xf32>
    %260 = arith.mulf %259, %257 : vector<8x128xf32>
    %261 = arith.mulf %252, %182 : vector<8x128xf32>
    %262 = arith.addf %260, %261 : vector<8x128xf32>
    %c2_i32_73 = arith.constant 2 : i32
    %263 = arith.addi %8, %c2_i32_73 : i32
    %264 = vector.broadcast %263 : i32 to vector<8x1xi32>
    %265 = arith.cmpi slt, %264, %3 : vector<8x1xi32>
    %c0_i32_74 = arith.constant 0 : i32
    %266 = arith.addi %10, %c0_i32_74 : i32
    %267 = vector.broadcast %266 : i32 to vector<8x1xi32>
    %268 = arith.cmpi slt, %267, %3 : vector<8x1xi32>
    %269 = vector.shape_cast %265 : vector<8x1xi1> to vector<8x1xi1>
    %270 = vector.broadcast %269 : vector<8x1xi1> to vector<8x128xi1>
    %271 = arith.select %270, %229, %179 : vector<8x128xi1>, vector<8x128xf32>
    %272 = vector.shape_cast %268 : vector<8x1xi1> to vector<8x1xi1>
    %273 = vector.broadcast %272 : vector<8x1xi1> to vector<8x128xi1>
    %274 = arith.select %273, %262, %182 : vector<8x128xi1>, vector<8x128xf32>
    %cst_75 = arith.constant 0.000000e+00 : f32
    %275 = vector.shape_cast %265 : vector<8x1xi1> to vector<8x1xi1>
    %276 = vector.broadcast %275 : vector<8x1xi1> to vector<8x128xi1>
    %277 = vector.broadcast %cst_75 : f32 to vector<8x128xf32>
    %278 = arith.select %276, %271, %277 : vector<8x128xi1>, vector<8x128xf32>
    %c2_76 = arith.constant 2 : index
    %c0_77 = arith.constant 0 : index
    %c0_78 = arith.constant 0 : index
    %279 = vector.load %arg9[%c2_76, %c0_77, %c0_78] : memref<3x8x128xf32, #tpu.memory_space<vmem>>, vector<1x8x128xf32>
    %280 = vector.shape_cast %279 : vector<1x8x128xf32> to vector<8x128xf32>
    %281 = vector.shape_cast %278 : vector<8x128xf32> to vector<1x8x128xf32>
    tpu.vector_store %arg9[%c2_76, %c0_77, %c0_78], %281 {strides = array<i32>} : memref<3x8x128xf32, #tpu.memory_space<vmem>>, vector<1x8x128xf32>,
    %cst_79 = arith.constant 0.000000e+00 : f32
    %282 = vector.shape_cast %268 : vector<8x1xi1> to vector<8x1xi1>
    %283 = vector.broadcast %282 : vector<8x1xi1> to vector<8x128xi1>
    %284 = vector.broadcast %cst_79 : f32 to vector<8x128xf32>
    %285 = arith.select %283, %274, %284 : vector<8x128xi1>, vector<8x128xf32>
    %c0_80 = arith.constant 0 : index
    %c0_81 = arith.constant 0 : index
    %c0_82 = arith.constant 0 : index
    %286 = vector.load %arg10[%c0_80, %c0_81, %c0_82] : memref<3x8x128xf32, #tpu.memory_space<vmem>>, vector<1x8x128xf32>
    %287 = vector.shape_cast %286 : vector<1x8x128xf32> to vector<8x128xf32>
    %288 = vector.shape_cast %285 : vector<8x128xf32> to vector<1x8x128xf32>
    tpu.vector_store %arg10[%c0_80, %c0_81, %c0_82], %288 {strides = array<i32>} : memref<3x8x128xf32, #tpu.memory_space<vmem>>, vector<1x8x128xf32>,
    %c0_83 = arith.constant 0 : index
    %c0_84 = arith.constant 0 : index
    %289 = vector.load %arg13[%c0_83, %c0_84] : memref<8x128xf32, #tpu.memory_space<vmem>>, vector<8x128xf32>
    tpu.vector_store %arg13[%c0_83, %c0_84], %271 {strides = array<i32>} : memref<8x128xf32, #tpu.memory_space<vmem>>, vector<8x128xf32>,
    %c0_85 = arith.constant 0 : index
    %c0_86 = arith.constant 0 : index
    %290 = vector.load %arg14[%c0_85, %c0_86] : memref<8x128xf32, #tpu.memory_space<vmem>>, vector<8x128xf32>
    tpu.vector_store %arg14[%c0_85, %c0_86], %274 {strides = array<i32>} : memref<8x128xf32, #tpu.memory_space<vmem>>, vector<8x128xf32>,
    %c0_i32_87 = arith.constant 0 : i32
    %291 = arith.cmpi eq, %arg1, %c0_i32_87 : i32
    %292 = arith.extui %291 : i1 to i32
    %c0_i32_88 = arith.constant 0 : i32
    %293 = arith.cmpi ne, %292, %c0_i32_88 : i32
    scf.if %293 {
      %c0_89 = arith.constant 0 : index
      %c0_90 = arith.constant 0 : index
      %294 = vector.load %arg11[%c0_89, %c0_90] : memref<8x128xf32, #tpu.memory_space<vmem>>, vector<8x128xf32>
      tpu.vector_store %arg11[%c0_89, %c0_90], %271 {strides = array<i32>} : memref<8x128xf32, #tpu.memory_space<vmem>>, vector<8x128xf32>,
      %c0_91 = arith.constant 0 : index
      %c0_92 = arith.constant 0 : index
      %295 = vector.load %arg12[%c0_91, %c0_92] : memref<8x128xf32, #tpu.memory_space<vmem>>, vector<8x128xf32>
      tpu.vector_store %arg12[%c0_91, %c0_92], %274 {strides = array<i32>} : memref<8x128xf32, #tpu.memory_space<vmem>>, vector<8x128xf32>,
    } else {
    }
    return
  }
  func.func @transform_0(%arg0: i32, %arg1: i32) -> (i32, i32, i32) {
    %c0_i32 = arith.constant 0 : i32
    %c0_i32_0 = arith.constant 0 : i32
    return %arg1, %arg0, %c0_i32 : i32, i32, i32
  }
  func.func @transform_1(%arg0: i32, %arg1: i32) -> (i32, i32, i32) {
    %c0_i32 = arith.constant 0 : i32
    %0 = arith.subi %c0_i32, %arg1 : i32
    %c0_i32_0 = arith.constant 0 : i32
    %c0_i32_1 = arith.constant 0 : i32
    return %0, %arg0, %c0_i32_0 : i32, i32, i32
  }
  func.func @transform_2(%arg0: i32, %arg1: i32) -> (i32, i32) {
    %c0_i32 = arith.constant 0 : i32
    %c0_i32_0 = arith.constant 0 : i32
    %c0_i32_1 = arith.constant 0 : i32
    return %c0_i32, %c0_i32_0 : i32, i32
  }
  func.func @transform_3(%arg0: i32, %arg1: i32) -> (i32, i32) {
    %c0_i32 = arith.constant 0 : i32
    %c0_i32_0 = arith.constant 0 : i32
    %c0_i32_1 = arith.constant 0 : i32
    return %c0_i32, %c0_i32_0 : i32, i32
  }
  func.func @transform_4(%arg0: i32, %arg1: i32) -> (i32, i32) {
    %c0_i32 = arith.constant 0 : i32
    %c0_i32_0 = arith.constant 0 : i32
    %c0_i32_1 = arith.constant 0 : i32
    return %c0_i32, %c0_i32_0 : i32, i32
  }
  func.func @transform_5(%arg0: i32, %arg1: i32) -> (i32, i32) {
    %c0_i32 = arith.constant 0 : i32
    %c0_i32_0 = arith.constant 0 : i32
    %c0_i32_1 = arith.constant 0 : i32
    return %c0_i32, %c0_i32_0 : i32, i32
  }
  func.func @transform_6(%arg0: i32, %arg1: i32) -> (i32, i32) {
    %c0_i32 = arith.constant 0 : i32
    %c0_i32_0 = arith.constant 0 : i32
    return %arg0, %c0_i32 : i32, i32
  }
  func.func @transform_7(%arg0: i32, %arg1: i32) -> (i32, i32, i32) {
    %c0_i32 = arith.constant 0 : i32
    %c0_i32_0 = arith.constant 0 : i32
    return %arg1, %arg0, %c0_i32 : i32, i32, i32
  }
  func.func @transform_8(%arg0: i32, %arg1: i32) -> (i32, i32, i32) {
    %c0_i32 = arith.constant 0 : i32
    %0 = arith.subi %c0_i32, %arg1 : i32
    %c0_i32_0 = arith.constant 0 : i32
    %c0_i32_1 = arith.constant 0 : i32
    return %0, %arg0, %c0_i32_0 : i32, i32, i32
  }
  func.func @transform_9(%arg0: i32, %arg1: i32) -> (i32, i32) {
    %c0_i32 = arith.constant 0 : i32
    %c0_i32_0 = arith.constant 0 : i32
    return %arg0, %c0_i32 : i32, i32
  }
  func.func @transform_10(%arg0: i32, %arg1: i32) -> (i32, i32) {
    %c0_i32 = arith.constant 0 : i32
    %c0_i32_0 = arith.constant 0 : i32
    return %arg0, %c0_i32 : i32, i32
  }
}

</mosaic_0001>

<llo_original>
// kernel: hrnn_encoder_forward.4
$region0: #{hrnn_encoder_forward.4}
  #allocation0 [shape = 'u32[]', space=smem, size = 0x4, offset = 0x4, fixed_abs, tag = 'smem constant byte address 0x4 - core index']
  #allocation1 [shape = 'u32[144,128]{1,0:T(1,128)}', space=vmem, size = 0x12000, scoped, tag = 'internal scratch']
  %s0 = inlined_call_operand.vmem [shape: f32[8,8,32], index: 0, kind: input, shape index: {}]
  %s1 = inlined_call_operand.vmem [shape: f32[32,16], index: 1, kind: input, shape index: {}]
  %s2 = inlined_call_operand.vmem [shape: f32[1,16], index: 2, kind: input, shape index: {}]
  %s3 = inlined_call_operand.vmem [shape: f32[1,16], index: 3, kind: input, shape index: {}]
  %s4 = inlined_call_operand.vmem [shape: f32[8,32], index: 4, kind: output, shape index: {}]
  %s5 = sld [smem:[#allocation0]]
  $region26: #{hrnn_encoder_forward.4} parent=0
    _
  %s7 = ssub.s32 1, %s5
  %s8 = scalar_select 0, %s7, %s5
  // Predicated region
  $region2: #{hrnn_encoder_forward.4} parent=0 // pred_check
    _
  $region3: #{hrnn_encoder_forward.4} parent=0 // pred_check_branch
    %10 = sbr.rel (0) target = $region5
  $region4: #{hrnn_encoder_forward.4} parent=0 // pred_region
    _
  $region5: #{hrnn_encoder_forward.4} parent=0 // pred_fallthru
    _
  // Predicated region
  $region6: #{hrnn_encoder_forward.4} parent=0 // pred_check
    _
  $region7: #{hrnn_encoder_forward.4} parent=0 // pred_check_branch
    %12 = sbr.rel (0) target = $region9
  $region8: #{hrnn_encoder_forward.4} parent=0 // pred_region
    _
  $region9: #{hrnn_encoder_forward.4} parent=0 // pred_fallthru
    _
  // Predicated region
  $region10: #{hrnn_encoder_forward.4} parent=0 // pred_check
    _
  $region11: #{hrnn_encoder_forward.4} parent=0 // pred_check_branch
    %14 = sbr.rel (0) target = $region13
  $region12: #{hrnn_encoder_forward.4} parent=0 // pred_region
    _
  $region13: #{hrnn_encoder_forward.4} parent=0 // pred_fallthru
    _
  // Predicated region
  $region14: #{hrnn_encoder_forward.4} parent=0 // pred_check
    _
  $region15: #{hrnn_encoder_forward.4} parent=0 // pred_check_branch
    %16 = sbr.rel (0) target = $region17
  $region16: #{hrnn_encoder_forward.4} parent=0 // pred_region
    _
  $region17: #{hrnn_encoder_forward.4} parent=0 // pred_fallthru
    _
  %v17 = vld [vmem:[%s0] sm:$0xff]
  %v18 = vld [vmem:[%s0 + $0x8] sm:$0xff]
  %v19 = vld [vmem:[%s0 + $0x10] sm:$0xff]
  %v20 = vld [vmem:[%s0 + $0x18] sm:$0xff]
  %v21 = vld [vmem:[%s0 + $0x20] sm:$0xff]
  %v22 = vld [vmem:[%s0 + $0x28] sm:$0xff]
  %v23 = vld [vmem:[%s0 + $0x30] sm:$0xff]
  %v24 = vld [vmem:[%s0 + $0x38] sm:$0xff]
  %v25 = vld [vmem:[%s1] sm:$0xff]
  %v26 = vld [vmem:[%s1 + $0x8] sm:$0xff]
  %v27 = vld [vmem:[%s1 + $0x10] sm:$0xff]
  %v28 = vld [vmem:[%s1 + $0x18] sm:$0xff]
  %v29 = vld [vmem:[%s2] sm:$0x1]
  %v31 = vlaneseq
  %v32 = vshrl.u32 %v31, 7
  %v33 = vsub.s32 0, %v32
  %v34 = vrot.slane %v29, %v33
  %vm36 = vcmask 261120
  %v38 = vsel %vm36, %v17, 0
  %v41 = vsel %vm36, %v18, 0
  %v44 = vsel %vm36, %v19, 0
  %v47 = vsel %vm36, %v20, 0
  %v50 = vsel %vm36, %v21, 0
  %v53 = vsel %vm36, %v22, 0
  %v56 = vsel %vm36, %v23, 0
  %v59 = vsel %vm36, %v24, 0
  %61 = vmatprep.subr.mxu0 0.0
  %62 = vmatpush1.msra.mxu0 %v25
  %63 = vmatprep.subr.mxu0 0.0
  %64 = vmatpush1.msra.mxu0 %v26
  %65 = vmatprep.subr.mxu0 0.0
  %66 = vmatpush1.msra.mxu0 %v27
  %67 = vmatprep.subr.mxu0 0.0
  %68 = vmatpush1.msra.mxu0 %v28
  %69 = vmatprep.subr.mxu0 0.0
  %70 = vmatpush1.msra.mxu0 0.0
  %71 = vmatprep.subr.mxu0 0.0
  %72 = vmatpush1.msra.mxu0 0.0
  %73 = vmatprep.subr.mxu0 0.0
  %74 = vmatpush1.msra.mxu0 0.0
  %75 = vmatprep.subr.mxu0 0.0
  %76 = vmatpush1.msra.mxu0 0.0
  %77 = vmatprep.subr.mxu0 0.0
  %78 = vmatpush1.msra.mxu0 0.0
  %79 = vmatprep.subr.mxu0 0.0
  %80 = vmatpush1.msra.mxu0 0.0
  %81 = vmatprep.subr.mxu0 0.0
  %82 = vmatpush1.msra.mxu0 0.0
  %83 = vmatprep.subr.mxu0 0.0
  %84 = vmatpush1.msra.mxu0 0.0
  %85 = vmatprep.subr.mxu0 0.0
  %86 = vmatpush1.msra.mxu0 0.0
  %87 = vmatprep.subr.mxu0 0.0
  %88 = vmatpush1.msra.mxu0 0.0
  %89 = vmatprep.subr.mxu0 0.0
  %90 = vmatpush1.msra.mxu0 0.0
  %91 = vmatprep.subr.mxu0 0.0
  %92 = vmatpush1.msra.mxu0 0.0
  %93 = vmatprep.subr.mxu0 0.0
  %94 = vmatpush1.msra.mxu0 0.0
  %95 = vmatprep.subr.mxu0 0.0
  %96 = vmatpush1.msra.mxu0 0.0
  %97 = vmatprep.subr.mxu0 0.0
  %98 = vmatpush1.msra.mxu0 0.0
  %99 = vmatprep.subr.mxu0 0.0
  %100 = vmatpush1.msra.mxu0 0.0
  %101 = vmatprep.subr.mxu0 0.0
  %102 = vmatpush1.msra.mxu0 0.0
  %103 = vmatprep.subr.mxu0 0.0
  %104 = vmatpush1.msra.mxu0 0.0
  %105 = vmatprep.subr.mxu0 0.0
  %106 = vmatpush1.msra.mxu0 0.0
  %107 = vmatprep.subr.mxu0 0.0
  %108 = vmatpush1.msra.mxu0 0.0
  %109 = vmatprep.subr.mxu0 0.0
  %110 = vmatpush1.msra.mxu0 0.0
  %111 = vmatprep.subr.mxu0 0.0
  %112 = vmatpush1.msra.mxu0 0.0
  %113 = vmatprep.subr.mxu0 0.0
  %114 = vmatpush1.msra.mxu0 0.0
  %115 = vmatprep.subr.mxu0 0.0
  %116 = vmatpush1.msra.mxu0 0.0
  %117 = vmatprep.subr.mxu0 0.0
  %118 = vmatpush1.msra.mxu0 0.0
  %119 = vmatprep.subr.mxu0 0.0
  %120 = vmatpush1.msra.mxu0 0.0
  %121 = vmatprep.subr.mxu0 0.0
  %122 = vmatpush1.msra.mxu0 0.0
  %123 = vmatprep.subr.mxu0 0.0
  %124 = vmatpush1.msra.mxu0 0.0
  %125 = vmatprep.mubr.f32.mxu0 0.0
  %126 = vmatmul.mubr.f32.gmra.mrb[0].mxu0 %v38
  %v127 = vpop.f32.mrb[0].mxu0
  %v128 = vadd.f32 %v34, %v127
  %v129 = vpop.f32.mrb[0].mxu0
  %130 = vmatprep.mubr.f32.mxu0 0.0
  %131 = vmatmul.mubr.f32.gmra.mrb[0].mxu0 %v41
  %v132 = vpop.f32.mrb[0].mxu0
  %v133 = vadd.f32 %v34, %v132
  %v134 = vpop.f32.mrb[0].mxu0
  %135 = vmatprep.mubr.f32.mxu0 0.0
  %136 = vmatmul.mubr.f32.gmra.mrb[0].mxu0 %v44
  %v137 = vpop.f32.mrb[0].mxu0
  %v138 = vadd.f32 %v34, %v137
  %v139 = vpop.f32.mrb[0].mxu0
  %140 = vmatprep.mubr.f32.mxu0 0.0
  %141 = vmatmul.mubr.f32.gmra.mrb[0].mxu0 %v47
  %v142 = vpop.f32.mrb[0].mxu0
  %v143 = vadd.f32 %v34, %v142
  %v144 = vpop.f32.mrb[0].mxu0
  %145 = vmatprep.mubr.f32.mxu0 0.0
  %146 = vmatmul.mubr.f32.gmra.mrb[0].mxu0 %v50
  %v147 = vpop.f32.mrb[0].mxu0
  %v148 = vadd.f32 %v34, %v147
  %v149 = vpop.f32.mrb[0].mxu0
  %150 = vmatprep.mubr.f32.mxu0 0.0
  %151 = vmatmul.mubr.f32.gmra.mrb[0].mxu0 %v53
  %v152 = vpop.f32.mrb[0].mxu0
  %v153 = vadd.f32 %v34, %v152
  %v154 = vpop.f32.mrb[0].mxu0
  %155 = vmatprep.mubr.f32.mxu0 0.0
  %156 = vmatmul.mubr.f32.gmra.mrb[0].mxu0 %v56
  %v157 = vpop.f32.mrb[0].mxu0
  %v158 = vadd.f32 %v34, %v157
  %v159 = vpop.f32.mrb[0].mxu0
  %160 = vmatprep.mubr.f32.mxu0 0.0
  %161 = vmatmul.mubr.f32.gmra.mrb[0].mxu0 %v59
  %v162 = vpop.f32.mrb[0].mxu0
  %v163 = vadd.f32 %v34, %v162
  %v164 = vpop.f32.mrb[0].mxu0
  %165 = vdwg.mxu0
  %v166 = vtanh.pop %v128
  %v167 = vtanh.pop %v133
  %v168 = vtanh.pop %v138
  %v169 = vtanh.pop %v143
  %v170 = vtanh.pop %v148
  %v171 = vtanh.pop %v153
  %v172 = vtanh.pop %v158
  %v173 = vtanh.pop %v163
  %v174 = vld [vmem:[%s3] sm:$0x1]
  %v176 = vlaneseq
  %v177 = vshrl.u32 %v176, 7
  %v178 = vsub.s32 0, %v177
  %v179 = vrot.slane %v174, %v178
  %v181 = vmul.f32 %v166, %v179
  %v182 = vmul.f32 %v167, %v179
  %v183 = vmul.f32 %v168, %v179
  %v184 = vmul.f32 %v169, %v179
  %v185 = vmul.f32 %v170, %v179
  %v186 = vmul.f32 %v171, %v179
  %v187 = vmul.f32 %v172, %v179
  %v188 = vmul.f32 %v173, %v179
  %vm189 = vcmask 130048
  %v190 = vsel %vm189, %v181, 0.0
  %191 = vadd.xlane.f32.xlu0 %v190
  %v192 = vpop.xlane.xlu0 %191
  %v193 = vsel %vm189, %v182, 0.0
  %194 = vadd.xlane.f32.xlu0 %v193
  %v195 = vpop.xlane.xlu0 %194
  %v196 = vsel %vm189, %v183, 0.0
  %197 = vadd.xlane.f32.xlu0 %v196
  %v198 = vpop.xlane.xlu0 %197
  %v199 = vsel %vm189, %v184, 0.0
  %200 = vadd.xlane.f32.xlu0 %v199
  %v201 = vpop.xlane.xlu0 %200
  %v202 = vsel %vm189, %v185, 0.0
  %203 = vadd.xlane.f32.xlu0 %v202
  %v204 = vpop.xlane.xlu0 %203
  %v205 = vsel %vm189, %v186, 0.0
  %206 = vadd.xlane.f32.xlu0 %v205
  %v207 = vpop.xlane.xlu0 %206
  %v208 = vsel %vm189, %v187, 0.0
  %209 = vadd.xlane.f32.xlu0 %v208
  %v210 = vpop.xlane.xlu0 %209
  %v211 = vsel %vm189, %v188, 0.0
  %212 = vadd.xlane.f32.xlu0 %v211
  %v213 = vpop.xlane.xlu0 %212
  %v214 = vlaneseq
  %v215 = vand.u32 %v214, 127
  %vm216 = vcmp.lt.s32.totalorder %v215, 8
  %v225 = vlaneseq
  %v226 = vshrl.u32 %v225, 7
  %v227 = vsub.s32 %v215, %v226
  %v228 = vrot.slane %v192, %v227
  %v229 = vlaneseq
  %v230 = vshrl.u32 %v229, 7
  %v231 = vsub.s32 %v215, %v230
  %v232 = vrot.slane %v195, %v231
  %v233 = vlaneseq
  %v234 = vshrl.u32 %v233, 7
  %v235 = vsub.s32 %v215, %v234
  %v236 = vrot.slane %v198, %v235
  %v237 = vlaneseq
  %v238 = vshrl.u32 %v237, 7
  %v239 = vsub.s32 %v215, %v238
  %v240 = vrot.slane %v201, %v239
  %v241 = vlaneseq
  %v242 = vshrl.u32 %v241, 7
  %v243 = vsub.s32 %v215, %v242
  %v244 = vrot.slane %v204, %v243
  %v245 = vlaneseq
  %v246 = vshrl.u32 %v245, 7
  %v247 = vsub.s32 %v215, %v246
  %v248 = vrot.slane %v207, %v247
  %v249 = vlaneseq
  %v250 = vshrl.u32 %v249, 7
  %v251 = vsub.s32 %v215, %v250
  %v252 = vrot.slane %v210, %v251
  %v253 = vlaneseq
  %v254 = vshrl.u32 %v253, 7
  %v255 = vsub.s32 %v215, %v254
  %v256 = vrot.slane %v213, %v255
  %vm257 = vcmask 1041409
  %v258 = vsel %vm257, %v232, %v228
  %vm259 = vcmask 1042434
  %v260 = vsel %vm259, %v236, %v258
  %vm261 = vcmask 1043459
  %v262 = vsel %vm261, %v240, %v260
  %vm263 = vcmask 1044484
  %v264 = vsel %vm263, %v244, %v262
  %vm265 = vcmask 1045509
  %v266 = vsel %vm265, %v248, %v264
  %vm267 = vcmask 1046534
  %v268 = vsel %vm267, %v252, %v266
  %vm269 = vcmask 1047559
  %v270 = vsel %vm269, %v256, %v268
  %v272 = vsel %vm216, %v270, -inf
  %vm273 = vcmask 64512
  %v274 = vsel %vm273, %v272, -inf
  %275 = vmax.xlane.f32.xlu0 %v274
  %v276 = vpop.xlane.xlu0 %275
  %v277 = vsub.f32 %v272, %v276
  %v278 = vmul.f32 %v277, 1.442695
  %v279 = vpow.pop %v278
  %v280 = vsel %vm273, %v279, 0.0
  %281 = vadd.xlane.f32.xlu0 %v280
  %v282 = vpop.xlane.xlu0 %281
  %v283 = vrcp.pop %v282
  %v284 = vmul.f32 %v279, %v283
  %v285 = vlaneseq
  %v286 = vshrl.u32 %v285, 7
  %v287 = vsub.s32 0, %v286
  %v288 = vrot.slane %v284, %v287
  %290 = vbcast.lane.b32.xlu0 %v288, 256
  %v291 = vpop.permute.xlu0 %290
  %v292 = vlaneseq
  %v293 = vshrl.u32 %v292, 7
  %v294 = vsub.s32 1, %v293
  %v295 = vrot.slane %v284, %v294
  %297 = vbcast.lane.b32.xlu0 %v295, 256
  %v298 = vpop.permute.xlu0 %297
  %v299 = vlaneseq
  %v300 = vshrl.u32 %v299, 7
  %v301 = vsub.s32 2, %v300
  %v302 = vrot.slane %v284, %v301
  %304 = vbcast.lane.b32.xlu0 %v302, 256
  %v305 = vpop.permute.xlu0 %304
  %v306 = vlaneseq
  %v307 = vshrl.u32 %v306, 7
  %v308 = vsub.s32 3, %v307
  %v309 = vrot.slane %v284, %v308
  %311 = vbcast.lane.b32.xlu0 %v309, 256
  %v312 = vpop.permute.xlu0 %311
  %v313 = vlaneseq
  %v314 = vshrl.u32 %v313, 7
  %v315 = vsub.s32 4, %v314
  %v316 = vrot.slane %v284, %v315
  %318 = vbcast.lane.b32.xlu0 %v316, 256
  %v319 = vpop.permute.xlu0 %318
  %v320 = vlaneseq
  %v321 = vshrl.u32 %v320, 7
  %v322 = vsub.s32 5, %v321
  %v323 = vrot.slane %v284, %v322
  %325 = vbcast.lane.b32.xlu0 %v323, 256
  %v326 = vpop.permute.xlu0 %325
  %v327 = vlaneseq
  %v328 = vshrl.u32 %v327, 7
  %v329 = vsub.s32 6, %v328
  %v330 = vrot.slane %v284, %v329
  %332 = vbcast.lane.b32.xlu0 %v330, 256
  %v333 = vpop.permute.xlu0 %332
  %v334 = vlaneseq
  %v335 = vshrl.u32 %v334, 7
  %v336 = vsub.s32 7, %v335
  %v337 = vrot.slane %v284, %v336
  %339 = vbcast.lane.b32.xlu0 %v337, 256
  %v340 = vpop.permute.xlu0 %339
  %v341 = vmul.f32 %v291, %v17
  %v342 = vmul.f32 %v298, %v18
  %v343 = vmul.f32 %v305, %v19
  %v344 = vmul.f32 %v312, %v20
  %v345 = vmul.f32 %v319, %v21
  %v346 = vmul.f32 %v326, %v22
  %v347 = vmul.f32 %v333, %v23
  %v348 = vmul.f32 %v340, %v24
  %v349 = vsel %vm36, %v341, 0.0
  %v350 = vrot.slane %v349, 4
  %v351 = vadd.f32 %v349, %v350
  %v352 = vrot.slane %v351, 2
  %v353 = vadd.f32 %v351, %v352
  %v354 = vrot.slane %v353, 1
  %v355 = vadd.f32 %v353, %v354
  %v356 = vsel %vm36, %v342, 0.0
  %v357 = vrot.slane %v356, 4
  %v358 = vadd.f32 %v356, %v357
  %v359 = vrot.slane %v358, 2
  %v360 = vadd.f32 %v358, %v359
  %v361 = vrot.slane %v360, 1
  %v362 = vadd.f32 %v360, %v361
  %v363 = vsel %vm36, %v343, 0.0
  %v364 = vrot.slane %v363, 4
  %v365 = vadd.f32 %v363, %v364
  %v366 = vrot.slane %v365, 2
  %v367 = vadd.f32 %v365, %v366
  %v368 = vrot.slane %v367, 1
  %v369 = vadd.f32 %v367, %v368
  %v370 = vsel %vm36, %v344, 0.0
  %v371 = vrot.slane %v370, 4
  %v372 = vadd.f32 %v370, %v371
  %v373 = vrot.slane %v372, 2
  %v374 = vadd.f32 %v372, %v373
  %v375 = vrot.slane %v374, 1
  %v376 = vadd.f32 %v374, %v375
  %v377 = vsel %vm36, %v345, 0.0
  %v378 = vrot.slane %v377, 4
  %v379 = vadd.f32 %v377, %v378
  %v380 = vrot.slane %v379, 2
  %v381 = vadd.f32 %v379, %v380
  %v382 = vrot.slane %v381, 1
  %v383 = vadd.f32 %v381, %v382
  %v384 = vsel %vm36, %v346, 0.0
  %v385 = vrot.slane %v384, 4
  %v386 = vadd.f32 %v384, %v385
  %v387 = vrot.slane %v386, 2
  %v388 = vadd.f32 %v386, %v387
  %v389 = vrot.slane %v388, 1
  %v390 = vadd.f32 %v388, %v389
  %v391 = vsel %vm36, %v347, 0.0
  %v392 = vrot.slane %v391, 4
  %v393 = vadd.f32 %v391, %v392
  %v394 = vrot.slane %v393, 2
  %v395 = vadd.f32 %v393, %v394
  %v396 = vrot.slane %v395, 1
  %v397 = vadd.f32 %v395, %v396
  %v398 = vsel %vm36, %v348, 0.0
  %v399 = vrot.slane %v398, 4
  %v400 = vadd.f32 %v398, %v399
  %v401 = vrot.slane %v400, 2
  %v402 = vadd.f32 %v400, %v401
  %v403 = vrot.slane %v402, 1
  %v404 = vadd.f32 %v402, %v403
  %v413 = vsel %vm257, %v362, %v355
  %v414 = vsel %vm259, %v369, %v413
  %v415 = vsel %vm261, %v376, %v414
  %v416 = vsel %vm263, %v383, %v415
  %v417 = vsel %vm265, %v390, %v416
  %v418 = vsel %vm267, %v397, %v417
  %v419 = vsel %vm269, %v404, %v418
  %421 = vst.msk [vmem:[%s4] sm:$0xff] %vm36, %v419
  // Predicated region
  $region18: #{hrnn_encoder_forward.4} parent=0 // pred_check
    _
  $region19: #{hrnn_encoder_forward.4} parent=0 // pred_check_branch
    %423 = sbr.rel (0) target = $region21
  $region20: #{hrnn_encoder_forward.4} parent=0 // pred_region
    _
  $region21: #{hrnn_encoder_forward.4} parent=0 // pred_fallthru
    _
  // Predicated region
  $region22: #{hrnn_encoder_forward.4} parent=0 // pred_check
    _
  $region23: #{hrnn_encoder_forward.4} parent=0 // pred_check_branch
    %425 = sbr.rel (0) target = $region25
  $region24: #{hrnn_encoder_forward.4} parent=0 // pred_region
    _
  $region25: #{hrnn_encoder_forward.4} parent=0 // pred_fallthru
    _

// kernel: hrnn_encoder_forward.5
$region0: #{hrnn_encoder_forward.5}
  #allocation0 [shape = 'u32[]', space=smem, size = 0x4, offset = 0x4, fixed_abs, tag = 'smem constant byte address 0x4 - core index']
  #allocation1 [shape = 'u32[144,128]{1,0:T(1,128)}', space=vmem, size = 0x12000, scoped, tag = 'internal scratch']
  #allocation2 [shape = 'f32[8,128]{1,0:T(8,128)}', space=vmem, size = 0x1000, scoped, tag = 'scratch operand']
  #allocation3 [shape = 'f32[8,128]{1,0:T(8,128)}', space=vmem, size = 0x1000, scoped, tag = 'scratch operand']
  %s0 = inlined_call_operand.vmem [shape: bf16[3,8,384], index: 0, kind: input, shape index: {}]
  %s1 = inlined_call_operand.vmem [shape: bf16[3,8,384], index: 1, kind: input, shape index: {}]
  %s2 = inlined_call_operand.vmem [shape: bf16[128,384], index: 2, kind: input, shape index: {}]
  %s3 = inlined_call_operand.vmem [shape: bf16[128,384], index: 3, kind: input, shape index: {}]
  %s4 = inlined_call_operand.vmem [shape: f32[1,384], index: 4, kind: input, shape index: {}]
  %s5 = inlined_call_operand.vmem [shape: f32[1,384], index: 5, kind: input, shape index: {}]
  %s6 = inlined_call_operand.vmem [shape: s32[8,1], index: 6, kind: input, shape index: {}]
  %s7 = inlined_call_operand.vmem [shape: f32[3,8,128], index: 7, kind: output, shape index: {0}]
  %s8 = inlined_call_operand.vmem [shape: f32[3,8,128], index: 8, kind: output, shape index: {1}]
  %s9 = inlined_call_operand.vmem [shape: f32[8,128], index: 9, kind: output, shape index: {2}]
  %s10 = inlined_call_operand.vmem [shape: f32[8,128], index: 10, kind: output, shape index: {3}]
  %11 = xla_tuple %s7, %s8, %s9, %s10
  %s12 = sld [smem:[#allocation0]]
  $region70: #{hrnn_encoder_forward.5} parent=0
    _
  %s14 = ssub.s32 1, %s12
  %s15 = scalar_select 0, %s14, %s12
  // Predicated region
  $region2: #{hrnn_encoder_forward.5} parent=0 // pred_check
    _
  $region3: #{hrnn_encoder_forward.5} parent=0 // pred_check_branch
    %17 = sbr.rel (0) target = $region5
  $region4: #{hrnn_encoder_forward.5} parent=0 // pred_region
    _
  $region5: #{hrnn_encoder_forward.5} parent=0 // pred_fallthru
    _
  // Predicated region
  $region6: #{hrnn_encoder_forward.5} parent=0 // pred_check
    _
  $region7: #{hrnn_encoder_forward.5} parent=0 // pred_check_branch
    %19 = sbr.rel (0) target = $region9
  $region8: #{hrnn_encoder_forward.5} parent=0 // pred_region
    %s20 = ssub.s32 0, 0
    %s21 = smul.u32 3, %s20
    %p22 = scmp.lt.s32.totalorder %s21, 2
    %s23 = scalar_select %p22, %s21, 2
    %s24 = smul.addr %s23, 3
    %s25 = smul.addr %s24, 4
    %s26 = scalar_lea.vmem %s1, %s25
    %s27 = ssub.s32 0, 0
    %s28 = smul.u32 3, %s27
  $region9: #{hrnn_encoder_forward.5} parent=0 // pred_fallthru
    _
  // Predicated region
  $region10: #{hrnn_encoder_forward.5} parent=0 // pred_check
    _
  $region11: #{hrnn_encoder_forward.5} parent=0 // pred_check_branch
    %30 = sbr.rel (0) target = $region13
  $region12: #{hrnn_encoder_forward.5} parent=0 // pred_region
    _
  $region13: #{hrnn_encoder_forward.5} parent=0 // pred_fallthru
    _
  // Predicated region
  $region14: #{hrnn_encoder_forward.5} parent=0 // pred_check
    _
  $region15: #{hrnn_encoder_forward.5} parent=0 // pred_check_branch
    %32 = sbr.rel (0) target = $region17
  $region16: #{hrnn_encoder_forward.5} parent=0 // pred_region
    _
  $region17: #{hrnn_encoder_forward.5} parent=0 // pred_fallthru
    _
  // Predicated region
  $region18: #{hrnn_encoder_forward.5} parent=0 // pred_check
    _
  $region19: #{hrnn_encoder_forward.5} parent=0 // pred_check_branch
    %34 = sbr.rel (0) target = $region21
  $region20: #{hrnn_encoder_forward.5} parent=0 // pred_region
    _
  $region21: #{hrnn_encoder_forward.5} parent=0 // pred_fallthru
    _
  // Predicated region
  $region22: #{hrnn_encoder_forward.5} parent=0 // pred_check
    _
  $region23: #{hrnn_encoder_forward.5} parent=0 // pred_check_branch
    %36 = sbr.rel (0) target = $region25
  $region24: #{hrnn_encoder_forward.5} parent=0 // pred_region
    _
  $region25: #{hrnn_encoder_forward.5} parent=0 // pred_fallthru
    _
  // Predicated region
  $region26: #{hrnn_encoder_forward.5} parent=0 // pred_check
    _
  $region27: #{hrnn_encoder_forward.5} parent=0 // pred_check_branch
    %38 = sbr.rel (0) target = $region29
  $region28: #{hrnn_encoder_forward.5} parent=0 // pred_region
    _
  $region29: #{hrnn_encoder_forward.5} parent=0 // pred_fallthru
    _
  %s39 = ssub.s32 0, 0
  %s40 = smul.u32 3, %s39
  %p41 = scmp.lt.s32.totalorder %s40, 2
  %s42 = scalar_select %p41, %s40, 2
  %s43 = smul.addr %s42, 3
  %s44 = smul.addr %s43, 4
  %s45 = scalar_lea.vmem %s1, %s44
  %s46 = ssub.s32 0, 0
  %s47 = smul.u32 3, %s46
  %p48 = scmp.lt.s32.totalorder %s47, 2
  %s49 = scalar_select %p48, %s47, 2
  %s50 = smul.addr %s49, 8
  %s51 = scalar_lea.vmem %s8, %s50
  %s52 = ssub.s32 0, 0
  %s53 = smul.u32 3, %s52
  %p54 = scmp.lt.s32.totalorder %s53, 2
  %s55 = scalar_select %p54, %s53, 2
  %s56 = smul.addr %s55, 3
  %s57 = smul.addr %s56, 4
  %s58 = scalar_lea.vmem %s1, %s57
  %s59 = ssub.s32 0, 0
  %s60 = smul.u32 3, %s59
  %s61 = ssub.s32 0, 0
  %s62 = smul.u32 3, %s61
  %p63 = scmp.lt.s32.totalorder %s62, 2
  %s64 = scalar_select %p63, %s62, 2
  %s65 = smul.addr %s64, 8
  %s66 = scalar_lea.vmem %s8, %s65
  %s67 = ssub.s32 0, 0
  %s68 = smul.u32 3, %s67
  %p70 = scmp.eq.s32.totalorder 0, 0
  // Predicated region
  $region30: #{hrnn_encoder_forward.5} parent=0 // pred_check
    %p71 = pneg %p70
  $region31: #{hrnn_encoder_forward.5} parent=0 // pred_check_branch
    %73 = sbr.rel (%p71) target = $region33
  $region32: #{hrnn_encoder_forward.5} parent=0 // pred_region
    %74 = vst [vmem:[#allocation2] sm:$0xff] 0.0
    %75 = vst [vmem:[#allocation3] sm:$0xff] 0.0
  $region33: #{hrnn_encoder_forward.5} parent=0 // pred_fallthru
    _
  %v76 = vld [vmem:[%s6] sm:$0xff]
  %v77 = vld [vmem:[%s2] sm:$0xff]
  %v78 = vld [vmem:[%s2 + $0x8] sm:$0xf]
  %v79 = vld [vmem:[%s2 + $0xc] sm:$0xff]
  %v80 = vld [vmem:[%s2 + $0x14] sm:$0xf]
  %v81 = vld [vmem:[%s2 + $0x18] sm:$0xff]
  %v82 = vld [vmem:[%s2 + $0x20] sm:$0xf]
  %v83 = vld [vmem:[%s2 + $0x24] sm:$0xff]
  %v84 = vld [vmem:[%s2 + $0x2c] sm:$0xf]
  %v85 = vld [vmem:[%s2 + $0x30] sm:$0xff]
  %v86 = vld [vmem:[%s2 + $0x38] sm:$0xf]
  %v87 = vld [vmem:[%s2 + $0x3c] sm:$0xff]
  %v88 = vld [vmem:[%s2 + $0x44] sm:$0xf]
  %v89 = vld [vmem:[%s2 + $0x48] sm:$0xff]
  %v90 = vld [vmem:[%s2 + $0x50] sm:$0xf]
  %v91 = vld [vmem:[%s2 + $0x54] sm:$0xff]
  %v92 = vld [vmem:[%s2 + $0x5c] sm:$0xf]
  %v93 = vld [vmem:[%s2 + $0x60] sm:$0xff]
  %v94 = vld [vmem:[%s2 + $0x68] sm:$0xf]
  %v95 = vld [vmem:[%s2 + $0x6c] sm:$0xff]
  %v96 = vld [vmem:[%s2 + $0x74] sm:$0xf]
  %v97 = vld [vmem:[%s2 + $0x78] sm:$0xff]
  %v98 = vld [vmem:[%s2 + $0x80] sm:$0xf]
  %v99 = vld [vmem:[%s2 + $0x84] sm:$0xff]
  %v100 = vld [vmem:[%s2 + $0x8c] sm:$0xf]
  %v101 = vld [vmem:[%s2 + $0x90] sm:$0xff]
  %v102 = vld [vmem:[%s2 + $0x98] sm:$0xf]
  %v103 = vld [vmem:[%s2 + $0x9c] sm:$0xff]
  %v104 = vld [vmem:[%s2 + $0xa4] sm:$0xf]
  %v105 = vld [vmem:[%s2 + $0xa8] sm:$0xff]
  %v106 = vld [vmem:[%s2 + $0xb0] sm:$0xf]
  %v107 = vld [vmem:[%s2 + $0xb4] sm:$0xff]
  %v108 = vld [vmem:[%s2 + $0xbc] sm:$0xf]
  %v109 = vld [vmem:[%s3] sm:$0xff]
  %v110 = vld [vmem:[%s3 + $0x8] sm:$0xf]
  %v111 = vld [vmem:[%s3 + $0xc] sm:$0xff]
  %v112 = vld [vmem:[%s3 + $0x14] sm:$0xf]
  %v113 = vld [vmem:[%s3 + $0x18] sm:$0xff]
  %v114 = vld [vmem:[%s3 + $0x20] sm:$0xf]
  %v115 = vld [vmem:[%s3 + $0x24] sm:$0xff]
  %v116 = vld [vmem:[%s3 + $0x2c] sm:$0xf]
  %v117 = vld [vmem:[%s3 + $0x30] sm:$0xff]
  %v118 = vld [vmem:[%s3 + $0x38] sm:$0xf]
  %v119 = vld [vmem:[%s3 + $0x3c] sm:$0xff]
  %v120 = vld [vmem:[%s3 + $0x44] sm:$0xf]
  %v121 = vld [vmem:[%s3 + $0x48] sm:$0xff]
  %v122 = vld [vmem:[%s3 + $0x50] sm:$0xf]
  %v123 = vld [vmem:[%s3 + $0x54] sm:$0xff]
  %v124 = vld [vmem:[%s3 + $0x5c] sm:$0xf]
  %v125 = vld [vmem:[%s3 + $0x60] sm:$0xff]
  %v126 = vld [vmem:[%s3 + $0x68] sm:$0xf]
  %v127 = vld [vmem:[%s3 + $0x6c] sm:$0xff]
  %v128 = vld [vmem:[%s3 + $0x74] sm:$0xf]
  %v129 = vld [vmem:[%s3 + $0x78] sm:$0xff]
  %v130 = vld [vmem:[%s3 + $0x80] sm:$0xf]
  %v131 = vld [vmem:[%s3 + $0x84] sm:$0xff]
  %v132 = vld [vmem:[%s3 + $0x8c] sm:$0xf]
  %v133 = vld [vmem:[%s3 + $0x90] sm:$0xff]
  %v134 = vld [vmem:[%s3 + $0x98] sm:$0xf]
  %v135 = vld [vmem:[%s3 + $0x9c] sm:$0xff]
  %v136 = vld [vmem:[%s3 + $0xa4] sm:$0xf]
  %v137 = vld [vmem:[%s3 + $0xa8] sm:$0xff]
  %v138 = vld [vmem:[%s3 + $0xb0] sm:$0xf]
  %v139 = vld [vmem:[%s3 + $0xb4] sm:$0xff]
  %v140 = vld [vmem:[%s3 + $0xbc] sm:$0xf]
  %v141 = vld [vmem:[%s4] sm:$0x7]
  %v142 = vld [vmem:[%s5] sm:$0x7]
  %s143 = smul.u32 0, 3
  %s144 = ssub.s32 0, 0
  %s145 = smul.u32 %s144, 3
  %v146 = vld [vmem:[#allocation2] sm:$0xff]
  %v147 = vld [vmem:[#allocation3] sm:$0xff]
  %v148 = vld [vmem:[%s0] sm:$0xff]
  %v149 = vld [vmem:[%s0 + $0x8] sm:$0xf]
  %v150 = vunpack.c.l.bf16 %v148
  %v151 = vunpack.c.h.bf16 %v148
  %v152 = vunpack.c.l.bf16 %v149
  %v153 = vpack.c.bf16 %v146, %v146
  %v155 = vlaneseq
  %v156 = vshrl.u32 %v155, 7
  %v157 = vsub.s32 0, %v156
  %v158 = vrot.slane %v141, %v157
  %v159 = vlaneseq
  %v160 = vshrl.u32 %v159, 7
  %v161 = vsub.s32 1, %v160
  %v162 = vrot.slane %v141, %v161
  %v163 = vlaneseq
  %v164 = vshrl.u32 %v163, 7
  %v165 = vsub.s32 2, %v164
  %v166 = vrot.slane %v141, %v165
  %v202 = vunpack.c.l.b16 %v77
  %v203 = vunpack.c.h.b16 %v77
  %v204 = vunpack.c.l.b16 %v78
  %v205 = vunpack.c.l.b16 %v79
  %v206 = vunpack.c.h.b16 %v79
  %v207 = vunpack.c.l.b16 %v80
  %v208 = vunpack.c.l.b16 %v81
  %v209 = vunpack.c.h.b16 %v81
  %v210 = vunpack.c.l.b16 %v82
  %v211 = vunpack.c.l.b16 %v83
  %v212 = vunpack.c.h.b16 %v83
  %v213 = vunpack.c.l.b16 %v84
  %v214 = vunpack.c.l.b16 %v85
  %v215 = vunpack.c.h.b16 %v85
  %v216 = vunpack.c.l.b16 %v86
  %v217 = vunpack.c.l.b16 %v87
  %v218 = vunpack.c.h.b16 %v87
  %v219 = vunpack.c.l.b16 %v88
  %v220 = vunpack.c.l.b16 %v89
  %v221 = vunpack.c.h.b16 %v89
  %v222 = vunpack.c.l.b16 %v90
  %v223 = vunpack.c.l.b16 %v91
  %v224 = vunpack.c.h.b16 %v91
  %v225 = vunpack.c.l.b16 %v92
  %v226 = vunpack.c.l.b16 %v93
  %v227 = vunpack.c.h.b16 %v93
  %v228 = vunpack.c.l.b16 %v94
  %v229 = vunpack.c.l.b16 %v95
  %v230 = vunpack.c.h.b16 %v95
  %v231 = vunpack.c.l.b16 %v96
  %v232 = vunpack.c.l.b16 %v97
  %v233 = vunpack.c.h.b16 %v97
  %v234 = vunpack.c.l.b16 %v98
  %v235 = vunpack.c.l.b16 %v99
  %v236 = vunpack.c.h.b16 %v99
  %v237 = vunpack.c.l.b16 %v100
  %v238 = vunpack.c.l.b16 %v101
  %v239 = vunpack.c.h.b16 %v101
  %v240 = vunpack.c.l.b16 %v102
  %v241 = vunpack.c.l.b16 %v103
  %v242 = vunpack.c.h.b16 %v103
  %v243 = vunpack.c.l.b16 %v104
  %v244 = vunpack.c.l.b16 %v105
  %v245 = vunpack.c.h.b16 %v105
  %v246 = vunpack.c.l.b16 %v106
  %v247 = vunpack.c.l.b16 %v107
  %v248 = vunpack.c.h.b16 %v107
  %v249 = vunpack.c.l.b16 %v108
  %v250 = vpack.c.b16 %v205, %v202
  %v251 = vpack.c.b16 %v206, %v203
  %v252 = vpack.c.b16 %v207, %v204
  %v253 = vpack.c.b16 %v211, %v208
  %v254 = vpack.c.b16 %v212, %v209
  %v255 = vpack.c.b16 %v213, %v210
  %v256 = vpack.c.b16 %v217, %v214
  %v257 = vpack.c.b16 %v218, %v215
  %v258 = vpack.c.b16 %v219, %v216
  %v259 = vpack.c.b16 %v223, %v220
  %v260 = vpack.c.b16 %v224, %v221
  %v261 = vpack.c.b16 %v225, %v222
  %v262 = vpack.c.b16 %v229, %v226
  %v263 = vpack.c.b16 %v230, %v227
  %v264 = vpack.c.b16 %v231, %v228
  %v265 = vpack.c.b16 %v235, %v232
  %v266 = vpack.c.b16 %v236, %v233
  %v267 = vpack.c.b16 %v237, %v234
  %v268 = vpack.c.b16 %v241, %v238
  %v269 = vpack.c.b16 %v242, %v239
  %v270 = vpack.c.b16 %v243, %v240
  %v271 = vpack.c.b16 %v247, %v244
  %v272 = vpack.c.b16 %v248, %v245
  %v273 = vpack.c.b16 %v249, %v246
  %298 = vmatprep.subr.bf16.mxu0 %v251
  %299 = vmatpush1.bf16.msra.mxu0 %v250
  %300 = vmatprep.subr.bf16.mxu0 %v254
  %301 = vmatpush1.bf16.msra.mxu0 %v253
  %302 = vmatprep.subr.bf16.mxu0 %v257
  %303 = vmatpush1.bf16.msra.mxu0 %v256
  %304 = vmatprep.subr.bf16.mxu0 %v260
  %305 = vmatpush1.bf16.msra.mxu0 %v259
  %306 = vmatprep.subr.bf16.mxu0 %v263
  %307 = vmatpush1.bf16.msra.mxu0 %v262
  %308 = vmatprep.subr.bf16.mxu0 %v266
  %309 = vmatpush1.bf16.msra.mxu0 %v265
  %310 = vmatprep.subr.bf16.mxu0 %v269
  %311 = vmatpush1.bf16.msra.mxu0 %v268
  %312 = vmatprep.subr.bf16.mxu0 %v272
  %313 = vmatpush1.bf16.msra.mxu0 %v271
  %314 = vmatprep.subr.bf16.mxu0 0
  %315 = vmatpush1.bf16.msra.mxu0 0
  %316 = vmatprep.subr.bf16.mxu0 0
  %317 = vmatpush1.bf16.msra.mxu0 0
  %318 = vmatprep.subr.bf16.mxu0 0
  %319 = vmatpush1.bf16.msra.mxu0 0
  %320 = vmatprep.subr.bf16.mxu0 0
  %321 = vmatpush1.bf16.msra.mxu0 0
  %322 = vmatprep.subr.bf16.mxu0 0
  %323 = vmatpush1.bf16.msra.mxu0 0
  %324 = vmatprep.subr.bf16.mxu0 0
  %325 = vmatpush1.bf16.msra.mxu0 0
  %326 = vmatprep.subr.bf16.mxu0 0
  %327 = vmatpush1.bf16.msra.mxu0 0
  %328 = vmatprep.subr.bf16.mxu0 0
  %329 = vmatpush1.bf16.msra.mxu0 0
  %330 = vmatprep.mubr.bf16.mxu0 0
  %331 = vmatmul.mubr.bf16.gmra.mrb[0].mxu0 %v153
  %v332 = vpop.f32.mrb[0].mxu0
  %v333 = vadd.f32 %v158, %v332
  %v334 = vpop.f32.mrb[0].mxu0
  %v335 = vadd.f32 %v162, %v334
  %v336 = vpop.f32.mrb[0].mxu0
  %v337 = vpop.f32.mrb[0].mxu0
  %338 = vdwg.mxu0
  %339 = vmatprep.subr.bf16.mxu0 0
  %340 = vmatpush1.bf16.msra.mxu0 %v252
  %341 = vmatprep.subr.bf16.mxu0 0
  %342 = vmatpush1.bf16.msra.mxu0 %v255
  %343 = vmatprep.subr.bf16.mxu0 0
  %344 = vmatpush1.bf16.msra.mxu0 %v258
  %345 = vmatprep.subr.bf16.mxu0 0
  %346 = vmatpush1.bf16.msra.mxu0 %v261
  %347 = vmatprep.subr.bf16.mxu0 0
  %348 = vmatpush1.bf16.msra.mxu0 %v264
  %349 = vmatprep.subr.bf16.mxu0 0
  %350 = vmatpush1.bf16.msra.mxu0 %v267
  %351 = vmatprep.subr.bf16.mxu0 0
  %352 = vmatpush1.bf16.msra.mxu0 %v270
  %353 = vmatprep.subr.bf16.mxu0 0
  %354 = vmatpush1.bf16.msra.mxu0 %v273
  %355 = vmatprep.subr.bf16.mxu0 0
  %356 = vmatpush1.bf16.msra.mxu0 0
  %357 = vmatprep.subr.bf16.mxu0 0
  %358 = vmatpush1.bf16.msra.mxu0 0
  %359 = vmatprep.subr.bf16.mxu0 0
  %360 = vmatpush1.bf16.msra.mxu0 0
  %361 = vmatprep.subr.bf16.mxu0 0
  %362 = vmatpush1.bf16.msra.mxu0 0
  %363 = vmatprep.subr.bf16.mxu0 0
  %364 = vmatpush1.bf16.msra.mxu0 0
  %365 = vmatprep.subr.bf16.mxu0 0
  %366 = vmatpush1.bf16.msra.mxu0 0
  %367 = vmatprep.subr.bf16.mxu0 0
  %368 = vmatpush1.bf16.msra.mxu0 0
  %369 = vmatprep.subr.bf16.mxu0 0
  %370 = vmatpush1.bf16.msra.mxu0 0
  %371 = vmatprep.mubr.bf16.mxu0 0
  %372 = vmatmul.mubr.bf16.gmra.mrb[0].mxu0 %v153
  %v373 = vpop.f32.mrb[0].mxu0
  %v374 = vadd.f32 %v166, %v373
  %v375 = vpop.f32.mrb[0].mxu0
  %v376 = vpop.f32.mrb[0].mxu0
  %v377 = vpop.f32.mrb[0].mxu0
  %378 = vdwg.mxu0
  %v379 = vadd.f32 %v150, %v333
  %v380 = vxor.u32 %v379, 2147483648
  %v381 = vmul.f32 %v380, 1.442695
  %v382 = vpow.pop %v381
  %v383 = vadd.f32 %v382, 1.0
  %v384 = vrcp.pop %v383
  %v385 = vmul.f32 1.0, %v384
  %v386 = vadd.f32 %v151, %v335
  %v387 = vxor.u32 %v386, 2147483648
  %v388 = vmul.f32 %v387, 1.442695
  %v389 = vpow.pop %v388
  %v390 = vadd.f32 %v389, 1.0
  %v391 = vrcp.pop %v390
  %v392 = vmul.f32 1.0, %v391
  %v393 = vmul.f32 %v385, %v374
  %v394 = vadd.f32 %v152, %v393
  %v395 = vtanh.pop %v394
  %v396 = vsub.f32 1.0, %v392
  %v397 = vmul.f32 %v396, %v395
  %v398 = vmul.f32 %v392, %v146
  %v399 = vadd.f32 %v397, %v398
  %s400 = scalar_lea.vmem %s58, 24
  %v401 = vld [vmem:[%s400] sm:$0xff]
  %v402 = vld [vmem:[%s400 + $0x8] sm:$0xf]
  %v403 = vunpack.c.l.bf16 %v401
  %v404 = vunpack.c.h.bf16 %v401
  %v405 = vunpack.c.l.bf16 %v402
  %v406 = vpack.c.bf16 %v147, %v147
  %v408 = vlaneseq
  %v409 = vshrl.u32 %v408, 7
  %v410 = vsub.s32 0, %v409
  %v411 = vrot.slane %v142, %v410
  %v412 = vlaneseq
  %v413 = vshrl.u32 %v412, 7
  %v414 = vsub.s32 1, %v413
  %v415 = vrot.slane %v142, %v414
  %v416 = vlaneseq
  %v417 = vshrl.u32 %v416, 7
  %v418 = vsub.s32 2, %v417
  %v419 = vrot.slane %v142, %v418
  %v455 = vunpack.c.l.b16 %v109
  %v456 = vunpack.c.h.b16 %v109
  %v457 = vunpack.c.l.b16 %v110
  %v458 = vunpack.c.l.b16 %v111
  %v459 = vunpack.c.h.b16 %v111
  %v460 = vunpack.c.l.b16 %v112
  %v461 = vunpack.c.l.b16 %v113
  %v462 = vunpack.c.h.b16 %v113
  %v463 = vunpack.c.l.b16 %v114
  %v464 = vunpack.c.l.b16 %v115
  %v465 = vunpack.c.h.b16 %v115
  %v466 = vunpack.c.l.b16 %v116
  %v467 = vunpack.c.l.b16 %v117
  %v468 = vunpack.c.h.b16 %v117
  %v469 = vunpack.c.l.b16 %v118
  %v470 = vunpack.c.l.b16 %v119
  %v471 = vunpack.c.h.b16 %v119
  %v472 = vunpack.c.l.b16 %v120
  %v473 = vunpack.c.l.b16 %v121
  %v474 = vunpack.c.h.b16 %v121
  %v475 = vunpack.c.l.b16 %v122
  %v476 = vunpack.c.l.b16 %v123
  %v477 = vunpack.c.h.b16 %v123
  %v478 = vunpack.c.l.b16 %v124
  %v479 = vunpack.c.l.b16 %v125
  %v480 = vunpack.c.h.b16 %v125
  %v481 = vunpack.c.l.b16 %v126
  %v482 = vunpack.c.l.b16 %v127
  %v483 = vunpack.c.h.b16 %v127
  %v484 = vunpack.c.l.b16 %v128
  %v485 = vunpack.c.l.b16 %v129
  %v486 = vunpack.c.h.b16 %v129
  %v487 = vunpack.c.l.b16 %v130
  %v488 = vunpack.c.l.b16 %v131
  %v489 = vunpack.c.h.b16 %v131
  %v490 = vunpack.c.l.b16 %v132
  %v491 = vunpack.c.l.b16 %v133
  %v492 = vunpack.c.h.b16 %v133
  %v493 = vunpack.c.l.b16 %v134
  %v494 = vunpack.c.l.b16 %v135
  %v495 = vunpack.c.h.b16 %v135
  %v496 = vunpack.c.l.b16 %v136
  %v497 = vunpack.c.l.b16 %v137
  %v498 = vunpack.c.h.b16 %v137
  %v499 = vunpack.c.l.b16 %v138
  %v500 = vunpack.c.l.b16 %v139
  %v501 = vunpack.c.h.b16 %v139
  %v502 = vunpack.c.l.b16 %v140
  %v503 = vpack.c.b16 %v458, %v455
  %v504 = vpack.c.b16 %v459, %v456
  %v505 = vpack.c.b16 %v460, %v457
  %v506 = vpack.c.b16 %v464, %v461
  %v507 = vpack.c.b16 %v465, %v462
  %v508 = vpack.c.b16 %v466, %v463
  %v509 = vpack.c.b16 %v470, %v467
  %v510 = vpack.c.b16 %v471, %v468
  %v511 = vpack.c.b16 %v472, %v469
  %v512 = vpack.c.b16 %v476, %v473
  %v513 = vpack.c.b16 %v477, %v474
  %v514 = vpack.c.b16 %v478, %v475
  %v515 = vpack.c.b16 %v482, %v479
  %v516 = vpack.c.b16 %v483, %v480
  %v517 = vpack.c.b16 %v484, %v481
  %v518 = vpack.c.b16 %v488, %v485
  %v519 = vpack.c.b16 %v489, %v486
  %v520 = vpack.c.b16 %v490, %v487
  %v521 = vpack.c.b16 %v494, %v491
  %v522 = vpack.c.b16 %v495, %v492
  %v523 = vpack.c.b16 %v496, %v493
  %v524 = vpack.c.b16 %v500, %v497
  %v525 = vpack.c.b16 %v501, %v498
  %v526 = vpack.c.b16 %v502, %v499
  %551 = vmatprep.subr.bf16.mxu0 %v504
  %552 = vmatpush1.bf16.msra.mxu0 %v503
  %553 = vmatprep.subr.bf16.mxu0 %v507
  %554 = vmatpush1.bf16.msra.mxu0 %v506
  %555 = vmatprep.subr.bf16.mxu0 %v510
  %556 = vmatpush1.bf16.msra.mxu0 %v509
  %557 = vmatprep.subr.bf16.mxu0 %v513
  %558 = vmatpush1.bf16.msra.mxu0 %v512
  %559 = vmatprep.subr.bf16.mxu0 %v516
  %560 = vmatpush1.bf16.msra.mxu0 %v515
  %561 = vmatprep.subr.bf16.mxu0 %v519
  %562 = vmatpush1.bf16.msra.mxu0 %v518
  %563 = vmatprep.subr.bf16.mxu0 %v522
  %564 = vmatpush1.bf16.msra.mxu0 %v521
  %565 = vmatprep.subr.bf16.mxu0 %v525
  %566 = vmatpush1.bf16.msra.mxu0 %v524
  %567 = vmatprep.subr.bf16.mxu0 0
  %568 = vmatpush1.bf16.msra.mxu0 0
  %569 = vmatprep.subr.bf16.mxu0 0
  %570 = vmatpush1.bf16.msra.mxu0 0
  %571 = vmatprep.subr.bf16.mxu0 0
  %572 = vmatpush1.bf16.msra.mxu0 0
  %573 = vmatprep.subr.bf16.mxu0 0
  %574 = vmatpush1.bf16.msra.mxu0 0
  %575 = vmatprep.subr.bf16.mxu0 0
  %576 = vmatpush1.bf16.msra.mxu0 0
  %577 = vmatprep.subr.bf16.mxu0 0
  %578 = vmatpush1.bf16.msra.mxu0 0
  %579 = vmatprep.subr.bf16.mxu0 0
  %580 = vmatpush1.bf16.msra.mxu0 0
  %581 = vmatprep.subr.bf16.mxu0 0
  %582 = vmatpush1.bf16.msra.mxu0 0
  %583 = vmatprep.mubr.bf16.mxu0 0
  %584 = vmatmul.mubr.bf16.gmra.mrb[0].mxu0 %v406
  %v585 = vpop.f32.mrb[0].mxu0
  %v586 = vadd.f32 %v411, %v585
  %v587 = vpop.f32.mrb[0].mxu0
  %v588 = vadd.f32 %v415, %v587
  %v589 = vpop.f32.mrb[0].mxu0
  %v590 = vpop.f32.mrb[0].mxu0
  %591 = vdwg.mxu0
  %592 = vmatprep.subr.bf16.mxu0 0
  %593 = vmatpush1.bf16.msra.mxu0 %v505
  %594 = vmatprep.subr.bf16.mxu0 0
  %595 = vmatpush1.bf16.msra.mxu0 %v508
  %596 = vmatprep.subr.bf16.mxu0 0
  %597 = vmatpush1.bf16.msra.mxu0 %v511
  %598 = vmatprep.subr.bf16.mxu0 0
  %599 = vmatpush1.bf16.msra.mxu0 %v514
  %600 = vmatprep.subr.bf16.mxu0 0
  %601 = vmatpush1.bf16.msra.mxu0 %v517
  %602 = vmatprep.subr.bf16.mxu0 0
  %603 = vmatpush1.bf16.msra.mxu0 %v520
  %604 = vmatprep.subr.bf16.mxu0 0
  %605 = vmatpush1.bf16.msra.mxu0 %v523
  %606 = vmatprep.subr.bf16.mxu0 0
  %607 = vmatpush1.bf16.msra.mxu0 %v526
  %608 = vmatprep.subr.bf16.mxu0 0
  %609 = vmatpush1.bf16.msra.mxu0 0
  %610 = vmatprep.subr.bf16.mxu0 0
  %611 = vmatpush1.bf16.msra.mxu0 0
  %612 = vmatprep.subr.bf16.mxu0 0
  %613 = vmatpush1.bf16.msra.mxu0 0
  %614 = vmatprep.subr.bf16.mxu0 0
  %615 = vmatpush1.bf16.msra.mxu0 0
  %616 = vmatprep.subr.bf16.mxu0 0
  %617 = vmatpush1.bf16.msra.mxu0 0
  %618 = vmatprep.subr.bf16.mxu0 0
  %619 = vmatpush1.bf16.msra.mxu0 0
  %620 = vmatprep.subr.bf16.mxu0 0
  %621 = vmatpush1.bf16.msra.mxu0 0
  %622 = vmatprep.subr.bf16.mxu0 0
  %623 = vmatpush1.bf16.msra.mxu0 0
  %624 = vmatprep.mubr.bf16.mxu0 0
  %625 = vmatmul.mubr.bf16.gmra.mrb[0].mxu0 %v406
  %v626 = vpop.f32.mrb[0].mxu0
  %v627 = vadd.f32 %v419, %v626
  %v628 = vpop.f32.mrb[0].mxu0
  %v629 = vpop.f32.mrb[0].mxu0
  %v630 = vpop.f32.mrb[0].mxu0
  %631 = vdwg.mxu0
  %v632 = vadd.f32 %v403, %v586
  %v633 = vxor.u32 %v632, 2147483648
  %v634 = vmul.f32 %v633, 1.442695
  %v635 = vpow.pop %v634
  %v636 = vadd.f32 %v635, 1.0
  %v637 = vrcp.pop %v636
  %v638 = vmul.f32 1.0, %v637
  %v639 = vadd.f32 %v404, %v588
  %v640 = vxor.u32 %v639, 2147483648
  %v641 = vmul.f32 %v640, 1.442695
  %v642 = vpow.pop %v641
  %v643 = vadd.f32 %v642, 1.0
  %v644 = vrcp.pop %v643
  %v645 = vmul.f32 1.0, %v644
  %v646 = vmul.f32 %v638, %v627
  %v647 = vadd.f32 %v405, %v646
  %v648 = vtanh.pop %v647
  %v649 = vsub.f32 1.0, %v645
  %v650 = vmul.f32 %v649, %v648
  %v651 = vmul.f32 %v645, %v147
  %v652 = vadd.f32 %v650, %v651
  %v653 = vstv %s143
  %vm654 = vcmp.lt.s32.totalorder %v653, %v76
  %s655 = sadd.s32 %s145, 2
  %v656 = vstv %s655
  %vm657 = vcmp.lt.s32.totalorder %v656, %v76
  %v658 = vsel %vm654, 1, 0
  %659 = vset.pattern.permute.xlu0 0
  %660 = vperm.xlu0 %659, %v658
  %v661 = vpop.permute.xlu0 %660
  %vm662 = vcmp.eq.s32.totalorder %v661, 1
  %v663 = vsel %vm662, %v399, %v146
  %v664 = vsel %vm657, 1, 0
  %665 = vset.pattern.permute.xlu0 0
  %666 = vperm.xlu0 %665, %v664
  %v667 = vpop.permute.xlu0 %666
  %vm668 = vcmp.eq.s32.totalorder %v667, 1
  %v669 = vsel %vm668, %v652, %v147
  %v670 = vsel %vm662, %v399, 0.0
  %671 = vst [vmem:[%s7] sm:$0xff] %v670
  %v672 = vsel %vm668, %v652, 0.0
  %s673 = scalar_lea.vmem %s66, 16
  %674 = vst [vmem:[%s673] sm:$0xff] %v672
  %s675 = scalar_lea.vmem %s0, 12
  %v676 = vld [vmem:[%s675] sm:$0xff]
  %v677 = vld [vmem:[%s675 + $0x8] sm:$0xf]
  %v678 = vunpack.c.l.bf16 %v676
  %v679 = vunpack.c.h.bf16 %v676
  %v680 = vunpack.c.l.bf16 %v677
  %v681 = vpack.c.bf16 %v663, %v663
  %682 = vmatprep.subr.bf16.mxu0 %v251
  %683 = vmatpush1.bf16.msra.mxu0 %v250
  %684 = vmatprep.subr.bf16.mxu0 %v254
  %685 = vmatpush1.bf16.msra.mxu0 %v253
  %686 = vmatprep.subr.bf16.mxu0 %v257
  %687 = vmatpush1.bf16.msra.mxu0 %v256
  %688 = vmatprep.subr.bf16.mxu0 %v260
  %689 = vmatpush1.bf16.msra.mxu0 %v259
  %690 = vmatprep.subr.bf16.mxu0 %v263
  %691 = vmatpush1.bf16.msra.mxu0 %v262
  %692 = vmatprep.subr.bf16.mxu0 %v266
  %693 = vmatpush1.bf16.msra.mxu0 %v265
  %694 = vmatprep.subr.bf16.mxu0 %v269
  %695 = vmatpush1.bf16.msra.mxu0 %v268
  %696 = vmatprep.subr.bf16.mxu0 %v272
  %697 = vmatpush1.bf16.msra.mxu0 %v271
  %698 = vmatprep.subr.bf16.mxu0 0
  %699 = vmatpush1.bf16.msra.mxu0 0
  %700 = vmatprep.subr.bf16.mxu0 0
  %701 = vmatpush1.bf16.msra.mxu0 0
  %702 = vmatprep.subr.bf16.mxu0 0
  %703 = vmatpush1.bf16.msra.mxu0 0
  %704 = vmatprep.subr.bf16.mxu0 0
  %705 = vmatpush1.bf16.msra.mxu0 0
  %706 = vmatprep.subr.bf16.mxu0 0
  %707 = vmatpush1.bf16.msra.mxu0 0
  %708 = vmatprep.subr.bf16.mxu0 0
  %709 = vmatpush1.bf16.msra.mxu0 0
  %710 = vmatprep.subr.bf16.mxu0 0
  %711 = vmatpush1.bf16.msra.mxu0 0
  %712 = vmatprep.subr.bf16.mxu0 0
  %713 = vmatpush1.bf16.msra.mxu0 0
  %714 = vmatprep.mubr.bf16.mxu0 0
  %715 = vmatmul.mubr.bf16.gmra.mrb[0].mxu0 %v681
  %v716 = vpop.f32.mrb[0].mxu0
  %v717 = vadd.f32 %v158, %v716
  %v718 = vpop.f32.mrb[0].mxu0
  %v719 = vadd.f32 %v162, %v718
  %v720 = vpop.f32.mrb[0].mxu0
  %v721 = vpop.f32.mrb[0].mxu0
  %722 = vdwg.mxu0
  %723 = vmatprep.subr.bf16.mxu0 0
  %724 = vmatpush1.bf16.msra.mxu0 %v252
  %725 = vmatprep.subr.bf16.mxu0 0
  %726 = vmatpush1.bf16.msra.mxu0 %v255
  %727 = vmatprep.subr.bf16.mxu0 0
  %728 = vmatpush1.bf16.msra.mxu0 %v258
  %729 = vmatprep.subr.bf16.mxu0 0
  %730 = vmatpush1.bf16.msra.mxu0 %v261
  %731 = vmatprep.subr.bf16.mxu0 0
  %732 = vmatpush1.bf16.msra.mxu0 %v264
  %733 = vmatprep.subr.bf16.mxu0 0
  %734 = vmatpush1.bf16.msra.mxu0 %v267
  %735 = vmatprep.subr.bf16.mxu0 0
  %736 = vmatpush1.bf16.msra.mxu0 %v270
  %737 = vmatprep.subr.bf16.mxu0 0
  %738 = vmatpush1.bf16.msra.mxu0 %v273
  %739 = vmatprep.subr.bf16.mxu0 0
  %740 = vmatpush1.bf16.msra.mxu0 0
  %741 = vmatprep.subr.bf16.mxu0 0
  %742 = vmatpush1.bf16.msra.mxu0 0
  %743 = vmatprep.subr.bf16.mxu0 0
  %744 = vmatpush1.bf16.msra.mxu0 0
  %745 = vmatprep.subr.bf16.mxu0 0
  %746 = vmatpush1.bf16.msra.mxu0 0
  %747 = vmatprep.subr.bf16.mxu0 0
  %748 = vmatpush1.bf16.msra.mxu0 0
  %749 = vmatprep.subr.bf16.mxu0 0
  %750 = vmatpush1.bf16.msra.mxu0 0
  %751 = vmatprep.subr.bf16.mxu0 0
  %752 = vmatpush1.bf16.msra.mxu0 0
  %753 = vmatprep.subr.bf16.mxu0 0
  %754 = vmatpush1.bf16.msra.mxu0 0
  %755 = vmatprep.mubr.bf16.mxu0 0
  %756 = vmatmul.mubr.bf16.gmra.mrb[0].mxu0 %v681
  %v757 = vpop.f32.mrb[0].mxu0
  %v758 = vadd.f32 %v166, %v757
  %v759 = vpop.f32.mrb[0].mxu0
  %v760 = vpop.f32.mrb[0].mxu0
  %v761 = vpop.f32.mrb[0].mxu0
  %762 = vdwg.mxu0
  %v763 = vadd.f32 %v678, %v717
  %v764 = vxor.u32 %v763, 2147483648
  %v765 = vmul.f32 %v764, 1.442695
  %v766 = vpow.pop %v765
  %v767 = vadd.f32 %v766, 1.0
  %v768 = vrcp.pop %v767
  %v769 = vmul.f32 1.0, %v768
  %v770 = vadd.f32 %v679, %v719
  %v771 = vxor.u32 %v770, 2147483648
  %v772 = vmul.f32 %v771, 1.442695
  %v773 = vpow.pop %v772
  %v774 = vadd.f32 %v773, 1.0
  %v775 = vrcp.pop %v774
  %v776 = vmul.f32 1.0, %v775
  %v777 = vmul.f32 %v769, %v758
  %v778 = vadd.f32 %v680, %v777
  %v779 = vtanh.pop %v778
  %v780 = vsub.f32 1.0, %v776
  %v781 = vmul.f32 %v780, %v779
  %v782 = vmul.f32 %v776, %v663
  %v783 = vadd.f32 %v781, %v782
  %s784 = scalar_lea.vmem %s58, 12
  %v785 = vld [vmem:[%s784] sm:$0xff]
  %v786 = vld [vmem:[%s784 + $0x8] sm:$0xf]
  %v787 = vunpack.c.l.bf16 %v785
  %v788 = vunpack.c.h.bf16 %v785
  %v789 = vunpack.c.l.bf16 %v786
  %v790 = vpack.c.bf16 %v669, %v669
  %791 = vmatprep.subr.bf16.mxu0 %v504
  %792 = vmatpush1.bf16.msra.mxu0 %v503
  %793 = vmatprep.subr.bf16.mxu0 %v507
  %794 = vmatpush1.bf16.msra.mxu0 %v506
  %795 = vmatprep.subr.bf16.mxu0 %v510
  %796 = vmatpush1.bf16.msra.mxu0 %v509
  %797 = vmatprep.subr.bf16.mxu0 %v513
  %798 = vmatpush1.bf16.msra.mxu0 %v512
  %799 = vmatprep.subr.bf16.mxu0 %v516
  %800 = vmatpush1.bf16.msra.mxu0 %v515
  %801 = vmatprep.subr.bf16.mxu0 %v519
  %802 = vmatpush1.bf16.msra.mxu0 %v518
  %803 = vmatprep.subr.bf16.mxu0 %v522
  %804 = vmatpush1.bf16.msra.mxu0 %v521
  %805 = vmatprep.subr.bf16.mxu0 %v525
  %806 = vmatpush1.bf16.msra.mxu0 %v524
  %807 = vmatprep.subr.bf16.mxu0 0
  %808 = vmatpush1.bf16.msra.mxu0 0
  %809 = vmatprep.subr.bf16.mxu0 0
  %810 = vmatpush1.bf16.msra.mxu0 0
  %811 = vmatprep.subr.bf16.mxu0 0
  %812 = vmatpush1.bf16.msra.mxu0 0
  %813 = vmatprep.subr.bf16.mxu0 0
  %814 = vmatpush1.bf16.msra.mxu0 0
  %815 = vmatprep.subr.bf16.mxu0 0
  %816 = vmatpush1.bf16.msra.mxu0 0
  %817 = vmatprep.subr.bf16.mxu0 0
  %818 = vmatpush1.bf16.msra.mxu0 0
  %819 = vmatprep.subr.bf16.mxu0 0
  %820 = vmatpush1.bf16.msra.mxu0 0
  %821 = vmatprep.subr.bf16.mxu0 0
  %822 = vmatpush1.bf16.msra.mxu0 0
  %823 = vmatprep.mubr.bf16.mxu0 0
  %824 = vmatmul.mubr.bf16.gmra.mrb[0].mxu0 %v790
  %v825 = vpop.f32.mrb[0].mxu0
  %v826 = vadd.f32 %v411, %v825
  %v827 = vpop.f32.mrb[0].mxu0
  %v828 = vadd.f32 %v415, %v827
  %v829 = vpop.f32.mrb[0].mxu0
  %v830 = vpop.f32.mrb[0].mxu0
  %831 = vdwg.mxu0
  %832 = vmatprep.subr.bf16.mxu0 0
  %833 = vmatpush1.bf16.msra.mxu0 %v505
  %834 = vmatprep.subr.bf16.mxu0 0
  %835 = vmatpush1.bf16.msra.mxu0 %v508
  %836 = vmatprep.subr.bf16.mxu0 0
  %837 = vmatpush1.bf16.msra.mxu0 %v511
  %838 = vmatprep.subr.bf16.mxu0 0
  %839 = vmatpush1.bf16.msra.mxu0 %v514
  %840 = vmatprep.subr.bf16.mxu0 0
  %841 = vmatpush1.bf16.msra.mxu0 %v517
  %842 = vmatprep.subr.bf16.mxu0 0
  %843 = vmatpush1.bf16.msra.mxu0 %v520
  %844 = vmatprep.subr.bf16.mxu0 0
  %845 = vmatpush1.bf16.msra.mxu0 %v523
  %846 = vmatprep.subr.bf16.mxu0 0
  %847 = vmatpush1.bf16.msra.mxu0 %v526
  %848 = vmatprep.subr.bf16.mxu0 0
  %849 = vmatpush1.bf16.msra.mxu0 0
  %850 = vmatprep.subr.bf16.mxu0 0
  %851 = vmatpush1.bf16.msra.mxu0 0
  %852 = vmatprep.subr.bf16.mxu0 0
  %853 = vmatpush1.bf16.msra.mxu0 0
  %854 = vmatprep.subr.bf16.mxu0 0
  %855 = vmatpush1.bf16.msra.mxu0 0
  %856 = vmatprep.subr.bf16.mxu0 0
  %857 = vmatpush1.bf16.msra.mxu0 0
  %858 = vmatprep.subr.bf16.mxu0 0
  %859 = vmatpush1.bf16.msra.mxu0 0
  %860 = vmatprep.subr.bf16.mxu0 0
  %861 = vmatpush1.bf16.msra.mxu0 0
  %862 = vmatprep.subr.bf16.mxu0 0
  %863 = vmatpush1.bf16.msra.mxu0 0
  %864 = vmatprep.mubr.bf16.mxu0 0
  %865 = vmatmul.mubr.bf16.gmra.mrb[0].mxu0 %v790
  %v866 = vpop.f32.mrb[0].mxu0
  %v867 = vadd.f32 %v419, %v866
  %v868 = vpop.f32.mrb[0].mxu0
  %v869 = vpop.f32.mrb[0].mxu0
  %v870 = vpop.f32.mrb[0].mxu0
  %871 = vdwg.mxu0
  %v872 = vadd.f32 %v787, %v826
  %v873 = vxor.u32 %v872, 2147483648
  %v874 = vmul.f32 %v873, 1.442695
  %v875 = vpow.pop %v874
  %v876 = vadd.f32 %v875, 1.0
  %v877 = vrcp.pop %v876
  %v878 = vmul.f32 1.0, %v877
  %v879 = vadd.f32 %v788, %v828
  %v880 = vxor.u32 %v879, 2147483648
  %v881 = vmul.f32 %v880, 1.442695
  %v882 = vpow.pop %v881
  %v883 = vadd.f32 %v882, 1.0
  %v884 = vrcp.pop %v883
  %v885 = vmul.f32 1.0, %v884
  %v886 = vmul.f32 %v878, %v867
  %v887 = vadd.f32 %v789, %v886
  %v888 = vtanh.pop %v887
  %v889 = vsub.f32 1.0, %v885
  %v890 = vmul.f32 %v889, %v888
  %v891 = vmul.f32 %v885, %v669
  %v892 = vadd.f32 %v890, %v891
  %s893 = sadd.s32 %s143, 1
  %v894 = vstv %s893
  %vm895 = vcmp.lt.s32.totalorder %v894, %v76
  %s896 = sadd.s32 %s145, 1
  %v897 = vstv %s896
  %vm898 = vcmp.lt.s32.totalorder %v897, %v76
  %v899 = vsel %vm895, 1, 0
  %900 = vset.pattern.permute.xlu0 0
  %901 = vperm.xlu0 %900, %v899
  %v902 = vpop.permute.xlu0 %901
  %vm903 = vcmp.eq.s32.totalorder %v902, 1
  %v904 = vsel %vm903, %v783, %v663
  %v905 = vsel %vm898, 1, 0
  %906 = vset.pattern.permute.xlu0 0
  %907 = vperm.xlu0 %906, %v905
  %v908 = vpop.permute.xlu0 %907
  %vm909 = vcmp.eq.s32.totalorder %v908, 1
  %v910 = vsel %vm909, %v892, %v669
  %v911 = vsel %vm903, %v783, 0.0
  %s912 = scalar_lea.vmem %s7, 8
  %913 = vst [vmem:[%s912] sm:$0xff] %v911
  %v914 = vsel %vm909, %v892, 0.0
  %s915 = scalar_lea.vmem %s66, 8
  %916 = vst [vmem:[%s915] sm:$0xff] %v914
  %s917 = scalar_lea.vmem %s0, 24
  %v918 = vld [vmem:[%s917] sm:$0xff]
  %v919 = vld [vmem:[%s917 + $0x8] sm:$0xf]
  %v920 = vunpack.c.l.bf16 %v918
  %v921 = vunpack.c.h.bf16 %v918
  %v922 = vunpack.c.l.bf16 %v919
  %v923 = vpack.c.bf16 %v904, %v904
  %924 = vmatprep.subr.bf16.mxu0 %v251
  %925 = vmatpush1.bf16.msra.mxu0 %v250
  %926 = vmatprep.subr.bf16.mxu0 %v254
  %927 = vmatpush1.bf16.msra.mxu0 %v253
  %928 = vmatprep.subr.bf16.mxu0 %v257
  %929 = vmatpush1.bf16.msra.mxu0 %v256
  %930 = vmatprep.subr.bf16.mxu0 %v260
  %931 = vmatpush1.bf16.msra.mxu0 %v259
  %932 = vmatprep.subr.bf16.mxu0 %v263
  %933 = vmatpush1.bf16.msra.mxu0 %v262
  %934 = vmatprep.subr.bf16.mxu0 %v266
  %935 = vmatpush1.bf16.msra.mxu0 %v265
  %936 = vmatprep.subr.bf16.mxu0 %v269
  %937 = vmatpush1.bf16.msra.mxu0 %v268
  %938 = vmatprep.subr.bf16.mxu0 %v272
  %939 = vmatpush1.bf16.msra.mxu0 %v271
  %940 = vmatprep.subr.bf16.mxu0 0
  %941 = vmatpush1.bf16.msra.mxu0 0
  %942 = vmatprep.subr.bf16.mxu0 0
  %943 = vmatpush1.bf16.msra.mxu0 0
  %944 = vmatprep.subr.bf16.mxu0 0
  %945 = vmatpush1.bf16.msra.mxu0 0
  %946 = vmatprep.subr.bf16.mxu0 0
  %947 = vmatpush1.bf16.msra.mxu0 0
  %948 = vmatprep.subr.bf16.mxu0 0
  %949 = vmatpush1.bf16.msra.mxu0 0
  %950 = vmatprep.subr.bf16.mxu0 0
  %951 = vmatpush1.bf16.msra.mxu0 0
  %952 = vmatprep.subr.bf16.mxu0 0
  %953 = vmatpush1.bf16.msra.mxu0 0
  %954 = vmatprep.subr.bf16.mxu0 0
  %955 = vmatpush1.bf16.msra.mxu0 0
  %956 = vmatprep.mubr.bf16.mxu0 0
  %957 = vmatmul.mubr.bf16.gmra.mrb[0].mxu0 %v923
  %v958 = vpop.f32.mrb[0].mxu0
  %v959 = vadd.f32 %v158, %v958
  %v960 = vpop.f32.mrb[0].mxu0
  %v961 = vadd.f32 %v162, %v960
  %v962 = vpop.f32.mrb[0].mxu0
  %v963 = vpop.f32.mrb[0].mxu0
  %964 = vdwg.mxu0
  %965 = vmatprep.subr.bf16.mxu0 0
  %966 = vmatpush1.bf16.msra.mxu0 %v252
  %967 = vmatprep.subr.bf16.mxu0 0
  %968 = vmatpush1.bf16.msra.mxu0 %v255
  %969 = vmatprep.subr.bf16.mxu0 0
  %970 = vmatpush1.bf16.msra.mxu0 %v258
  %971 = vmatprep.subr.bf16.mxu0 0
  %972 = vmatpush1.bf16.msra.mxu0 %v261
  %973 = vmatprep.subr.bf16.mxu0 0
  %974 = vmatpush1.bf16.msra.mxu0 %v264
  %975 = vmatprep.subr.bf16.mxu0 0
  %976 = vmatpush1.bf16.msra.mxu0 %v267
  %977 = vmatprep.subr.bf16.mxu0 0
  %978 = vmatpush1.bf16.msra.mxu0 %v270
  %979 = vmatprep.subr.bf16.mxu0 0
  %980 = vmatpush1.bf16.msra.mxu0 %v273
  %981 = vmatprep.subr.bf16.mxu0 0
  %982 = vmatpush1.bf16.msra.mxu0 0
  %983 = vmatprep.subr.bf16.mxu0 0
  %984 = vmatpush1.bf16.msra.mxu0 0
  %985 = vmatprep.subr.bf16.mxu0 0
  %986 = vmatpush1.bf16.msra.mxu0 0
  %987 = vmatprep.subr.bf16.mxu0 0
  %988 = vmatpush1.bf16.msra.mxu0 0
  %989 = vmatprep.subr.bf16.mxu0 0
  %990 = vmatpush1.bf16.msra.mxu0 0
  %991 = vmatprep.subr.bf16.mxu0 0
  %992 = vmatpush1.bf16.msra.mxu0 0
  %993 = vmatprep.subr.bf16.mxu0 0
  %994 = vmatpush1.bf16.msra.mxu0 0
  %995 = vmatprep.subr.bf16.mxu0 0
  %996 = vmatpush1.bf16.msra.mxu0 0
  %997 = vmatprep.mubr.bf16.mxu0 0
  %998 = vmatmul.mubr.bf16.gmra.mrb[0].mxu0 %v923
  %v999 = vpop.f32.mrb[0].mxu0
  %v1000 = vadd.f32 %v166, %v999
  %v1001 = vpop.f32.mrb[0].mxu0
  %v1002 = vpop.f32.mrb[0].mxu0
  %v1003 = vpop.f32.mrb[0].mxu0
  %1004 = vdwg.mxu0
  %v1005 = vadd.f32 %v920, %v959
  %v1006 = vxor.u32 %v1005, 2147483648
  %v1007 = vmul.f32 %v1006, 1.442695
  %v1008 = vpow.pop %v1007
  %v1009 = vadd.f32 %v1008, 1.0
  %v1010 = vrcp.pop %v1009
  %v1011 = vmul.f32 1.0, %v1010
  %v1012 = vadd.f32 %v921, %v961
  %v1013 = vxor.u32 %v1012, 2147483648
  %v1014 = vmul.f32 %v1013, 1.442695
  %v1015 = vpow.pop %v1014
  %v1016 = vadd.f32 %v1015, 1.0
  %v1017 = vrcp.pop %v1016
  %v1018 = vmul.f32 1.0, %v1017
  %v1019 = vmul.f32 %v1011, %v1000
  %v1020 = vadd.f32 %v922, %v1019
  %v1021 = vtanh.pop %v1020
  %v1022 = vsub.f32 1.0, %v1018
  %v1023 = vmul.f32 %v1022, %v1021
  %v1024 = vmul.f32 %v1018, %v904
  %v1025 = vadd.f32 %v1023, %v1024
  %v1026 = vld [vmem:[%s58] sm:$0xff]
  %v1027 = vld [vmem:[%s58 + $0x8] sm:$0xf]
  %v1028 = vunpack.c.l.bf16 %v1026
  %v1029 = vunpack.c.h.bf16 %v1026
  %v1030 = vunpack.c.l.bf16 %v1027
  %v1031 = vpack.c.bf16 %v910, %v910
  %1032 = vmatprep.subr.bf16.mxu0 %v504
  %1033 = vmatpush1.bf16.msra.mxu0 %v503
  %1034 = vmatprep.subr.bf16.mxu0 %v507
  %1035 = vmatpush1.bf16.msra.mxu0 %v506
  %1036 = vmatprep.subr.bf16.mxu0 %v510
  %1037 = vmatpush1.bf16.msra.mxu0 %v509
  %1038 = vmatprep.subr.bf16.mxu0 %v513
  %1039 = vmatpush1.bf16.msra.mxu0 %v512
  %1040 = vmatprep.subr.bf16.mxu0 %v516
  %1041 = vmatpush1.bf16.msra.mxu0 %v515
  %1042 = vmatprep.subr.bf16.mxu0 %v519
  %1043 = vmatpush1.bf16.msra.mxu0 %v518
  %1044 = vmatprep.subr.bf16.mxu0 %v522
  %1045 = vmatpush1.bf16.msra.mxu0 %v521
  %1046 = vmatprep.subr.bf16.mxu0 %v525
  %1047 = vmatpush1.bf16.msra.mxu0 %v524
  %1048 = vmatprep.subr.bf16.mxu0 0
  %1049 = vmatpush1.bf16.msra.mxu0 0
  %1050 = vmatprep.subr.bf16.mxu0 0
  %1051 = vmatpush1.bf16.msra.mxu0 0
  %1052 = vmatprep.subr.bf16.mxu0 0
  %1053 = vmatpush1.bf16.msra.mxu0 0
  %1054 = vmatprep.subr.bf16.mxu0 0
  %1055 = vmatpush1.bf16.msra.mxu0 0
  %1056 = vmatprep.subr.bf16.mxu0 0
  %1057 = vmatpush1.bf16.msra.mxu0 0
  %1058 = vmatprep.subr.bf16.mxu0 0
  %1059 = vmatpush1.bf16.msra.mxu0 0
  %1060 = vmatprep.subr.bf16.mxu0 0
  %1061 = vmatpush1.bf16.msra.mxu0 0
  %1062 = vmatprep.subr.bf16.mxu0 0
  %1063 = vmatpush1.bf16.msra.mxu0 0
  %1064 = vmatprep.mubr.bf16.mxu0 0
  %1065 = vmatmul.mubr.bf16.gmra.mrb[0].mxu0 %v1031
  %v1066 = vpop.f32.mrb[0].mxu0
  %v1067 = vadd.f32 %v411, %v1066
  %v1068 = vpop.f32.mrb[0].mxu0
  %v1069 = vadd.f32 %v415, %v1068
  %v1070 = vpop.f32.mrb[0].mxu0
  %v1071 = vpop.f32.mrb[0].mxu0
  %1072 = vdwg.mxu0
  %1073 = vmatprep.subr.bf16.mxu0 0
  %1074 = vmatpush1.bf16.msra.mxu0 %v505
  %1075 = vmatprep.subr.bf16.mxu0 0
  %1076 = vmatpush1.bf16.msra.mxu0 %v508
  %1077 = vmatprep.subr.bf16.mxu0 0
  %1078 = vmatpush1.bf16.msra.mxu0 %v511
  %1079 = vmatprep.subr.bf16.mxu0 0
  %1080 = vmatpush1.bf16.msra.mxu0 %v514
  %1081 = vmatprep.subr.bf16.mxu0 0
  %1082 = vmatpush1.bf16.msra.mxu0 %v517
  %1083 = vmatprep.subr.bf16.mxu0 0
  %1084 = vmatpush1.bf16.msra.mxu0 %v520
  %1085 = vmatprep.subr.bf16.mxu0 0
  %1086 = vmatpush1.bf16.msra.mxu0 %v523
  %1087 = vmatprep.subr.bf16.mxu0 0
  %1088 = vmatpush1.bf16.msra.mxu0 %v526
  %1089 = vmatprep.subr.bf16.mxu0 0
  %1090 = vmatpush1.bf16.msra.mxu0 0
  %1091 = vmatprep.subr.bf16.mxu0 0
  %1092 = vmatpush1.bf16.msra.mxu0 0
  %1093 = vmatprep.subr.bf16.mxu0 0
  %1094 = vmatpush1.bf16.msra.mxu0 0
  %1095 = vmatprep.subr.bf16.mxu0 0
  %1096 = vmatpush1.bf16.msra.mxu0 0
  %1097 = vmatprep.subr.bf16.mxu0 0
  %1098 = vmatpush1.bf16.msra.mxu0 0
  %1099 = vmatprep.subr.bf16.mxu0 0
  %1100 = vmatpush1.bf16.msra.mxu0 0
  %1101 = vmatprep.subr.bf16.mxu0 0
  %1102 = vmatpush1.bf16.msra.mxu0 0
  %1103 = vmatprep.subr.bf16.mxu0 0
  %1104 = vmatpush1.bf16.msra.mxu0 0
  %1105 = vmatprep.mubr.bf16.mxu0 0
  %1106 = vmatmul.mubr.bf16.gmra.mrb[0].mxu0 %v1031
  %v1107 = vpop.f32.mrb[0].mxu0
  %v1108 = vadd.f32 %v419, %v1107
  %v1109 = vpop.f32.mrb[0].mxu0
  %v1110 = vpop.f32.mrb[0].mxu0
  %v1111 = vpop.f32.mrb[0].mxu0
  %1112 = vdwg.mxu0
  %v1113 = vadd.f32 %v1028, %v1067
  %v1114 = vxor.u32 %v1113, 2147483648
  %v1115 = vmul.f32 %v1114, 1.442695
  %v1116 = vpow.pop %v1115
  %v1117 = vadd.f32 %v1116, 1.0
  %v1118 = vrcp.pop %v1117
  %v1119 = vmul.f32 1.0, %v1118
  %v1120 = vadd.f32 %v1029, %v1069
  %v1121 = vxor.u32 %v1120, 2147483648
  %v1122 = vmul.f32 %v1121, 1.442695
  %v1123 = vpow.pop %v1122
  %v1124 = vadd.f32 %v1123, 1.0
  %v1125 = vrcp.pop %v1124
  %v1126 = vmul.f32 1.0, %v1125
  %v1127 = vmul.f32 %v1119, %v1108
  %v1128 = vadd.f32 %v1030, %v1127
  %v1129 = vtanh.pop %v1128
  %v1130 = vsub.f32 1.0, %v1126
  %v1131 = vmul.f32 %v1130, %v1129
  %v1132 = vmul.f32 %v1126, %v910
  %v1133 = vadd.f32 %v1131, %v1132
  %s1134 = sadd.s32 %s143, 2
  %v1135 = vstv %s1134
  %vm1136 = vcmp.lt.s32.totalorder %v1135, %v76
  %v1137 = vstv %s145
  %vm1138 = vcmp.lt.s32.totalorder %v1137, %v76
  %v1139 = vsel %vm1136, 1, 0
  %1140 = vset.pattern.permute.xlu0 0
  %1141 = vperm.xlu0 %1140, %v1139
  %v1142 = vpop.permute.xlu0 %1141
  %vm1143 = vcmp.eq.s32.totalorder %v1142, 1
  %v1144 = vsel %vm1143, %v1025, %v904
  %v1145 = vsel %vm1138, 1, 0
  %1146 = vset.pattern.permute.xlu0 0
  %1147 = vperm.xlu0 %1146, %v1145
  %v1148 = vpop.permute.xlu0 %1147
  %vm1149 = vcmp.eq.s32.totalorder %v1148, 1
  %v1150 = vsel %vm1149, %v1133, %v910
  %v1151 = vsel %vm1143, %v1025, 0.0
  %s1152 = scalar_lea.vmem %s7, 16
  %1153 = vst [vmem:[%s1152] sm:$0xff] %v1151
  %v1154 = vsel %vm1149, %v1133, 0.0
  %1155 = vst [vmem:[%s66] sm:$0xff] %v1154
  %1156 = vst [vmem:[#allocation2] sm:$0xff] %v1144
  %1157 = vst [vmem:[#allocation3] sm:$0xff] %v1150
  // Predicated region
  $region34: #{hrnn_encoder_forward.5} parent=0 // pred_check
    %p1158 = pneg %p70
  $region35: #{hrnn_encoder_forward.5} parent=0 // pred_check_branch
    %1160 = sbr.rel (%p1158) target = $region37
  $region36: #{hrnn_encoder_forward.5} parent=0 // pred_region
    %1161 = vst [vmem:[%s9] sm:$0xff] %v1144
    %1162 = vst [vmem:[%s10] sm:$0xff] %v1150
  $region37: #{hrnn_encoder_forward.5} parent=0 // pred_fallthru
    _
  %s1163 = ssub.s32 0, 0
  %s1164 = smul.u32 3, %s1163
  %p1165 = scmp.lt.s32.totalorder %s1164, 2
  %s1166 = scalar_select %p1165, %s1164, 2
  %s1167 = smul.addr %s1166, 8
  %s1168 = scalar_lea.vmem %s8, %s1167
  // Predicated region
  $region38: #{hrnn_encoder_forward.5} parent=0 // pred_check
    _
  $region39: #{hrnn_encoder_forward.5} parent=0 // pred_check_branch
    %1170 = sbr.rel (0) target = $region41
  $region40: #{hrnn_encoder_forward.5} parent=0 // pred_region
    _
  $region41: #{hrnn_encoder_forward.5} parent=0 // pred_fallthru
    _
  // Predicated region
  $region42: #{hrnn_encoder_forward.5} parent=0 // pred_check
    _
  $region43: #{hrnn_encoder_forward.5} parent=0 // pred_check_branch
    %1172 = sbr.rel (0) target = $region45
  $region44: #{hrnn_encoder_forward.5} parent=0 // pred_region
    %s1173 = ssub.s32 0, 0
    %s1174 = smul.u32 3, %s1173
  $region45: #{hrnn_encoder_forward.5} parent=0 // pred_fallthru
    _
  // Predicated region
  $region46: #{hrnn_encoder_forward.5} parent=0 // pred_check
    _
  $region47: #{hrnn_encoder_forward.5} parent=0 // pred_check_branch
    %1176 = sbr.rel (0) target = $region49
  $region48: #{hrnn_encoder_forward.5} parent=0 // pred_region
    _
  $region49: #{hrnn_encoder_forward.5} parent=0 // pred_fallthru
    _
  // Predicated region
  $region50: #{hrnn_encoder_forward.5} parent=0 // pred_check
    _
  $region51: #{hrnn_encoder_forward.5} parent=0 // pred_check_branch
    %1178 = sbr.rel (0) target = $region53
  $region52: #{hrnn_encoder_forward.5} parent=0 // pred_region
    _
  $region53: #{hrnn_encoder_forward.5} parent=0 // pred_fallthru
    _
  // Predicated region
  $region54: #{hrnn_encoder_forward.5} parent=0 // pred_check
    _
  $region55: #{hrnn_encoder_forward.5} parent=0 // pred_check_branch
    %1180 = sbr.rel (0) target = $region57
  $region56: #{hrnn_encoder_forward.5} parent=0 // pred_region
    _
  $region57: #{hrnn_encoder_forward.5} parent=0 // pred_fallthru
    _
  // Predicated region
  $region58: #{hrnn_encoder_forward.5} parent=0 // pred_check
    _
  $region59: #{hrnn_encoder_forward.5} parent=0 // pred_check_branch
    %1182 = sbr.rel (0) target = $region61
  $region60: #{hrnn_encoder_forward.5} parent=0 // pred_region
    %s1183 = ssub.s32 0, 0
    %s1184 = smul.u32 3, %s1183
    %p1185 = scmp.lt.s32.totalorder %s1184, 2
    %s1186 = scalar_select %p1185, %s1184, 2
    %s1187 = smul.addr %s1186, 8
    %s1188 = scalar_lea.vmem %s8, %s1187
  $region61: #{hrnn_encoder_forward.5} parent=0 // pred_fallthru
    _
  // Predicated region
  $region62: #{hrnn_encoder_forward.5} parent=0 // pred_check
    _
  $region63: #{hrnn_encoder_forward.5} parent=0 // pred_check_branch
    %1190 = sbr.rel (0) target = $region65
  $region64: #{hrnn_encoder_forward.5} parent=0 // pred_region
    _
  $region65: #{hrnn_encoder_forward.5} parent=0 // pred_fallthru
    _
  // Predicated region
  $region66: #{hrnn_encoder_forward.5} parent=0 // pred_check
    _
  $region67: #{hrnn_encoder_forward.5} parent=0 // pred_check_branch
    %1192 = sbr.rel (0) target = $region69
  $region68: #{hrnn_encoder_forward.5} parent=0 // pred_region
    _
  $region69: #{hrnn_encoder_forward.5} parent=0 // pred_fallthru
    _

// kernel: hrnn_encoder_forward.3
$region0: #{hrnn_encoder_forward.3}
  #allocation0 [shape = 'u32[]', space=smem, size = 0x4, offset = 0x4, fixed_abs, tag = 'smem constant byte address 0x4 - core index']
  #allocation1 [shape = 'u32[144,128]{1,0:T(1,128)}', space=vmem, size = 0x12000, scoped, tag = 'internal scratch']
  #allocation2 [shape = 'f32[8,128]{1,0:T(8,128)}', space=vmem, size = 0x1000, scoped, tag = 'scratch operand']
  #allocation3 [shape = 'f32[8,128]{1,0:T(8,128)}', space=vmem, size = 0x1000, scoped, tag = 'scratch operand']
  %s0 = inlined_call_operand.vmem [shape: bf16[8,8,384], index: 0, kind: input, shape index: {}]
  %s1 = inlined_call_operand.vmem [shape: bf16[8,8,384], index: 1, kind: input, shape index: {}]
  %s2 = inlined_call_operand.vmem [shape: bf16[128,384], index: 2, kind: input, shape index: {}]
  %s3 = inlined_call_operand.vmem [shape: bf16[128,384], index: 3, kind: input, shape index: {}]
  %s4 = inlined_call_operand.vmem [shape: f32[1,384], index: 4, kind: input, shape index: {}]
  %s5 = inlined_call_operand.vmem [shape: f32[1,384], index: 5, kind: input, shape index: {}]
  %s6 = inlined_call_operand.vmem [shape: s32[8,1], index: 6, kind: input, shape index: {}]
  %s7 = inlined_call_operand.vmem [shape: f32[8,8,128], index: 7, kind: output, shape index: {0}]
  %s8 = inlined_call_operand.vmem [shape: f32[8,8,128], index: 8, kind: output, shape index: {1}]
  %s9 = inlined_call_operand.hbm [shape: f32[8,128], index: 9, kind: output, shape index: {2}]
  %s10 = inlined_call_operand.hbm [shape: f32[8,128], index: 10, kind: output, shape index: {3}]
  %11 = xla_tuple %s7, %s8, %s9, %s10
  %s12 = sld [smem:[#allocation0]]
  $region70: #{hrnn_encoder_forward.3} parent=0
    _
  %s14 = ssub.s32 1, %s12
  %s15 = scalar_select 0, %s14, %s12
  $region1: #{hrnn_encoder_forward.3} parent=0
    #allocation4 [shape = 'u8[4096]{0}', space=vmem, size = 0x1000, scoped, tag = 'output window, operand 2, single buffered']
    #allocation5 [shape = 's32[1]{0}', space=sflag, size = 0x4, scoped, tag = 'scoped memory for hrnn_encoder_forward.3']
    #allocation6 [shape = 'u8[4096]{0}', space=vmem, size = 0x1000, scoped, tag = 'output window, operand 3, single buffered']
    #allocation7 [shape = 's32[1]{0}', space=sflag, size = 0x4, scoped, tag = 'scoped memory for hrnn_encoder_forward.3']
    %16 = vsyncpa [#allocation5], 0
    %17 = vsyncpa [#allocation7], 0
    // Predicated region
    $region2: #{hrnn_encoder_forward.3} parent=1 // pred_check
      _
    $region3: #{hrnn_encoder_forward.3} parent=1 // pred_check_branch
      %19 = sbr.rel (0) target = $region5
    $region4: #{hrnn_encoder_forward.3} parent=1 // pred_region
      _
    $region5: #{hrnn_encoder_forward.3} parent=1 // pred_fallthru
      _
    // Predicated region
    $region6: #{hrnn_encoder_forward.3} parent=1 // pred_check
      _
    $region7: #{hrnn_encoder_forward.3} parent=1 // pred_check_branch
      %21 = sbr.rel (0) target = $region9
    $region8: #{hrnn_encoder_forward.3} parent=1 // pred_region
      %s22 = ssub.s32 0, 0
      %s23 = smul.u32 8, %s22
      %p24 = scmp.lt.s32.totalorder %s23, 7
      %s25 = scalar_select %p24, %s23, 7
      %s26 = smul.addr %s25, 3
      %s27 = smul.addr %s26, 4
      %s28 = scalar_lea.vmem %s1, %s27
      %s29 = ssub.s32 0, 0
      %s30 = smul.u32 8, %s29
    $region9: #{hrnn_encoder_forward.3} parent=1 // pred_fallthru
      _
    // Predicated region
    $region10: #{hrnn_encoder_forward.3} parent=1 // pred_check
      _
    $region11: #{hrnn_encoder_forward.3} parent=1 // pred_check_branch
      %32 = sbr.rel (0) target = $region13
    $region12: #{hrnn_encoder_forward.3} parent=1 // pred_region
      _
    $region13: #{hrnn_encoder_forward.3} parent=1 // pred_fallthru
      _
    // Predicated region
    $region14: #{hrnn_encoder_forward.3} parent=1 // pred_check
      _
    $region15: #{hrnn_encoder_forward.3} parent=1 // pred_check_branch
      %34 = sbr.rel (0) target = $region17
    $region16: #{hrnn_encoder_forward.3} parent=1 // pred_region
      _
    $region17: #{hrnn_encoder_forward.3} parent=1 // pred_fallthru
      _
    // Predicated region
    $region18: #{hrnn_encoder_forward.3} parent=1 // pred_check
      _
    $region19: #{hrnn_encoder_forward.3} parent=1 // pred_check_branch
      %36 = sbr.rel (0) target = $region21
    $region20: #{hrnn_encoder_forward.3} parent=1 // pred_region
      _
    $region21: #{hrnn_encoder_forward.3} parent=1 // pred_fallthru
      _
    // Predicated region
    $region22: #{hrnn_encoder_forward.3} parent=1 // pred_check
      _
    $region23: #{hrnn_encoder_forward.3} parent=1 // pred_check_branch
      %38 = sbr.rel (0) target = $region25
    $region24: #{hrnn_encoder_forward.3} parent=1 // pred_region
      _
    $region25: #{hrnn_encoder_forward.3} parent=1 // pred_fallthru
      _
    // Predicated region
    $region26: #{hrnn_encoder_forward.3} parent=1 // pred_check
      _
    $region27: #{hrnn_encoder_forward.3} parent=1 // pred_check_branch
      %40 = sbr.rel (0) target = $region29
    $region28: #{hrnn_encoder_forward.3} parent=1 // pred_region
      _
    $region29: #{hrnn_encoder_forward.3} parent=1 // pred_fallthru
      _
    %s41 = ssub.s32 0, 0
    %s42 = smul.u32 8, %s41
    %p43 = scmp.lt.s32.totalorder %s42, 7
    %s44 = scalar_select %p43, %s42, 7
    %s45 = smul.addr %s44, 3
    %s46 = smul.addr %s45, 4
    %s47 = scalar_lea.vmem %s1, %s46
    %s48 = ssub.s32 0, 0
    %s49 = smul.u32 8, %s48
    %p50 = scmp.lt.s32.totalorder %s49, 7
    %s51 = scalar_select %p50, %s49, 7
    %s52 = smul.addr %s51, 8
    %s53 = scalar_lea.vmem %s8, %s52
    %s54 = ssub.s32 0, 0
    %s55 = smul.u32 8, %s54
    %p56 = scmp.lt.s32.totalorder %s55, 7
    %s57 = scalar_select %p56, %s55, 7
    %s58 = smul.addr %s57, 3
    %s59 = smul.addr %s58, 4
    %s60 = scalar_lea.vmem %s1, %s59
    %s61 = ssub.s32 0, 0
    %s62 = smul.u32 8, %s61
    %s63 = ssub.s32 0, 0
    %s64 = smul.u32 8, %s63
    %p65 = scmp.lt.s32.totalorder %s64, 7
    %s66 = scalar_select %p65, %s64, 7
    %s67 = smul.addr %s66, 8
    %s68 = scalar_lea.vmem %s8, %s67
    %s69 = ssub.s32 0, 0
    %s70 = smul.u32 8, %s69
    %p72 = scmp.eq.s32.totalorder 0, 0
    // Predicated region
    $region30: #{hrnn_encoder_forward.3} parent=1 // pred_check
      %p73 = pneg %p72
    $region31: #{hrnn_encoder_forward.3} parent=1 // pred_check_branch
      %75 = sbr.rel (%p73) target = $region33
    $region32: #{hrnn_encoder_forward.3} parent=1 // pred_region
      %76 = vst [vmem:[#allocation2] sm:$0xff] 0.0
      %77 = vst [vmem:[#allocation3] sm:$0xff] 0.0
    $region33: #{hrnn_encoder_forward.3} parent=1 // pred_fallthru
      _
    %v78 = vld [vmem:[%s6] sm:$0xff]
    %v79 = vld [vmem:[%s2] sm:$0xff]
    %v80 = vld [vmem:[%s2 + $0x8] sm:$0xf]
    %v81 = vld [vmem:[%s2 + $0xc] sm:$0xff]
    %v82 = vld [vmem:[%s2 + $0x14] sm:$0xf]
    %v83 = vld [vmem:[%s2 + $0x18] sm:$0xff]
    %v84 = vld [vmem:[%s2 + $0x20] sm:$0xf]
    %v85 = vld [vmem:[%s2 + $0x24] sm:$0xff]
    %v86 = vld [vmem:[%s2 + $0x2c] sm:$0xf]
    %v87 = vld [vmem:[%s2 + $0x30] sm:$0xff]
    %v88 = vld [vmem:[%s2 + $0x38] sm:$0xf]
    %v89 = vld [vmem:[%s2 + $0x3c] sm:$0xff]
    %v90 = vld [vmem:[%s2 + $0x44] sm:$0xf]
    %v91 = vld [vmem:[%s2 + $0x48] sm:$0xff]
    %v92 = vld [vmem:[%s2 + $0x50] sm:$0xf]
    %v93 = vld [vmem:[%s2 + $0x54] sm:$0xff]
    %v94 = vld [vmem:[%s2 + $0x5c] sm:$0xf]
    %v95 = vld [vmem:[%s2 + $0x60] sm:$0xff]
    %v96 = vld [vmem:[%s2 + $0x68] sm:$0xf]
    %v97 = vld [vmem:[%s2 + $0x6c] sm:$0xff]
    %v98 = vld [vmem:[%s2 + $0x74] sm:$0xf]
    %v99 = vld [vmem:[%s2 + $0x78] sm:$0xff]
    %v100 = vld [vmem:[%s2 + $0x80] sm:$0xf]
    %v101 = vld [vmem:[%s2 + $0x84] sm:$0xff]
    %v102 = vld [vmem:[%s2 + $0x8c] sm:$0xf]
    %v103 = vld [vmem:[%s2 + $0x90] sm:$0xff]
    %v104 = vld [vmem:[%s2 + $0x98] sm:$0xf]
    %v105 = vld [vmem:[%s2 + $0x9c] sm:$0xff]
    %v106 = vld [vmem:[%s2 + $0xa4] sm:$0xf]
    %v107 = vld [vmem:[%s2 + $0xa8] sm:$0xff]
    %v108 = vld [vmem:[%s2 + $0xb0] sm:$0xf]
    %v109 = vld [vmem:[%s2 + $0xb4] sm:$0xff]
    %v110 = vld [vmem:[%s2 + $0xbc] sm:$0xf]
    %v111 = vld [vmem:[%s3] sm:$0xff]
    %v112 = vld [vmem:[%s3 + $0x8] sm:$0xf]
    %v113 = vld [vmem:[%s3 + $0xc] sm:$0xff]
    %v114 = vld [vmem:[%s3 + $0x14] sm:$0xf]
    %v115 = vld [vmem:[%s3 + $0x18] sm:$0xff]
    %v116 = vld [vmem:[%s3 + $0x20] sm:$0xf]
    %v117 = vld [vmem:[%s3 + $0x24] sm:$0xff]
    %v118 = vld [vmem:[%s3 + $0x2c] sm:$0xf]
    %v119 = vld [vmem:[%s3 + $0x30] sm:$0xff]
    %v120 = vld [vmem:[%s3 + $0x38] sm:$0xf]
    %v121 = vld [vmem:[%s3 + $0x3c] sm:$0xff]
    %v122 = vld [vmem:[%s3 + $0x44] sm:$0xf]
    %v123 = vld [vmem:[%s3 + $0x48] sm:$0xff]
    %v124 = vld [vmem:[%s3 + $0x50] sm:$0xf]
    %v125 = vld [vmem:[%s3 + $0x54] sm:$0xff]
    %v126 = vld [vmem:[%s3 + $0x5c] sm:$0xf]
    %v127 = vld [vmem:[%s3 + $0x60] sm:$0xff]
    %v128 = vld [vmem:[%s3 + $0x68] sm:$0xf]
    %v129 = vld [vmem:[%s3 + $0x6c] sm:$0xff]
    %v130 = vld [vmem:[%s3 + $0x74] sm:$0xf]
    %v131 = vld [vmem:[%s3 + $0x78] sm:$0xff]
    %v132 = vld [vmem:[%s3 + $0x80] sm:$0xf]
    %v133 = vld [vmem:[%s3 + $0x84] sm:$0xff]
    %v134 = vld [vmem:[%s3 + $0x8c] sm:$0xf]
    %v135 = vld [vmem:[%s3 + $0x90] sm:$0xff]
    %v136 = vld [vmem:[%s3 + $0x98] sm:$0xf]
    %v137 = vld [vmem:[%s3 + $0x9c] sm:$0xff]
    %v138 = vld [vmem:[%s3 + $0xa4] sm:$0xf]
    %v139 = vld [vmem:[%s3 + $0xa8] sm:$0xff]
    %v140 = vld [vmem:[%s3 + $0xb0] sm:$0xf]
    %v141 = vld [vmem:[%s3 + $0xb4] sm:$0xff]
    %v142 = vld [vmem:[%s3 + $0xbc] sm:$0xf]
    %v143 = vld [vmem:[%s4] sm:$0x7]
    %v144 = vld [vmem:[%s5] sm:$0x7]
    %s145 = smul.u32 0, 8
    %s146 = ssub.s32 0, 0
    %s147 = smul.u32 %s146, 8
    %v148 = vld [vmem:[#allocation2] sm:$0xff]
    %v149 = vld [vmem:[#allocation3] sm:$0xff]
    %v150 = vld [vmem:[%s0] sm:$0xff]
    %v151 = vld [vmem:[%s0 + $0x8] sm:$0xf]
    %v152 = vunpack.c.l.bf16 %v150
    %v153 = vunpack.c.h.bf16 %v150
    %v154 = vunpack.c.l.bf16 %v151
    %v155 = vpack.c.bf16 %v148, %v148
    %v157 = vlaneseq
    %v158 = vshrl.u32 %v157, 7
    %v159 = vsub.s32 0, %v158
    %v160 = vrot.slane %v143, %v159
    %v161 = vlaneseq
    %v162 = vshrl.u32 %v161, 7
    %v163 = vsub.s32 1, %v162
    %v164 = vrot.slane %v143, %v163
    %v165 = vlaneseq
    %v166 = vshrl.u32 %v165, 7
    %v167 = vsub.s32 2, %v166
    %v168 = vrot.slane %v143, %v167
    %v204 = vunpack.c.l.b16 %v79
    %v205 = vunpack.c.h.b16 %v79
    %v206 = vunpack.c.l.b16 %v80
    %v207 = vunpack.c.l.b16 %v81
    %v208 = vunpack.c.h.b16 %v81
    %v209 = vunpack.c.l.b16 %v82
    %v210 = vunpack.c.l.b16 %v83
    %v211 = vunpack.c.h.b16 %v83
    %v212 = vunpack.c.l.b16 %v84
    %v213 = vunpack.c.l.b16 %v85
    %v214 = vunpack.c.h.b16 %v85
    %v215 = vunpack.c.l.b16 %v86
    %v216 = vunpack.c.l.b16 %v87
    %v217 = vunpack.c.h.b16 %v87
    %v218 = vunpack.c.l.b16 %v88
    %v219 = vunpack.c.l.b16 %v89
    %v220 = vunpack.c.h.b16 %v89
    %v221 = vunpack.c.l.b16 %v90
    %v222 = vunpack.c.l.b16 %v91
    %v223 = vunpack.c.h.b16 %v91
    %v224 = vunpack.c.l.b16 %v92
    %v225 = vunpack.c.l.b16 %v93
    %v226 = vunpack.c.h.b16 %v93
    %v227 = vunpack.c.l.b16 %v94
    %v228 = vunpack.c.l.b16 %v95
    %v229 = vunpack.c.h.b16 %v95
    %v230 = vunpack.c.l.b16 %v96
    %v231 = vunpack.c.l.b16 %v97
    %v232 = vunpack.c.h.b16 %v97
    %v233 = vunpack.c.l.b16 %v98
    %v234 = vunpack.c.l.b16 %v99
    %v235 = vunpack.c.h.b16 %v99
    %v236 = vunpack.c.l.b16 %v100
    %v237 = vunpack.c.l.b16 %v101
    %v238 = vunpack.c.h.b16 %v101
    %v239 = vunpack.c.l.b16 %v102
    %v240 = vunpack.c.l.b16 %v103
    %v241 = vunpack.c.h.b16 %v103
    %v242 = vunpack.c.l.b16 %v104
    %v243 = vunpack.c.l.b16 %v105
    %v244 = vunpack.c.h.b16 %v105
    %v245 = vunpack.c.l.b16 %v106
    %v246 = vunpack.c.l.b16 %v107
    %v247 = vunpack.c.h.b16 %v107
    %v248 = vunpack.c.l.b16 %v108
    %v249 = vunpack.c.l.b16 %v109
    %v250 = vunpack.c.h.b16 %v109
    %v251 = vunpack.c.l.b16 %v110
    %v252 = vpack.c.b16 %v207, %v204
    %v253 = vpack.c.b16 %v208, %v205
    %v254 = vpack.c.b16 %v209, %v206
    %v255 = vpack.c.b16 %v213, %v210
    %v256 = vpack.c.b16 %v214, %v211
    %v257 = vpack.c.b16 %v215, %v212
    %v258 = vpack.c.b16 %v219, %v216
    %v259 = vpack.c.b16 %v220, %v217
    %v260 = vpack.c.b16 %v221, %v218
    %v261 = vpack.c.b16 %v225, %v222
    %v262 = vpack.c.b16 %v226, %v223
    %v263 = vpack.c.b16 %v227, %v224
    %v264 = vpack.c.b16 %v231, %v228
    %v265 = vpack.c.b16 %v232, %v229
    %v266 = vpack.c.b16 %v233, %v230
    %v267 = vpack.c.b16 %v237, %v234
    %v268 = vpack.c.b16 %v238, %v235
    %v269 = vpack.c.b16 %v239, %v236
    %v270 = vpack.c.b16 %v243, %v240
    %v271 = vpack.c.b16 %v244, %v241
    %v272 = vpack.c.b16 %v245, %v242
    %v273 = vpack.c.b16 %v249, %v246
    %v274 = vpack.c.b16 %v250, %v247
    %v275 = vpack.c.b16 %v251, %v248
    %300 = vmatprep.subr.bf16.mxu0 %v253
    %301 = vmatpush1.bf16.msra.mxu0 %v252
    %302 = vmatprep.subr.bf16.mxu0 %v256
    %303 = vmatpush1.bf16.msra.mxu0 %v255
    %304 = vmatprep.subr.bf16.mxu0 %v259
    %305 = vmatpush1.bf16.msra.mxu0 %v258
    %306 = vmatprep.subr.bf16.mxu0 %v262
    %307 = vmatpush1.bf16.msra.mxu0 %v261
    %308 = vmatprep.subr.bf16.mxu0 %v265
    %309 = vmatpush1.bf16.msra.mxu0 %v264
    %310 = vmatprep.subr.bf16.mxu0 %v268
    %311 = vmatpush1.bf16.msra.mxu0 %v267
    %312 = vmatprep.subr.bf16.mxu0 %v271
    %313 = vmatpush1.bf16.msra.mxu0 %v270
    %314 = vmatprep.subr.bf16.mxu0 %v274
    %315 = vmatpush1.bf16.msra.mxu0 %v273
    %316 = vmatprep.subr.bf16.mxu0 0
    %317 = vmatpush1.bf16.msra.mxu0 0
    %318 = vmatprep.subr.bf16.mxu0 0
    %319 = vmatpush1.bf16.msra.mxu0 0
    %320 = vmatprep.subr.bf16.mxu0 0
    %321 = vmatpush1.bf16.msra.mxu0 0
    %322 = vmatprep.subr.bf16.mxu0 0
    %323 = vmatpush1.bf16.msra.mxu0 0
    %324 = vmatprep.subr.bf16.mxu0 0
    %325 = vmatpush1.bf16.msra.mxu0 0
    %326 = vmatprep.subr.bf16.mxu0 0
    %327 = vmatpush1.bf16.msra.mxu0 0
    %328 = vmatprep.subr.bf16.mxu0 0
    %329 = vmatpush1.bf16.msra.mxu0 0
    %330 = vmatprep.subr.bf16.mxu0 0
    %331 = vmatpush1.bf16.msra.mxu0 0
    %332 = vmatprep.mubr.bf16.mxu0 0
    %333 = vmatmul.mubr.bf16.gmra.mrb[0].mxu0 %v155
    %v334 = vpop.f32.mrb[0].mxu0
    %v335 = vadd.f32 %v160, %v334
    %v336 = vpop.f32.mrb[0].mxu0
    %v337 = vadd.f32 %v164, %v336
    %v338 = vpop.f32.mrb[0].mxu0
    %v339 = vpop.f32.mrb[0].mxu0
    %340 = vdwg.mxu0
    %341 = vmatprep.subr.bf16.mxu0 0
    %342 = vmatpush1.bf16.msra.mxu0 %v254
    %343 = vmatprep.subr.bf16.mxu0 0
    %344 = vmatpush1.bf16.msra.mxu0 %v257
    %345 = vmatprep.subr.bf16.mxu0 0
    %346 = vmatpush1.bf16.msra.mxu0 %v260
    %347 = vmatprep.subr.bf16.mxu0 0
    %348 = vmatpush1.bf16.msra.mxu0 %v263
    %349 = vmatprep.subr.bf16.mxu0 0
    %350 = vmatpush1.bf16.msra.mxu0 %v266
    %351 = vmatprep.subr.bf16.mxu0 0
    %352 = vmatpush1.bf16.msra.mxu0 %v269
    %353 = vmatprep.subr.bf16.mxu0 0
    %354 = vmatpush1.bf16.msra.mxu0 %v272
    %355 = vmatprep.subr.bf16.mxu0 0
    %356 = vmatpush1.bf16.msra.mxu0 %v275
    %357 = vmatprep.subr.bf16.mxu0 0
    %358 = vmatpush1.bf16.msra.mxu0 0
    %359 = vmatprep.subr.bf16.mxu0 0
    %360 = vmatpush1.bf16.msra.mxu0 0
    %361 = vmatprep.subr.bf16.mxu0 0
    %362 = vmatpush1.bf16.msra.mxu0 0
    %363 = vmatprep.subr.bf16.mxu0 0
    %364 = vmatpush1.bf16.msra.mxu0 0
    %365 = vmatprep.subr.bf16.mxu0 0
    %366 = vmatpush1.bf16.msra.mxu0 0
    %367 = vmatprep.subr.bf16.mxu0 0
    %368 = vmatpush1.bf16.msra.mxu0 0
    %369 = vmatprep.subr.bf16.mxu0 0
    %370 = vmatpush1.bf16.msra.mxu0 0
    %371 = vmatprep.subr.bf16.mxu0 0
    %372 = vmatpush1.bf16.msra.mxu0 0
    %373 = vmatprep.mubr.bf16.mxu0 0
    %374 = vmatmul.mubr.bf16.gmra.mrb[0].mxu0 %v155
    %v375 = vpop.f32.mrb[0].mxu0
    %v376 = vadd.f32 %v168, %v375
    %v377 = vpop.f32.mrb[0].mxu0
    %v378 = vpop.f32.mrb[0].mxu0
    %v379 = vpop.f32.mrb[0].mxu0
    %380 = vdwg.mxu0
    %v381 = vadd.f32 %v152, %v335
    %v382 = vxor.u32 %v381, 2147483648
    %v383 = vmul.f32 %v382, 1.442695
    %v384 = vpow.pop %v383
    %v385 = vadd.f32 %v384, 1.0
    %v386 = vrcp.pop %v385
    %v387 = vmul.f32 1.0, %v386
    %v388 = vadd.f32 %v153, %v337
    %v389 = vxor.u32 %v388, 2147483648
    %v390 = vmul.f32 %v389, 1.442695
    %v391 = vpow.pop %v390
    %v392 = vadd.f32 %v391, 1.0
    %v393 = vrcp.pop %v392
    %v394 = vmul.f32 1.0, %v393
    %v395 = vmul.f32 %v387, %v376
    %v396 = vadd.f32 %v154, %v395
    %v397 = vtanh.pop %v396
    %v398 = vsub.f32 1.0, %v394
    %v399 = vmul.f32 %v398, %v397
    %v400 = vmul.f32 %v394, %v148
    %v401 = vadd.f32 %v399, %v400
    %s402 = scalar_lea.vmem %s60, 84
    %v403 = vld [vmem:[%s402] sm:$0xff]
    %v404 = vld [vmem:[%s402 + $0x8] sm:$0xf]
    %v405 = vunpack.c.l.bf16 %v403
    %v406 = vunpack.c.h.bf16 %v403
    %v407 = vunpack.c.l.bf16 %v404
    %v408 = vpack.c.bf16 %v149, %v149
    %v410 = vlaneseq
    %v411 = vshrl.u32 %v410, 7
    %v412 = vsub.s32 0, %v411
    %v413 = vrot.slane %v144, %v412
    %v414 = vlaneseq
    %v415 = vshrl.u32 %v414, 7
    %v416 = vsub.s32 1, %v415
    %v417 = vrot.slane %v144, %v416
    %v418 = vlaneseq
    %v419 = vshrl.u32 %v418, 7
    %v420 = vsub.s32 2, %v419
    %v421 = vrot.slane %v144, %v420
    %v457 = vunpack.c.l.b16 %v111
    %v458 = vunpack.c.h.b16 %v111
    %v459 = vunpack.c.l.b16 %v112
    %v460 = vunpack.c.l.b16 %v113
    %v461 = vunpack.c.h.b16 %v113
    %v462 = vunpack.c.l.b16 %v114
    %v463 = vunpack.c.l.b16 %v115
    %v464 = vunpack.c.h.b16 %v115
    %v465 = vunpack.c.l.b16 %v116
    %v466 = vunpack.c.l.b16 %v117
    %v467 = vunpack.c.h.b16 %v117
    %v468 = vunpack.c.l.b16 %v118
    %v469 = vunpack.c.l.b16 %v119
    %v470 = vunpack.c.h.b16 %v119
    %v471 = vunpack.c.l.b16 %v120
    %v472 = vunpack.c.l.b16 %v121
    %v473 = vunpack.c.h.b16 %v121
    %v474 = vunpack.c.l.b16 %v122
    %v475 = vunpack.c.l.b16 %v123
    %v476 = vunpack.c.h.b16 %v123
    %v477 = vunpack.c.l.b16 %v124
    %v478 = vunpack.c.l.b16 %v125
    %v479 = vunpack.c.h.b16 %v125
    %v480 = vunpack.c.l.b16 %v126
    %v481 = vunpack.c.l.b16 %v127
    %v482 = vunpack.c.h.b16 %v127
    %v483 = vunpack.c.l.b16 %v128
    %v484 = vunpack.c.l.b16 %v129
    %v485 = vunpack.c.h.b16 %v129
    %v486 = vunpack.c.l.b16 %v130
    %v487 = vunpack.c.l.b16 %v131
    %v488 = vunpack.c.h.b16 %v131
    %v489 = vunpack.c.l.b16 %v132
    %v490 = vunpack.c.l.b16 %v133
    %v491 = vunpack.c.h.b16 %v133
    %v492 = vunpack.c.l.b16 %v134
    %v493 = vunpack.c.l.b16 %v135
    %v494 = vunpack.c.h.b16 %v135
    %v495 = vunpack.c.l.b16 %v136
    %v496 = vunpack.c.l.b16 %v137
    %v497 = vunpack.c.h.b16 %v137
    %v498 = vunpack.c.l.b16 %v138
    %v499 = vunpack.c.l.b16 %v139
    %v500 = vunpack.c.h.b16 %v139
    %v501 = vunpack.c.l.b16 %v140
    %v502 = vunpack.c.l.b16 %v141
    %v503 = vunpack.c.h.b16 %v141
    %v504 = vunpack.c.l.b16 %v142
    %v505 = vpack.c.b16 %v460, %v457
    %v506 = vpack.c.b16 %v461, %v458
    %v507 = vpack.c.b16 %v462, %v459
    %v508 = vpack.c.b16 %v466, %v463
    %v509 = vpack.c.b16 %v467, %v464
    %v510 = vpack.c.b16 %v468, %v465
    %v511 = vpack.c.b16 %v472, %v469
    %v512 = vpack.c.b16 %v473, %v470
    %v513 = vpack.c.b16 %v474, %v471
    %v514 = vpack.c.b16 %v478, %v475
    %v515 = vpack.c.b16 %v479, %v476
    %v516 = vpack.c.b16 %v480, %v477
    %v517 = vpack.c.b16 %v484, %v481
    %v518 = vpack.c.b16 %v485, %v482
    %v519 = vpack.c.b16 %v486, %v483
    %v520 = vpack.c.b16 %v490, %v487
    %v521 = vpack.c.b16 %v491, %v488
    %v522 = vpack.c.b16 %v492, %v489
    %v523 = vpack.c.b16 %v496, %v493
    %v524 = vpack.c.b16 %v497, %v494
    %v525 = vpack.c.b16 %v498, %v495
    %v526 = vpack.c.b16 %v502, %v499
    %v527 = vpack.c.b16 %v503, %v500
    %v528 = vpack.c.b16 %v504, %v501
    %553 = vmatprep.subr.bf16.mxu0 %v506
    %554 = vmatpush1.bf16.msra.mxu0 %v505
    %555 = vmatprep.subr.bf16.mxu0 %v509
    %556 = vmatpush1.bf16.msra.mxu0 %v508
    %557 = vmatprep.subr.bf16.mxu0 %v512
    %558 = vmatpush1.bf16.msra.mxu0 %v511
    %559 = vmatprep.subr.bf16.mxu0 %v515
    %560 = vmatpush1.bf16.msra.mxu0 %v514
    %561 = vmatprep.subr.bf16.mxu0 %v518
    %562 = vmatpush1.bf16.msra.mxu0 %v517
    %563 = vmatprep.subr.bf16.mxu0 %v521
    %564 = vmatpush1.bf16.msra.mxu0 %v520
    %565 = vmatprep.subr.bf16.mxu0 %v524
    %566 = vmatpush1.bf16.msra.mxu0 %v523
    %567 = vmatprep.subr.bf16.mxu0 %v527
    %568 = vmatpush1.bf16.msra.mxu0 %v526
    %569 = vmatprep.subr.bf16.mxu0 0
    %570 = vmatpush1.bf16.msra.mxu0 0
    %571 = vmatprep.subr.bf16.mxu0 0
    %572 = vmatpush1.bf16.msra.mxu0 0
    %573 = vmatprep.subr.bf16.mxu0 0
    %574 = vmatpush1.bf16.msra.mxu0 0
    %575 = vmatprep.subr.bf16.mxu0 0
    %576 = vmatpush1.bf16.msra.mxu0 0
    %577 = vmatprep.subr.bf16.mxu0 0
    %578 = vmatpush1.bf16.msra.mxu0 0
    %579 = vmatprep.subr.bf16.mxu0 0
    %580 = vmatpush1.bf16.msra.mxu0 0
    %581 = vmatprep.subr.bf16.mxu0 0
    %582 = vmatpush1.bf16.msra.mxu0 0
    %583 = vmatprep.subr.bf16.mxu0 0
    %584 = vmatpush1.bf16.msra.mxu0 0
    %585 = vmatprep.mubr.bf16.mxu0 0
    %586 = vmatmul.mubr.bf16.gmra.mrb[0].mxu0 %v408
    %v587 = vpop.f32.mrb[0].mxu0
    %v588 = vadd.f32 %v413, %v587
    %v589 = vpop.f32.mrb[0].mxu0
    %v590 = vadd.f32 %v417, %v589
    %v591 = vpop.f32.mrb[0].mxu0
    %v592 = vpop.f32.mrb[0].mxu0
    %593 = vdwg.mxu0
    %594 = vmatprep.subr.bf16.mxu0 0
    %595 = vmatpush1.bf16.msra.mxu0 %v507
    %596 = vmatprep.subr.bf16.mxu0 0
    %597 = vmatpush1.bf16.msra.mxu0 %v510
    %598 = vmatprep.subr.bf16.mxu0 0
    %599 = vmatpush1.bf16.msra.mxu0 %v513
    %600 = vmatprep.subr.bf16.mxu0 0
    %601 = vmatpush1.bf16.msra.mxu0 %v516
    %602 = vmatprep.subr.bf16.mxu0 0
    %603 = vmatpush1.bf16.msra.mxu0 %v519
    %604 = vmatprep.subr.bf16.mxu0 0
    %605 = vmatpush1.bf16.msra.mxu0 %v522
    %606 = vmatprep.subr.bf16.mxu0 0
    %607 = vmatpush1.bf16.msra.mxu0 %v525
    %608 = vmatprep.subr.bf16.mxu0 0
    %609 = vmatpush1.bf16.msra.mxu0 %v528
    %610 = vmatprep.subr.bf16.mxu0 0
    %611 = vmatpush1.bf16.msra.mxu0 0
    %612 = vmatprep.subr.bf16.mxu0 0
    %613 = vmatpush1.bf16.msra.mxu0 0
    %614 = vmatprep.subr.bf16.mxu0 0
    %615 = vmatpush1.bf16.msra.mxu0 0
    %616 = vmatprep.subr.bf16.mxu0 0
    %617 = vmatpush1.bf16.msra.mxu0 0
    %618 = vmatprep.subr.bf16.mxu0 0
    %619 = vmatpush1.bf16.msra.mxu0 0
    %620 = vmatprep.subr.bf16.mxu0 0
    %621 = vmatpush1.bf16.msra.mxu0 0
    %622 = vmatprep.subr.bf16.mxu0 0
    %623 = vmatpush1.bf16.msra.mxu0 0
    %624 = vmatprep.subr.bf16.mxu0 0
    %625 = vmatpush1.bf16.msra.mxu0 0
    %626 = vmatprep.mubr.bf16.mxu0 0
    %627 = vmatmul.mubr.bf16.gmra.mrb[0].mxu0 %v408
    %v628 = vpop.f32.mrb[0].mxu0
    %v629 = vadd.f32 %v421, %v628
    %v630 = vpop.f32.mrb[0].mxu0
    %v631 = vpop.f32.mrb[0].mxu0
    %v632 = vpop.f32.mrb[0].mxu0
    %633 = vdwg.mxu0
    %v634 = vadd.f32 %v405, %v588
    %v635 = vxor.u32 %v634, 2147483648
    %v636 = vmul.f32 %v635, 1.442695
    %v637 = vpow.pop %v636
    %v638 = vadd.f32 %v637, 1.0
    %v639 = vrcp.pop %v638
    %v640 = vmul.f32 1.0, %v639
    %v641 = vadd.f32 %v406, %v590
    %v642 = vxor.u32 %v641, 2147483648
    %v643 = vmul.f32 %v642, 1.442695
    %v644 = vpow.pop %v643
    %v645 = vadd.f32 %v644, 1.0
    %v646 = vrcp.pop %v645
    %v647 = vmul.f32 1.0, %v646
    %v648 = vmul.f32 %v640, %v629
    %v649 = vadd.f32 %v407, %v648
    %v650 = vtanh.pop %v649
    %v651 = vsub.f32 1.0, %v647
    %v652 = vmul.f32 %v651, %v650
    %v653 = vmul.f32 %v647, %v149
    %v654 = vadd.f32 %v652, %v653
    %v655 = vstv %s145
    %vm656 = vcmp.lt.s32.totalorder %v655, %v78
    %s657 = sadd.s32 %s147, 7
    %v658 = vstv %s657
    %vm659 = vcmp.lt.s32.totalorder %v658, %v78
    %v660 = vsel %vm656, 1, 0
    %661 = vset.pattern.permute.xlu0 0
    %662 = vperm.xlu0 %661, %v660
    %v663 = vpop.permute.xlu0 %662
    %vm664 = vcmp.eq.s32.totalorder %v663, 1
    %v665 = vsel %vm664, %v401, %v148
    %v666 = vsel %vm659, 1, 0
    %667 = vset.pattern.permute.xlu0 0
    %668 = vperm.xlu0 %667, %v666
    %v669 = vpop.permute.xlu0 %668
    %vm670 = vcmp.eq.s32.totalorder %v669, 1
    %v671 = vsel %vm670, %v654, %v149
    %v672 = vsel %vm664, %v401, 0.0
    %673 = vst [vmem:[%s7] sm:$0xff] %v672
    %v674 = vsel %vm670, %v654, 0.0
    %s675 = scalar_lea.vmem %s68, 56
    %676 = vst [vmem:[%s675] sm:$0xff] %v674
    %s677 = scalar_lea.vmem %s0, 12
    %v678 = vld [vmem:[%s677] sm:$0xff]
    %v679 = vld [vmem:[%s677 + $0x8] sm:$0xf]
    %v680 = vunpack.c.l.bf16 %v678
    %v681 = vunpack.c.h.bf16 %v678
    %v682 = vunpack.c.l.bf16 %v679
    %v683 = vpack.c.bf16 %v665, %v665
    %684 = vmatprep.subr.bf16.mxu0 %v253
    %685 = vmatpush1.bf16.msra.mxu0 %v252
    %686 = vmatprep.subr.bf16.mxu0 %v256
    %687 = vmatpush1.bf16.msra.mxu0 %v255
    %688 = vmatprep.subr.bf16.mxu0 %v259
    %689 = vmatpush1.bf16.msra.mxu0 %v258
    %690 = vmatprep.subr.bf16.mxu0 %v262
    %691 = vmatpush1.bf16.msra.mxu0 %v261
    %692 = vmatprep.subr.bf16.mxu0 %v265
    %693 = vmatpush1.bf16.msra.mxu0 %v264
    %694 = vmatprep.subr.bf16.mxu0 %v268
    %695 = vmatpush1.bf16.msra.mxu0 %v267
    %696 = vmatprep.subr.bf16.mxu0 %v271
    %697 = vmatpush1.bf16.msra.mxu0 %v270
    %698 = vmatprep.subr.bf16.mxu0 %v274
    %699 = vmatpush1.bf16.msra.mxu0 %v273
    %700 = vmatprep.subr.bf16.mxu0 0
    %701 = vmatpush1.bf16.msra.mxu0 0
    %702 = vmatprep.subr.bf16.mxu0 0
    %703 = vmatpush1.bf16.msra.mxu0 0
    %704 = vmatprep.subr.bf16.mxu0 0
    %705 = vmatpush1.bf16.msra.mxu0 0
    %706 = vmatprep.subr.bf16.mxu0 0
    %707 = vmatpush1.bf16.msra.mxu0 0
    %708 = vmatprep.subr.bf16.mxu0 0
    %709 = vmatpush1.bf16.msra.mxu0 0
    %710 = vmatprep.subr.bf16.mxu0 0
    %711 = vmatpush1.bf16.msra.mxu0 0
    %712 = vmatprep.subr.bf16.mxu0 0
    %713 = vmatpush1.bf16.msra.mxu0 0
    %714 = vmatprep.subr.bf16.mxu0 0
    %715 = vmatpush1.bf16.msra.mxu0 0
    %716 = vmatprep.mubr.bf16.mxu0 0
    %717 = vmatmul.mubr.bf16.gmra.mrb[0].mxu0 %v683
    %v718 = vpop.f32.mrb[0].mxu0
    %v719 = vadd.f32 %v160, %v718
    %v720 = vpop.f32.mrb[0].mxu0
    %v721 = vadd.f32 %v164, %v720
    %v722 = vpop.f32.mrb[0].mxu0
    %v723 = vpop.f32.mrb[0].mxu0
    %724 = vdwg.mxu0
    %725 = vmatprep.subr.bf16.mxu0 0
    %726 = vmatpush1.bf16.msra.mxu0 %v254
    %727 = vmatprep.subr.bf16.mxu0 0
    %728 = vmatpush1.bf16.msra.mxu0 %v257
    %729 = vmatprep.subr.bf16.mxu0 0
    %730 = vmatpush1.bf16.msra.mxu0 %v260
    %731 = vmatprep.subr.bf16.mxu0 0
    %732 = vmatpush1.bf16.msra.mxu0 %v263
    %733 = vmatprep.subr.bf16.mxu0 0
    %734 = vmatpush1.bf16.msra.mxu0 %v266
    %735 = vmatprep.subr.bf16.mxu0 0
    %736 = vmatpush1.bf16.msra.mxu0 %v269
    %737 = vmatprep.subr.bf16.mxu0 0
    %738 = vmatpush1.bf16.msra.mxu0 %v272
    %739 = vmatprep.subr.bf16.mxu0 0
    %740 = vmatpush1.bf16.msra.mxu0 %v275
    %741 = vmatprep.subr.bf16.mxu0 0
    %742 = vmatpush1.bf16.msra.mxu0 0
    %743 = vmatprep.subr.bf16.mxu0 0
    %744 = vmatpush1.bf16.msra.mxu0 0
    %745 = vmatprep.subr.bf16.mxu0 0
    %746 = vmatpush1.bf16.msra.mxu0 0
    %747 = vmatprep.subr.bf16.mxu0 0
    %748 = vmatpush1.bf16.msra.mxu0 0
    %749 = vmatprep.subr.bf16.mxu0 0
    %750 = vmatpush1.bf16.msra.mxu0 0
    %751 = vmatprep.subr.bf16.mxu0 0
    %752 = vmatpush1.bf16.msra.mxu0 0
    %753 = vmatprep.subr.bf16.mxu0 0
    %754 = vmatpush1.bf16.msra.mxu0 0
    %755 = vmatprep.subr.bf16.mxu0 0
    %756 = vmatpush1.bf16.msra.mxu0 0
    %757 = vmatprep.mubr.bf16.mxu0 0
    %758 = vmatmul.mubr.bf16.gmra.mrb[0].mxu0 %v683
    %v759 = vpop.f32.mrb[0].mxu0
    %v760 = vadd.f32 %v168, %v759
    %v761 = vpop.f32.mrb[0].mxu0
    %v762 = vpop.f32.mrb[0].mxu0
    %v763 = vpop.f32.mrb[0].mxu0
    %764 = vdwg.mxu0
    %v765 = vadd.f32 %v680, %v719
    %v766 = vxor.u32 %v765, 2147483648
    %v767 = vmul.f32 %v766, 1.442695
    %v768 = vpow.pop %v767
    %v769 = vadd.f32 %v768, 1.0
    %v770 = vrcp.pop %v769
    %v771 = vmul.f32 1.0, %v770
    %v772 = vadd.f32 %v681, %v721
    %v773 = vxor.u32 %v772, 2147483648
    %v774 = vmul.f32 %v773, 1.442695
    %v775 = vpow.pop %v774
    %v776 = vadd.f32 %v775, 1.0
    %v777 = vrcp.pop %v776
    %v778 = vmul.f32 1.0, %v777
    %v779 = vmul.f32 %v771, %v760
    %v780 = vadd.f32 %v682, %v779
    %v781 = vtanh.pop %v780
    %v782 = vsub.f32 1.0, %v778
    %v783 = vmul.f32 %v782, %v781
    %v784 = vmul.f32 %v778, %v665
    %v785 = vadd.f32 %v783, %v784
    %s786 = scalar_lea.vmem %s60, 72
    %v787 = vld [vmem:[%s786] sm:$0xff]
    %v788 = vld [vmem:[%s786 + $0x8] sm:$0xf]
    %v789 = vunpack.c.l.bf16 %v787
    %v790 = vunpack.c.h.bf16 %v787
    %v791 = vunpack.c.l.bf16 %v788
    %v792 = vpack.c.bf16 %v671, %v671
    %793 = vmatprep.subr.bf16.mxu0 %v506
    %794 = vmatpush1.bf16.msra.mxu0 %v505
    %795 = vmatprep.subr.bf16.mxu0 %v509
    %796 = vmatpush1.bf16.msra.mxu0 %v508
    %797 = vmatprep.subr.bf16.mxu0 %v512
    %798 = vmatpush1.bf16.msra.mxu0 %v511
    %799 = vmatprep.subr.bf16.mxu0 %v515
    %800 = vmatpush1.bf16.msra.mxu0 %v514
    %801 = vmatprep.subr.bf16.mxu0 %v518
    %802 = vmatpush1.bf16.msra.mxu0 %v517
    %803 = vmatprep.subr.bf16.mxu0 %v521
    %804 = vmatpush1.bf16.msra.mxu0 %v520
    %805 = vmatprep.subr.bf16.mxu0 %v524
    %806 = vmatpush1.bf16.msra.mxu0 %v523
    %807 = vmatprep.subr.bf16.mxu0 %v527
    %808 = vmatpush1.bf16.msra.mxu0 %v526
    %809 = vmatprep.subr.bf16.mxu0 0
    %810 = vmatpush1.bf16.msra.mxu0 0
    %811 = vmatprep.subr.bf16.mxu0 0
    %812 = vmatpush1.bf16.msra.mxu0 0
    %813 = vmatprep.subr.bf16.mxu0 0
    %814 = vmatpush1.bf16.msra.mxu0 0
    %815 = vmatprep.subr.bf16.mxu0 0
    %816 = vmatpush1.bf16.msra.mxu0 0
    %817 = vmatprep.subr.bf16.mxu0 0
    %818 = vmatpush1.bf16.msra.mxu0 0
    %819 = vmatprep.subr.bf16.mxu0 0
    %820 = vmatpush1.bf16.msra.mxu0 0
    %821 = vmatprep.subr.bf16.mxu0 0
    %822 = vmatpush1.bf16.msra.mxu0 0
    %823 = vmatprep.subr.bf16.mxu0 0
    %824 = vmatpush1.bf16.msra.mxu0 0
    %825 = vmatprep.mubr.bf16.mxu0 0
    %826 = vmatmul.mubr.bf16.gmra.mrb[0].mxu0 %v792
    %v827 = vpop.f32.mrb[0].mxu0
    %v828 = vadd.f32 %v413, %v827
    %v829 = vpop.f32.mrb[0].mxu0
    %v830 = vadd.f32 %v417, %v829
    %v831 = vpop.f32.mrb[0].mxu0
    %v832 = vpop.f32.mrb[0].mxu0
    %833 = vdwg.mxu0
    %834 = vmatprep.subr.bf16.mxu0 0
    %835 = vmatpush1.bf16.msra.mxu0 %v507
    %836 = vmatprep.subr.bf16.mxu0 0
    %837 = vmatpush1.bf16.msra.mxu0 %v510
    %838 = vmatprep.subr.bf16.mxu0 0
    %839 = vmatpush1.bf16.msra.mxu0 %v513
    %840 = vmatprep.subr.bf16.mxu0 0
    %841 = vmatpush1.bf16.msra.mxu0 %v516
    %842 = vmatprep.subr.bf16.mxu0 0
    %843 = vmatpush1.bf16.msra.mxu0 %v519
    %844 = vmatprep.subr.bf16.mxu0 0
    %845 = vmatpush1.bf16.msra.mxu0 %v522
    %846 = vmatprep.subr.bf16.mxu0 0
    %847 = vmatpush1.bf16.msra.mxu0 %v525
    %848 = vmatprep.subr.bf16.mxu0 0
    %849 = vmatpush1.bf16.msra.mxu0 %v528
    %850 = vmatprep.subr.bf16.mxu0 0
    %851 = vmatpush1.bf16.msra.mxu0 0
    %852 = vmatprep.subr.bf16.mxu0 0
    %853 = vmatpush1.bf16.msra.mxu0 0
    %854 = vmatprep.subr.bf16.mxu0 0
    %855 = vmatpush1.bf16.msra.mxu0 0
    %856 = vmatprep.subr.bf16.mxu0 0
    %857 = vmatpush1.bf16.msra.mxu0 0
    %858 = vmatprep.subr.bf16.mxu0 0
    %859 = vmatpush1.bf16.msra.mxu0 0
    %860 = vmatprep.subr.bf16.mxu0 0
    %861 = vmatpush1.bf16.msra.mxu0 0
    %862 = vmatprep.subr.bf16.mxu0 0
    %863 = vmatpush1.bf16.msra.mxu0 0
    %864 = vmatprep.subr.bf16.mxu0 0
    %865 = vmatpush1.bf16.msra.mxu0 0
    %866 = vmatprep.mubr.bf16.mxu0 0
    %867 = vmatmul.mubr.bf16.gmra.mrb[0].mxu0 %v792
    %v868 = vpop.f32.mrb[0].mxu0
    %v869 = vadd.f32 %v421, %v868
    %v870 = vpop.f32.mrb[0].mxu0
    %v871 = vpop.f32.mrb[0].mxu0
    %v872 = vpop.f32.mrb[0].mxu0
    %873 = vdwg.mxu0
    %v874 = vadd.f32 %v789, %v828
    %v875 = vxor.u32 %v874, 2147483648
    %v876 = vmul.f32 %v875, 1.442695
    %v877 = vpow.pop %v876
    %v878 = vadd.f32 %v877, 1.0
    %v879 = vrcp.pop %v878
    %v880 = vmul.f32 1.0, %v879
    %v881 = vadd.f32 %v790, %v830
    %v882 = vxor.u32 %v881, 2147483648
    %v883 = vmul.f32 %v882, 1.442695
    %v884 = vpow.pop %v883
    %v885 = vadd.f32 %v884, 1.0
    %v886 = vrcp.pop %v885
    %v887 = vmul.f32 1.0, %v886
    %v888 = vmul.f32 %v880, %v869
    %v889 = vadd.f32 %v791, %v888
    %v890 = vtanh.pop %v889
    %v891 = vsub.f32 1.0, %v887
    %v892 = vmul.f32 %v891, %v890
    %v893 = vmul.f32 %v887, %v671
    %v894 = vadd.f32 %v892, %v893
    %s895 = sadd.s32 %s145, 1
    %v896 = vstv %s895
    %vm897 = vcmp.lt.s32.totalorder %v896, %v78
    %s898 = sadd.s32 %s147, 6
    %v899 = vstv %s898
    %vm900 = vcmp.lt.s32.totalorder %v899, %v78
    %v901 = vsel %vm897, 1, 0
    %902 = vset.pattern.permute.xlu0 0
    %903 = vperm.xlu0 %902, %v901
    %v904 = vpop.permute.xlu0 %903
    %vm905 = vcmp.eq.s32.totalorder %v904, 1
    %v906 = vsel %vm905, %v785, %v665
    %v907 = vsel %vm900, 1, 0
    %908 = vset.pattern.permute.xlu0 0
    %909 = vperm.xlu0 %908, %v907
    %v910 = vpop.permute.xlu0 %909
    %vm911 = vcmp.eq.s32.totalorder %v910, 1
    %v912 = vsel %vm911, %v894, %v671
    %v913 = vsel %vm905, %v785, 0.0
    %s914 = scalar_lea.vmem %s7, 8
    %915 = vst [vmem:[%s914] sm:$0xff] %v913
    %v916 = vsel %vm911, %v894, 0.0
    %s917 = scalar_lea.vmem %s68, 48
    %918 = vst [vmem:[%s917] sm:$0xff] %v916
    %s919 = scalar_lea.vmem %s0, 24
    %v920 = vld [vmem:[%s919] sm:$0xff]
    %v921 = vld [vmem:[%s919 + $0x8] sm:$0xf]
    %v922 = vunpack.c.l.bf16 %v920
    %v923 = vunpack.c.h.bf16 %v920
    %v924 = vunpack.c.l.bf16 %v921
    %v925 = vpack.c.bf16 %v906, %v906
    %926 = vmatprep.subr.bf16.mxu0 %v253
    %927 = vmatpush1.bf16.msra.mxu0 %v252
    %928 = vmatprep.subr.bf16.mxu0 %v256
    %929 = vmatpush1.bf16.msra.mxu0 %v255
    %930 = vmatprep.subr.bf16.mxu0 %v259
    %931 = vmatpush1.bf16.msra.mxu0 %v258
    %932 = vmatprep.subr.bf16.mxu0 %v262
    %933 = vmatpush1.bf16.msra.mxu0 %v261
    %934 = vmatprep.subr.bf16.mxu0 %v265
    %935 = vmatpush1.bf16.msra.mxu0 %v264
    %936 = vmatprep.subr.bf16.mxu0 %v268
    %937 = vmatpush1.bf16.msra.mxu0 %v267
    %938 = vmatprep.subr.bf16.mxu0 %v271
    %939 = vmatpush1.bf16.msra.mxu0 %v270
    %940 = vmatprep.subr.bf16.mxu0 %v274
    %941 = vmatpush1.bf16.msra.mxu0 %v273
    %942 = vmatprep.subr.bf16.mxu0 0
    %943 = vmatpush1.bf16.msra.mxu0 0
    %944 = vmatprep.subr.bf16.mxu0 0
    %945 = vmatpush1.bf16.msra.mxu0 0
    %946 = vmatprep.subr.bf16.mxu0 0
    %947 = vmatpush1.bf16.msra.mxu0 0
    %948 = vmatprep.subr.bf16.mxu0 0
    %949 = vmatpush1.bf16.msra.mxu0 0
    %950 = vmatprep.subr.bf16.mxu0 0
    %951 = vmatpush1.bf16.msra.mxu0 0
    %952 = vmatprep.subr.bf16.mxu0 0
    %953 = vmatpush1.bf16.msra.mxu0 0
    %954 = vmatprep.subr.bf16.mxu0 0
    %955 = vmatpush1.bf16.msra.mxu0 0
    %956 = vmatprep.subr.bf16.mxu0 0
    %957 = vmatpush1.bf16.msra.mxu0 0
    %958 = vmatprep.mubr.bf16.mxu0 0
    %959 = vmatmul.mubr.bf16.gmra.mrb[0].mxu0 %v925
    %v960 = vpop.f32.mrb[0].mxu0
    %v961 = vadd.f32 %v160, %v960
    %v962 = vpop.f32.mrb[0].mxu0
    %v963 = vadd.f32 %v164, %v962
    %v964 = vpop.f32.mrb[0].mxu0
    %v965 = vpop.f32.mrb[0].mxu0
    %966 = vdwg.mxu0
    %967 = vmatprep.subr.bf16.mxu0 0
    %968 = vmatpush1.bf16.msra.mxu0 %v254
    %969 = vmatprep.subr.bf16.mxu0 0
    %970 = vmatpush1.bf16.msra.mxu0 %v257
    %971 = vmatprep.subr.bf16.mxu0 0
    %972 = vmatpush1.bf16.msra.mxu0 %v260
    %973 = vmatprep.subr.bf16.mxu0 0
    %974 = vmatpush1.bf16.msra.mxu0 %v263
    %975 = vmatprep.subr.bf16.mxu0 0
    %976 = vmatpush1.bf16.msra.mxu0 %v266
    %977 = vmatprep.subr.bf16.mxu0 0
    %978 = vmatpush1.bf16.msra.mxu0 %v269
    %979 = vmatprep.subr.bf16.mxu0 0
    %980 = vmatpush1.bf16.msra.mxu0 %v272
    %981 = vmatprep.subr.bf16.mxu0 0
    %982 = vmatpush1.bf16.msra.mxu0 %v275
    %983 = vmatprep.subr.bf16.mxu0 0
    %984 = vmatpush1.bf16.msra.mxu0 0
    %985 = vmatprep.subr.bf16.mxu0 0
    %986 = vmatpush1.bf16.msra.mxu0 0
    %987 = vmatprep.subr.bf16.mxu0 0
    %988 = vmatpush1.bf16.msra.mxu0 0
    %989 = vmatprep.subr.bf16.mxu0 0
    %990 = vmatpush1.bf16.msra.mxu0 0
    %991 = vmatprep.subr.bf16.mxu0 0
    %992 = vmatpush1.bf16.msra.mxu0 0
    %993 = vmatprep.subr.bf16.mxu0 0
    %994 = vmatpush1.bf16.msra.mxu0 0
    %995 = vmatprep.subr.bf16.mxu0 0
    %996 = vmatpush1.bf16.msra.mxu0 0
    %997 = vmatprep.subr.bf16.mxu0 0
    %998 = vmatpush1.bf16.msra.mxu0 0
    %999 = vmatprep.mubr.bf16.mxu0 0
    %1000 = vmatmul.mubr.bf16.gmra.mrb[0].mxu0 %v925
    %v1001 = vpop.f32.mrb[0].mxu0
    %v1002 = vadd.f32 %v168, %v1001
    %v1003 = vpop.f32.mrb[0].mxu0
    %v1004 = vpop.f32.mrb[0].mxu0
    %v1005 = vpop.f32.mrb[0].mxu0
    %1006 = vdwg.mxu0
    %v1007 = vadd.f32 %v922, %v961
    %v1008 = vxor.u32 %v1007, 2147483648
    %v1009 = vmul.f32 %v1008, 1.442695
    %v1010 = vpow.pop %v1009
    %v1011 = vadd.f32 %v1010, 1.0
    %v1012 = vrcp.pop %v1011
    %v1013 = vmul.f32 1.0, %v1012
    %v1014 = vadd.f32 %v923, %v963
    %v1015 = vxor.u32 %v1014, 2147483648
    %v1016 = vmul.f32 %v1015, 1.442695
    %v1017 = vpow.pop %v1016
    %v1018 = vadd.f32 %v1017, 1.0
    %v1019 = vrcp.pop %v1018
    %v1020 = vmul.f32 1.0, %v1019
    %v1021 = vmul.f32 %v1013, %v1002
    %v1022 = vadd.f32 %v924, %v1021
    %v1023 = vtanh.pop %v1022
    %v1024 = vsub.f32 1.0, %v1020
    %v1025 = vmul.f32 %v1024, %v1023
    %v1026 = vmul.f32 %v1020, %v906
    %v1027 = vadd.f32 %v1025, %v1026
    %s1028 = scalar_lea.vmem %s60, 60
    %v1029 = vld [vmem:[%s1028] sm:$0xff]
    %v1030 = vld [vmem:[%s1028 + $0x8] sm:$0xf]
    %v1031 = vunpack.c.l.bf16 %v1029
    %v1032 = vunpack.c.h.bf16 %v1029
    %v1033 = vunpack.c.l.bf16 %v1030
    %v1034 = vpack.c.bf16 %v912, %v912
    %1035 = vmatprep.subr.bf16.mxu0 %v506
    %1036 = vmatpush1.bf16.msra.mxu0 %v505
    %1037 = vmatprep.subr.bf16.mxu0 %v509
    %1038 = vmatpush1.bf16.msra.mxu0 %v508
    %1039 = vmatprep.subr.bf16.mxu0 %v512
    %1040 = vmatpush1.bf16.msra.mxu0 %v511
    %1041 = vmatprep.subr.bf16.mxu0 %v515
    %1042 = vmatpush1.bf16.msra.mxu0 %v514
    %1043 = vmatprep.subr.bf16.mxu0 %v518
    %1044 = vmatpush1.bf16.msra.mxu0 %v517
    %1045 = vmatprep.subr.bf16.mxu0 %v521
    %1046 = vmatpush1.bf16.msra.mxu0 %v520
    %1047 = vmatprep.subr.bf16.mxu0 %v524
    %1048 = vmatpush1.bf16.msra.mxu0 %v523
    %1049 = vmatprep.subr.bf16.mxu0 %v527
    %1050 = vmatpush1.bf16.msra.mxu0 %v526
    %1051 = vmatprep.subr.bf16.mxu0 0
    %1052 = vmatpush1.bf16.msra.mxu0 0
    %1053 = vmatprep.subr.bf16.mxu0 0
    %1054 = vmatpush1.bf16.msra.mxu0 0
    %1055 = vmatprep.subr.bf16.mxu0 0
    %1056 = vmatpush1.bf16.msra.mxu0 0
    %1057 = vmatprep.subr.bf16.mxu0 0
    %1058 = vmatpush1.bf16.msra.mxu0 0
    %1059 = vmatprep.subr.bf16.mxu0 0
    %1060 = vmatpush1.bf16.msra.mxu0 0
    %1061 = vmatprep.subr.bf16.mxu0 0
    %1062 = vmatpush1.bf16.msra.mxu0 0
    %1063 = vmatprep.subr.bf16.mxu0 0
    %1064 = vmatpush1.bf16.msra.mxu0 0
    %1065 = vmatprep.subr.bf16.mxu0 0
    %1066 = vmatpush1.bf16.msra.mxu0 0
    %1067 = vmatprep.mubr.bf16.mxu0 0
    %1068 = vmatmul.mubr.bf16.gmra.mrb[0].mxu0 %v1034
    %v1069 = vpop.f32.mrb[0].mxu0
    %v1070 = vadd.f32 %v413, %v1069
    %v1071 = vpop.f32.mrb[0].mxu0
    %v1072 = vadd.f32 %v417, %v1071
    %v1073 = vpop.f32.mrb[0].mxu0
    %v1074 = vpop.f32.mrb[0].mxu0
    %1075 = vdwg.mxu0
    %1076 = vmatprep.subr.bf16.mxu0 0
    %1077 = vmatpush1.bf16.msra.mxu0 %v507
    %1078 = vmatprep.subr.bf16.mxu0 0
    %1079 = vmatpush1.bf16.msra.mxu0 %v510
    %1080 = vmatprep.subr.bf16.mxu0 0
    %1081 = vmatpush1.bf16.msra.mxu0 %v513
    %1082 = vmatprep.subr.bf16.mxu0 0
    %1083 = vmatpush1.bf16.msra.mxu0 %v516
    %1084 = vmatprep.subr.bf16.mxu0 0
    %1085 = vmatpush1.bf16.msra.mxu0 %v519
    %1086 = vmatprep.subr.bf16.mxu0 0
    %1087 = vmatpush1.bf16.msra.mxu0 %v522
    %1088 = vmatprep.subr.bf16.mxu0 0
    %1089 = vmatpush1.bf16.msra.mxu0 %v525
    %1090 = vmatprep.subr.bf16.mxu0 0
    %1091 = vmatpush1.bf16.msra.mxu0 %v528
    %1092 = vmatprep.subr.bf16.mxu0 0
    %1093 = vmatpush1.bf16.msra.mxu0 0
    %1094 = vmatprep.subr.bf16.mxu0 0
    %1095 = vmatpush1.bf16.msra.mxu0 0
    %1096 = vmatprep.subr.bf16.mxu0 0
    %1097 = vmatpush1.bf16.msra.mxu0 0
    %1098 = vmatprep.subr.bf16.mxu0 0
    %1099 = vmatpush1.bf16.msra.mxu0 0
    %1100 = vmatprep.subr.bf16.mxu0 0
    %1101 = vmatpush1.bf16.msra.mxu0 0
    %1102 = vmatprep.subr.bf16.mxu0 0
    %1103 = vmatpush1.bf16.msra.mxu0 0
    %1104 = vmatprep.subr.bf16.mxu0 0
    %1105 = vmatpush1.bf16.msra.mxu0 0
    %1106 = vmatprep.subr.bf16.mxu0 0
    %1107 = vmatpush1.bf16.msra.mxu0 0
    %1108 = vmatprep.mubr.bf16.mxu0 0
    %1109 = vmatmul.mubr.bf16.gmra.mrb[0].mxu0 %v1034
    %v1110 = vpop.f32.mrb[0].mxu0
    %v1111 = vadd.f32 %v421, %v1110
    %v1112 = vpop.f32.mrb[0].mxu0
    %v1113 = vpop.f32.mrb[0].mxu0
    %v1114 = vpop.f32.mrb[0].mxu0
    %1115 = vdwg.mxu0
    %v1116 = vadd.f32 %v1031, %v1070
    %v1117 = vxor.u32 %v1116, 2147483648
    %v1118 = vmul.f32 %v1117, 1.442695
    %v1119 = vpow.pop %v1118
    %v1120 = vadd.f32 %v1119, 1.0
    %v1121 = vrcp.pop %v1120
    %v1122 = vmul.f32 1.0, %v1121
    %v1123 = vadd.f32 %v1032, %v1072
    %v1124 = vxor.u32 %v1123, 2147483648
    %v1125 = vmul.f32 %v1124, 1.442695
    %v1126 = vpow.pop %v1125
    %v1127 = vadd.f32 %v1126, 1.0
    %v1128 = vrcp.pop %v1127
    %v1129 = vmul.f32 1.0, %v1128
    %v1130 = vmul.f32 %v1122, %v1111
    %v1131 = vadd.f32 %v1033, %v1130
    %v1132 = vtanh.pop %v1131
    %v1133 = vsub.f32 1.0, %v1129
    %v1134 = vmul.f32 %v1133, %v1132
    %v1135 = vmul.f32 %v1129, %v912
    %v1136 = vadd.f32 %v1134, %v1135
    %s1137 = sadd.s32 %s145, 2
    %v1138 = vstv %s1137
    %vm1139 = vcmp.lt.s32.totalorder %v1138, %v78
    %s1140 = sadd.s32 %s147, 5
    %v1141 = vstv %s1140
    %vm1142 = vcmp.lt.s32.totalorder %v1141, %v78
    %v1143 = vsel %vm1139, 1, 0
    %1144 = vset.pattern.permute.xlu0 0
    %1145 = vperm.xlu0 %1144, %v1143
    %v1146 = vpop.permute.xlu0 %1145
    %vm1147 = vcmp.eq.s32.totalorder %v1146, 1
    %v1148 = vsel %vm1147, %v1027, %v906
    %v1149 = vsel %vm1142, 1, 0
    %1150 = vset.pattern.permute.xlu0 0
    %1151 = vperm.xlu0 %1150, %v1149
    %v1152 = vpop.permute.xlu0 %1151
    %vm1153 = vcmp.eq.s32.totalorder %v1152, 1
    %v1154 = vsel %vm1153, %v1136, %v912
    %v1155 = vsel %vm1147, %v1027, 0.0
    %s1156 = scalar_lea.vmem %s7, 16
    %1157 = vst [vmem:[%s1156] sm:$0xff] %v1155
    %v1158 = vsel %vm1153, %v1136, 0.0
    %s1159 = scalar_lea.vmem %s68, 40
    %1160 = vst [vmem:[%s1159] sm:$0xff] %v1158
    %s1161 = scalar_lea.vmem %s0, 36
    %v1162 = vld [vmem:[%s1161] sm:$0xff]
    %v1163 = vld [vmem:[%s1161 + $0x8] sm:$0xf]
    %v1164 = vunpack.c.l.bf16 %v1162
    %v1165 = vunpack.c.h.bf16 %v1162
    %v1166 = vunpack.c.l.bf16 %v1163
    %v1167 = vpack.c.bf16 %v1148, %v1148
    %1168 = vmatprep.subr.bf16.mxu0 %v253
    %1169 = vmatpush1.bf16.msra.mxu0 %v252
    %1170 = vmatprep.subr.bf16.mxu0 %v256
    %1171 = vmatpush1.bf16.msra.mxu0 %v255
    %1172 = vmatprep.subr.bf16.mxu0 %v259
    %1173 = vmatpush1.bf16.msra.mxu0 %v258
    %1174 = vmatprep.subr.bf16.mxu0 %v262
    %1175 = vmatpush1.bf16.msra.mxu0 %v261
    %1176 = vmatprep.subr.bf16.mxu0 %v265
    %1177 = vmatpush1.bf16.msra.mxu0 %v264
    %1178 = vmatprep.subr.bf16.mxu0 %v268
    %1179 = vmatpush1.bf16.msra.mxu0 %v267
    %1180 = vmatprep.subr.bf16.mxu0 %v271
    %1181 = vmatpush1.bf16.msra.mxu0 %v270
    %1182 = vmatprep.subr.bf16.mxu0 %v274
    %1183 = vmatpush1.bf16.msra.mxu0 %v273
    %1184 = vmatprep.subr.bf16.mxu0 0
    %1185 = vmatpush1.bf16.msra.mxu0 0
    %1186 = vmatprep.subr.bf16.mxu0 0
    %1187 = vmatpush1.bf16.msra.mxu0 0
    %1188 = vmatprep.subr.bf16.mxu0 0
    %1189 = vmatpush1.bf16.msra.mxu0 0
    %1190 = vmatprep.subr.bf16.mxu0 0
    %1191 = vmatpush1.bf16.msra.mxu0 0
    %1192 = vmatprep.subr.bf16.mxu0 0
    %1193 = vmatpush1.bf16.msra.mxu0 0
    %1194 = vmatprep.subr.bf16.mxu0 0
    %1195 = vmatpush1.bf16.msra.mxu0 0
    %1196 = vmatprep.subr.bf16.mxu0 0
    %1197 = vmatpush1.bf16.msra.mxu0 0
    %1198 = vmatprep.subr.bf16.mxu0 0
    %1199 = vmatpush1.bf16.msra.mxu0 0
    %1200 = vmatprep.mubr.bf16.mxu0 0
    %1201 = vmatmul.mubr.bf16.gmra.mrb[0].mxu0 %v1167
    %v1202 = vpop.f32.mrb[0].mxu0
    %v1203 = vadd.f32 %v160, %v1202
    %v1204 = vpop.f32.mrb[0].mxu0
    %v1205 = vadd.f32 %v164, %v1204
    %v1206 = vpop.f32.mrb[0].mxu0
    %v1207 = vpop.f32.mrb[0].mxu0
    %1208 = vdwg.mxu0
    %1209 = vmatprep.subr.bf16.mxu0 0
    %1210 = vmatpush1.bf16.msra.mxu0 %v254
    %1211 = vmatprep.subr.bf16.mxu0 0
    %1212 = vmatpush1.bf16.msra.mxu0 %v257
    %1213 = vmatprep.subr.bf16.mxu0 0
    %1214 = vmatpush1.bf16.msra.mxu0 %v260
    %1215 = vmatprep.subr.bf16.mxu0 0
    %1216 = vmatpush1.bf16.msra.mxu0 %v263
    %1217 = vmatprep.subr.bf16.mxu0 0
    %1218 = vmatpush1.bf16.msra.mxu0 %v266
    %1219 = vmatprep.subr.bf16.mxu0 0
    %1220 = vmatpush1.bf16.msra.mxu0 %v269
    %1221 = vmatprep.subr.bf16.mxu0 0
    %1222 = vmatpush1.bf16.msra.mxu0 %v272
    %1223 = vmatprep.subr.bf16.mxu0 0
    %1224 = vmatpush1.bf16.msra.mxu0 %v275
    %1225 = vmatprep.subr.bf16.mxu0 0
    %1226 = vmatpush1.bf16.msra.mxu0 0
    %1227 = vmatprep.subr.bf16.mxu0 0
    %1228 = vmatpush1.bf16.msra.mxu0 0
    %1229 = vmatprep.subr.bf16.mxu0 0
    %1230 = vmatpush1.bf16.msra.mxu0 0
    %1231 = vmatprep.subr.bf16.mxu0 0
    %1232 = vmatpush1.bf16.msra.mxu0 0
    %1233 = vmatprep.subr.bf16.mxu0 0
    %1234 = vmatpush1.bf16.msra.mxu0 0
    %1235 = vmatprep.subr.bf16.mxu0 0
    %1236 = vmatpush1.bf16.msra.mxu0 0
    %1237 = vmatprep.subr.bf16.mxu0 0
    %1238 = vmatpush1.bf16.msra.mxu0 0
    %1239 = vmatprep.subr.bf16.mxu0 0
    %1240 = vmatpush1.bf16.msra.mxu0 0
    %1241 = vmatprep.mubr.bf16.mxu0 0
    %1242 = vmatmul.mubr.bf16.gmra.mrb[0].mxu0 %v1167
    %v1243 = vpop.f32.mrb[0].mxu0
    %v1244 = vadd.f32 %v168, %v1243
    %v1245 = vpop.f32.mrb[0].mxu0
    %v1246 = vpop.f32.mrb[0].mxu0
    %v1247 = vpop.f32.mrb[0].mxu0
    %1248 = vdwg.mxu0
    %v1249 = vadd.f32 %v1164, %v1203
    %v1250 = vxor.u32 %v1249, 2147483648
    %v1251 = vmul.f32 %v1250, 1.442695
    %v1252 = vpow.pop %v1251
    %v1253 = vadd.f32 %v1252, 1.0
    %v1254 = vrcp.pop %v1253
    %v1255 = vmul.f32 1.0, %v1254
    %v1256 = vadd.f32 %v1165, %v1205
    %v1257 = vxor.u32 %v1256, 2147483648
    %v1258 = vmul.f32 %v1257, 1.442695
    %v1259 = vpow.pop %v1258
    %v1260 = vadd.f32 %v1259, 1.0
    %v1261 = vrcp.pop %v1260
    %v1262 = vmul.f32 1.0, %v1261
    %v1263 = vmul.f32 %v1255, %v1244
    %v1264 = vadd.f32 %v1166, %v1263
    %v1265 = vtanh.pop %v1264
    %v1266 = vsub.f32 1.0, %v1262
    %v1267 = vmul.f32 %v1266, %v1265
    %v1268 = vmul.f32 %v1262, %v1148
    %v1269 = vadd.f32 %v1267, %v1268
    %s1270 = scalar_lea.vmem %s60, 48
    %v1271 = vld [vmem:[%s1270] sm:$0xff]
    %v1272 = vld [vmem:[%s1270 + $0x8] sm:$0xf]
    %v1273 = vunpack.c.l.bf16 %v1271
    %v1274 = vunpack.c.h.bf16 %v1271
    %v1275 = vunpack.c.l.bf16 %v1272
    %v1276 = vpack.c.bf16 %v1154, %v1154
    %1277 = vmatprep.subr.bf16.mxu0 %v506
    %1278 = vmatpush1.bf16.msra.mxu0 %v505
    %1279 = vmatprep.subr.bf16.mxu0 %v509
    %1280 = vmatpush1.bf16.msra.mxu0 %v508
    %1281 = vmatprep.subr.bf16.mxu0 %v512
    %1282 = vmatpush1.bf16.msra.mxu0 %v511
    %1283 = vmatprep.subr.bf16.mxu0 %v515
    %1284 = vmatpush1.bf16.msra.mxu0 %v514
    %1285 = vmatprep.subr.bf16.mxu0 %v518
    %1286 = vmatpush1.bf16.msra.mxu0 %v517
    %1287 = vmatprep.subr.bf16.mxu0 %v521
    %1288 = vmatpush1.bf16.msra.mxu0 %v520
    %1289 = vmatprep.subr.bf16.mxu0 %v524
    %1290 = vmatpush1.bf16.msra.mxu0 %v523
    %1291 = vmatprep.subr.bf16.mxu0 %v527
    %1292 = vmatpush1.bf16.msra.mxu0 %v526
    %1293 = vmatprep.subr.bf16.mxu0 0
    %1294 = vmatpush1.bf16.msra.mxu0 0
    %1295 = vmatprep.subr.bf16.mxu0 0
    %1296 = vmatpush1.bf16.msra.mxu0 0
    %1297 = vmatprep.subr.bf16.mxu0 0
    %1298 = vmatpush1.bf16.msra.mxu0 0
    %1299 = vmatprep.subr.bf16.mxu0 0
    %1300 = vmatpush1.bf16.msra.mxu0 0
    %1301 = vmatprep.subr.bf16.mxu0 0
    %1302 = vmatpush1.bf16.msra.mxu0 0
    %1303 = vmatprep.subr.bf16.mxu0 0
    %1304 = vmatpush1.bf16.msra.mxu0 0
    %1305 = vmatprep.subr.bf16.mxu0 0
    %1306 = vmatpush1.bf16.msra.mxu0 0
    %1307 = vmatprep.subr.bf16.mxu0 0
    %1308 = vmatpush1.bf16.msra.mxu0 0
    %1309 = vmatprep.mubr.bf16.mxu0 0
    %1310 = vmatmul.mubr.bf16.gmra.mrb[0].mxu0 %v1276
    %v1311 = vpop.f32.mrb[0].mxu0
    %v1312 = vadd.f32 %v413, %v1311
    %v1313 = vpop.f32.mrb[0].mxu0
    %v1314 = vadd.f32 %v417, %v1313
    %v1315 = vpop.f32.mrb[0].mxu0
    %v1316 = vpop.f32.mrb[0].mxu0
    %1317 = vdwg.mxu0
    %1318 = vmatprep.subr.bf16.mxu0 0
    %1319 = vmatpush1.bf16.msra.mxu0 %v507
    %1320 = vmatprep.subr.bf16.mxu0 0
    %1321 = vmatpush1.bf16.msra.mxu0 %v510
    %1322 = vmatprep.subr.bf16.mxu0 0
    %1323 = vmatpush1.bf16.msra.mxu0 %v513
    %1324 = vmatprep.subr.bf16.mxu0 0
    %1325 = vmatpush1.bf16.msra.mxu0 %v516
    %1326 = vmatprep.subr.bf16.mxu0 0
    %1327 = vmatpush1.bf16.msra.mxu0 %v519
    %1328 = vmatprep.subr.bf16.mxu0 0
    %1329 = vmatpush1.bf16.msra.mxu0 %v522
    %1330 = vmatprep.subr.bf16.mxu0 0
    %1331 = vmatpush1.bf16.msra.mxu0 %v525
    %1332 = vmatprep.subr.bf16.mxu0 0
    %1333 = vmatpush1.bf16.msra.mxu0 %v528
    %1334 = vmatprep.subr.bf16.mxu0 0
    %1335 = vmatpush1.bf16.msra.mxu0 0
    %1336 = vmatprep.subr.bf16.mxu0 0
    %1337 = vmatpush1.bf16.msra.mxu0 0
    %1338 = vmatprep.subr.bf16.mxu0 0
    %1339 = vmatpush1.bf16.msra.mxu0 0
    %1340 = vmatprep.subr.bf16.mxu0 0
    %1341 = vmatpush1.bf16.msra.mxu0 0
    %1342 = vmatprep.subr.bf16.mxu0 0
    %1343 = vmatpush1.bf16.msra.mxu0 0
    %1344 = vmatprep.subr.bf16.mxu0 0
    %1345 = vmatpush1.bf16.msra.mxu0 0
    %1346 = vmatprep.subr.bf16.mxu0 0
    %1347 = vmatpush1.bf16.msra.mxu0 0
    %1348 = vmatprep.subr.bf16.mxu0 0
    %1349 = vmatpush1.bf16.msra.mxu0 0
    %1350 = vmatprep.mubr.bf16.mxu0 0
    %1351 = vmatmul.mubr.bf16.gmra.mrb[0].mxu0 %v1276
    %v1352 = vpop.f32.mrb[0].mxu0
    %v1353 = vadd.f32 %v421, %v1352
    %v1354 = vpop.f32.mrb[0].mxu0
    %v1355 = vpop.f32.mrb[0].mxu0
    %v1356 = vpop.f32.mrb[0].mxu0
    %1357 = vdwg.mxu0
    %v1358 = vadd.f32 %v1273, %v1312
    %v1359 = vxor.u32 %v1358, 2147483648
    %v1360 = vmul.f32 %v1359, 1.442695
    %v1361 = vpow.pop %v1360
    %v1362 = vadd.f32 %v1361, 1.0
    %v1363 = vrcp.pop %v1362
    %v1364 = vmul.f32 1.0, %v1363
    %v1365 = vadd.f32 %v1274, %v1314
    %v1366 = vxor.u32 %v1365, 2147483648
    %v1367 = vmul.f32 %v1366, 1.442695
    %v1368 = vpow.pop %v1367
    %v1369 = vadd.f32 %v1368, 1.0
    %v1370 = vrcp.pop %v1369
    %v1371 = vmul.f32 1.0, %v1370
    %v1372 = vmul.f32 %v1364, %v1353
    %v1373 = vadd.f32 %v1275, %v1372
    %v1374 = vtanh.pop %v1373
    %v1375 = vsub.f32 1.0, %v1371
    %v1376 = vmul.f32 %v1375, %v1374
    %v1377 = vmul.f32 %v1371, %v1154
    %v1378 = vadd.f32 %v1376, %v1377
    %s1379 = sadd.s32 %s145, 3
    %v1380 = vstv %s1379
    %vm1381 = vcmp.lt.s32.totalorder %v1380, %v78
    %s1382 = sadd.s32 %s147, 4
    %v1383 = vstv %s1382
    %vm1384 = vcmp.lt.s32.totalorder %v1383, %v78
    %v1385 = vsel %vm1381, 1, 0
    %1386 = vset.pattern.permute.xlu0 0
    %1387 = vperm.xlu0 %1386, %v1385
    %v1388 = vpop.permute.xlu0 %1387
    %vm1389 = vcmp.eq.s32.totalorder %v1388, 1
    %v1390 = vsel %vm1389, %v1269, %v1148
    %v1391 = vsel %vm1384, 1, 0
    %1392 = vset.pattern.permute.xlu0 0
    %1393 = vperm.xlu0 %1392, %v1391
    %v1394 = vpop.permute.xlu0 %1393
    %vm1395 = vcmp.eq.s32.totalorder %v1394, 1
    %v1396 = vsel %vm1395, %v1378, %v1154
    %v1397 = vsel %vm1389, %v1269, 0.0
    %s1398 = scalar_lea.vmem %s7, 24
    %1399 = vst [vmem:[%s1398] sm:$0xff] %v1397
    %v1400 = vsel %vm1395, %v1378, 0.0
    %s1401 = scalar_lea.vmem %s68, 32
    %1402 = vst [vmem:[%s1401] sm:$0xff] %v1400
    %s1403 = scalar_lea.vmem %s0, 48
    %v1404 = vld [vmem:[%s1403] sm:$0xff]
    %v1405 = vld [vmem:[%s1403 + $0x8] sm:$0xf]
    %v1406 = vunpack.c.l.bf16 %v1404
    %v1407 = vunpack.c.h.bf16 %v1404
    %v1408 = vunpack.c.l.bf16 %v1405
    %v1409 = vpack.c.bf16 %v1390, %v1390
    %1410 = vmatprep.subr.bf16.mxu0 %v253
    %1411 = vmatpush1.bf16.msra.mxu0 %v252
    %1412 = vmatprep.subr.bf16.mxu0 %v256
    %1413 = vmatpush1.bf16.msra.mxu0 %v255
    %1414 = vmatprep.subr.bf16.mxu0 %v259
    %1415 = vmatpush1.bf16.msra.mxu0 %v258
    %1416 = vmatprep.subr.bf16.mxu0 %v262
    %1417 = vmatpush1.bf16.msra.mxu0 %v261
    %1418 = vmatprep.subr.bf16.mxu0 %v265
    %1419 = vmatpush1.bf16.msra.mxu0 %v264
    %1420 = vmatprep.subr.bf16.mxu0 %v268
    %1421 = vmatpush1.bf16.msra.mxu0 %v267
    %1422 = vmatprep.subr.bf16.mxu0 %v271
    %1423 = vmatpush1.bf16.msra.mxu0 %v270
    %1424 = vmatprep.subr.bf16.mxu0 %v274
    %1425 = vmatpush1.bf16.msra.mxu0 %v273
    %1426 = vmatprep.subr.bf16.mxu0 0
    %1427 = vmatpush1.bf16.msra.mxu0 0
    %1428 = vmatprep.subr.bf16.mxu0 0
    %1429 = vmatpush1.bf16.msra.mxu0 0
    %1430 = vmatprep.subr.bf16.mxu0 0
    %1431 = vmatpush1.bf16.msra.mxu0 0
    %1432 = vmatprep.subr.bf16.mxu0 0
    %1433 = vmatpush1.bf16.msra.mxu0 0
    %1434 = vmatprep.subr.bf16.mxu0 0
    %1435 = vmatpush1.bf16.msra.mxu0 0
    %1436 = vmatprep.subr.bf16.mxu0 0
    %1437 = vmatpush1.bf16.msra.mxu0 0
    %1438 = vmatprep.subr.bf16.mxu0 0
    %1439 = vmatpush1.bf16.msra.mxu0 0
    %1440 = vmatprep.subr.bf16.mxu0 0
    %1441 = vmatpush1.bf16.msra.mxu0 0
    %1442 = vmatprep.mubr.bf16.mxu0 0
    %1443 = vmatmul.mubr.bf16.gmra.mrb[0].mxu0 %v1409
    %v1444 = vpop.f32.mrb[0].mxu0
    %v1445 = vadd.f32 %v160, %v1444
    %v1446 = vpop.f32.mrb[0].mxu0
    %v1447 = vadd.f32 %v164, %v1446
    %v1448 = vpop.f32.mrb[0].mxu0
    %v1449 = vpop.f32.mrb[0].mxu0
    %1450 = vdwg.mxu0
    %1451 = vmatprep.subr.bf16.mxu0 0
    %1452 = vmatpush1.bf16.msra.mxu0 %v254
    %1453 = vmatprep.subr.bf16.mxu0 0
    %1454 = vmatpush1.bf16.msra.mxu0 %v257
    %1455 = vmatprep.subr.bf16.mxu0 0
    %1456 = vmatpush1.bf16.msra.mxu0 %v260
    %1457 = vmatprep.subr.bf16.mxu0 0
    %1458 = vmatpush1.bf16.msra.mxu0 %v263
    %1459 = vmatprep.subr.bf16.mxu0 0
    %1460 = vmatpush1.bf16.msra.mxu0 %v266
    %1461 = vmatprep.subr.bf16.mxu0 0
    %1462 = vmatpush1.bf16.msra.mxu0 %v269
    %1463 = vmatprep.subr.bf16.mxu0 0
    %1464 = vmatpush1.bf16.msra.mxu0 %v272
    %1465 = vmatprep.subr.bf16.mxu0 0
    %1466 = vmatpush1.bf16.msra.mxu0 %v275
    %1467 = vmatprep.subr.bf16.mxu0 0
    %1468 = vmatpush1.bf16.msra.mxu0 0
    %1469 = vmatprep.subr.bf16.mxu0 0
    %1470 = vmatpush1.bf16.msra.mxu0 0
    %1471 = vmatprep.subr.bf16.mxu0 0
    %1472 = vmatpush1.bf16.msra.mxu0 0
    %1473 = vmatprep.subr.bf16.mxu0 0
    %1474 = vmatpush1.bf16.msra.mxu0 0
    %1475 = vmatprep.subr.bf16.mxu0 0
    %1476 = vmatpush1.bf16.msra.mxu0 0
    %1477 = vmatprep.subr.bf16.mxu0 0
    %1478 = vmatpush1.bf16.msra.mxu0 0
    %1479 = vmatprep.subr.bf16.mxu0 0
    %1480 = vmatpush1.bf16.msra.mxu0 0
    %1481 = vmatprep.subr.bf16.mxu0 0
    %1482 = vmatpush1.bf16.msra.mxu0 0
    %1483 = vmatprep.mubr.bf16.mxu0 0
    %1484 = vmatmul.mubr.bf16.gmra.mrb[0].mxu0 %v1409
    %v1485 = vpop.f32.mrb[0].mxu0
    %v1486 = vadd.f32 %v168, %v1485
    %v1487 = vpop.f32.mrb[0].mxu0
    %v1488 = vpop.f32.mrb[0].mxu0
    %v1489 = vpop.f32.mrb[0].mxu0
    %1490 = vdwg.mxu0
    %v1491 = vadd.f32 %v1406, %v1445
    %v1492 = vxor.u32 %v1491, 2147483648
    %v1493 = vmul.f32 %v1492, 1.442695
    %v1494 = vpow.pop %v1493
    %v1495 = vadd.f32 %v1494, 1.0
    %v1496 = vrcp.pop %v1495
    %v1497 = vmul.f32 1.0, %v1496
    %v1498 = vadd.f32 %v1407, %v1447
    %v1499 = vxor.u32 %v1498, 2147483648
    %v1500 = vmul.f32 %v1499, 1.442695
    %v1501 = vpow.pop %v1500
    %v1502 = vadd.f32 %v1501, 1.0
    %v1503 = vrcp.pop %v1502
    %v1504 = vmul.f32 1.0, %v1503
    %v1505 = vmul.f32 %v1497, %v1486
    %v1506 = vadd.f32 %v1408, %v1505
    %v1507 = vtanh.pop %v1506
    %v1508 = vsub.f32 1.0, %v1504
    %v1509 = vmul.f32 %v1508, %v1507
    %v1510 = vmul.f32 %v1504, %v1390
    %v1511 = vadd.f32 %v1509, %v1510
    %s1512 = scalar_lea.vmem %s60, 36
    %v1513 = vld [vmem:[%s1512] sm:$0xff]
    %v1514 = vld [vmem:[%s1512 + $0x8] sm:$0xf]
    %v1515 = vunpack.c.l.bf16 %v1513
    %v1516 = vunpack.c.h.bf16 %v1513
    %v1517 = vunpack.c.l.bf16 %v1514
    %v1518 = vpack.c.bf16 %v1396, %v1396
    %1519 = vmatprep.subr.bf16.mxu0 %v506
    %1520 = vmatpush1.bf16.msra.mxu0 %v505
    %1521 = vmatprep.subr.bf16.mxu0 %v509
    %1522 = vmatpush1.bf16.msra.mxu0 %v508
    %1523 = vmatprep.subr.bf16.mxu0 %v512
    %1524 = vmatpush1.bf16.msra.mxu0 %v511
    %1525 = vmatprep.subr.bf16.mxu0 %v515
    %1526 = vmatpush1.bf16.msra.mxu0 %v514
    %1527 = vmatprep.subr.bf16.mxu0 %v518
    %1528 = vmatpush1.bf16.msra.mxu0 %v517
    %1529 = vmatprep.subr.bf16.mxu0 %v521
    %1530 = vmatpush1.bf16.msra.mxu0 %v520
    %1531 = vmatprep.subr.bf16.mxu0 %v524
    %1532 = vmatpush1.bf16.msra.mxu0 %v523
    %1533 = vmatprep.subr.bf16.mxu0 %v527
    %1534 = vmatpush1.bf16.msra.mxu0 %v526
    %1535 = vmatprep.subr.bf16.mxu0 0
    %1536 = vmatpush1.bf16.msra.mxu0 0
    %1537 = vmatprep.subr.bf16.mxu0 0
    %1538 = vmatpush1.bf16.msra.mxu0 0
    %1539 = vmatprep.subr.bf16.mxu0 0
    %1540 = vmatpush1.bf16.msra.mxu0 0
    %1541 = vmatprep.subr.bf16.mxu0 0
    %1542 = vmatpush1.bf16.msra.mxu0 0
    %1543 = vmatprep.subr.bf16.mxu0 0
    %1544 = vmatpush1.bf16.msra.mxu0 0
    %1545 = vmatprep.subr.bf16.mxu0 0
    %1546 = vmatpush1.bf16.msra.mxu0 0
    %1547 = vmatprep.subr.bf16.mxu0 0
    %1548 = vmatpush1.bf16.msra.mxu0 0
    %1549 = vmatprep.subr.bf16.mxu0 0
    %1550 = vmatpush1.bf16.msra.mxu0 0
    %1551 = vmatprep.mubr.bf16.mxu0 0
    %1552 = vmatmul.mubr.bf16.gmra.mrb[0].mxu0 %v1518
    %v1553 = vpop.f32.mrb[0].mxu0
    %v1554 = vadd.f32 %v413, %v1553
    %v1555 = vpop.f32.mrb[0].mxu0
    %v1556 = vadd.f32 %v417, %v1555
    %v1557 = vpop.f32.mrb[0].mxu0
    %v1558 = vpop.f32.mrb[0].mxu0
    %1559 = vdwg.mxu0
    %1560 = vmatprep.subr.bf16.mxu0 0
    %1561 = vmatpush1.bf16.msra.mxu0 %v507
    %1562 = vmatprep.subr.bf16.mxu0 0
    %1563 = vmatpush1.bf16.msra.mxu0 %v510
    %1564 = vmatprep.subr.bf16.mxu0 0
    %1565 = vmatpush1.bf16.msra.mxu0 %v513
    %1566 = vmatprep.subr.bf16.mxu0 0
    %1567 = vmatpush1.bf16.msra.mxu0 %v516
    %1568 = vmatprep.subr.bf16.mxu0 0
    %1569 = vmatpush1.bf16.msra.mxu0 %v519
    %1570 = vmatprep.subr.bf16.mxu0 0
    %1571 = vmatpush1.bf16.msra.mxu0 %v522
    %1572 = vmatprep.subr.bf16.mxu0 0
    %1573 = vmatpush1.bf16.msra.mxu0 %v525
    %1574 = vmatprep.subr.bf16.mxu0 0
    %1575 = vmatpush1.bf16.msra.mxu0 %v528
    %1576 = vmatprep.subr.bf16.mxu0 0
    %1577 = vmatpush1.bf16.msra.mxu0 0
    %1578 = vmatprep.subr.bf16.mxu0 0
    %1579 = vmatpush1.bf16.msra.mxu0 0
    %1580 = vmatprep.subr.bf16.mxu0 0
    %1581 = vmatpush1.bf16.msra.mxu0 0
    %1582 = vmatprep.subr.bf16.mxu0 0
    %1583 = vmatpush1.bf16.msra.mxu0 0
    %1584 = vmatprep.subr.bf16.mxu0 0
    %1585 = vmatpush1.bf16.msra.mxu0 0
    %1586 = vmatprep.subr.bf16.mxu0 0
    %1587 = vmatpush1.bf16.msra.mxu0 0
    %1588 = vmatprep.subr.bf16.mxu0 0
    %1589 = vmatpush1.bf16.msra.mxu0 0
    %1590 = vmatprep.subr.bf16.mxu0 0
    %1591 = vmatpush1.bf16.msra.mxu0 0
    %1592 = vmatprep.mubr.bf16.mxu0 0
    %1593 = vmatmul.mubr.bf16.gmra.mrb[0].mxu0 %v1518
    %v1594 = vpop.f32.mrb[0].mxu0
    %v1595 = vadd.f32 %v421, %v1594
    %v1596 = vpop.f32.mrb[0].mxu0
    %v1597 = vpop.f32.mrb[0].mxu0
    %v1598 = vpop.f32.mrb[0].mxu0
    %1599 = vdwg.mxu0
    %v1600 = vadd.f32 %v1515, %v1554
    %v1601 = vxor.u32 %v1600, 2147483648
    %v1602 = vmul.f32 %v1601, 1.442695
    %v1603 = vpow.pop %v1602
    %v1604 = vadd.f32 %v1603, 1.0
    %v1605 = vrcp.pop %v1604
    %v1606 = vmul.f32 1.0, %v1605
    %v1607 = vadd.f32 %v1516, %v1556
    %v1608 = vxor.u32 %v1607, 2147483648
    %v1609 = vmul.f32 %v1608, 1.442695
    %v1610 = vpow.pop %v1609
    %v1611 = vadd.f32 %v1610, 1.0
    %v1612 = vrcp.pop %v1611
    %v1613 = vmul.f32 1.0, %v1612
    %v1614 = vmul.f32 %v1606, %v1595
    %v1615 = vadd.f32 %v1517, %v1614
    %v1616 = vtanh.pop %v1615
    %v1617 = vsub.f32 1.0, %v1613
    %v1618 = vmul.f32 %v1617, %v1616
    %v1619 = vmul.f32 %v1613, %v1396
    %v1620 = vadd.f32 %v1618, %v1619
    %s1621 = sadd.s32 %s145, 4
    %v1622 = vstv %s1621
    %vm1623 = vcmp.lt.s32.totalorder %v1622, %v78
    %s1624 = sadd.s32 %s147, 3
    %v1625 = vstv %s1624
    %vm1626 = vcmp.lt.s32.totalorder %v1625, %v78
    %v1627 = vsel %vm1623, 1, 0
    %1628 = vset.pattern.permute.xlu0 0
    %1629 = vperm.xlu0 %1628, %v1627
    %v1630 = vpop.permute.xlu0 %1629
    %vm1631 = vcmp.eq.s32.totalorder %v1630, 1
    %v1632 = vsel %vm1631, %v1511, %v1390
    %v1633 = vsel %vm1626, 1, 0
    %1634 = vset.pattern.permute.xlu0 0
    %1635 = vperm.xlu0 %1634, %v1633
    %v1636 = vpop.permute.xlu0 %1635
    %vm1637 = vcmp.eq.s32.totalorder %v1636, 1
    %v1638 = vsel %vm1637, %v1620, %v1396
    %v1639 = vsel %vm1631, %v1511, 0.0
    %s1640 = scalar_lea.vmem %s7, 32
    %1641 = vst [vmem:[%s1640] sm:$0xff] %v1639
    %v1642 = vsel %vm1637, %v1620, 0.0
    %s1643 = scalar_lea.vmem %s68, 24
    %1644 = vst [vmem:[%s1643] sm:$0xff] %v1642
    %s1645 = scalar_lea.vmem %s0, 60
    %v1646 = vld [vmem:[%s1645] sm:$0xff]
    %v1647 = vld [vmem:[%s1645 + $0x8] sm:$0xf]
    %v1648 = vunpack.c.l.bf16 %v1646
    %v1649 = vunpack.c.h.bf16 %v1646
    %v1650 = vunpack.c.l.bf16 %v1647
    %v1651 = vpack.c.bf16 %v1632, %v1632
    %1652 = vmatprep.subr.bf16.mxu0 %v253
    %1653 = vmatpush1.bf16.msra.mxu0 %v252
    %1654 = vmatprep.subr.bf16.mxu0 %v256
    %1655 = vmatpush1.bf16.msra.mxu0 %v255
    %1656 = vmatprep.subr.bf16.mxu0 %v259
    %1657 = vmatpush1.bf16.msra.mxu0 %v258
    %1658 = vmatprep.subr.bf16.mxu0 %v262
    %1659 = vmatpush1.bf16.msra.mxu0 %v261
    %1660 = vmatprep.subr.bf16.mxu0 %v265
    %1661 = vmatpush1.bf16.msra.mxu0 %v264
    %1662 = vmatprep.subr.bf16.mxu0 %v268
    %1663 = vmatpush1.bf16.msra.mxu0 %v267
    %1664 = vmatprep.subr.bf16.mxu0 %v271
    %1665 = vmatpush1.bf16.msra.mxu0 %v270
    %1666 = vmatprep.subr.bf16.mxu0 %v274
    %1667 = vmatpush1.bf16.msra.mxu0 %v273
    %1668 = vmatprep.subr.bf16.mxu0 0
    %1669 = vmatpush1.bf16.msra.mxu0 0
    %1670 = vmatprep.subr.bf16.mxu0 0
    %1671 = vmatpush1.bf16.msra.mxu0 0
    %1672 = vmatprep.subr.bf16.mxu0 0
    %1673 = vmatpush1.bf16.msra.mxu0 0
    %1674 = vmatprep.subr.bf16.mxu0 0
    %1675 = vmatpush1.bf16.msra.mxu0 0
    %1676 = vmatprep.subr.bf16.mxu0 0
    %1677 = vmatpush1.bf16.msra.mxu0 0
    %1678 = vmatprep.subr.bf16.mxu0 0
    %1679 = vmatpush1.bf16.msra.mxu0 0
    %1680 = vmatprep.subr.bf16.mxu0 0
    %1681 = vmatpush1.bf16.msra.mxu0 0
    %1682 = vmatprep.subr.bf16.mxu0 0
    %1683 = vmatpush1.bf16.msra.mxu0 0
    %1684 = vmatprep.mubr.bf16.mxu0 0
    %1685 = vmatmul.mubr.bf16.gmra.mrb[0].mxu0 %v1651
    %v1686 = vpop.f32.mrb[0].mxu0
    %v1687 = vadd.f32 %v160, %v1686
    %v1688 = vpop.f32.mrb[0].mxu0
    %v1689 = vadd.f32 %v164, %v1688
    %v1690 = vpop.f32.mrb[0].mxu0
    %v1691 = vpop.f32.mrb[0].mxu0
    %1692 = vdwg.mxu0
    %1693 = vmatprep.subr.bf16.mxu0 0
    %1694 = vmatpush1.bf16.msra.mxu0 %v254
    %1695 = vmatprep.subr.bf16.mxu0 0
    %1696 = vmatpush1.bf16.msra.mxu0 %v257
    %1697 = vmatprep.subr.bf16.mxu0 0
    %1698 = vmatpush1.bf16.msra.mxu0 %v260
    %1699 = vmatprep.subr.bf16.mxu0 0
    %1700 = vmatpush1.bf16.msra.mxu0 %v263
    %1701 = vmatprep.subr.bf16.mxu0 0
    %1702 = vmatpush1.bf16.msra.mxu0 %v266
    %1703 = vmatprep.subr.bf16.mxu0 0
    %1704 = vmatpush1.bf16.msra.mxu0 %v269
    %1705 = vmatprep.subr.bf16.mxu0 0
    %1706 = vmatpush1.bf16.msra.mxu0 %v272
    %1707 = vmatprep.subr.bf16.mxu0 0
    %1708 = vmatpush1.bf16.msra.mxu0 %v275
    %1709 = vmatprep.subr.bf16.mxu0 0
    %1710 = vmatpush1.bf16.msra.mxu0 0
    %1711 = vmatprep.subr.bf16.mxu0 0
    %1712 = vmatpush1.bf16.msra.mxu0 0
    %1713 = vmatprep.subr.bf16.mxu0 0
    %1714 = vmatpush1.bf16.msra.mxu0 0
    %1715 = vmatprep.subr.bf16.mxu0 0
    %1716 = vmatpush1.bf16.msra.mxu0 0
    %1717 = vmatprep.subr.bf16.mxu0 0
    %1718 = vmatpush1.bf16.msra.mxu0 0
    %1719 = vmatprep.subr.bf16.mxu0 0
    %1720 = vmatpush1.bf16.msra.mxu0 0
    %1721 = vmatprep.subr.bf16.mxu0 0
    %1722 = vmatpush1.bf16.msra.mxu0 0
    %1723 = vmatprep.subr.bf16.mxu0 0
    %1724 = vmatpush1.bf16.msra.mxu0 0
    %1725 = vmatprep.mubr.bf16.mxu0 0
    %1726 = vmatmul.mubr.bf16.gmra.mrb[0].mxu0 %v1651
    %v1727 = vpop.f32.mrb[0].mxu0
    %v1728 = vadd.f32 %v168, %v1727
    %v1729 = vpop.f32.mrb[0].mxu0
    %v1730 = vpop.f32.mrb[0].mxu0
    %v1731 = vpop.f32.mrb[0].mxu0
    %1732 = vdwg.mxu0
    %v1733 = vadd.f32 %v1648, %v1687
    %v1734 = vxor.u32 %v1733, 2147483648
    %v1735 = vmul.f32 %v1734, 1.442695
    %v1736 = vpow.pop %v1735
    %v1737 = vadd.f32 %v1736, 1.0
    %v1738 = vrcp.pop %v1737
    %v1739 = vmul.f32 1.0, %v1738
    %v1740 = vadd.f32 %v1649, %v1689
    %v1741 = vxor.u32 %v1740, 2147483648
    %v1742 = vmul.f32 %v1741, 1.442695
    %v1743 = vpow.pop %v1742
    %v1744 = vadd.f32 %v1743, 1.0
    %v1745 = vrcp.pop %v1744
    %v1746 = vmul.f32 1.0, %v1745
    %v1747 = vmul.f32 %v1739, %v1728
    %v1748 = vadd.f32 %v1650, %v1747
    %v1749 = vtanh.pop %v1748
    %v1750 = vsub.f32 1.0, %v1746
    %v1751 = vmul.f32 %v1750, %v1749
    %v1752 = vmul.f32 %v1746, %v1632
    %v1753 = vadd.f32 %v1751, %v1752
    %s1754 = scalar_lea.vmem %s60, 24
    %v1755 = vld [vmem:[%s1754] sm:$0xff]
    %v1756 = vld [vmem:[%s1754 + $0x8] sm:$0xf]
    %v1757 = vunpack.c.l.bf16 %v1755
    %v1758 = vunpack.c.h.bf16 %v1755
    %v1759 = vunpack.c.l.bf16 %v1756
    %v1760 = vpack.c.bf16 %v1638, %v1638
    %1761 = vmatprep.subr.bf16.mxu0 %v506
    %1762 = vmatpush1.bf16.msra.mxu0 %v505
    %1763 = vmatprep.subr.bf16.mxu0 %v509
    %1764 = vmatpush1.bf16.msra.mxu0 %v508
    %1765 = vmatprep.subr.bf16.mxu0 %v512
    %1766 = vmatpush1.bf16.msra.mxu0 %v511
    %1767 = vmatprep.subr.bf16.mxu0 %v515
    %1768 = vmatpush1.bf16.msra.mxu0 %v514
    %1769 = vmatprep.subr.bf16.mxu0 %v518
    %1770 = vmatpush1.bf16.msra.mxu0 %v517
    %1771 = vmatprep.subr.bf16.mxu0 %v521
    %1772 = vmatpush1.bf16.msra.mxu0 %v520
    %1773 = vmatprep.subr.bf16.mxu0 %v524
    %1774 = vmatpush1.bf16.msra.mxu0 %v523
    %1775 = vmatprep.subr.bf16.mxu0 %v527
    %1776 = vmatpush1.bf16.msra.mxu0 %v526
    %1777 = vmatprep.subr.bf16.mxu0 0
    %1778 = vmatpush1.bf16.msra.mxu0 0
    %1779 = vmatprep.subr.bf16.mxu0 0
    %1780 = vmatpush1.bf16.msra.mxu0 0
    %1781 = vmatprep.subr.bf16.mxu0 0
    %1782 = vmatpush1.bf16.msra.mxu0 0
    %1783 = vmatprep.subr.bf16.mxu0 0
    %1784 = vmatpush1.bf16.msra.mxu0 0
    %1785 = vmatprep.subr.bf16.mxu0 0
    %1786 = vmatpush1.bf16.msra.mxu0 0
    %1787 = vmatprep.subr.bf16.mxu0 0
    %1788 = vmatpush1.bf16.msra.mxu0 0
    %1789 = vmatprep.subr.bf16.mxu0 0
    %1790 = vmatpush1.bf16.msra.mxu0 0
    %1791 = vmatprep.subr.bf16.mxu0 0
    %1792 = vmatpush1.bf16.msra.mxu0 0
    %1793 = vmatprep.mubr.bf16.mxu0 0
    %1794 = vmatmul.mubr.bf16.gmra.mrb[0].mxu0 %v1760
    %v1795 = vpop.f32.mrb[0].mxu0
    %v1796 = vadd.f32 %v413, %v1795
    %v1797 = vpop.f32.mrb[0].mxu0
    %v1798 = vadd.f32 %v417, %v1797
    %v1799 = vpop.f32.mrb[0].mxu0
    %v1800 = vpop.f32.mrb[0].mxu0
    %1801 = vdwg.mxu0
    %1802 = vmatprep.subr.bf16.mxu0 0
    %1803 = vmatpush1.bf16.msra.mxu0 %v507
    %1804 = vmatprep.subr.bf16.mxu0 0
    %1805 = vmatpush1.bf16.msra.mxu0 %v510
    %1806 = vmatprep.subr.bf16.mxu0 0
    %1807 = vmatpush1.bf16.msra.mxu0 %v513
    %1808 = vmatprep.subr.bf16.mxu0 0
    %1809 = vmatpush1.bf16.msra.mxu0 %v516
    %1810 = vmatprep.subr.bf16.mxu0 0
    %1811 = vmatpush1.bf16.msra.mxu0 %v519
    %1812 = vmatprep.subr.bf16.mxu0 0
    %1813 = vmatpush1.bf16.msra.mxu0 %v522
    %1814 = vmatprep.subr.bf16.mxu0 0
    %1815 = vmatpush1.bf16.msra.mxu0 %v525
    %1816 = vmatprep.subr.bf16.mxu0 0
    %1817 = vmatpush1.bf16.msra.mxu0 %v528
    %1818 = vmatprep.subr.bf16.mxu0 0
    %1819 = vmatpush1.bf16.msra.mxu0 0
    %1820 = vmatprep.subr.bf16.mxu0 0
    %1821 = vmatpush1.bf16.msra.mxu0 0
    %1822 = vmatprep.subr.bf16.mxu0 0
    %1823 = vmatpush1.bf16.msra.mxu0 0
    %1824 = vmatprep.subr.bf16.mxu0 0
    %1825 = vmatpush1.bf16.msra.mxu0 0
    %1826 = vmatprep.subr.bf16.mxu0 0
    %1827 = vmatpush1.bf16.msra.mxu0 0
    %1828 = vmatprep.subr.bf16.mxu0 0
    %1829 = vmatpush1.bf16.msra.mxu0 0
    %1830 = vmatprep.subr.bf16.mxu0 0
    %1831 = vmatpush1.bf16.msra.mxu0 0
    %1832 = vmatprep.subr.bf16.mxu0 0
    %1833 = vmatpush1.bf16.msra.mxu0 0
    %1834 = vmatprep.mubr.bf16.mxu0 0
    %1835 = vmatmul.mubr.bf16.gmra.mrb[0].mxu0 %v1760
    %v1836 = vpop.f32.mrb[0].mxu0
    %v1837 = vadd.f32 %v421, %v1836
    %v1838 = vpop.f32.mrb[0].mxu0
    %v1839 = vpop.f32.mrb[0].mxu0
    %v1840 = vpop.f32.mrb[0].mxu0
    %1841 = vdwg.mxu0
    %v1842 = vadd.f32 %v1757, %v1796
    %v1843 = vxor.u32 %v1842, 2147483648
    %v1844 = vmul.f32 %v1843, 1.442695
    %v1845 = vpow.pop %v1844
    %v1846 = vadd.f32 %v1845, 1.0
    %v1847 = vrcp.pop %v1846
    %v1848 = vmul.f32 1.0, %v1847
    %v1849 = vadd.f32 %v1758, %v1798
    %v1850 = vxor.u32 %v1849, 2147483648
    %v1851 = vmul.f32 %v1850, 1.442695
    %v1852 = vpow.pop %v1851
    %v1853 = vadd.f32 %v1852, 1.0
    %v1854 = vrcp.pop %v1853
    %v1855 = vmul.f32 1.0, %v1854
    %v1856 = vmul.f32 %v1848, %v1837
    %v1857 = vadd.f32 %v1759, %v1856
    %v1858 = vtanh.pop %v1857
    %v1859 = vsub.f32 1.0, %v1855
    %v1860 = vmul.f32 %v1859, %v1858
    %v1861 = vmul.f32 %v1855, %v1638
    %v1862 = vadd.f32 %v1860, %v1861
    %s1863 = sadd.s32 %s145, 5
    %v1864 = vstv %s1863
    %vm1865 = vcmp.lt.s32.totalorder %v1864, %v78
    %s1866 = sadd.s32 %s147, 2
    %v1867 = vstv %s1866
    %vm1868 = vcmp.lt.s32.totalorder %v1867, %v78
    %v1869 = vsel %vm1865, 1, 0
    %1870 = vset.pattern.permute.xlu0 0
    %1871 = vperm.xlu0 %1870, %v1869
    %v1872 = vpop.permute.xlu0 %1871
    %vm1873 = vcmp.eq.s32.totalorder %v1872, 1
    %v1874 = vsel %vm1873, %v1753, %v1632
    %v1875 = vsel %vm1868, 1, 0
    %1876 = vset.pattern.permute.xlu0 0
    %1877 = vperm.xlu0 %1876, %v1875
    %v1878 = vpop.permute.xlu0 %1877
    %vm1879 = vcmp.eq.s32.totalorder %v1878, 1
    %v1880 = vsel %vm1879, %v1862, %v1638
    %v1881 = vsel %vm1873, %v1753, 0.0
    %s1882 = scalar_lea.vmem %s7, 40
    %1883 = vst [vmem:[%s1882] sm:$0xff] %v1881
    %v1884 = vsel %vm1879, %v1862, 0.0
    %s1885 = scalar_lea.vmem %s68, 16
    %1886 = vst [vmem:[%s1885] sm:$0xff] %v1884
    %s1887 = scalar_lea.vmem %s0, 72
    %v1888 = vld [vmem:[%s1887] sm:$0xff]
    %v1889 = vld [vmem:[%s1887 + $0x8] sm:$0xf]
    %v1890 = vunpack.c.l.bf16 %v1888
    %v1891 = vunpack.c.h.bf16 %v1888
    %v1892 = vunpack.c.l.bf16 %v1889
    %v1893 = vpack.c.bf16 %v1874, %v1874
    %1894 = vmatprep.subr.bf16.mxu0 %v253
    %1895 = vmatpush1.bf16.msra.mxu0 %v252
    %1896 = vmatprep.subr.bf16.mxu0 %v256
    %1897 = vmatpush1.bf16.msra.mxu0 %v255
    %1898 = vmatprep.subr.bf16.mxu0 %v259
    %1899 = vmatpush1.bf16.msra.mxu0 %v258
    %1900 = vmatprep.subr.bf16.mxu0 %v262
    %1901 = vmatpush1.bf16.msra.mxu0 %v261
    %1902 = vmatprep.subr.bf16.mxu0 %v265
    %1903 = vmatpush1.bf16.msra.mxu0 %v264
    %1904 = vmatprep.subr.bf16.mxu0 %v268
    %1905 = vmatpush1.bf16.msra.mxu0 %v267
    %1906 = vmatprep.subr.bf16.mxu0 %v271
    %1907 = vmatpush1.bf16.msra.mxu0 %v270
    %1908 = vmatprep.subr.bf16.mxu0 %v274
    %1909 = vmatpush1.bf16.msra.mxu0 %v273
    %1910 = vmatprep.subr.bf16.mxu0 0
    %1911 = vmatpush1.bf16.msra.mxu0 0
    %1912 = vmatprep.subr.bf16.mxu0 0
    %1913 = vmatpush1.bf16.msra.mxu0 0
    %1914 = vmatprep.subr.bf16.mxu0 0
    %1915 = vmatpush1.bf16.msra.mxu0 0
    %1916 = vmatprep.subr.bf16.mxu0 0
    %1917 = vmatpush1.bf16.msra.mxu0 0
    %1918 = vmatprep.subr.bf16.mxu0 0
    %1919 = vmatpush1.bf16.msra.mxu0 0
    %1920 = vmatprep.subr.bf16.mxu0 0
    %1921 = vmatpush1.bf16.msra.mxu0 0
    %1922 = vmatprep.subr.bf16.mxu0 0
    %1923 = vmatpush1.bf16.msra.mxu0 0
    %1924 = vmatprep.subr.bf16.mxu0 0
    %1925 = vmatpush1.bf16.msra.mxu0 0
    %1926 = vmatprep.mubr.bf16.mxu0 0
    %1927 = vmatmul.mubr.bf16.gmra.mrb[0].mxu0 %v1893
    %v1928 = vpop.f32.mrb[0].mxu0
    %v1929 = vadd.f32 %v160, %v1928
    %v1930 = vpop.f32.mrb[0].mxu0
    %v1931 = vadd.f32 %v164, %v1930
    %v1932 = vpop.f32.mrb[0].mxu0
    %v1933 = vpop.f32.mrb[0].mxu0
    %1934 = vdwg.mxu0
    %1935 = vmatprep.subr.bf16.mxu0 0
    %1936 = vmatpush1.bf16.msra.mxu0 %v254
    %1937 = vmatprep.subr.bf16.mxu0 0
    %1938 = vmatpush1.bf16.msra.mxu0 %v257
    %1939 = vmatprep.subr.bf16.mxu0 0
    %1940 = vmatpush1.bf16.msra.mxu0 %v260
    %1941 = vmatprep.subr.bf16.mxu0 0
    %1942 = vmatpush1.bf16.msra.mxu0 %v263
    %1943 = vmatprep.subr.bf16.mxu0 0
    %1944 = vmatpush1.bf16.msra.mxu0 %v266
    %1945 = vmatprep.subr.bf16.mxu0 0
    %1946 = vmatpush1.bf16.msra.mxu0 %v269
    %1947 = vmatprep.subr.bf16.mxu0 0
    %1948 = vmatpush1.bf16.msra.mxu0 %v272
    %1949 = vmatprep.subr.bf16.mxu0 0
    %1950 = vmatpush1.bf16.msra.mxu0 %v275
    %1951 = vmatprep.subr.bf16.mxu0 0
    %1952 = vmatpush1.bf16.msra.mxu0 0
    %1953 = vmatprep.subr.bf16.mxu0 0
    %1954 = vmatpush1.bf16.msra.mxu0 0
    %1955 = vmatprep.subr.bf16.mxu0 0
    %1956 = vmatpush1.bf16.msra.mxu0 0
    %1957 = vmatprep.subr.bf16.mxu0 0
    %1958 = vmatpush1.bf16.msra.mxu0 0
    %1959 = vmatprep.subr.bf16.mxu0 0
    %1960 = vmatpush1.bf16.msra.mxu0 0
    %1961 = vmatprep.subr.bf16.mxu0 0
    %1962 = vmatpush1.bf16.msra.mxu0 0
    %1963 = vmatprep.subr.bf16.mxu0 0
    %1964 = vmatpush1.bf16.msra.mxu0 0
    %1965 = vmatprep.subr.bf16.mxu0 0
    %1966 = vmatpush1.bf16.msra.mxu0 0
    %1967 = vmatprep.mubr.bf16.mxu0 0
    %1968 = vmatmul.mubr.bf16.gmra.mrb[0].mxu0 %v1893
    %v1969 = vpop.f32.mrb[0].mxu0
    %v1970 = vadd.f32 %v168, %v1969
    %v1971 = vpop.f32.mrb[0].mxu0
    %v1972 = vpop.f32.mrb[0].mxu0
    %v1973 = vpop.f32.mrb[0].mxu0
    %1974 = vdwg.mxu0
    %v1975 = vadd.f32 %v1890, %v1929
    %v1976 = vxor.u32 %v1975, 2147483648
    %v1977 = vmul.f32 %v1976, 1.442695
    %v1978 = vpow.pop %v1977
    %v1979 = vadd.f32 %v1978, 1.0
    %v1980 = vrcp.pop %v1979
    %v1981 = vmul.f32 1.0, %v1980
    %v1982 = vadd.f32 %v1891, %v1931
    %v1983 = vxor.u32 %v1982, 2147483648
    %v1984 = vmul.f32 %v1983, 1.442695
    %v1985 = vpow.pop %v1984
    %v1986 = vadd.f32 %v1985, 1.0
    %v1987 = vrcp.pop %v1986
    %v1988 = vmul.f32 1.0, %v1987
    %v1989 = vmul.f32 %v1981, %v1970
    %v1990 = vadd.f32 %v1892, %v1989
    %v1991 = vtanh.pop %v1990
    %v1992 = vsub.f32 1.0, %v1988
    %v1993 = vmul.f32 %v1992, %v1991
    %v1994 = vmul.f32 %v1988, %v1874
    %v1995 = vadd.f32 %v1993, %v1994
    %s1996 = scalar_lea.vmem %s60, 12
    %v1997 = vld [vmem:[%s1996] sm:$0xff]
    %v1998 = vld [vmem:[%s1996 + $0x8] sm:$0xf]
    %v1999 = vunpack.c.l.bf16 %v1997
    %v2000 = vunpack.c.h.bf16 %v1997
    %v2001 = vunpack.c.l.bf16 %v1998
    %v2002 = vpack.c.bf16 %v1880, %v1880
    %2003 = vmatprep.subr.bf16.mxu0 %v506
    %2004 = vmatpush1.bf16.msra.mxu0 %v505
    %2005 = vmatprep.subr.bf16.mxu0 %v509
    %2006 = vmatpush1.bf16.msra.mxu0 %v508
    %2007 = vmatprep.subr.bf16.mxu0 %v512
    %2008 = vmatpush1.bf16.msra.mxu0 %v511
    %2009 = vmatprep.subr.bf16.mxu0 %v515
    %2010 = vmatpush1.bf16.msra.mxu0 %v514
    %2011 = vmatprep.subr.bf16.mxu0 %v518
    %2012 = vmatpush1.bf16.msra.mxu0 %v517
    %2013 = vmatprep.subr.bf16.mxu0 %v521
    %2014 = vmatpush1.bf16.msra.mxu0 %v520
    %2015 = vmatprep.subr.bf16.mxu0 %v524
    %2016 = vmatpush1.bf16.msra.mxu0 %v523
    %2017 = vmatprep.subr.bf16.mxu0 %v527
    %2018 = vmatpush1.bf16.msra.mxu0 %v526
    %2019 = vmatprep.subr.bf16.mxu0 0
    %2020 = vmatpush1.bf16.msra.mxu0 0
    %2021 = vmatprep.subr.bf16.mxu0 0
    %2022 = vmatpush1.bf16.msra.mxu0 0
    %2023 = vmatprep.subr.bf16.mxu0 0
    %2024 = vmatpush1.bf16.msra.mxu0 0
    %2025 = vmatprep.subr.bf16.mxu0 0
    %2026 = vmatpush1.bf16.msra.mxu0 0
    %2027 = vmatprep.subr.bf16.mxu0 0
    %2028 = vmatpush1.bf16.msra.mxu0 0
    %2029 = vmatprep.subr.bf16.mxu0 0
    %2030 = vmatpush1.bf16.msra.mxu0 0
    %2031 = vmatprep.subr.bf16.mxu0 0
    %2032 = vmatpush1.bf16.msra.mxu0 0
    %2033 = vmatprep.subr.bf16.mxu0 0
    %2034 = vmatpush1.bf16.msra.mxu0 0
    %2035 = vmatprep.mubr.bf16.mxu0 0
    %2036 = vmatmul.mubr.bf16.gmra.mrb[0].mxu0 %v2002
    %v2037 = vpop.f32.mrb[0].mxu0
    %v2038 = vadd.f32 %v413, %v2037
    %v2039 = vpop.f32.mrb[0].mxu0
    %v2040 = vadd.f32 %v417, %v2039
    %v2041 = vpop.f32.mrb[0].mxu0
    %v2042 = vpop.f32.mrb[0].mxu0
    %2043 = vdwg.mxu0
    %2044 = vmatprep.subr.bf16.mxu0 0
    %2045 = vmatpush1.bf16.msra.mxu0 %v507
    %2046 = vmatprep.subr.bf16.mxu0 0
    %2047 = vmatpush1.bf16.msra.mxu0 %v510
    %2048 = vmatprep.subr.bf16.mxu0 0
    %2049 = vmatpush1.bf16.msra.mxu0 %v513
    %2050 = vmatprep.subr.bf16.mxu0 0
    %2051 = vmatpush1.bf16.msra.mxu0 %v516
    %2052 = vmatprep.subr.bf16.mxu0 0
    %2053 = vmatpush1.bf16.msra.mxu0 %v519
    %2054 = vmatprep.subr.bf16.mxu0 0
    %2055 = vmatpush1.bf16.msra.mxu0 %v522
    %2056 = vmatprep.subr.bf16.mxu0 0
    %2057 = vmatpush1.bf16.msra.mxu0 %v525
    %2058 = vmatprep.subr.bf16.mxu0 0
    %2059 = vmatpush1.bf16.msra.mxu0 %v528
    %2060 = vmatprep.subr.bf16.mxu0 0
    %2061 = vmatpush1.bf16.msra.mxu0 0
    %2062 = vmatprep.subr.bf16.mxu0 0
    %2063 = vmatpush1.bf16.msra.mxu0 0
    %2064 = vmatprep.subr.bf16.mxu0 0
    %2065 = vmatpush1.bf16.msra.mxu0 0
    %2066 = vmatprep.subr.bf16.mxu0 0
    %2067 = vmatpush1.bf16.msra.mxu0 0
    %2068 = vmatprep.subr.bf16.mxu0 0
    %2069 = vmatpush1.bf16.msra.mxu0 0
    %2070 = vmatprep.subr.bf16.mxu0 0
    %2071 = vmatpush1.bf16.msra.mxu0 0
    %2072 = vmatprep.subr.bf16.mxu0 0
    %2073 = vmatpush1.bf16.msra.mxu0 0
    %2074 = vmatprep.subr.bf16.mxu0 0
    %2075 = vmatpush1.bf16.msra.mxu0 0
    %2076 = vmatprep.mubr.bf16.mxu0 0
    %2077 = vmatmul.mubr.bf16.gmra.mrb[0].mxu0 %v2002
    %v2078 = vpop.f32.mrb[0].mxu0
    %v2079 = vadd.f32 %v421, %v2078
    %v2080 = vpop.f32.mrb[0].mxu0
    %v2081 = vpop.f32.mrb[0].mxu0
    %v2082 = vpop.f32.mrb[0].mxu0
    %2083 = vdwg.mxu0
    %v2084 = vadd.f32 %v1999, %v2038
    %v2085 = vxor.u32 %v2084, 2147483648
    %v2086 = vmul.f32 %v2085, 1.442695
    %v2087 = vpow.pop %v2086
    %v2088 = vadd.f32 %v2087, 1.0
    %v2089 = vrcp.pop %v2088
    %v2090 = vmul.f32 1.0, %v2089
    %v2091 = vadd.f32 %v2000, %v2040
    %v2092 = vxor.u32 %v2091, 2147483648
    %v2093 = vmul.f32 %v2092, 1.442695
    %v2094 = vpow.pop %v2093
    %v2095 = vadd.f32 %v2094, 1.0
    %v2096 = vrcp.pop %v2095
    %v2097 = vmul.f32 1.0, %v2096
    %v2098 = vmul.f32 %v2090, %v2079
    %v2099 = vadd.f32 %v2001, %v2098
    %v2100 = vtanh.pop %v2099
    %v2101 = vsub.f32 1.0, %v2097
    %v2102 = vmul.f32 %v2101, %v2100
    %v2103 = vmul.f32 %v2097, %v1880
    %v2104 = vadd.f32 %v2102, %v2103
    %s2105 = sadd.s32 %s145, 6
    %v2106 = vstv %s2105
    %vm2107 = vcmp.lt.s32.totalorder %v2106, %v78
    %s2108 = sadd.s32 %s147, 1
    %v2109 = vstv %s2108
    %vm2110 = vcmp.lt.s32.totalorder %v2109, %v78
    %v2111 = vsel %vm2107, 1, 0
    %2112 = vset.pattern.permute.xlu0 0
    %2113 = vperm.xlu0 %2112, %v2111
    %v2114 = vpop.permute.xlu0 %2113
    %vm2115 = vcmp.eq.s32.totalorder %v2114, 1
    %v2116 = vsel %vm2115, %v1995, %v1874
    %v2117 = vsel %vm2110, 1, 0
    %2118 = vset.pattern.permute.xlu0 0
    %2119 = vperm.xlu0 %2118, %v2117
    %v2120 = vpop.permute.xlu0 %2119
    %vm2121 = vcmp.eq.s32.totalorder %v2120, 1
    %v2122 = vsel %vm2121, %v2104, %v1880
    %v2123 = vsel %vm2115, %v1995, 0.0
    %s2124 = scalar_lea.vmem %s7, 48
    %2125 = vst [vmem:[%s2124] sm:$0xff] %v2123
    %v2126 = vsel %vm2121, %v2104, 0.0
    %s2127 = scalar_lea.vmem %s68, 8
    %2128 = vst [vmem:[%s2127] sm:$0xff] %v2126
    %s2129 = scalar_lea.vmem %s0, 84
    %v2130 = vld [vmem:[%s2129] sm:$0xff]
    %v2131 = vld [vmem:[%s2129 + $0x8] sm:$0xf]
    %v2132 = vunpack.c.l.bf16 %v2130
    %v2133 = vunpack.c.h.bf16 %v2130
    %v2134 = vunpack.c.l.bf16 %v2131
    %v2135 = vpack.c.bf16 %v2116, %v2116
    %2136 = vmatprep.subr.bf16.mxu0 %v253
    %2137 = vmatpush1.bf16.msra.mxu0 %v252
    %2138 = vmatprep.subr.bf16.mxu0 %v256
    %2139 = vmatpush1.bf16.msra.mxu0 %v255
    %2140 = vmatprep.subr.bf16.mxu0 %v259
    %2141 = vmatpush1.bf16.msra.mxu0 %v258
    %2142 = vmatprep.subr.bf16.mxu0 %v262
    %2143 = vmatpush1.bf16.msra.mxu0 %v261
    %2144 = vmatprep.subr.bf16.mxu0 %v265
    %2145 = vmatpush1.bf16.msra.mxu0 %v264
    %2146 = vmatprep.subr.bf16.mxu0 %v268
    %2147 = vmatpush1.bf16.msra.mxu0 %v267
    %2148 = vmatprep.subr.bf16.mxu0 %v271
    %2149 = vmatpush1.bf16.msra.mxu0 %v270
    %2150 = vmatprep.subr.bf16.mxu0 %v274
    %2151 = vmatpush1.bf16.msra.mxu0 %v273
    %2152 = vmatprep.subr.bf16.mxu0 0
    %2153 = vmatpush1.bf16.msra.mxu0 0
    %2154 = vmatprep.subr.bf16.mxu0 0
    %2155 = vmatpush1.bf16.msra.mxu0 0
    %2156 = vmatprep.subr.bf16.mxu0 0
    %2157 = vmatpush1.bf16.msra.mxu0 0
    %2158 = vmatprep.subr.bf16.mxu0 0
    %2159 = vmatpush1.bf16.msra.mxu0 0
    %2160 = vmatprep.subr.bf16.mxu0 0
    %2161 = vmatpush1.bf16.msra.mxu0 0
    %2162 = vmatprep.subr.bf16.mxu0 0
    %2163 = vmatpush1.bf16.msra.mxu0 0
    %2164 = vmatprep.subr.bf16.mxu0 0
    %2165 = vmatpush1.bf16.msra.mxu0 0
    %2166 = vmatprep.subr.bf16.mxu0 0
    %2167 = vmatpush1.bf16.msra.mxu0 0
    %2168 = vmatprep.mubr.bf16.mxu0 0
    %2169 = vmatmul.mubr.bf16.gmra.mrb[0].mxu0 %v2135
    %v2170 = vpop.f32.mrb[0].mxu0
    %v2171 = vadd.f32 %v160, %v2170
    %v2172 = vpop.f32.mrb[0].mxu0
    %v2173 = vadd.f32 %v164, %v2172
    %v2174 = vpop.f32.mrb[0].mxu0
    %v2175 = vpop.f32.mrb[0].mxu0
    %2176 = vdwg.mxu0
    %2177 = vmatprep.subr.bf16.mxu0 0
    %2178 = vmatpush1.bf16.msra.mxu0 %v254
    %2179 = vmatprep.subr.bf16.mxu0 0
    %2180 = vmatpush1.bf16.msra.mxu0 %v257
    %2181 = vmatprep.subr.bf16.mxu0 0
    %2182 = vmatpush1.bf16.msra.mxu0 %v260
    %2183 = vmatprep.subr.bf16.mxu0 0
    %2184 = vmatpush1.bf16.msra.mxu0 %v263
    %2185 = vmatprep.subr.bf16.mxu0 0
    %2186 = vmatpush1.bf16.msra.mxu0 %v266
    %2187 = vmatprep.subr.bf16.mxu0 0
    %2188 = vmatpush1.bf16.msra.mxu0 %v269
    %2189 = vmatprep.subr.bf16.mxu0 0
    %2190 = vmatpush1.bf16.msra.mxu0 %v272
    %2191 = vmatprep.subr.bf16.mxu0 0
    %2192 = vmatpush1.bf16.msra.mxu0 %v275
    %2193 = vmatprep.subr.bf16.mxu0 0
    %2194 = vmatpush1.bf16.msra.mxu0 0
    %2195 = vmatprep.subr.bf16.mxu0 0
    %2196 = vmatpush1.bf16.msra.mxu0 0
    %2197 = vmatprep.subr.bf16.mxu0 0
    %2198 = vmatpush1.bf16.msra.mxu0 0
    %2199 = vmatprep.subr.bf16.mxu0 0
    %2200 = vmatpush1.bf16.msra.mxu0 0
    %2201 = vmatprep.subr.bf16.mxu0 0
    %2202 = vmatpush1.bf16.msra.mxu0 0
    %2203 = vmatprep.subr.bf16.mxu0 0
    %2204 = vmatpush1.bf16.msra.mxu0 0
    %2205 = vmatprep.subr.bf16.mxu0 0
    %2206 = vmatpush1.bf16.msra.mxu0 0
    %2207 = vmatprep.subr.bf16.mxu0 0
    %2208 = vmatpush1.bf16.msra.mxu0 0
    %2209 = vmatprep.mubr.bf16.mxu0 0
    %2210 = vmatmul.mubr.bf16.gmra.mrb[0].mxu0 %v2135
    %v2211 = vpop.f32.mrb[0].mxu0
    %v2212 = vadd.f32 %v168, %v2211
    %v2213 = vpop.f32.mrb[0].mxu0
    %v2214 = vpop.f32.mrb[0].mxu0
    %v2215 = vpop.f32.mrb[0].mxu0
    %2216 = vdwg.mxu0
    %v2217 = vadd.f32 %v2132, %v2171
    %v2218 = vxor.u32 %v2217, 2147483648
    %v2219 = vmul.f32 %v2218, 1.442695
    %v2220 = vpow.pop %v2219
    %v2221 = vadd.f32 %v2220, 1.0
    %v2222 = vrcp.pop %v2221
    %v2223 = vmul.f32 1.0, %v2222
    %v2224 = vadd.f32 %v2133, %v2173
    %v2225 = vxor.u32 %v2224, 2147483648
    %v2226 = vmul.f32 %v2225, 1.442695
    %v2227 = vpow.pop %v2226
    %v2228 = vadd.f32 %v2227, 1.0
    %v2229 = vrcp.pop %v2228
    %v2230 = vmul.f32 1.0, %v2229
    %v2231 = vmul.f32 %v2223, %v2212
    %v2232 = vadd.f32 %v2134, %v2231
    %v2233 = vtanh.pop %v2232
    %v2234 = vsub.f32 1.0, %v2230
    %v2235 = vmul.f32 %v2234, %v2233
    %v2236 = vmul.f32 %v2230, %v2116
    %v2237 = vadd.f32 %v2235, %v2236
    %v2238 = vld [vmem:[%s60] sm:$0xff]
    %v2239 = vld [vmem:[%s60 + $0x8] sm:$0xf]
    %v2240 = vunpack.c.l.bf16 %v2238
    %v2241 = vunpack.c.h.bf16 %v2238
    %v2242 = vunpack.c.l.bf16 %v2239
    %v2243 = vpack.c.bf16 %v2122, %v2122
    %2244 = vmatprep.subr.bf16.mxu0 %v506
    %2245 = vmatpush1.bf16.msra.mxu0 %v505
    %2246 = vmatprep.subr.bf16.mxu0 %v509
    %2247 = vmatpush1.bf16.msra.mxu0 %v508
    %2248 = vmatprep.subr.bf16.mxu0 %v512
    %2249 = vmatpush1.bf16.msra.mxu0 %v511
    %2250 = vmatprep.subr.bf16.mxu0 %v515
    %2251 = vmatpush1.bf16.msra.mxu0 %v514
    %2252 = vmatprep.subr.bf16.mxu0 %v518
    %2253 = vmatpush1.bf16.msra.mxu0 %v517
    %2254 = vmatprep.subr.bf16.mxu0 %v521
    %2255 = vmatpush1.bf16.msra.mxu0 %v520
    %2256 = vmatprep.subr.bf16.mxu0 %v524
    %2257 = vmatpush1.bf16.msra.mxu0 %v523
    %2258 = vmatprep.subr.bf16.mxu0 %v527
    %2259 = vmatpush1.bf16.msra.mxu0 %v526
    %2260 = vmatprep.subr.bf16.mxu0 0
    %2261 = vmatpush1.bf16.msra.mxu0 0
    %2262 = vmatprep.subr.bf16.mxu0 0
    %2263 = vmatpush1.bf16.msra.mxu0 0
    %2264 = vmatprep.subr.bf16.mxu0 0
    %2265 = vmatpush1.bf16.msra.mxu0 0
    %2266 = vmatprep.subr.bf16.mxu0 0
    %2267 = vmatpush1.bf16.msra.mxu0 0
    %2268 = vmatprep.subr.bf16.mxu0 0
    %2269 = vmatpush1.bf16.msra.mxu0 0
    %2270 = vmatprep.subr.bf16.mxu0 0
    %2271 = vmatpush1.bf16.msra.mxu0 0
    %2272 = vmatprep.subr.bf16.mxu0 0
    %2273 = vmatpush1.bf16.msra.mxu0 0
    %2274 = vmatprep.subr.bf16.mxu0 0
    %2275 = vmatpush1.bf16.msra.mxu0 0
    %2276 = vmatprep.mubr.bf16.mxu0 0
    %2277 = vmatmul.mubr.bf16.gmra.mrb[0].mxu0 %v2243
    %v2278 = vpop.f32.mrb[0].mxu0
    %v2279 = vadd.f32 %v413, %v2278
    %v2280 = vpop.f32.mrb[0].mxu0
    %v2281 = vadd.f32 %v417, %v2280
    %v2282 = vpop.f32.mrb[0].mxu0
    %v2283 = vpop.f32.mrb[0].mxu0
    %2284 = vdwg.mxu0
    %2285 = vmatprep.subr.bf16.mxu0 0
    %2286 = vmatpush1.bf16.msra.mxu0 %v507
    %2287 = vmatprep.subr.bf16.mxu0 0
    %2288 = vmatpush1.bf16.msra.mxu0 %v510
    %2289 = vmatprep.subr.bf16.mxu0 0
    %2290 = vmatpush1.bf16.msra.mxu0 %v513
    %2291 = vmatprep.subr.bf16.mxu0 0
    %2292 = vmatpush1.bf16.msra.mxu0 %v516
    %2293 = vmatprep.subr.bf16.mxu0 0
    %2294 = vmatpush1.bf16.msra.mxu0 %v519
    %2295 = vmatprep.subr.bf16.mxu0 0
    %2296 = vmatpush1.bf16.msra.mxu0 %v522
    %2297 = vmatprep.subr.bf16.mxu0 0
    %2298 = vmatpush1.bf16.msra.mxu0 %v525
    %2299 = vmatprep.subr.bf16.mxu0 0
    %2300 = vmatpush1.bf16.msra.mxu0 %v528
    %2301 = vmatprep.subr.bf16.mxu0 0
    %2302 = vmatpush1.bf16.msra.mxu0 0
    %2303 = vmatprep.subr.bf16.mxu0 0
    %2304 = vmatpush1.bf16.msra.mxu0 0
    %2305 = vmatprep.subr.bf16.mxu0 0
    %2306 = vmatpush1.bf16.msra.mxu0 0
    %2307 = vmatprep.subr.bf16.mxu0 0
    %2308 = vmatpush1.bf16.msra.mxu0 0
    %2309 = vmatprep.subr.bf16.mxu0 0
    %2310 = vmatpush1.bf16.msra.mxu0 0
    %2311 = vmatprep.subr.bf16.mxu0 0
    %2312 = vmatpush1.bf16.msra.mxu0 0
    %2313 = vmatprep.subr.bf16.mxu0 0
    %2314 = vmatpush1.bf16.msra.mxu0 0
    %2315 = vmatprep.subr.bf16.mxu0 0
    %2316 = vmatpush1.bf16.msra.mxu0 0
    %2317 = vmatprep.mubr.bf16.mxu0 0
    %2318 = vmatmul.mubr.bf16.gmra.mrb[0].mxu0 %v2243
    %v2319 = vpop.f32.mrb[0].mxu0
    %v2320 = vadd.f32 %v421, %v2319
    %v2321 = vpop.f32.mrb[0].mxu0
    %v2322 = vpop.f32.mrb[0].mxu0
    %v2323 = vpop.f32.mrb[0].mxu0
    %2324 = vdwg.mxu0
    %v2325 = vadd.f32 %v2240, %v2279
    %v2326 = vxor.u32 %v2325, 2147483648
    %v2327 = vmul.f32 %v2326, 1.442695
    %v2328 = vpow.pop %v2327
    %v2329 = vadd.f32 %v2328, 1.0
    %v2330 = vrcp.pop %v2329
    %v2331 = vmul.f32 1.0, %v2330
    %v2332 = vadd.f32 %v2241, %v2281
    %v2333 = vxor.u32 %v2332, 2147483648
    %v2334 = vmul.f32 %v2333, 1.442695
    %v2335 = vpow.pop %v2334
    %v2336 = vadd.f32 %v2335, 1.0
    %v2337 = vrcp.pop %v2336
    %v2338 = vmul.f32 1.0, %v2337
    %v2339 = vmul.f32 %v2331, %v2320
    %v2340 = vadd.f32 %v2242, %v2339
    %v2341 = vtanh.pop %v2340
    %v2342 = vsub.f32 1.0, %v2338
    %v2343 = vmul.f32 %v2342, %v2341
    %v2344 = vmul.f32 %v2338, %v2122
    %v2345 = vadd.f32 %v2343, %v2344
    %s2346 = sadd.s32 %s145, 7
    %v2347 = vstv %s2346
    %vm2348 = vcmp.lt.s32.totalorder %v2347, %v78
    %v2349 = vstv %s147
    %vm2350 = vcmp.lt.s32.totalorder %v2349, %v78
    %v2351 = vsel %vm2348, 1, 0
    %2352 = vset.pattern.permute.xlu0 0
    %2353 = vperm.xlu0 %2352, %v2351
    %v2354 = vpop.permute.xlu0 %2353
    %vm2355 = vcmp.eq.s32.totalorder %v2354, 1
    %v2356 = vsel %vm2355, %v2237, %v2116
    %v2357 = vsel %vm2350, 1, 0
    %2358 = vset.pattern.permute.xlu0 0
    %2359 = vperm.xlu0 %2358, %v2357
    %v2360 = vpop.permute.xlu0 %2359
    %vm2361 = vcmp.eq.s32.totalorder %v2360, 1
    %v2362 = vsel %vm2361, %v2345, %v2122
    %v2363 = vsel %vm2355, %v2237, 0.0
    %s2364 = scalar_lea.vmem %s7, 56
    %2365 = vst [vmem:[%s2364] sm:$0xff] %v2363
    %v2366 = vsel %vm2361, %v2345, 0.0
    %2367 = vst [vmem:[%s68] sm:$0xff] %v2366
    %2368 = vst [vmem:[#allocation2] sm:$0xff] %v2356
    %2369 = vst [vmem:[#allocation3] sm:$0xff] %v2362
    // Predicated region
    $region34: #{hrnn_encoder_forward.3} parent=1 // pred_check
      %p2370 = pneg %p72
    $region35: #{hrnn_encoder_forward.3} parent=1 // pred_check_branch
      %2372 = sbr.rel (%p2370) target = $region37
    $region36: #{hrnn_encoder_forward.3} parent=1 // pred_region
      %2373 = vst [vmem:[#allocation4] sm:$0xff] %v2356
      %2374 = vst [vmem:[#allocation6] sm:$0xff] %v2362
    $region37: #{hrnn_encoder_forward.3} parent=1 // pred_fallthru
      _
    %s2375 = ssub.s32 0, 0
    %s2376 = smul.u32 8, %s2375
    %p2377 = scmp.lt.s32.totalorder %s2376, 7
    %s2378 = scalar_select %p2377, %s2376, 7
    %s2379 = smul.addr %s2378, 8
    %s2380 = scalar_lea.vmem %s8, %s2379
    // Predicated region
    $region38: #{hrnn_encoder_forward.3} parent=1 // pred_check
      _
    $region39: #{hrnn_encoder_forward.3} parent=1 // pred_check_branch
      %2382 = sbr.rel (0) target = $region41
    $region40: #{hrnn_encoder_forward.3} parent=1 // pred_region
      _
    $region41: #{hrnn_encoder_forward.3} parent=1 // pred_fallthru
      _
    // Predicated region
    $region42: #{hrnn_encoder_forward.3} parent=1 // pred_check
      _
    $region43: #{hrnn_encoder_forward.3} parent=1 // pred_check_branch
      %2384 = sbr.rel (0) target = $region45
    $region44: #{hrnn_encoder_forward.3} parent=1 // pred_region
      %s2385 = ssub.s32 0, 0
      %s2386 = smul.u32 8, %s2385
    $region45: #{hrnn_encoder_forward.3} parent=1 // pred_fallthru
      _
    // Predicated region
    $region46: #{hrnn_encoder_forward.3} parent=1 // pred_check
      _
    $region47: #{hrnn_encoder_forward.3} parent=1 // pred_check_branch
      %2388 = sbr.rel (0) target = $region49
    $region48: #{hrnn_encoder_forward.3} parent=1 // pred_region
      %s2390 = ssub.s32 128, 128
      %2391 = vsyncadd [#allocation5], %s2390
      %s2393 = sshll.u32 [#allocation4], 4
      %s2394 = int_to_ptr.vmem [resolvable:$true] %s2393
      %2396 = dma.vmem_to_hbm [thread:$0]  %s2394, 128, %s9, [#allocation5]
    $region49: #{hrnn_encoder_forward.3} parent=1 // pred_fallthru
      _
    // Predicated region
    $region50: #{hrnn_encoder_forward.3} parent=1 // pred_check
      _
    $region51: #{hrnn_encoder_forward.3} parent=1 // pred_check_branch
      %2398 = sbr.rel (0) target = $region53
    $region52: #{hrnn_encoder_forward.3} parent=1 // pred_region
      %s2400 = ssub.s32 128, 128
      %2401 = vsyncadd [#allocation7], %s2400
      %s2403 = sshll.u32 [#allocation6], 4
      %s2404 = int_to_ptr.vmem [resolvable:$true] %s2403
      %2406 = dma.vmem_to_hbm [thread:$0]  %s2404, 128, %s10, [#allocation7]
    $region53: #{hrnn_encoder_forward.3} parent=1 // pred_fallthru
      _
    // Predicated region
    $region54: #{hrnn_encoder_forward.3} parent=1 // pred_check
      _
    $region55: #{hrnn_encoder_forward.3} parent=1 // pred_check_branch
      %2408 = sbr.rel (0) target = $region57
    $region56: #{hrnn_encoder_forward.3} parent=1 // pred_region
      _
    $region57: #{hrnn_encoder_forward.3} parent=1 // pred_fallthru
      _
    // Predicated region
    $region58: #{hrnn_encoder_forward.3} parent=1 // pred_check
      _
    $region59: #{hrnn_encoder_forward.3} parent=1 // pred_check_branch
      %2410 = sbr.rel (0) target = $region61
    $region60: #{hrnn_encoder_forward.3} parent=1 // pred_region
      %s2411 = ssub.s32 0, 0
      %s2412 = smul.u32 8, %s2411
      %p2413 = scmp.lt.s32.totalorder %s2412, 7
      %s2414 = scalar_select %p2413, %s2412, 7
      %s2415 = smul.addr %s2414, 8
      %s2416 = scalar_lea.vmem %s8, %s2415
    $region61: #{hrnn_encoder_forward.3} parent=1 // pred_fallthru
      _
    // Predicated region
    $region62: #{hrnn_encoder_forward.3} parent=1 // pred_check
      _
    $region63: #{hrnn_encoder_forward.3} parent=1 // pred_check_branch
      %2418 = sbr.rel (0) target = $region65
    $region64: #{hrnn_encoder_forward.3} parent=1 // pred_region
      %2419 = dma.done [#allocation5], 128
    $region65: #{hrnn_encoder_forward.3} parent=1 // pred_fallthru
      _
    // Predicated region
    $region66: #{hrnn_encoder_forward.3} parent=1 // pred_check
      _
    $region67: #{hrnn_encoder_forward.3} parent=1 // pred_check_branch
      %2421 = sbr.rel (0) target = $region69
    $region68: #{hrnn_encoder_forward.3} parent=1 // pred_region
      %2422 = dma.done [#allocation7], 128
    $region69: #{hrnn_encoder_forward.3} parent=1 // pred_fallthru
      _
    %2423 = vsyncpa [#allocation5], 1
    %2424 = vsyncpa [#allocation7], 1

</llo_original>
